<compile_context>
chip_gen: v7x
topology: tpu7x:2x2x1
jax: 0.10.0
libtpu: 0.0.40
codegen_flags: <defaults>
</compile_context>

<pallas_src>
import functools

import jax
import jax.numpy as jnp
from jax.experimental import pallas as pl
from jax.experimental.pallas import tpu as pltpu


# Scaled-down config (structure identical to the reference module).
CHANS = (8, 16, 32, 64, 128)        # O_1..O_5   (ref: 64,128,256,512,1024)
KERNELS = (15, 8, 6, 4, 2)          # K_1..K_5
POOLS = (6, 3, 2, 2, 1)             # KP_1..KP_5
OUTER_LEAKY = (False, False, False, True, True)   # F.relu vs F.leaky_relu
EPS = 1e-5


def _relu(v):
    return jnp.maximum(v, 0.0)


def _leaky(v):
    return jnp.where(v > 0, v, 0.01 * v)   # F.leaky_relu default slope


def _fused_cnn_kernel(*args, B, l0, chans, kernels, pools, outer_leaky, eps):
    """Whole CNN_1d forward in one kernel, transposed (features, B*L) layout.

    args = [x (1, B*l0),
            (conv_w (Co,K*Ci), conv_b (Co,1), bn_g (Co,1), bn_b (Co,1)) * 5,
            fc1_w (L,FN1,C), fc1_b, fcbn1_g, fcbn1_b,
            fc2_w (FN2,FN1), fc2_b, fcbn2_g, fcbn2_b,
            fc3_w (NC,FN2),  fc3_b,
            out_ref (NC, B)]
    """
    nb = len(chans)
    x_ref = args[0]
    conv_args = args[1:1 + 4 * nb]
    fc_off = 1 + 4 * nb
    (w1_ref, b1_ref, g1_ref, be1_ref,
     w2_ref, b2_ref, g2_ref, be2_ref,
     w3_ref, b3_ref) = args[fc_off:fc_off + 10]
    out_ref = args[fc_off + 10]

    f32 = jnp.float32

    # ---------------- conv blocks ----------------
    prev = x_ref[...]                     # (c_in, B*l_prev), batch-stacked lanes
    l_prev, c_in = l0, 1
    for blk in range(nb):
        w_ref, b_ref, g_ref, be_ref = conv_args[4 * blk:4 * blk + 4]
        c_out, K, kp = chans[blk], kernels[blk], pools[blk]
        l_conv = l_prev - K + 1
        l_pool = l_conv // kp

        # In-register im2col: (K*c_in, B*l_conv).  Row k*c_in+c holds channel
        # c of the input window shifted by tap k; columns are b-major.
        cols = []
        for b in range(B):
            taps = [prev[:, b * l_prev + k: b * l_prev + k + l_conv]
                    for k in range(K)]
            cols.append(jnp.concatenate(taps, axis=0))       # (K*c_in, l_conv)
        col = jnp.concatenate(cols, axis=1)                   # (K*c_in, B*l_conv)

        # Conv1d as ONE matmul + bias + nn.ReLU (inside the Sequential).
        y = jnp.dot(w_ref[...], col, preferred_element_type=f32)  # (c_out, B*l_conv)
        y = _relu(y + b_ref[...])

        if kp > 1:
            # AvgPool1d(kp) (incl. floor truncation) as a small matmul against
            # an averaging matrix generated in-kernel (no HBM pool matrices).
            r = jax.lax.broadcasted_iota(jnp.int32, (l_conv, l_pool), 0)
            c = jax.lax.broadcasted_iota(jnp.int32, (l_conv, l_pool), 1)
            pool_m = jnp.where((r >= c * kp) & (r < (c + 1) * kp),
                               1.0 / kp, 0.0).astype(f32)     # (l_conv, l_pool)
            pooled = [jnp.dot(y[:, b * l_conv:(b + 1) * l_conv], pool_m,
                              preferred_element_type=f32)
                      for b in range(B)]
            y = jnp.concatenate(pooled, axis=1)               # (c_out, B*l_pool)

        # Outer F.relu / F.leaky_relu on the block output.
        y = _leaky(y) if outer_leaky[blk] else _relu(y)

        # Training-mode BatchNorm1d: per-channel stats over B*l_pool columns,
        # two-pass (numerically safe) variance, then F.relu.
        n = float(B * l_pool)
        mean = jnp.sum(y, axis=1, keepdims=True) / n          # (c_out, 1)
        var = jnp.sum((y - mean) ** 2, axis=1, keepdims=True) / n
        y = _relu((y - mean) * jax.lax.rsqrt(var + eps) * g_ref[...] + be_ref[...])

        prev, l_prev, c_in = y, l_pool, c_out

    # ---------------- FC tail (features on sublanes, batch on lanes) --------
    # fc1 absorbs the channel-major x.view(len(x), -1) flatten of the NCL
    # tensor:  fc1_w[l, n, c] == torch fc1.weight[n, c*L_last + l].
    l_last = l_prev
    fn1 = w1_ref.shape[1]
    h = jnp.zeros((fn1, B), f32)
    for l in range(l_last):
        # Gather the B columns of position l into a (c_in, B) matrix.
        a_l = jnp.concatenate(
            [prev[:, b * l_last + l: b * l_last + l + 1] for b in range(B)],
            axis=1)
        h = h + jnp.dot(w1_ref[l], a_l, preferred_element_type=f32)  # (FN1, B)
    h = _relu(h + b1_ref[...])                                       # F.relu(fc1)

    def bn_relu(v, g, bta):
        # BatchNorm1d over the batch (lanes), two-pass variance, then F.relu.
        m = jnp.sum(v, axis=1, keepdims=True) / float(B)
        va = jnp.sum((v - m) ** 2, axis=1, keepdims=True) / float(B)
        return _relu((v - m) * jax.lax.rsqrt(va + eps) * g + bta)

    h = bn_relu(h, g1_ref[...], be1_ref[...])                        # fc1_bn + relu
    h = _relu(jnp.dot(w2_ref[...], h, preferred_element_type=f32)
              + b2_ref[...])                                         # F.relu(fc2)
    h = bn_relu(h, g2_ref[...], be2_ref[...])                        # fc2_bn + relu
    logits = jnp.dot(w3_ref[...], h, preferred_element_type=f32) + b3_ref[...]
    out_ref[...] = logits.astype(out_ref.dtype)                      # (num_class, B)


def forward(params, x):
    """x: (B, 1, L0) float32 (PyTorch NCL).  Returns (B, num_class) logits."""
    x = x.astype(jnp.float32)
    B, _, L0 = x.shape
    # (B, 1, L0) -> (1, B*L0): a pure row-major reshape, columns are b-major.
    xr = x.reshape(1, B * L0)

    nb = len(CHANS)
    inputs = [xr]
    for i in range(1, nb + 1):
        inputs += [params[f"conv{i}_w"], params[f"conv{i}_b"],
                   params[f"bn{i}_g"], params[f"bn{i}_b"]]
    inputs += [params["fc1_w"], params["fc1_b"],
               params["fcbn1_g"], params["fcbn1_b"],
               params["fc2_w"], params["fc2_b"],
               params["fcbn2_g"], params["fcbn2_b"],
               params["fc3_w"], params["fc3_b"]]

    num_class = params["fc3_w"].shape[0]

    def _full_spec(a):
        nd = a.ndim
        return pl.BlockSpec(a.shape, lambda i, _nd=nd: (0,) * _nd)

    kernel = functools.partial(
        _fused_cnn_kernel,
        B=B, l0=L0, chans=CHANS, kernels=KERNELS, pools=POOLS,
        outer_leaky=OUTER_LEAKY, eps=EPS)

    out_t = pl.pallas_call(
        kernel,
        out_shape=jax.ShapeDtypeStruct((num_class, B), jnp.float32),
        grid=(1,),
        in_specs=[_full_spec(a) for a in inputs],
        out_specs=pl.BlockSpec((num_class, B), lambda i: (0, 0)),
        compiler_params=pltpu.CompilerParams(
            dimension_semantics=("arbitrary",),
            # Whole net (weights + activations) is well under 1 MiB; keep the
            # scoped-VMEM reservation modest (v7x only has 64 MiB physical).
            vmem_limit_bytes=8 * 1024 * 1024,
        ),
    )(*inputs)
    return out_t.T     # (num_class, B) -> (B, num_class)


# ----------------------------------------------------------------------------
# Parameters (deterministic, PyTorch-default-like uniform init)
# ----------------------------------------------------------------------------
def _uniform(key, shape, fan_in):
    bound = 1.0 / (fan_in ** 0.5)
    return jax.random.uniform(key, shape, jnp.float32, -bound, bound)


def init_params(key, L0, chans, kernels, pools, fn1, fn2, num_class):
    """Layouts relative to torch:
       conv{i}_w[co, k*Ci + ci] == conv_i.weight[co, ci, k]
       conv{i}_b / bn params    == (C_out, 1) column vectors
       fc1_w[l, n, c]           == fc1.weight[n, c*L_last + l] (absorbs flatten)
       fc2_w / fc3_w            == torch fc.weight as-is (out, in)
       fc biases / fc BN params == (out, 1) column vectors."""
    params = {}
    c_in, L = 1, L0
    for i, (c_out, K, kp) in enumerate(zip(chans, kernels, pools), start=1):
        l_conv = L - K + 1
        l_pool = l_conv // kp
        key, kw, kb = jax.random.split(key, 3)
        fan_in = c_in * K
        params[f"conv{i}_w"] = _uniform(kw, (c_out, K * c_in), fan_in)
        params[f"conv{i}_b"] = _uniform(kb, (c_out, 1), fan_in)
        params[f"bn{i}_g"] = jnp.ones((c_out, 1), jnp.float32)
        params[f"bn{i}_b"] = jnp.zeros((c_out, 1), jnp.float32)
        c_in, L = c_out, l_pool
    flat = c_in * L
    key, kw, kb = jax.random.split(key, 3)
    params["fc1_w"] = _uniform(kw, (L, fn1, c_in), flat)
    params["fc1_b"] = _uniform(kb, (fn1, 1), flat)
    params["fcbn1_g"] = jnp.ones((fn1, 1), jnp.float32)
    params["fcbn1_b"] = jnp.zeros((fn1, 1), jnp.float32)
    key, kw, kb = jax.random.split(key, 3)
    params["fc2_w"] = _uniform(kw, (fn2, fn1), fn1)
    params["fc2_b"] = _uniform(kb, (fn2, 1), fn1)
    params["fcbn2_g"] = jnp.ones((fn2, 1), jnp.float32)
    params["fcbn2_b"] = jnp.zeros((fn2, 1), jnp.float32)
    key, kw, kb = jax.random.split(key, 3)
    params["fc3_w"] = _uniform(kw, (num_class, fn2), fn2)
    params["fc3_b"] = _uniform(kb, (num_class, 1), fn2)
    return params


# ----------------------------------------------------------------------------
# Pure-JAX reference (same semantics, XLA execution) for validation
# ----------------------------------------------------------------------------
def reference_forward(params, x):
    hp = jax.lax.Precision.HIGHEST
    x = x.astype(jnp.float32)
    B, _, L0 = x.shape
    h = x.reshape(B, L0, 1)                                   # (B, L, C)
    for i in range(1, len(CHANS) + 1):
        c_out, K, kp = CHANS[i - 1], KERNELS[i - 1], POOLS[i - 1]
        c_in = h.shape[-1]
        w = params[f"conv{i}_w"].reshape(c_out, K, c_in)      # [co, k, ci]
        l_conv = h.shape[1] - K + 1
        y = jnp.zeros((B, l_conv, c_out), jnp.float32)
        for k in range(K):
            y = y + jnp.einsum("blc,oc->blo", h[:, k:k + l_conv, :],
                               w[:, k, :], precision=hp)
        y = jnp.maximum(y + params[f"conv{i}_b"][:, 0], 0.0)
        l_pool = l_conv // kp
        y = y[:, :l_pool * kp, :].reshape(B, l_pool, kp, c_out).mean(axis=2)
        if OUTER_LEAKY[i - 1]:
            y = jnp.where(y > 0, y, 0.01 * y)
        else:
            y = jnp.maximum(y, 0.0)
        mean = jnp.mean(y, axis=(0, 1), keepdims=True)
        var = jnp.mean((y - mean) ** 2, axis=(0, 1), keepdims=True)
        y = (y - mean) * jax.lax.rsqrt(var + EPS) * params[f"bn{i}_g"][:, 0] \
            + params[f"bn{i}_b"][:, 0]
        h = jnp.maximum(y, 0.0)

    def bn_relu(r, g, b):
        m = jnp.mean(r, axis=0, keepdims=True)
        va = jnp.mean((r - m) ** 2, axis=0, keepdims=True)
        return jnp.maximum((r - m) * jax.lax.rsqrt(va + EPS) * g[:, 0] + b[:, 0], 0.0)

    r = jnp.einsum("blc,lnc->bn", h, params["fc1_w"], precision=hp) \
        + params["fc1_b"][:, 0]
    r = bn_relu(jnp.maximum(r, 0.0), params["fcbn1_g"], params["fcbn1_b"])
    r = jnp.maximum(jnp.dot(r, params["fc2_w"].T, precision=hp)
                    + params["fc2_b"][:, 0], 0.0)
    r = bn_relu(r, params["fcbn2_g"], params["fcbn2_b"])
    return jnp.dot(r, params["fc3_w"].T, precision=hp) + params["fc3_b"][:, 0]


# ----------------------------------------------------------------------------
if __name__ == "__main__":
    B, L0 = 2, 512
    NUM_CLASS = 5
    FN1, FN2 = 128, 64

    key = jax.random.PRNGKey(0)
    key, kx = jax.random.split(key)
    params = init_params(key, L0, CHANS, KERNELS, POOLS, FN1, FN2, NUM_CLASS)
    x = jax.random.normal(kx, (B, 1, L0), jnp.float32)

    out = jax.jit(forward)(params, x)
    out = jax.block_until_ready(out)
    assert out.shape == (B, NUM_CLASS), out.shape
    assert bool(jnp.all(jnp.isfinite(out)))

    # Validate against the pure-JAX reference (tolerance covers f32 MXU
    # pass-precision differences vs. Precision.HIGHEST; tightened vs. 5e-2).
    ref = reference_forward(params, x)
    max_err = float(jnp.max(jnp.abs(out - ref)))
    assert jnp.allclose(out, ref, rtol=2e-2, atol=2e-2), max_err

    print("KERNEL_OK")
</pallas_src>

<mosaic_0001>
module attributes {stable_mosaic.version = 11 : i64} {
  func.func @_fused_cnn_kernel(%arg0: i32, %arg1: memref<1x1024xf32, #tpu.memory_space<vmem>>, %arg2: memref<8x15xf32, #tpu.memory_space<vmem>>, %arg3: memref<8x1xf32, #tpu.memory_space<vmem>>, %arg4: memref<8x1xf32, #tpu.memory_space<vmem>>, %arg5: memref<8x1xf32, #tpu.memory_space<vmem>>, %arg6: memref<16x64xf32, #tpu.memory_space<vmem>>, %arg7: memref<16x1xf32, #tpu.memory_space<vmem>>, %arg8: memref<16x1xf32, #tpu.memory_space<vmem>>, %arg9: memref<16x1xf32, #tpu.memory_space<vmem>>, %arg10: memref<32x96xf32, #tpu.memory_space<vmem>>, %arg11: memref<32x1xf32, #tpu.memory_space<vmem>>, %arg12: memref<32x1xf32, #tpu.memory_space<vmem>>, %arg13: memref<32x1xf32, #tpu.memory_space<vmem>>, %arg14: memref<64x128xf32, #tpu.memory_space<vmem>>, %arg15: memref<64x1xf32, #tpu.memory_space<vmem>>, %arg16: memref<64x1xf32, #tpu.memory_space<vmem>>, %arg17: memref<64x1xf32, #tpu.memory_space<vmem>>, %arg18: memref<128x128xf32, #tpu.memory_space<vmem>>, %arg19: memref<128x1xf32, #tpu.memory_space<vmem>>, %arg20: memref<128x1xf32, #tpu.memory_space<vmem>>, %arg21: memref<128x1xf32, #tpu.memory_space<vmem>>, %arg22: memref<2x128x128xf32, #tpu.memory_space<vmem>>, %arg23: memref<128x1xf32, #tpu.memory_space<vmem>>, %arg24: memref<128x1xf32, #tpu.memory_space<vmem>>, %arg25: memref<128x1xf32, #tpu.memory_space<vmem>>, %arg26: memref<64x128xf32, #tpu.memory_space<vmem>>, %arg27: memref<64x1xf32, #tpu.memory_space<vmem>>, %arg28: memref<64x1xf32, #tpu.memory_space<vmem>>, %arg29: memref<64x1xf32, #tpu.memory_space<vmem>>, %arg30: memref<5x64xf32, #tpu.memory_space<vmem>>, %arg31: memref<5x1xf32, #tpu.memory_space<vmem>>, %arg32: memref<5x2xf32, #tpu.memory_space<vmem>>) attributes {dimension_semantics = [#tpu.dimension_semantics<arbitrary>], iteration_bounds = array<i64: 1>, scalar_prefetch = 0 : i64, scratch_operands = 0 : i64, tpu.core_type = #tpu.core_type<tc>, window_params = [{pipeline_mode = #tpu.pipeline_mode<synchronous>, transform_indices = @transform_0, window_bounds = array<i64: 1, 1024>}, {pipeline_mode = #tpu.pipeline_mode<synchronous>, transform_indices = @transform_1, window_bounds = array<i64: 8, 15>}, {pipeline_mode = #tpu.pipeline_mode<synchronous>, transform_indices = @transform_2, window_bounds = array<i64: 8, 1>}, {pipeline_mode = #tpu.pipeline_mode<synchronous>, transform_indices = @transform_3, window_bounds = array<i64: 8, 1>}, {pipeline_mode = #tpu.pipeline_mode<synchronous>, transform_indices = @transform_4, window_bounds = array<i64: 8, 1>}, {pipeline_mode = #tpu.pipeline_mode<synchronous>, transform_indices = @transform_5, window_bounds = array<i64: 16, 64>}, {pipeline_mode = #tpu.pipeline_mode<synchronous>, transform_indices = @transform_6, window_bounds = array<i64: 16, 1>}, {pipeline_mode = #tpu.pipeline_mode<synchronous>, transform_indices = @transform_7, window_bounds = array<i64: 16, 1>}, {pipeline_mode = #tpu.pipeline_mode<synchronous>, transform_indices = @transform_8, window_bounds = array<i64: 16, 1>}, {pipeline_mode = #tpu.pipeline_mode<synchronous>, transform_indices = @transform_9, window_bounds = array<i64: 32, 96>}, {pipeline_mode = #tpu.pipeline_mode<synchronous>, transform_indices = @transform_10, window_bounds = array<i64: 32, 1>}, {pipeline_mode = #tpu.pipeline_mode<synchronous>, transform_indices = @transform_11, window_bounds = array<i64: 32, 1>}, {pipeline_mode = #tpu.pipeline_mode<synchronous>, transform_indices = @transform_12, window_bounds = array<i64: 32, 1>}, {pipeline_mode = #tpu.pipeline_mode<synchronous>, transform_indices = @transform_13, window_bounds = array<i64: 64, 128>}, {pipeline_mode = #tpu.pipeline_mode<synchronous>, transform_indices = @transform_14, window_bounds = array<i64: 64, 1>}, {pipeline_mode = #tpu.pipeline_mode<synchronous>, transform_indices = @transform_15, window_bounds = array<i64: 64, 1>}, {pipeline_mode = #tpu.pipeline_mode<synchronous>, transform_indices = @transform_16, window_bounds = array<i64: 64, 1>}, {pipeline_mode = #tpu.pipeline_mode<synchronous>, transform_indices = @transform_17, window_bounds = array<i64: 128, 128>}, {pipeline_mode = #tpu.pipeline_mode<synchronous>, transform_indices = @transform_18, window_bounds = array<i64: 128, 1>}, {pipeline_mode = #tpu.pipeline_mode<synchronous>, transform_indices = @transform_19, window_bounds = array<i64: 128, 1>}, {pipeline_mode = #tpu.pipeline_mode<synchronous>, transform_indices = @transform_20, window_bounds = array<i64: 128, 1>}, {pipeline_mode = #tpu.pipeline_mode<synchronous>, transform_indices = @transform_21, window_bounds = array<i64: 2, 128, 128>}, {pipeline_mode = #tpu.pipeline_mode<synchronous>, transform_indices = @transform_22, window_bounds = array<i64: 128, 1>}, {pipeline_mode = #tpu.pipeline_mode<synchronous>, transform_indices = @transform_23, window_bounds = array<i64: 128, 1>}, {pipeline_mode = #tpu.pipeline_mode<synchronous>, transform_indices = @transform_24, window_bounds = array<i64: 128, 1>}, {pipeline_mode = #tpu.pipeline_mode<synchronous>, transform_indices = @transform_25, window_bounds = array<i64: 64, 128>}, {pipeline_mode = #tpu.pipeline_mode<synchronous>, transform_indices = @transform_26, window_bounds = array<i64: 64, 1>}, {pipeline_mode = #tpu.pipeline_mode<synchronous>, transform_indices = @transform_27, window_bounds = array<i64: 64, 1>}, {pipeline_mode = #tpu.pipeline_mode<synchronous>, transform_indices = @transform_28, window_bounds = array<i64: 64, 1>}, {pipeline_mode = #tpu.pipeline_mode<synchronous>, transform_indices = @transform_29, window_bounds = array<i64: 5, 64>}, {pipeline_mode = #tpu.pipeline_mode<synchronous>, transform_indices = @transform_30, window_bounds = array<i64: 5, 1>}, {pipeline_mode = #tpu.pipeline_mode<synchronous>, transform_indices = @transform_31, window_bounds = array<i64: 5, 2>}]} {
    %c0 = arith.constant 0 : index
    %c0_0 = arith.constant 0 : index
    %0 = vector.load %arg1[%c0, %c0_0] : memref<1x1024xf32, #tpu.memory_space<vmem>>, vector<1x1024xf32>
    %1 = vector.extract_strided_slice %0 {offsets = [0, 0], sizes = [1, 498], strides = [1, 1]} : vector<1x1024xf32> to vector<1x498xf32>
    %2 = vector.extract_strided_slice %0 {offsets = [0, 1], sizes = [1, 498], strides = [1, 1]} : vector<1x1024xf32> to vector<1x498xf32>
    %3 = vector.extract_strided_slice %0 {offsets = [0, 2], sizes = [1, 498], strides = [1, 1]} : vector<1x1024xf32> to vector<1x498xf32>
    %4 = vector.extract_strided_slice %0 {offsets = [0, 3], sizes = [1, 498], strides = [1, 1]} : vector<1x1024xf32> to vector<1x498xf32>
    %5 = vector.extract_strided_slice %0 {offsets = [0, 4], sizes = [1, 498], strides = [1, 1]} : vector<1x1024xf32> to vector<1x498xf32>
    %6 = vector.extract_strided_slice %0 {offsets = [0, 5], sizes = [1, 498], strides = [1, 1]} : vector<1x1024xf32> to vector<1x498xf32>
    %7 = vector.extract_strided_slice %0 {offsets = [0, 6], sizes = [1, 498], strides = [1, 1]} : vector<1x1024xf32> to vector<1x498xf32>
    %8 = vector.extract_strided_slice %0 {offsets = [0, 7], sizes = [1, 498], strides = [1, 1]} : vector<1x1024xf32> to vector<1x498xf32>
    %9 = vector.extract_strided_slice %0 {offsets = [0, 8], sizes = [1, 498], strides = [1, 1]} : vector<1x1024xf32> to vector<1x498xf32>
    %10 = vector.extract_strided_slice %0 {offsets = [0, 9], sizes = [1, 498], strides = [1, 1]} : vector<1x1024xf32> to vector<1x498xf32>
    %11 = vector.extract_strided_slice %0 {offsets = [0, 10], sizes = [1, 498], strides = [1, 1]} : vector<1x1024xf32> to vector<1x498xf32>
    %12 = vector.extract_strided_slice %0 {offsets = [0, 11], sizes = [1, 498], strides = [1, 1]} : vector<1x1024xf32> to vector<1x498xf32>
    %13 = vector.extract_strided_slice %0 {offsets = [0, 12], sizes = [1, 498], strides = [1, 1]} : vector<1x1024xf32> to vector<1x498xf32>
    %14 = vector.extract_strided_slice %0 {offsets = [0, 13], sizes = [1, 498], strides = [1, 1]} : vector<1x1024xf32> to vector<1x498xf32>
    %15 = vector.extract_strided_slice %0 {offsets = [0, 14], sizes = [1, 498], strides = [1, 1]} : vector<1x1024xf32> to vector<1x498xf32>
    %16 = tpu.concatenate %1, %2, %3, %4, %5, %6, %7, %8, %9, %10, %11, %12, %13, %14, %15 in 0 : vector<1x498xf32>, vector<1x498xf32>, vector<1x498xf32>, vector<1x498xf32>, vector<1x498xf32>, vector<1x498xf32>, vector<1x498xf32>, vector<1x498xf32>, vector<1x498xf32>, vector<1x498xf32>, vector<1x498xf32>, vector<1x498xf32>, vector<1x498xf32>, vector<1x498xf32>, vector<1x498xf32> -> vector<15x498xf32>
    %17 = vector.extract_strided_slice %0 {offsets = [0, 512], sizes = [1, 498], strides = [1, 1]} : vector<1x1024xf32> to vector<1x498xf32>
    %18 = vector.extract_strided_slice %0 {offsets = [0, 513], sizes = [1, 498], strides = [1, 1]} : vector<1x1024xf32> to vector<1x498xf32>
    %19 = vector.extract_strided_slice %0 {offsets = [0, 514], sizes = [1, 498], strides = [1, 1]} : vector<1x1024xf32> to vector<1x498xf32>
    %20 = vector.extract_strided_slice %0 {offsets = [0, 515], sizes = [1, 498], strides = [1, 1]} : vector<1x1024xf32> to vector<1x498xf32>
    %21 = vector.extract_strided_slice %0 {offsets = [0, 516], sizes = [1, 498], strides = [1, 1]} : vector<1x1024xf32> to vector<1x498xf32>
    %22 = vector.extract_strided_slice %0 {offsets = [0, 517], sizes = [1, 498], strides = [1, 1]} : vector<1x1024xf32> to vector<1x498xf32>
    %23 = vector.extract_strided_slice %0 {offsets = [0, 518], sizes = [1, 498], strides = [1, 1]} : vector<1x1024xf32> to vector<1x498xf32>
    %24 = vector.extract_strided_slice %0 {offsets = [0, 519], sizes = [1, 498], strides = [1, 1]} : vector<1x1024xf32> to vector<1x498xf32>
    %25 = vector.extract_strided_slice %0 {offsets = [0, 520], sizes = [1, 498], strides = [1, 1]} : vector<1x1024xf32> to vector<1x498xf32>
    %26 = vector.extract_strided_slice %0 {offsets = [0, 521], sizes = [1, 498], strides = [1, 1]} : vector<1x1024xf32> to vector<1x498xf32>
    %27 = vector.extract_strided_slice %0 {offsets = [0, 522], sizes = [1, 498], strides = [1, 1]} : vector<1x1024xf32> to vector<1x498xf32>
    %28 = vector.extract_strided_slice %0 {offsets = [0, 523], sizes = [1, 498], strides = [1, 1]} : vector<1x1024xf32> to vector<1x498xf32>
    %29 = vector.extract_strided_slice %0 {offsets = [0, 524], sizes = [1, 498], strides = [1, 1]} : vector<1x1024xf32> to vector<1x498xf32>
    %30 = vector.extract_strided_slice %0 {offsets = [0, 525], sizes = [1, 498], strides = [1, 1]} : vector<1x1024xf32> to vector<1x498xf32>
    %31 = vector.extract_strided_slice %0 {offsets = [0, 526], sizes = [1, 498], strides = [1, 1]} : vector<1x1024xf32> to vector<1x498xf32>
    %32 = tpu.concatenate %17, %18, %19, %20, %21, %22, %23, %24, %25, %26, %27, %28, %29, %30, %31 in 0 : vector<1x498xf32>, vector<1x498xf32>, vector<1x498xf32>, vector<1x498xf32>, vector<1x498xf32>, vector<1x498xf32>, vector<1x498xf32>, vector<1x498xf32>, vector<1x498xf32>, vector<1x498xf32>, vector<1x498xf32>, vector<1x498xf32>, vector<1x498xf32>, vector<1x498xf32>, vector<1x498xf32> -> vector<15x498xf32>
    %33 = tpu.concatenate %16, %32 in 1 : vector<15x498xf32>, vector<15x498xf32> -> vector<15x996xf32>
    %c0_1 = arith.constant 0 : index
    %c0_2 = arith.constant 0 : index
    %34 = vector.load %arg2[%c0_1, %c0_2] : memref<8x15xf32, #tpu.memory_space<vmem>>, vector<8x15xf32>
    %cst = arith.constant dense<0.000000e+00> : vector<8x996xf32>
    %35 = tpu.matmul %34, %33, %cst {dimension_numbers = #tpu.dot_dimension_numbers<[1], [0], [0], [1], [0, 0, 1, 1], [], []>} : vector<8x15xf32>, vector<15x996xf32>, vector<8x996xf32> -> vector<8x996xf32>
    %c0_3 = arith.constant 0 : index
    %c0_4 = arith.constant 0 : index
    %36 = vector.load %arg3[%c0_3, %c0_4] : memref<8x1xf32, #tpu.memory_space<vmem>>, vector<8x1xf32>
    %37 = vector.broadcast %36 : vector<8x1xf32> to vector<8x996xf32>
    %38 = arith.addf %35, %37 : vector<8x996xf32>
    %cst_5 = arith.constant 0.000000e+00 : f32
    %39 = vector.broadcast %cst_5 : f32 to vector<8x996xf32>
    %40 = arith.maximumf %38, %39 : vector<8x996xf32>
    %41 = tpu.iota {dimensions = array<i32: 0>} : vector<498x83xi32>
    %42 = tpu.iota {dimensions = array<i32: 1>} : vector<498x83xi32>
    %c6_i32 = arith.constant 6 : i32
    %43 = vector.broadcast %c6_i32 : i32 to vector<498x83xi32>
    %44 = arith.muli %42, %43 : vector<498x83xi32>
    %45 = arith.cmpi sge, %41, %44 : vector<498x83xi32>
    %c1_i32 = arith.constant 1 : i32
    %46 = vector.broadcast %c1_i32 : i32 to vector<498x83xi32>
    %47 = arith.addi %42, %46 : vector<498x83xi32>
    %c6_i32_6 = arith.constant 6 : i32
    %48 = vector.broadcast %c6_i32_6 : i32 to vector<498x83xi32>
    %49 = arith.muli %47, %48 : vector<498x83xi32>
    %50 = arith.cmpi slt, %41, %49 : vector<498x83xi32>
    %51 = arith.andi %45, %50 : vector<498x83xi1>
    %cst_7 = arith.constant 0.166666672 : f32
    %cst_8 = arith.constant 0.000000e+00 : f32
    %52 = vector.broadcast %cst_7 : f32 to vector<498x83xf32>
    %53 = vector.broadcast %cst_8 : f32 to vector<498x83xf32>
    %54 = arith.select %51, %52, %53 : vector<498x83xi1>, vector<498x83xf32>
    %55 = vector.extract_strided_slice %40 {offsets = [0, 0], sizes = [8, 498], strides = [1, 1]} : vector<8x996xf32> to vector<8x498xf32>
    %cst_9 = arith.constant dense<0.000000e+00> : vector<8x83xf32>
    %56 = tpu.matmul %55, %54, %cst_9 {dimension_numbers = #tpu.dot_dimension_numbers<[1], [0], [0], [1], [0, 0, 1, 1], [], []>} : vector<8x498xf32>, vector<498x83xf32>, vector<8x83xf32> -> vector<8x83xf32>
    %57 = vector.extract_strided_slice %40 {offsets = [0, 498], sizes = [8, 498], strides = [1, 1]} : vector<8x996xf32> to vector<8x498xf32>
    %cst_10 = arith.constant dense<0.000000e+00> : vector<8x83xf32>
    %58 = tpu.matmul %57, %54, %cst_10 {dimension_numbers = #tpu.dot_dimension_numbers<[1], [0], [0], [1], [0, 0, 1, 1], [], []>} : vector<8x498xf32>, vector<498x83xf32>, vector<8x83xf32> -> vector<8x83xf32>
    %59 = tpu.concatenate %56, %58 in 1 : vector<8x83xf32>, vector<8x83xf32> -> vector<8x166xf32>
    %cst_11 = arith.constant 0.000000e+00 : f32
    %60 = vector.broadcast %cst_11 : f32 to vector<8x166xf32>
    %61 = arith.maximumf %59, %60 : vector<8x166xf32>
    %cst_12 = arith.constant dense<0.000000e+00> : vector<8xf32>
    %62 = vector.multi_reduction <add>, %61, %cst_12 [1] : vector<8x166xf32> to vector<8xf32>
    %63 = vector.shape_cast %62 : vector<8xf32> to vector<8x1xf32>
    %cst_13 = arith.constant 1.660000e+02 : f32
    %64 = vector.broadcast %cst_13 : f32 to vector<8x1xf32>
    %65 = arith.divf %63, %64 : vector<8x1xf32>
    %66 = vector.broadcast %65 : vector<8x1xf32> to vector<8x166xf32>
    %67 = arith.subf %61, %66 : vector<8x166xf32>
    %68 = arith.mulf %67, %67 : vector<8x166xf32>
    %cst_14 = arith.constant dense<0.000000e+00> : vector<8xf32>
    %69 = vector.multi_reduction <add>, %68, %cst_14 [1] : vector<8x166xf32> to vector<8xf32>
    %70 = vector.shape_cast %69 : vector<8xf32> to vector<8x1xf32>
    %cst_15 = arith.constant 1.660000e+02 : f32
    %71 = vector.broadcast %cst_15 : f32 to vector<8x1xf32>
    %72 = arith.divf %70, %71 : vector<8x1xf32>
    %73 = vector.broadcast %65 : vector<8x1xf32> to vector<8x166xf32>
    %74 = arith.subf %61, %73 : vector<8x166xf32>
    %cst_16 = arith.constant 9.99999974E-6 : f32
    %75 = vector.broadcast %cst_16 : f32 to vector<8x1xf32>
    %76 = arith.addf %72, %75 : vector<8x1xf32>
    %77 = math.rsqrt %76 : vector<8x1xf32>
    %78 = vector.broadcast %77 : vector<8x1xf32> to vector<8x166xf32>
    %79 = arith.mulf %74, %78 : vector<8x166xf32>
    %c0_17 = arith.constant 0 : index
    %c0_18 = arith.constant 0 : index
    %80 = vector.load %arg4[%c0_17, %c0_18] : memref<8x1xf32, #tpu.memory_space<vmem>>, vector<8x1xf32>
    %81 = vector.broadcast %80 : vector<8x1xf32> to vector<8x166xf32>
    %82 = arith.mulf %79, %81 : vector<8x166xf32>
    %c0_19 = arith.constant 0 : index
    %c0_20 = arith.constant 0 : index
    %83 = vector.load %arg5[%c0_19, %c0_20] : memref<8x1xf32, #tpu.memory_space<vmem>>, vector<8x1xf32>
    %84 = vector.broadcast %83 : vector<8x1xf32> to vector<8x166xf32>
    %85 = arith.addf %82, %84 : vector<8x166xf32>
    %cst_21 = arith.constant 0.000000e+00 : f32
    %86 = vector.broadcast %cst_21 : f32 to vector<8x166xf32>
    %87 = arith.maximumf %85, %86 : vector<8x166xf32>
    %88 = vector.extract_strided_slice %87 {offsets = [0, 0], sizes = [8, 76], strides = [1, 1]} : vector<8x166xf32> to vector<8x76xf32>
    %89 = vector.extract_strided_slice %87 {offsets = [0, 1], sizes = [8, 76], strides = [1, 1]} : vector<8x166xf32> to vector<8x76xf32>
    %90 = vector.extract_strided_slice %87 {offsets = [0, 2], sizes = [8, 76], strides = [1, 1]} : vector<8x166xf32> to vector<8x76xf32>
    %91 = vector.extract_strided_slice %87 {offsets = [0, 3], sizes = [8, 76], strides = [1, 1]} : vector<8x166xf32> to vector<8x76xf32>
    %92 = vector.extract_strided_slice %87 {offsets = [0, 4], sizes = [8, 76], strides = [1, 1]} : vector<8x166xf32> to vector<8x76xf32>
    %93 = vector.extract_strided_slice %87 {offsets = [0, 5], sizes = [8, 76], strides = [1, 1]} : vector<8x166xf32> to vector<8x76xf32>
    %94 = vector.extract_strided_slice %87 {offsets = [0, 6], sizes = [8, 76], strides = [1, 1]} : vector<8x166xf32> to vector<8x76xf32>
    %95 = vector.extract_strided_slice %87 {offsets = [0, 7], sizes = [8, 76], strides = [1, 1]} : vector<8x166xf32> to vector<8x76xf32>
    %96 = tpu.concatenate %88, %89, %90, %91, %92, %93, %94, %95 in 0 : vector<8x76xf32>, vector<8x76xf32>, vector<8x76xf32>, vector<8x76xf32>, vector<8x76xf32>, vector<8x76xf32>, vector<8x76xf32>, vector<8x76xf32> -> vector<64x76xf32>
    %97 = vector.extract_strided_slice %87 {offsets = [0, 83], sizes = [8, 76], strides = [1, 1]} : vector<8x166xf32> to vector<8x76xf32>
    %98 = vector.extract_strided_slice %87 {offsets = [0, 84], sizes = [8, 76], strides = [1, 1]} : vector<8x166xf32> to vector<8x76xf32>
    %99 = vector.extract_strided_slice %87 {offsets = [0, 85], sizes = [8, 76], strides = [1, 1]} : vector<8x166xf32> to vector<8x76xf32>
    %100 = vector.extract_strided_slice %87 {offsets = [0, 86], sizes = [8, 76], strides = [1, 1]} : vector<8x166xf32> to vector<8x76xf32>
    %101 = vector.extract_strided_slice %87 {offsets = [0, 87], sizes = [8, 76], strides = [1, 1]} : vector<8x166xf32> to vector<8x76xf32>
    %102 = vector.extract_strided_slice %87 {offsets = [0, 88], sizes = [8, 76], strides = [1, 1]} : vector<8x166xf32> to vector<8x76xf32>
    %103 = vector.extract_strided_slice %87 {offsets = [0, 89], sizes = [8, 76], strides = [1, 1]} : vector<8x166xf32> to vector<8x76xf32>
    %104 = vector.extract_strided_slice %87 {offsets = [0, 90], sizes = [8, 76], strides = [1, 1]} : vector<8x166xf32> to vector<8x76xf32>
    %105 = tpu.concatenate %97, %98, %99, %100, %101, %102, %103, %104 in 0 : vector<8x76xf32>, vector<8x76xf32>, vector<8x76xf32>, vector<8x76xf32>, vector<8x76xf32>, vector<8x76xf32>, vector<8x76xf32>, vector<8x76xf32> -> vector<64x76xf32>
    %106 = tpu.concatenate %96, %105 in 1 : vector<64x76xf32>, vector<64x76xf32> -> vector<64x152xf32>
    %c0_22 = arith.constant 0 : index
    %c0_23 = arith.constant 0 : index
    %107 = vector.load %arg6[%c0_22, %c0_23] : memref<16x64xf32, #tpu.memory_space<vmem>>, vector<16x64xf32>
    %cst_24 = arith.constant dense<0.000000e+00> : vector<16x152xf32>
    %108 = tpu.matmul %107, %106, %cst_24 {dimension_numbers = #tpu.dot_dimension_numbers<[1], [0], [0], [1], [0, 0, 1, 1], [], []>} : vector<16x64xf32>, vector<64x152xf32>, vector<16x152xf32> -> vector<16x152xf32>
    %c0_25 = arith.constant 0 : index
    %c0_26 = arith.constant 0 : index
    %109 = vector.load %arg7[%c0_25, %c0_26] : memref<16x1xf32, #tpu.memory_space<vmem>>, vector<16x1xf32>
    %110 = vector.broadcast %109 : vector<16x1xf32> to vector<16x152xf32>
    %111 = arith.addf %108, %110 : vector<16x152xf32>
    %cst_27 = arith.constant 0.000000e+00 : f32
    %112 = vector.broadcast %cst_27 : f32 to vector<16x152xf32>
    %113 = arith.maximumf %111, %112 : vector<16x152xf32>
    %114 = tpu.iota {dimensions = array<i32: 0>} : vector<76x25xi32>
    %115 = tpu.iota {dimensions = array<i32: 1>} : vector<76x25xi32>
    %c3_i32 = arith.constant 3 : i32
    %116 = vector.broadcast %c3_i32 : i32 to vector<76x25xi32>
    %117 = arith.muli %115, %116 : vector<76x25xi32>
    %118 = arith.cmpi sge, %114, %117 : vector<76x25xi32>
    %c1_i32_28 = arith.constant 1 : i32
    %119 = vector.broadcast %c1_i32_28 : i32 to vector<76x25xi32>
    %120 = arith.addi %115, %119 : vector<76x25xi32>
    %c3_i32_29 = arith.constant 3 : i32
    %121 = vector.broadcast %c3_i32_29 : i32 to vector<76x25xi32>
    %122 = arith.muli %120, %121 : vector<76x25xi32>
    %123 = arith.cmpi slt, %114, %122 : vector<76x25xi32>
    %124 = arith.andi %118, %123 : vector<76x25xi1>
    %cst_30 = arith.constant 0.333333343 : f32
    %cst_31 = arith.constant 0.000000e+00 : f32
    %125 = vector.broadcast %cst_30 : f32 to vector<76x25xf32>
    %126 = vector.broadcast %cst_31 : f32 to vector<76x25xf32>
    %127 = arith.select %124, %125, %126 : vector<76x25xi1>, vector<76x25xf32>
    %128 = vector.extract_strided_slice %113 {offsets = [0, 0], sizes = [16, 76], strides = [1, 1]} : vector<16x152xf32> to vector<16x76xf32>
    %cst_32 = arith.constant dense<0.000000e+00> : vector<16x25xf32>
    %129 = tpu.matmul %128, %127, %cst_32 {dimension_numbers = #tpu.dot_dimension_numbers<[1], [0], [0], [1], [0, 0, 1, 1], [], []>} : vector<16x76xf32>, vector<76x25xf32>, vector<16x25xf32> -> vector<16x25xf32>
    %130 = vector.extract_strided_slice %113 {offsets = [0, 76], sizes = [16, 76], strides = [1, 1]} : vector<16x152xf32> to vector<16x76xf32>
    %cst_33 = arith.constant dense<0.000000e+00> : vector<16x25xf32>
    %131 = tpu.matmul %130, %127, %cst_33 {dimension_numbers = #tpu.dot_dimension_numbers<[1], [0], [0], [1], [0, 0, 1, 1], [], []>} : vector<16x76xf32>, vector<76x25xf32>, vector<16x25xf32> -> vector<16x25xf32>
    %132 = tpu.concatenate %129, %131 in 1 : vector<16x25xf32>, vector<16x25xf32> -> vector<16x50xf32>
    %cst_34 = arith.constant 0.000000e+00 : f32
    %133 = vector.broadcast %cst_34 : f32 to vector<16x50xf32>
    %134 = arith.maximumf %132, %133 : vector<16x50xf32>
    %cst_35 = arith.constant dense<0.000000e+00> : vector<16xf32>
    %135 = vector.multi_reduction <add>, %134, %cst_35 [1] : vector<16x50xf32> to vector<16xf32>
    %136 = vector.shape_cast %135 : vector<16xf32> to vector<16x1xf32>
    %cst_36 = arith.constant 5.000000e+01 : f32
    %137 = vector.broadcast %cst_36 : f32 to vector<16x1xf32>
    %138 = arith.divf %136, %137 : vector<16x1xf32>
    %139 = vector.broadcast %138 : vector<16x1xf32> to vector<16x50xf32>
    %140 = arith.subf %134, %139 : vector<16x50xf32>
    %141 = arith.mulf %140, %140 : vector<16x50xf32>
    %cst_37 = arith.constant dense<0.000000e+00> : vector<16xf32>
    %142 = vector.multi_reduction <add>, %141, %cst_37 [1] : vector<16x50xf32> to vector<16xf32>
    %143 = vector.shape_cast %142 : vector<16xf32> to vector<16x1xf32>
    %cst_38 = arith.constant 5.000000e+01 : f32
    %144 = vector.broadcast %cst_38 : f32 to vector<16x1xf32>
    %145 = arith.divf %143, %144 : vector<16x1xf32>
    %146 = vector.broadcast %138 : vector<16x1xf32> to vector<16x50xf32>
    %147 = arith.subf %134, %146 : vector<16x50xf32>
    %cst_39 = arith.constant 9.99999974E-6 : f32
    %148 = vector.broadcast %cst_39 : f32 to vector<16x1xf32>
    %149 = arith.addf %145, %148 : vector<16x1xf32>
    %150 = math.rsqrt %149 : vector<16x1xf32>
    %151 = vector.broadcast %150 : vector<16x1xf32> to vector<16x50xf32>
    %152 = arith.mulf %147, %151 : vector<16x50xf32>
    %c0_40 = arith.constant 0 : index
    %c0_41 = arith.constant 0 : index
    %153 = vector.load %arg8[%c0_40, %c0_41] : memref<16x1xf32, #tpu.memory_space<vmem>>, vector<16x1xf32>
    %154 = vector.broadcast %153 : vector<16x1xf32> to vector<16x50xf32>
    %155 = arith.mulf %152, %154 : vector<16x50xf32>
    %c0_42 = arith.constant 0 : index
    %c0_43 = arith.constant 0 : index
    %156 = vector.load %arg9[%c0_42, %c0_43] : memref<16x1xf32, #tpu.memory_space<vmem>>, vector<16x1xf32>
    %157 = vector.broadcast %156 : vector<16x1xf32> to vector<16x50xf32>
    %158 = arith.addf %155, %157 : vector<16x50xf32>
    %cst_44 = arith.constant 0.000000e+00 : f32
    %159 = vector.broadcast %cst_44 : f32 to vector<16x50xf32>
    %160 = arith.maximumf %158, %159 : vector<16x50xf32>
    %161 = vector.extract_strided_slice %160 {offsets = [0, 0], sizes = [16, 20], strides = [1, 1]} : vector<16x50xf32> to vector<16x20xf32>
    %162 = vector.extract_strided_slice %160 {offsets = [0, 1], sizes = [16, 20], strides = [1, 1]} : vector<16x50xf32> to vector<16x20xf32>
    %163 = vector.extract_strided_slice %160 {offsets = [0, 2], sizes = [16, 20], strides = [1, 1]} : vector<16x50xf32> to vector<16x20xf32>
    %164 = vector.extract_strided_slice %160 {offsets = [0, 3], sizes = [16, 20], strides = [1, 1]} : vector<16x50xf32> to vector<16x20xf32>
    %165 = vector.extract_strided_slice %160 {offsets = [0, 4], sizes = [16, 20], strides = [1, 1]} : vector<16x50xf32> to vector<16x20xf32>
    %166 = vector.extract_strided_slice %160 {offsets = [0, 5], sizes = [16, 20], strides = [1, 1]} : vector<16x50xf32> to vector<16x20xf32>
    %167 = tpu.concatenate %161, %162, %163, %164, %165, %166 in 0 : vector<16x20xf32>, vector<16x20xf32>, vector<16x20xf32>, vector<16x20xf32>, vector<16x20xf32>, vector<16x20xf32> -> vector<96x20xf32>
    %168 = vector.extract_strided_slice %160 {offsets = [0, 25], sizes = [16, 20], strides = [1, 1]} : vector<16x50xf32> to vector<16x20xf32>
    %169 = vector.extract_strided_slice %160 {offsets = [0, 26], sizes = [16, 20], strides = [1, 1]} : vector<16x50xf32> to vector<16x20xf32>
    %170 = vector.extract_strided_slice %160 {offsets = [0, 27], sizes = [16, 20], strides = [1, 1]} : vector<16x50xf32> to vector<16x20xf32>
    %171 = vector.extract_strided_slice %160 {offsets = [0, 28], sizes = [16, 20], strides = [1, 1]} : vector<16x50xf32> to vector<16x20xf32>
    %172 = vector.extract_strided_slice %160 {offsets = [0, 29], sizes = [16, 20], strides = [1, 1]} : vector<16x50xf32> to vector<16x20xf32>
    %173 = vector.extract_strided_slice %160 {offsets = [0, 30], sizes = [16, 20], strides = [1, 1]} : vector<16x50xf32> to vector<16x20xf32>
    %174 = tpu.concatenate %168, %169, %170, %171, %172, %173 in 0 : vector<16x20xf32>, vector<16x20xf32>, vector<16x20xf32>, vector<16x20xf32>, vector<16x20xf32>, vector<16x20xf32> -> vector<96x20xf32>
    %175 = tpu.concatenate %167, %174 in 1 : vector<96x20xf32>, vector<96x20xf32> -> vector<96x40xf32>
    %c0_45 = arith.constant 0 : index
    %c0_46 = arith.constant 0 : index
    %176 = vector.load %arg10[%c0_45, %c0_46] : memref<32x96xf32, #tpu.memory_space<vmem>>, vector<32x96xf32>
    %cst_47 = arith.constant dense<0.000000e+00> : vector<32x40xf32>
    %177 = tpu.matmul %176, %175, %cst_47 {dimension_numbers = #tpu.dot_dimension_numbers<[1], [0], [0], [1], [0, 0, 1, 1], [], []>} : vector<32x96xf32>, vector<96x40xf32>, vector<32x40xf32> -> vector<32x40xf32>
    %c0_48 = arith.constant 0 : index
    %c0_49 = arith.constant 0 : index
    %178 = vector.load %arg11[%c0_48, %c0_49] : memref<32x1xf32, #tpu.memory_space<vmem>>, vector<32x1xf32>
    %179 = vector.broadcast %178 : vector<32x1xf32> to vector<32x40xf32>
    %180 = arith.addf %177, %179 : vector<32x40xf32>
    %cst_50 = arith.constant 0.000000e+00 : f32
    %181 = vector.broadcast %cst_50 : f32 to vector<32x40xf32>
    %182 = arith.maximumf %180, %181 : vector<32x40xf32>
    %183 = tpu.iota {dimensions = array<i32: 0>} : vector<20x10xi32>
    %184 = tpu.iota {dimensions = array<i32: 1>} : vector<20x10xi32>
    %c2_i32 = arith.constant 2 : i32
    %185 = vector.broadcast %c2_i32 : i32 to vector<20x10xi32>
    %186 = arith.muli %184, %185 : vector<20x10xi32>
    %187 = arith.cmpi sge, %183, %186 : vector<20x10xi32>
    %c1_i32_51 = arith.constant 1 : i32
    %188 = vector.broadcast %c1_i32_51 : i32 to vector<20x10xi32>
    %189 = arith.addi %184, %188 : vector<20x10xi32>
    %c2_i32_52 = arith.constant 2 : i32
    %190 = vector.broadcast %c2_i32_52 : i32 to vector<20x10xi32>
    %191 = arith.muli %189, %190 : vector<20x10xi32>
    %192 = arith.cmpi slt, %183, %191 : vector<20x10xi32>
    %193 = arith.andi %187, %192 : vector<20x10xi1>
    %cst_53 = arith.constant 5.000000e-01 : f32
    %cst_54 = arith.constant 0.000000e+00 : f32
    %194 = vector.broadcast %cst_53 : f32 to vector<20x10xf32>
    %195 = vector.broadcast %cst_54 : f32 to vector<20x10xf32>
    %196 = arith.select %193, %194, %195 : vector<20x10xi1>, vector<20x10xf32>
    %197 = vector.extract_strided_slice %182 {offsets = [0, 0], sizes = [32, 20], strides = [1, 1]} : vector<32x40xf32> to vector<32x20xf32>
    %cst_55 = arith.constant dense<0.000000e+00> : vector<32x10xf32>
    %198 = tpu.matmul %197, %196, %cst_55 {dimension_numbers = #tpu.dot_dimension_numbers<[1], [0], [0], [1], [0, 0, 1, 1], [], []>} : vector<32x20xf32>, vector<20x10xf32>, vector<32x10xf32> -> vector<32x10xf32>
    %199 = vector.extract_strided_slice %182 {offsets = [0, 20], sizes = [32, 20], strides = [1, 1]} : vector<32x40xf32> to vector<32x20xf32>
    %cst_56 = arith.constant dense<0.000000e+00> : vector<32x10xf32>
    %200 = tpu.matmul %199, %196, %cst_56 {dimension_numbers = #tpu.dot_dimension_numbers<[1], [0], [0], [1], [0, 0, 1, 1], [], []>} : vector<32x20xf32>, vector<20x10xf32>, vector<32x10xf32> -> vector<32x10xf32>
    %201 = tpu.concatenate %198, %200 in 1 : vector<32x10xf32>, vector<32x10xf32> -> vector<32x20xf32>
    %cst_57 = arith.constant 0.000000e+00 : f32
    %202 = vector.broadcast %cst_57 : f32 to vector<32x20xf32>
    %203 = arith.maximumf %201, %202 : vector<32x20xf32>
    %cst_58 = arith.constant dense<0.000000e+00> : vector<32xf32>
    %204 = vector.multi_reduction <add>, %203, %cst_58 [1] : vector<32x20xf32> to vector<32xf32>
    %205 = vector.shape_cast %204 : vector<32xf32> to vector<32x1xf32>
    %cst_59 = arith.constant 2.000000e+01 : f32
    %206 = vector.broadcast %cst_59 : f32 to vector<32x1xf32>
    %207 = arith.divf %205, %206 : vector<32x1xf32>
    %208 = vector.broadcast %207 : vector<32x1xf32> to vector<32x20xf32>
    %209 = arith.subf %203, %208 : vector<32x20xf32>
    %210 = arith.mulf %209, %209 : vector<32x20xf32>
    %cst_60 = arith.constant dense<0.000000e+00> : vector<32xf32>
    %211 = vector.multi_reduction <add>, %210, %cst_60 [1] : vector<32x20xf32> to vector<32xf32>
    %212 = vector.shape_cast %211 : vector<32xf32> to vector<32x1xf32>
    %cst_61 = arith.constant 2.000000e+01 : f32
    %213 = vector.broadcast %cst_61 : f32 to vector<32x1xf32>
    %214 = arith.divf %212, %213 : vector<32x1xf32>
    %215 = vector.broadcast %207 : vector<32x1xf32> to vector<32x20xf32>
    %216 = arith.subf %203, %215 : vector<32x20xf32>
    %cst_62 = arith.constant 9.99999974E-6 : f32
    %217 = vector.broadcast %cst_62 : f32 to vector<32x1xf32>
    %218 = arith.addf %214, %217 : vector<32x1xf32>
    %219 = math.rsqrt %218 : vector<32x1xf32>
    %220 = vector.broadcast %219 : vector<32x1xf32> to vector<32x20xf32>
    %221 = arith.mulf %216, %220 : vector<32x20xf32>
    %c0_63 = arith.constant 0 : index
    %c0_64 = arith.constant 0 : index
    %222 = vector.load %arg12[%c0_63, %c0_64] : memref<32x1xf32, #tpu.memory_space<vmem>>, vector<32x1xf32>
    %223 = vector.broadcast %222 : vector<32x1xf32> to vector<32x20xf32>
    %224 = arith.mulf %221, %223 : vector<32x20xf32>
    %c0_65 = arith.constant 0 : index
    %c0_66 = arith.constant 0 : index
    %225 = vector.load %arg13[%c0_65, %c0_66] : memref<32x1xf32, #tpu.memory_space<vmem>>, vector<32x1xf32>
    %226 = vector.broadcast %225 : vector<32x1xf32> to vector<32x20xf32>
    %227 = arith.addf %224, %226 : vector<32x20xf32>
    %cst_67 = arith.constant 0.000000e+00 : f32
    %228 = vector.broadcast %cst_67 : f32 to vector<32x20xf32>
    %229 = arith.maximumf %227, %228 : vector<32x20xf32>
    %230 = vector.extract_strided_slice %229 {offsets = [0, 0], sizes = [32, 7], strides = [1, 1]} : vector<32x20xf32> to vector<32x7xf32>
    %231 = vector.extract_strided_slice %229 {offsets = [0, 1], sizes = [32, 7], strides = [1, 1]} : vector<32x20xf32> to vector<32x7xf32>
    %232 = vector.extract_strided_slice %229 {offsets = [0, 2], sizes = [32, 7], strides = [1, 1]} : vector<32x20xf32> to vector<32x7xf32>
    %233 = vector.extract_strided_slice %229 {offsets = [0, 3], sizes = [32, 7], strides = [1, 1]} : vector<32x20xf32> to vector<32x7xf32>
    %234 = tpu.concatenate %230, %231, %232, %233 in 0 : vector<32x7xf32>, vector<32x7xf32>, vector<32x7xf32>, vector<32x7xf32> -> vector<128x7xf32>
    %235 = vector.extract_strided_slice %229 {offsets = [0, 10], sizes = [32, 7], strides = [1, 1]} : vector<32x20xf32> to vector<32x7xf32>
    %236 = vector.extract_strided_slice %229 {offsets = [0, 11], sizes = [32, 7], strides = [1, 1]} : vector<32x20xf32> to vector<32x7xf32>
    %237 = vector.extract_strided_slice %229 {offsets = [0, 12], sizes = [32, 7], strides = [1, 1]} : vector<32x20xf32> to vector<32x7xf32>
    %238 = vector.extract_strided_slice %229 {offsets = [0, 13], sizes = [32, 7], strides = [1, 1]} : vector<32x20xf32> to vector<32x7xf32>
    %239 = tpu.concatenate %235, %236, %237, %238 in 0 : vector<32x7xf32>, vector<32x7xf32>, vector<32x7xf32>, vector<32x7xf32> -> vector<128x7xf32>
    %240 = tpu.concatenate %234, %239 in 1 : vector<128x7xf32>, vector<128x7xf32> -> vector<128x14xf32>
    %c0_68 = arith.constant 0 : index
    %c0_69 = arith.constant 0 : index
    %241 = vector.load %arg14[%c0_68, %c0_69] : memref<64x128xf32, #tpu.memory_space<vmem>>, vector<64x128xf32>
    %cst_70 = arith.constant dense<0.000000e+00> : vector<64x14xf32>
    %242 = tpu.matmul %241, %240, %cst_70 {dimension_numbers = #tpu.dot_dimension_numbers<[1], [0], [0], [1], [0, 0, 1, 1], [], []>} : vector<64x128xf32>, vector<128x14xf32>, vector<64x14xf32> -> vector<64x14xf32>
    %c0_71 = arith.constant 0 : index
    %c0_72 = arith.constant 0 : index
    %243 = vector.load %arg15[%c0_71, %c0_72] : memref<64x1xf32, #tpu.memory_space<vmem>>, vector<64x1xf32>
    %244 = vector.broadcast %243 : vector<64x1xf32> to vector<64x14xf32>
    %245 = arith.addf %242, %244 : vector<64x14xf32>
    %cst_73 = arith.constant 0.000000e+00 : f32
    %246 = vector.broadcast %cst_73 : f32 to vector<64x14xf32>
    %247 = arith.maximumf %245, %246 : vector<64x14xf32>
    %248 = tpu.iota {dimensions = array<i32: 0>} : vector<7x3xi32>
    %249 = tpu.iota {dimensions = array<i32: 1>} : vector<7x3xi32>
    %c2_i32_74 = arith.constant 2 : i32
    %250 = vector.broadcast %c2_i32_74 : i32 to vector<7x3xi32>
    %251 = arith.muli %249, %250 : vector<7x3xi32>
    %252 = arith.cmpi sge, %248, %251 : vector<7x3xi32>
    %c1_i32_75 = arith.constant 1 : i32
    %253 = vector.broadcast %c1_i32_75 : i32 to vector<7x3xi32>
    %254 = arith.addi %249, %253 : vector<7x3xi32>
    %c2_i32_76 = arith.constant 2 : i32
    %255 = vector.broadcast %c2_i32_76 : i32 to vector<7x3xi32>
    %256 = arith.muli %254, %255 : vector<7x3xi32>
    %257 = arith.cmpi slt, %248, %256 : vector<7x3xi32>
    %258 = arith.andi %252, %257 : vector<7x3xi1>
    %cst_77 = arith.constant 5.000000e-01 : f32
    %cst_78 = arith.constant 0.000000e+00 : f32
    %259 = vector.broadcast %cst_77 : f32 to vector<7x3xf32>
    %260 = vector.broadcast %cst_78 : f32 to vector<7x3xf32>
    %261 = arith.select %258, %259, %260 : vector<7x3xi1>, vector<7x3xf32>
    %262 = vector.extract_strided_slice %247 {offsets = [0, 0], sizes = [64, 7], strides = [1, 1]} : vector<64x14xf32> to vector<64x7xf32>
    %cst_79 = arith.constant dense<0.000000e+00> : vector<64x3xf32>
    %263 = tpu.matmul %262, %261, %cst_79 {dimension_numbers = #tpu.dot_dimension_numbers<[1], [0], [0], [1], [0, 0, 1, 1], [], []>} : vector<64x7xf32>, vector<7x3xf32>, vector<64x3xf32> -> vector<64x3xf32>
    %264 = vector.extract_strided_slice %247 {offsets = [0, 7], sizes = [64, 7], strides = [1, 1]} : vector<64x14xf32> to vector<64x7xf32>
    %cst_80 = arith.constant dense<0.000000e+00> : vector<64x3xf32>
    %265 = tpu.matmul %264, %261, %cst_80 {dimension_numbers = #tpu.dot_dimension_numbers<[1], [0], [0], [1], [0, 0, 1, 1], [], []>} : vector<64x7xf32>, vector<7x3xf32>, vector<64x3xf32> -> vector<64x3xf32>
    %266 = tpu.concatenate %263, %265 in 1 : vector<64x3xf32>, vector<64x3xf32> -> vector<64x6xf32>
    %cst_81 = arith.constant 0.000000e+00 : f32
    %267 = vector.broadcast %cst_81 : f32 to vector<64x6xf32>
    %268 = arith.cmpf ogt, %266, %267 : vector<64x6xf32>
    %cst_82 = arith.constant 0.00999999977 : f32
    %269 = vector.broadcast %cst_82 : f32 to vector<64x6xf32>
    %270 = arith.mulf %269, %266 : vector<64x6xf32>
    %271 = arith.select %268, %266, %270 : vector<64x6xi1>, vector<64x6xf32>
    %cst_83 = arith.constant dense<0.000000e+00> : vector<64xf32>
    %272 = vector.multi_reduction <add>, %271, %cst_83 [1] : vector<64x6xf32> to vector<64xf32>
    %273 = vector.shape_cast %272 : vector<64xf32> to vector<64x1xf32>
    %cst_84 = arith.constant 6.000000e+00 : f32
    %274 = vector.broadcast %cst_84 : f32 to vector<64x1xf32>
    %275 = arith.divf %273, %274 : vector<64x1xf32>
    %276 = vector.broadcast %275 : vector<64x1xf32> to vector<64x6xf32>
    %277 = arith.subf %271, %276 : vector<64x6xf32>
    %278 = arith.mulf %277, %277 : vector<64x6xf32>
    %cst_85 = arith.constant dense<0.000000e+00> : vector<64xf32>
    %279 = vector.multi_reduction <add>, %278, %cst_85 [1] : vector<64x6xf32> to vector<64xf32>
    %280 = vector.shape_cast %279 : vector<64xf32> to vector<64x1xf32>
    %cst_86 = arith.constant 6.000000e+00 : f32
    %281 = vector.broadcast %cst_86 : f32 to vector<64x1xf32>
    %282 = arith.divf %280, %281 : vector<64x1xf32>
    %283 = vector.broadcast %275 : vector<64x1xf32> to vector<64x6xf32>
    %284 = arith.subf %271, %283 : vector<64x6xf32>
    %cst_87 = arith.constant 9.99999974E-6 : f32
    %285 = vector.broadcast %cst_87 : f32 to vector<64x1xf32>
    %286 = arith.addf %282, %285 : vector<64x1xf32>
    %287 = math.rsqrt %286 : vector<64x1xf32>
    %288 = vector.broadcast %287 : vector<64x1xf32> to vector<64x6xf32>
    %289 = arith.mulf %284, %288 : vector<64x6xf32>
    %c0_88 = arith.constant 0 : index
    %c0_89 = arith.constant 0 : index
    %290 = vector.load %arg16[%c0_88, %c0_89] : memref<64x1xf32, #tpu.memory_space<vmem>>, vector<64x1xf32>
    %291 = vector.broadcast %290 : vector<64x1xf32> to vector<64x6xf32>
    %292 = arith.mulf %289, %291 : vector<64x6xf32>
    %c0_90 = arith.constant 0 : index
    %c0_91 = arith.constant 0 : index
    %293 = vector.load %arg17[%c0_90, %c0_91] : memref<64x1xf32, #tpu.memory_space<vmem>>, vector<64x1xf32>
    %294 = vector.broadcast %293 : vector<64x1xf32> to vector<64x6xf32>
    %295 = arith.addf %292, %294 : vector<64x6xf32>
    %cst_92 = arith.constant 0.000000e+00 : f32
    %296 = vector.broadcast %cst_92 : f32 to vector<64x6xf32>
    %297 = arith.maximumf %295, %296 : vector<64x6xf32>
    %298 = vector.extract_strided_slice %297 {offsets = [0, 0], sizes = [64, 2], strides = [1, 1]} : vector<64x6xf32> to vector<64x2xf32>
    %299 = vector.extract_strided_slice %297 {offsets = [0, 1], sizes = [64, 2], strides = [1, 1]} : vector<64x6xf32> to vector<64x2xf32>
    %300 = tpu.concatenate %298, %299 in 0 : vector<64x2xf32>, vector<64x2xf32> -> vector<128x2xf32>
    %301 = vector.extract_strided_slice %297 {offsets = [0, 3], sizes = [64, 2], strides = [1, 1]} : vector<64x6xf32> to vector<64x2xf32>
    %302 = vector.extract_strided_slice %297 {offsets = [0, 4], sizes = [64, 2], strides = [1, 1]} : vector<64x6xf32> to vector<64x2xf32>
    %303 = tpu.concatenate %301, %302 in 0 : vector<64x2xf32>, vector<64x2xf32> -> vector<128x2xf32>
    %304 = tpu.concatenate %300, %303 in 1 : vector<128x2xf32>, vector<128x2xf32> -> vector<128x4xf32>
    %c0_93 = arith.constant 0 : index
    %c0_94 = arith.constant 0 : index
    %305 = vector.load %arg18[%c0_93, %c0_94] : memref<128x128xf32, #tpu.memory_space<vmem>>, vector<128x128xf32>
    %cst_95 = arith.constant dense<0.000000e+00> : vector<128x4xf32>
    %306 = tpu.matmul %305, %304, %cst_95 {dimension_numbers = #tpu.dot_dimension_numbers<[1], [0], [0], [1], [0, 0, 1, 1], [], []>} : vector<128x128xf32>, vector<128x4xf32>, vector<128x4xf32> -> vector<128x4xf32>
    %c0_96 = arith.constant 0 : index
    %c0_97 = arith.constant 0 : index
    %307 = vector.load %arg19[%c0_96, %c0_97] : memref<128x1xf32, #tpu.memory_space<vmem>>, vector<128x1xf32>
    %308 = vector.broadcast %307 : vector<128x1xf32> to vector<128x4xf32>
    %309 = arith.addf %306, %308 : vector<128x4xf32>
    %cst_98 = arith.constant 0.000000e+00 : f32
    %310 = vector.broadcast %cst_98 : f32 to vector<128x4xf32>
    %311 = arith.maximumf %309, %310 : vector<128x4xf32>
    %cst_99 = arith.constant 0.000000e+00 : f32
    %312 = vector.broadcast %cst_99 : f32 to vector<128x4xf32>
    %313 = arith.cmpf ogt, %311, %312 : vector<128x4xf32>
    %cst_100 = arith.constant 0.00999999977 : f32
    %314 = vector.broadcast %cst_100 : f32 to vector<128x4xf32>
    %315 = arith.mulf %314, %311 : vector<128x4xf32>
    %316 = arith.select %313, %311, %315 : vector<128x4xi1>, vector<128x4xf32>
    %cst_101 = arith.constant dense<0.000000e+00> : vector<128xf32>
    %317 = vector.multi_reduction <add>, %316, %cst_101 [1] : vector<128x4xf32> to vector<128xf32>
    %318 = vector.shape_cast %317 : vector<128xf32> to vector<128x1xf32>
    %cst_102 = arith.constant 4.000000e+00 : f32
    %319 = vector.broadcast %cst_102 : f32 to vector<128x1xf32>
    %320 = arith.divf %318, %319 : vector<128x1xf32>
    %321 = vector.broadcast %320 : vector<128x1xf32> to vector<128x4xf32>
    %322 = arith.subf %316, %321 : vector<128x4xf32>
    %323 = arith.mulf %322, %322 : vector<128x4xf32>
    %cst_103 = arith.constant dense<0.000000e+00> : vector<128xf32>
    %324 = vector.multi_reduction <add>, %323, %cst_103 [1] : vector<128x4xf32> to vector<128xf32>
    %325 = vector.shape_cast %324 : vector<128xf32> to vector<128x1xf32>
    %cst_104 = arith.constant 4.000000e+00 : f32
    %326 = vector.broadcast %cst_104 : f32 to vector<128x1xf32>
    %327 = arith.divf %325, %326 : vector<128x1xf32>
    %328 = vector.broadcast %320 : vector<128x1xf32> to vector<128x4xf32>
    %329 = arith.subf %316, %328 : vector<128x4xf32>
    %cst_105 = arith.constant 9.99999974E-6 : f32
    %330 = vector.broadcast %cst_105 : f32 to vector<128x1xf32>
    %331 = arith.addf %327, %330 : vector<128x1xf32>
    %332 = math.rsqrt %331 : vector<128x1xf32>
    %333 = vector.broadcast %332 : vector<128x1xf32> to vector<128x4xf32>
    %334 = arith.mulf %329, %333 : vector<128x4xf32>
    %c0_106 = arith.constant 0 : index
    %c0_107 = arith.constant 0 : index
    %335 = vector.load %arg20[%c0_106, %c0_107] : memref<128x1xf32, #tpu.memory_space<vmem>>, vector<128x1xf32>
    %336 = vector.broadcast %335 : vector<128x1xf32> to vector<128x4xf32>
    %337 = arith.mulf %334, %336 : vector<128x4xf32>
    %c0_108 = arith.constant 0 : index
    %c0_109 = arith.constant 0 : index
    %338 = vector.load %arg21[%c0_108, %c0_109] : memref<128x1xf32, #tpu.memory_space<vmem>>, vector<128x1xf32>
    %339 = vector.broadcast %338 : vector<128x1xf32> to vector<128x4xf32>
    %340 = arith.addf %337, %339 : vector<128x4xf32>
    %cst_110 = arith.constant 0.000000e+00 : f32
    %341 = vector.broadcast %cst_110 : f32 to vector<128x4xf32>
    %342 = arith.maximumf %340, %341 : vector<128x4xf32>
    %cst_111 = arith.constant 0.000000e+00 : f32
    %343 = vector.broadcast %cst_111 : f32 to vector<128x2xf32>
    %344 = vector.extract_strided_slice %342 {offsets = [0, 0], sizes = [128, 1], strides = [1, 1]} : vector<128x4xf32> to vector<128x1xf32>
    %345 = vector.extract_strided_slice %342 {offsets = [0, 2], sizes = [128, 1], strides = [1, 1]} : vector<128x4xf32> to vector<128x1xf32>
    %346 = tpu.concatenate %344, %345 in 1 : vector<128x1xf32>, vector<128x1xf32> -> vector<128x2xf32>
    %c0_112 = arith.constant 0 : index
    %c0_113 = arith.constant 0 : index
    %c0_114 = arith.constant 0 : index
    %347 = vector.load %arg22[%c0_112, %c0_113, %c0_114] : memref<2x128x128xf32, #tpu.memory_space<vmem>>, vector<1x128x128xf32>
    %348 = vector.shape_cast %347 : vector<1x128x128xf32> to vector<128x128xf32>
    %cst_115 = arith.constant dense<0.000000e+00> : vector<128x2xf32>
    %349 = tpu.matmul %348, %346, %cst_115 {dimension_numbers = #tpu.dot_dimension_numbers<[1], [0], [0], [1], [0, 0, 1, 1], [], []>} : vector<128x128xf32>, vector<128x2xf32>, vector<128x2xf32> -> vector<128x2xf32>
    %350 = arith.addf %343, %349 : vector<128x2xf32>
    %351 = vector.extract_strided_slice %342 {offsets = [0, 1], sizes = [128, 1], strides = [1, 1]} : vector<128x4xf32> to vector<128x1xf32>
    %352 = vector.extract_strided_slice %342 {offsets = [0, 3], sizes = [128, 1], strides = [1, 1]} : vector<128x4xf32> to vector<128x1xf32>
    %353 = tpu.concatenate %351, %352 in 1 : vector<128x1xf32>, vector<128x1xf32> -> vector<128x2xf32>
    %c1 = arith.constant 1 : index
    %c0_116 = arith.constant 0 : index
    %c0_117 = arith.constant 0 : index
    %354 = vector.load %arg22[%c1, %c0_116, %c0_117] : memref<2x128x128xf32, #tpu.memory_space<vmem>>, vector<1x128x128xf32>
    %355 = vector.shape_cast %354 : vector<1x128x128xf32> to vector<128x128xf32>
    %cst_118 = arith.constant dense<0.000000e+00> : vector<128x2xf32>
    %356 = tpu.matmul %355, %353, %cst_118 {dimension_numbers = #tpu.dot_dimension_numbers<[1], [0], [0], [1], [0, 0, 1, 1], [], []>} : vector<128x128xf32>, vector<128x2xf32>, vector<128x2xf32> -> vector<128x2xf32>
    %357 = arith.addf %350, %356 : vector<128x2xf32>
    %c0_119 = arith.constant 0 : index
    %c0_120 = arith.constant 0 : index
    %358 = vector.load %arg23[%c0_119, %c0_120] : memref<128x1xf32, #tpu.memory_space<vmem>>, vector<128x1xf32>
    %359 = vector.broadcast %358 : vector<128x1xf32> to vector<128x2xf32>
    %360 = arith.addf %357, %359 : vector<128x2xf32>
    %cst_121 = arith.constant 0.000000e+00 : f32
    %361 = vector.broadcast %cst_121 : f32 to vector<128x2xf32>
    %362 = arith.maximumf %360, %361 : vector<128x2xf32>
    %c0_122 = arith.constant 0 : index
    %c0_123 = arith.constant 0 : index
    %363 = vector.load %arg24[%c0_122, %c0_123] : memref<128x1xf32, #tpu.memory_space<vmem>>, vector<128x1xf32>
    %c0_124 = arith.constant 0 : index
    %c0_125 = arith.constant 0 : index
    %364 = vector.load %arg25[%c0_124, %c0_125] : memref<128x1xf32, #tpu.memory_space<vmem>>, vector<128x1xf32>
    %cst_126 = arith.constant dense<0.000000e+00> : vector<128xf32>
    %365 = vector.multi_reduction <add>, %362, %cst_126 [1] : vector<128x2xf32> to vector<128xf32>
    %366 = vector.shape_cast %365 : vector<128xf32> to vector<128x1xf32>
    %cst_127 = arith.constant 2.000000e+00 : f32
    %367 = vector.broadcast %cst_127 : f32 to vector<128x1xf32>
    %368 = arith.divf %366, %367 : vector<128x1xf32>
    %369 = vector.broadcast %368 : vector<128x1xf32> to vector<128x2xf32>
    %370 = arith.subf %362, %369 : vector<128x2xf32>
    %371 = arith.mulf %370, %370 : vector<128x2xf32>
    %cst_128 = arith.constant dense<0.000000e+00> : vector<128xf32>
    %372 = vector.multi_reduction <add>, %371, %cst_128 [1] : vector<128x2xf32> to vector<128xf32>
    %373 = vector.shape_cast %372 : vector<128xf32> to vector<128x1xf32>
    %cst_129 = arith.constant 2.000000e+00 : f32
    %374 = vector.broadcast %cst_129 : f32 to vector<128x1xf32>
    %375 = arith.divf %373, %374 : vector<128x1xf32>
    %376 = vector.broadcast %368 : vector<128x1xf32> to vector<128x2xf32>
    %377 = arith.subf %362, %376 : vector<128x2xf32>
    %cst_130 = arith.constant 9.99999974E-6 : f32
    %378 = vector.broadcast %cst_130 : f32 to vector<128x1xf32>
    %379 = arith.addf %375, %378 : vector<128x1xf32>
    %380 = math.rsqrt %379 : vector<128x1xf32>
    %381 = vector.broadcast %380 : vector<128x1xf32> to vector<128x2xf32>
    %382 = arith.mulf %377, %381 : vector<128x2xf32>
    %383 = vector.broadcast %363 : vector<128x1xf32> to vector<128x2xf32>
    %384 = arith.mulf %382, %383 : vector<128x2xf32>
    %385 = vector.broadcast %364 : vector<128x1xf32> to vector<128x2xf32>
    %386 = arith.addf %384, %385 : vector<128x2xf32>
    %cst_131 = arith.constant 0.000000e+00 : f32
    %387 = vector.broadcast %cst_131 : f32 to vector<128x2xf32>
    %388 = arith.maximumf %386, %387 : vector<128x2xf32>
    %c0_132 = arith.constant 0 : index
    %c0_133 = arith.constant 0 : index
    %389 = vector.load %arg26[%c0_132, %c0_133] : memref<64x128xf32, #tpu.memory_space<vmem>>, vector<64x128xf32>
    %cst_134 = arith.constant dense<0.000000e+00> : vector<64x2xf32>
    %390 = tpu.matmul %389, %388, %cst_134 {dimension_numbers = #tpu.dot_dimension_numbers<[1], [0], [0], [1], [0, 0, 1, 1], [], []>} : vector<64x128xf32>, vector<128x2xf32>, vector<64x2xf32> -> vector<64x2xf32>
    %c0_135 = arith.constant 0 : index
    %c0_136 = arith.constant 0 : index
    %391 = vector.load %arg27[%c0_135, %c0_136] : memref<64x1xf32, #tpu.memory_space<vmem>>, vector<64x1xf32>
    %392 = vector.broadcast %391 : vector<64x1xf32> to vector<64x2xf32>
    %393 = arith.addf %390, %392 : vector<64x2xf32>
    %cst_137 = arith.constant 0.000000e+00 : f32
    %394 = vector.broadcast %cst_137 : f32 to vector<64x2xf32>
    %395 = arith.maximumf %393, %394 : vector<64x2xf32>
    %c0_138 = arith.constant 0 : index
    %c0_139 = arith.constant 0 : index
    %396 = vector.load %arg28[%c0_138, %c0_139] : memref<64x1xf32, #tpu.memory_space<vmem>>, vector<64x1xf32>
    %c0_140 = arith.constant 0 : index
    %c0_141 = arith.constant 0 : index
    %397 = vector.load %arg29[%c0_140, %c0_141] : memref<64x1xf32, #tpu.memory_space<vmem>>, vector<64x1xf32>
    %cst_142 = arith.constant dense<0.000000e+00> : vector<64xf32>
    %398 = vector.multi_reduction <add>, %395, %cst_142 [1] : vector<64x2xf32> to vector<64xf32>
    %399 = vector.shape_cast %398 : vector<64xf32> to vector<64x1xf32>
    %cst_143 = arith.constant 2.000000e+00 : f32
    %400 = vector.broadcast %cst_143 : f32 to vector<64x1xf32>
    %401 = arith.divf %399, %400 : vector<64x1xf32>
    %402 = vector.broadcast %401 : vector<64x1xf32> to vector<64x2xf32>
    %403 = arith.subf %395, %402 : vector<64x2xf32>
    %404 = arith.mulf %403, %403 : vector<64x2xf32>
    %cst_144 = arith.constant dense<0.000000e+00> : vector<64xf32>
    %405 = vector.multi_reduction <add>, %404, %cst_144 [1] : vector<64x2xf32> to vector<64xf32>
    %406 = vector.shape_cast %405 : vector<64xf32> to vector<64x1xf32>
    %cst_145 = arith.constant 2.000000e+00 : f32
    %407 = vector.broadcast %cst_145 : f32 to vector<64x1xf32>
    %408 = arith.divf %406, %407 : vector<64x1xf32>
    %409 = vector.broadcast %401 : vector<64x1xf32> to vector<64x2xf32>
    %410 = arith.subf %395, %409 : vector<64x2xf32>
    %cst_146 = arith.constant 9.99999974E-6 : f32
    %411 = vector.broadcast %cst_146 : f32 to vector<64x1xf32>
    %412 = arith.addf %408, %411 : vector<64x1xf32>
    %413 = math.rsqrt %412 : vector<64x1xf32>
    %414 = vector.broadcast %413 : vector<64x1xf32> to vector<64x2xf32>
    %415 = arith.mulf %410, %414 : vector<64x2xf32>
    %416 = vector.broadcast %396 : vector<64x1xf32> to vector<64x2xf32>
    %417 = arith.mulf %415, %416 : vector<64x2xf32>
    %418 = vector.broadcast %397 : vector<64x1xf32> to vector<64x2xf32>
    %419 = arith.addf %417, %418 : vector<64x2xf32>
    %cst_147 = arith.constant 0.000000e+00 : f32
    %420 = vector.broadcast %cst_147 : f32 to vector<64x2xf32>
    %421 = arith.maximumf %419, %420 : vector<64x2xf32>
    %c0_148 = arith.constant 0 : index
    %c0_149 = arith.constant 0 : index
    %422 = vector.load %arg30[%c0_148, %c0_149] : memref<5x64xf32, #tpu.memory_space<vmem>>, vector<5x64xf32>
    %cst_150 = arith.constant dense<0.000000e+00> : vector<5x2xf32>
    %423 = tpu.matmul %422, %421, %cst_150 {dimension_numbers = #tpu.dot_dimension_numbers<[1], [0], [0], [1], [0, 0, 1, 1], [], []>} : vector<5x64xf32>, vector<64x2xf32>, vector<5x2xf32> -> vector<5x2xf32>
    %c0_151 = arith.constant 0 : index
    %c0_152 = arith.constant 0 : index
    %424 = vector.load %arg31[%c0_151, %c0_152] : memref<5x1xf32, #tpu.memory_space<vmem>>, vector<5x1xf32>
    %425 = vector.broadcast %424 : vector<5x1xf32> to vector<5x2xf32>
    %426 = arith.addf %423, %425 : vector<5x2xf32>
    %c0_153 = arith.constant 0 : index
    %c0_154 = arith.constant 0 : index
    %427 = vector.load %arg32[%c0_153, %c0_154] : memref<5x2xf32, #tpu.memory_space<vmem>>, vector<5x2xf32>
    tpu.vector_store %arg32[%c0_153, %c0_154], %426 {strides = array<i32>} : memref<5x2xf32, #tpu.memory_space<vmem>>, vector<5x2xf32>,
    return
  }
  func.func @transform_0(%arg0: i32) -> (i32, i32) {
    %c0_i32 = arith.constant 0 : i32
    %c0_i32_0 = arith.constant 0 : i32
    %c0_i32_1 = arith.constant 0 : i32
    return %c0_i32, %c0_i32_0 : i32, i32
  }
  func.func @transform_1(%arg0: i32) -> (i32, i32) {
    %c0_i32 = arith.constant 0 : i32
    %c0_i32_0 = arith.constant 0 : i32
    %c0_i32_1 = arith.constant 0 : i32
    return %c0_i32, %c0_i32_0 : i32, i32
  }
  func.func @transform_2(%arg0: i32) -> (i32, i32) {
    %c0_i32 = arith.constant 0 : i32
    %c0_i32_0 = arith.constant 0 : i32
    %c0_i32_1 = arith.constant 0 : i32
    return %c0_i32, %c0_i32_0 : i32, i32
  }
  func.func @transform_3(%arg0: i32) -> (i32, i32) {
    %c0_i32 = arith.constant 0 : i32
    %c0_i32_0 = arith.constant 0 : i32
    %c0_i32_1 = arith.constant 0 : i32
    return %c0_i32, %c0_i32_0 : i32, i32
  }
  func.func @transform_4(%arg0: i32) -> (i32, i32) {
    %c0_i32 = arith.constant 0 : i32
    %c0_i32_0 = arith.constant 0 : i32
    %c0_i32_1 = arith.constant 0 : i32
    return %c0_i32, %c0_i32_0 : i32, i32
  }
  func.func @transform_5(%arg0: i32) -> (i32, i32) {
    %c0_i32 = arith.constant 0 : i32
    %c0_i32_0 = arith.constant 0 : i32
    %c0_i32_1 = arith.constant 0 : i32
    return %c0_i32, %c0_i32_0 : i32, i32
  }
  func.func @transform_6(%arg0: i32) -> (i32, i32) {
    %c0_i32 = arith.constant 0 : i32
    %c0_i32_0 = arith.constant 0 : i32
    %c0_i32_1 = arith.constant 0 : i32
    return %c0_i32, %c0_i32_0 : i32, i32
  }
  func.func @transform_7(%arg0: i32) -> (i32, i32) {
    %c0_i32 = arith.constant 0 : i32
    %c0_i32_0 = arith.constant 0 : i32
    %c0_i32_1 = arith.constant 0 : i32
    return %c0_i32, %c0_i32_0 : i32, i32
  }
  func.func @transform_8(%arg0: i32) -> (i32, i32) {
    %c0_i32 = arith.constant 0 : i32
    %c0_i32_0 = arith.constant 0 : i32
    %c0_i32_1 = arith.constant 0 : i32
    return %c0_i32, %c0_i32_0 : i32, i32
  }
  func.func @transform_9(%arg0: i32) -> (i32, i32) {
    %c0_i32 = arith.constant 0 : i32
    %c0_i32_0 = arith.constant 0 : i32
    %c0_i32_1 = arith.constant 0 : i32
    return %c0_i32, %c0_i32_0 : i32, i32
  }
  func.func @transform_10(%arg0: i32) -> (i32, i32) {
    %c0_i32 = arith.constant 0 : i32
    %c0_i32_0 = arith.constant 0 : i32
    %c0_i32_1 = arith.constant 0 : i32
    return %c0_i32, %c0_i32_0 : i32, i32
  }
  func.func @transform_11(%arg0: i32) -> (i32, i32) {
    %c0_i32 = arith.constant 0 : i32
    %c0_i32_0 = arith.constant 0 : i32
    %c0_i32_1 = arith.constant 0 : i32
    return %c0_i32, %c0_i32_0 : i32, i32
  }
  func.func @transform_12(%arg0: i32) -> (i32, i32) {
    %c0_i32 = arith.constant 0 : i32
    %c0_i32_0 = arith.constant 0 : i32
    %c0_i32_1 = arith.constant 0 : i32
    return %c0_i32, %c0_i32_0 : i32, i32
  }
  func.func @transform_13(%arg0: i32) -> (i32, i32) {
    %c0_i32 = arith.constant 0 : i32
    %c0_i32_0 = arith.constant 0 : i32
    %c0_i32_1 = arith.constant 0 : i32
    return %c0_i32, %c0_i32_0 : i32, i32
  }
  func.func @transform_14(%arg0: i32) -> (i32, i32) {
    %c0_i32 = arith.constant 0 : i32
    %c0_i32_0 = arith.constant 0 : i32
    %c0_i32_1 = arith.constant 0 : i32
    return %c0_i32, %c0_i32_0 : i32, i32
  }
  func.func @transform_15(%arg0: i32) -> (i32, i32) {
    %c0_i32 = arith.constant 0 : i32
    %c0_i32_0 = arith.constant 0 : i32
    %c0_i32_1 = arith.constant 0 : i32
    return %c0_i32, %c0_i32_0 : i32, i32
  }
  func.func @transform_16(%arg0: i32) -> (i32, i32) {
    %c0_i32 = arith.constant 0 : i32
    %c0_i32_0 = arith.constant 0 : i32
    %c0_i32_1 = arith.constant 0 : i32
    return %c0_i32, %c0_i32_0 : i32, i32
  }
  func.func @transform_17(%arg0: i32) -> (i32, i32) {
    %c0_i32 = arith.constant 0 : i32
    %c0_i32_0 = arith.constant 0 : i32
    %c0_i32_1 = arith.constant 0 : i32
    return %c0_i32, %c0_i32_0 : i32, i32
  }
  func.func @transform_18(%arg0: i32) -> (i32, i32) {
    %c0_i32 = arith.constant 0 : i32
    %c0_i32_0 = arith.constant 0 : i32
    %c0_i32_1 = arith.constant 0 : i32
    return %c0_i32, %c0_i32_0 : i32, i32
  }
  func.func @transform_19(%arg0: i32) -> (i32, i32) {
    %c0_i32 = arith.constant 0 : i32
    %c0_i32_0 = arith.constant 0 : i32
    %c0_i32_1 = arith.constant 0 : i32
    return %c0_i32, %c0_i32_0 : i32, i32
  }
  func.func @transform_20(%arg0: i32) -> (i32, i32) {
    %c0_i32 = arith.constant 0 : i32
    %c0_i32_0 = arith.constant 0 : i32
    %c0_i32_1 = arith.constant 0 : i32
    return %c0_i32, %c0_i32_0 : i32, i32
  }
  func.func @transform_21(%arg0: i32) -> (i32, i32, i32) {
    %c0_i32 = arith.constant 0 : i32
    %c0_i32_0 = arith.constant 0 : i32
    %c0_i32_1 = arith.constant 0 : i32
    %c0_i32_2 = arith.constant 0 : i32
    return %c0_i32, %c0_i32_0, %c0_i32_1 : i32, i32, i32
  }
  func.func @transform_22(%arg0: i32) -> (i32, i32) {
    %c0_i32 = arith.constant 0 : i32
    %c0_i32_0 = arith.constant 0 : i32
    %c0_i32_1 = arith.constant 0 : i32
    return %c0_i32, %c0_i32_0 : i32, i32
  }
  func.func @transform_23(%arg0: i32) -> (i32, i32) {
    %c0_i32 = arith.constant 0 : i32
    %c0_i32_0 = arith.constant 0 : i32
    %c0_i32_1 = arith.constant 0 : i32
    return %c0_i32, %c0_i32_0 : i32, i32
  }
  func.func @transform_24(%arg0: i32) -> (i32, i32) {
    %c0_i32 = arith.constant 0 : i32
    %c0_i32_0 = arith.constant 0 : i32
    %c0_i32_1 = arith.constant 0 : i32
    return %c0_i32, %c0_i32_0 : i32, i32
  }
  func.func @transform_25(%arg0: i32) -> (i32, i32) {
    %c0_i32 = arith.constant 0 : i32
    %c0_i32_0 = arith.constant 0 : i32
    %c0_i32_1 = arith.constant 0 : i32
    return %c0_i32, %c0_i32_0 : i32, i32
  }
  func.func @transform_26(%arg0: i32) -> (i32, i32) {
    %c0_i32 = arith.constant 0 : i32
    %c0_i32_0 = arith.constant 0 : i32
    %c0_i32_1 = arith.constant 0 : i32
    return %c0_i32, %c0_i32_0 : i32, i32
  }
  func.func @transform_27(%arg0: i32) -> (i32, i32) {
    %c0_i32 = arith.constant 0 : i32
    %c0_i32_0 = arith.constant 0 : i32
    %c0_i32_1 = arith.constant 0 : i32
    return %c0_i32, %c0_i32_0 : i32, i32
  }
  func.func @transform_28(%arg0: i32) -> (i32, i32) {
    %c0_i32 = arith.constant 0 : i32
    %c0_i32_0 = arith.constant 0 : i32
    %c0_i32_1 = arith.constant 0 : i32
    return %c0_i32, %c0_i32_0 : i32, i32
  }
  func.func @transform_29(%arg0: i32) -> (i32, i32) {
    %c0_i32 = arith.constant 0 : i32
    %c0_i32_0 = arith.constant 0 : i32
    %c0_i32_1 = arith.constant 0 : i32
    return %c0_i32, %c0_i32_0 : i32, i32
  }
  func.func @transform_30(%arg0: i32) -> (i32, i32) {
    %c0_i32 = arith.constant 0 : i32
    %c0_i32_0 = arith.constant 0 : i32
    %c0_i32_1 = arith.constant 0 : i32
    return %c0_i32, %c0_i32_0 : i32, i32
  }
  func.func @transform_31(%arg0: i32) -> (i32, i32) {
    %c0_i32 = arith.constant 0 : i32
    %c0_i32_0 = arith.constant 0 : i32
    %c0_i32_1 = arith.constant 0 : i32
    return %c0_i32, %c0_i32_0 : i32, i32
  }
}

</mosaic_0001>

<llo_original>
// kernel: forward.1
$region0: #{forward.1}
  #allocation0 [shape = 'u32[]', space=smem, size = 0x4, offset = 0x4, fixed_abs, tag = 'smem constant byte address 0x4 - core index']
  #allocation1 [shape = 'u32[144,128]{1,0:T(1,128)}', space=vmem, size = 0x12000, scoped, tag = 'internal scratch']
  %s0 = inlined_call_operand.smem [shape: u32[32], index: -1, kind: input, shape index: {}]
  %s1 = sld [smem:[%s0]]
  %s2 = scalar_lea.smem %s0, 1
  %s3 = sld [smem:[%s2]]
  %s4 = scalar_lea.smem %s0, 2
  %s5 = sld [smem:[%s4]]
  %s6 = scalar_lea.smem %s0, 3
  %s7 = sld [smem:[%s6]]
  %s8 = scalar_lea.smem %s0, 4
  %s9 = sld [smem:[%s8]]
  %s10 = scalar_lea.smem %s0, 5
  %s11 = sld [smem:[%s10]]
  %s12 = scalar_lea.smem %s0, 6
  %s13 = sld [smem:[%s12]]
  %s14 = scalar_lea.smem %s0, 7
  %s15 = sld [smem:[%s14]]
  %s16 = scalar_lea.smem %s0, 8
  %s17 = sld [smem:[%s16]]
  %s18 = scalar_lea.smem %s0, 9
  %s19 = sld [smem:[%s18]]
  %s20 = scalar_lea.smem %s0, 10
  %s21 = sld [smem:[%s20]]
  %s22 = scalar_lea.smem %s0, 11
  %s23 = sld [smem:[%s22]]
  %s24 = scalar_lea.smem %s0, 12
  %s25 = sld [smem:[%s24]]
  %s26 = scalar_lea.smem %s0, 13
  %s27 = sld [smem:[%s26]]
  %s28 = scalar_lea.smem %s0, 14
  %s29 = sld [smem:[%s28]]
  %s30 = scalar_lea.smem %s0, 15
  %s31 = sld [smem:[%s30]]
  %s32 = scalar_lea.smem %s0, 16
  %s33 = sld [smem:[%s32]]
  %s34 = scalar_lea.smem %s0, 17
  %s35 = sld [smem:[%s34]]
  %s36 = scalar_lea.smem %s0, 18
  %s37 = sld [smem:[%s36]]
  %s38 = scalar_lea.smem %s0, 19
  %s39 = sld [smem:[%s38]]
  %s40 = scalar_lea.smem %s0, 20
  %s41 = sld [smem:[%s40]]
  %s42 = scalar_lea.smem %s0, 21
  %s43 = sld [smem:[%s42]]
  %s44 = scalar_lea.smem %s0, 22
  %s45 = sld [smem:[%s44]]
  %s46 = scalar_lea.smem %s0, 23
  %s47 = sld [smem:[%s46]]
  %s48 = scalar_lea.smem %s0, 24
  %s49 = sld [smem:[%s48]]
  %s50 = scalar_lea.smem %s0, 25
  %s51 = sld [smem:[%s50]]
  %s52 = scalar_lea.smem %s0, 26
  %s53 = sld [smem:[%s52]]
  %s54 = scalar_lea.smem %s0, 27
  %s55 = sld [smem:[%s54]]
  %s56 = scalar_lea.smem %s0, 28
  %s57 = sld [smem:[%s56]]
  %s58 = scalar_lea.smem %s0, 29
  %s59 = sld [smem:[%s58]]
  %s60 = scalar_lea.smem %s0, 30
  %s61 = sld [smem:[%s60]]
  %s62 = scalar_lea.smem %s0, 31
  %s63 = sld [smem:[%s62]]
  %s64 = sld [smem:[#allocation0]]
  $region134: #{forward.1} parent=0
    _
  %s66 = ssub.s32 1, %s64
  %s67 = scalar_select 0, %s66, %s64
  // Predicated region
  $region2: #{forward.1} parent=0 // pred_check
    _
  $region3: #{forward.1} parent=0 // pred_check_branch
    %69 = sbr.rel (0) target = $region5
  $region4: #{forward.1} parent=0 // pred_region
    _
  $region5: #{forward.1} parent=0 // pred_fallthru
    _
  // Predicated region
  $region6: #{forward.1} parent=0 // pred_check
    _
  $region7: #{forward.1} parent=0 // pred_check_branch
    %71 = sbr.rel (0) target = $region9
  $region8: #{forward.1} parent=0 // pred_region
    _
  $region9: #{forward.1} parent=0 // pred_fallthru
    _
  // Predicated region
  $region10: #{forward.1} parent=0 // pred_check
    _
  $region11: #{forward.1} parent=0 // pred_check_branch
    %73 = sbr.rel (0) target = $region13
  $region12: #{forward.1} parent=0 // pred_region
    _
  $region13: #{forward.1} parent=0 // pred_fallthru
    _
  // Predicated region
  $region14: #{forward.1} parent=0 // pred_check
    _
  $region15: #{forward.1} parent=0 // pred_check_branch
    %75 = sbr.rel (0) target = $region17
  $region16: #{forward.1} parent=0 // pred_region
    _
  $region17: #{forward.1} parent=0 // pred_fallthru
    _
  // Predicated region
  $region18: #{forward.1} parent=0 // pred_check
    _
  $region19: #{forward.1} parent=0 // pred_check_branch
    %77 = sbr.rel (0) target = $region21
  $region20: #{forward.1} parent=0 // pred_region
    _
  $region21: #{forward.1} parent=0 // pred_fallthru
    _
  // Predicated region
  $region22: #{forward.1} parent=0 // pred_check
    _
  $region23: #{forward.1} parent=0 // pred_check_branch
    %79 = sbr.rel (0) target = $region25
  $region24: #{forward.1} parent=0 // pred_region
    _
  $region25: #{forward.1} parent=0 // pred_fallthru
    _
  // Predicated region
  $region26: #{forward.1} parent=0 // pred_check
    _
  $region27: #{forward.1} parent=0 // pred_check_branch
    %81 = sbr.rel (0) target = $region29
  $region28: #{forward.1} parent=0 // pred_region
    _
  $region29: #{forward.1} parent=0 // pred_fallthru
    _
  // Predicated region
  $region30: #{forward.1} parent=0 // pred_check
    _
  $region31: #{forward.1} parent=0 // pred_check_branch
    %83 = sbr.rel (0) target = $region33
  $region32: #{forward.1} parent=0 // pred_region
    _
  $region33: #{forward.1} parent=0 // pred_fallthru
    _
  // Predicated region
  $region34: #{forward.1} parent=0 // pred_check
    _
  $region35: #{forward.1} parent=0 // pred_check_branch
    %85 = sbr.rel (0) target = $region37
  $region36: #{forward.1} parent=0 // pred_region
    _
  $region37: #{forward.1} parent=0 // pred_fallthru
    _
  // Predicated region
  $region38: #{forward.1} parent=0 // pred_check
    _
  $region39: #{forward.1} parent=0 // pred_check_branch
    %87 = sbr.rel (0) target = $region41
  $region40: #{forward.1} parent=0 // pred_region
    _
  $region41: #{forward.1} parent=0 // pred_fallthru
    _
  // Predicated region
  $region42: #{forward.1} parent=0 // pred_check
    _
  $region43: #{forward.1} parent=0 // pred_check_branch
    %89 = sbr.rel (0) target = $region45
  $region44: #{forward.1} parent=0 // pred_region
    _
  $region45: #{forward.1} parent=0 // pred_fallthru
    _
  // Predicated region
  $region46: #{forward.1} parent=0 // pred_check
    _
  $region47: #{forward.1} parent=0 // pred_check_branch
    %91 = sbr.rel (0) target = $region49
  $region48: #{forward.1} parent=0 // pred_region
    _
  $region49: #{forward.1} parent=0 // pred_fallthru
    _
  // Predicated region
  $region50: #{forward.1} parent=0 // pred_check
    _
  $region51: #{forward.1} parent=0 // pred_check_branch
    %93 = sbr.rel (0) target = $region53
  $region52: #{forward.1} parent=0 // pred_region
    _
  $region53: #{forward.1} parent=0 // pred_fallthru
    _
  // Predicated region
  $region54: #{forward.1} parent=0 // pred_check
    _
  $region55: #{forward.1} parent=0 // pred_check_branch
    %95 = sbr.rel (0) target = $region57
  $region56: #{forward.1} parent=0 // pred_region
    _
  $region57: #{forward.1} parent=0 // pred_fallthru
    _
  // Predicated region
  $region58: #{forward.1} parent=0 // pred_check
    _
  $region59: #{forward.1} parent=0 // pred_check_branch
    %97 = sbr.rel (0) target = $region61
  $region60: #{forward.1} parent=0 // pred_region
    _
  $region61: #{forward.1} parent=0 // pred_fallthru
    _
  // Predicated region
  $region62: #{forward.1} parent=0 // pred_check
    _
  $region63: #{forward.1} parent=0 // pred_check_branch
    %99 = sbr.rel (0) target = $region65
  $region64: #{forward.1} parent=0 // pred_region
    _
  $region65: #{forward.1} parent=0 // pred_fallthru
    _
  // Predicated region
  $region66: #{forward.1} parent=0 // pred_check
    _
  $region67: #{forward.1} parent=0 // pred_check_branch
    %101 = sbr.rel (0) target = $region69
  $region68: #{forward.1} parent=0 // pred_region
    _
  $region69: #{forward.1} parent=0 // pred_fallthru
    _
  // Predicated region
  $region70: #{forward.1} parent=0 // pred_check
    _
  $region71: #{forward.1} parent=0 // pred_check_branch
    %103 = sbr.rel (0) target = $region73
  $region72: #{forward.1} parent=0 // pred_region
    _
  $region73: #{forward.1} parent=0 // pred_fallthru
    _
  // Predicated region
  $region74: #{forward.1} parent=0 // pred_check
    _
  $region75: #{forward.1} parent=0 // pred_check_branch
    %105 = sbr.rel (0) target = $region77
  $region76: #{forward.1} parent=0 // pred_region
    _
  $region77: #{forward.1} parent=0 // pred_fallthru
    _
  // Predicated region
  $region78: #{forward.1} parent=0 // pred_check
    _
  $region79: #{forward.1} parent=0 // pred_check_branch
    %107 = sbr.rel (0) target = $region81
  $region80: #{forward.1} parent=0 // pred_region
    _
  $region81: #{forward.1} parent=0 // pred_fallthru
    _
  // Predicated region
  $region82: #{forward.1} parent=0 // pred_check
    _
  $region83: #{forward.1} parent=0 // pred_check_branch
    %109 = sbr.rel (0) target = $region85
  $region84: #{forward.1} parent=0 // pred_region
    _
  $region85: #{forward.1} parent=0 // pred_fallthru
    _
  // Predicated region
  $region86: #{forward.1} parent=0 // pred_check
    _
  $region87: #{forward.1} parent=0 // pred_check_branch
    %111 = sbr.rel (0) target = $region89
  $region88: #{forward.1} parent=0 // pred_region
    _
  $region89: #{forward.1} parent=0 // pred_fallthru
    _
  // Predicated region
  $region90: #{forward.1} parent=0 // pred_check
    _
  $region91: #{forward.1} parent=0 // pred_check_branch
    %113 = sbr.rel (0) target = $region93
  $region92: #{forward.1} parent=0 // pred_region
    _
  $region93: #{forward.1} parent=0 // pred_fallthru
    _
  // Predicated region
  $region94: #{forward.1} parent=0 // pred_check
    _
  $region95: #{forward.1} parent=0 // pred_check_branch
    %115 = sbr.rel (0) target = $region97
  $region96: #{forward.1} parent=0 // pred_region
    _
  $region97: #{forward.1} parent=0 // pred_fallthru
    _
  // Predicated region
  $region98: #{forward.1} parent=0 // pred_check
    _
  $region99: #{forward.1} parent=0 // pred_check_branch
    %117 = sbr.rel (0) target = $region101
  $region100: #{forward.1} parent=0 // pred_region
    _
  $region101: #{forward.1} parent=0 // pred_fallthru
    _
  // Predicated region
  $region102: #{forward.1} parent=0 // pred_check
    _
  $region103: #{forward.1} parent=0 // pred_check_branch
    %119 = sbr.rel (0) target = $region105
  $region104: #{forward.1} parent=0 // pred_region
    _
  $region105: #{forward.1} parent=0 // pred_fallthru
    _
  // Predicated region
  $region106: #{forward.1} parent=0 // pred_check
    _
  $region107: #{forward.1} parent=0 // pred_check_branch
    %121 = sbr.rel (0) target = $region109
  $region108: #{forward.1} parent=0 // pred_region
    _
  $region109: #{forward.1} parent=0 // pred_fallthru
    _
  // Predicated region
  $region110: #{forward.1} parent=0 // pred_check
    _
  $region111: #{forward.1} parent=0 // pred_check_branch
    %123 = sbr.rel (0) target = $region113
  $region112: #{forward.1} parent=0 // pred_region
    _
  $region113: #{forward.1} parent=0 // pred_fallthru
    _
  // Predicated region
  $region114: #{forward.1} parent=0 // pred_check
    _
  $region115: #{forward.1} parent=0 // pred_check_branch
    %125 = sbr.rel (0) target = $region117
  $region116: #{forward.1} parent=0 // pred_region
    _
  $region117: #{forward.1} parent=0 // pred_fallthru
    _
  // Predicated region
  $region118: #{forward.1} parent=0 // pred_check
    _
  $region119: #{forward.1} parent=0 // pred_check_branch
    %127 = sbr.rel (0) target = $region121
  $region120: #{forward.1} parent=0 // pred_region
    _
  $region121: #{forward.1} parent=0 // pred_fallthru
    _
  // Predicated region
  $region122: #{forward.1} parent=0 // pred_check
    _
  $region123: #{forward.1} parent=0 // pred_check_branch
    %129 = sbr.rel (0) target = $region125
  $region124: #{forward.1} parent=0 // pred_region
    _
  $region125: #{forward.1} parent=0 // pred_fallthru
    _
  %v130 = vld [vmem:[%s1] sm:$0xff]
  %v132 = vlaneseq
  %v133 = vshrl.u32 %v132, 7
  %v134 = vsub.s32 0, %v133
  %v135 = vrot.slane %v130, %v134
  %v136 = vlaneseq
  %v137 = vshrl.u32 %v136, 7
  %v138 = vsub.s32 1, %v137
  %v139 = vrot.slane %v130, %v138
  %v140 = vlaneseq
  %v141 = vshrl.u32 %v140, 7
  %v142 = vsub.s32 2, %v141
  %v143 = vrot.slane %v130, %v142
  %v144 = vlaneseq
  %v145 = vshrl.u32 %v144, 7
  %v146 = vsub.s32 3, %v145
  %v147 = vrot.slane %v130, %v146
  %152 = vrot.lane.b32.xlu0 %v135, 127
  %v153 = vpop.permute.xlu0 %152
  %154 = vrot.lane.b32.xlu0 %v139, 127
  %v155 = vpop.permute.xlu0 %154
  %156 = vrot.lane.b32.xlu0 %v143, 127
  %v157 = vpop.permute.xlu0 %156
  %158 = vrot.lane.b32.xlu0 %v147, 127
  %v159 = vpop.permute.xlu0 %158
  %vm160 = vcmask 1039360
  %v161 = vsel %vm160, %v153, %v155
  %v162 = vsel %vm160, %v155, %v157
  %v163 = vsel %vm160, %v157, %v159
  %168 = vrot.lane.b32.xlu0 %v135, 126
  %v169 = vpop.permute.xlu0 %168
  %170 = vrot.lane.b32.xlu0 %v139, 126
  %v171 = vpop.permute.xlu0 %170
  %172 = vrot.lane.b32.xlu0 %v143, 126
  %v173 = vpop.permute.xlu0 %172
  %174 = vrot.lane.b32.xlu0 %v147, 126
  %v175 = vpop.permute.xlu0 %174
  %vm176 = vcmask 1031168
  %v177 = vsel %vm176, %v169, %v171
  %v178 = vsel %vm176, %v171, %v173
  %v179 = vsel %vm176, %v173, %v175
  %184 = vrot.lane.b32.xlu0 %v135, 125
  %v185 = vpop.permute.xlu0 %184
  %186 = vrot.lane.b32.xlu0 %v139, 125
  %v187 = vpop.permute.xlu0 %186
  %188 = vrot.lane.b32.xlu0 %v143, 125
  %v189 = vpop.permute.xlu0 %188
  %190 = vrot.lane.b32.xlu0 %v147, 125
  %v191 = vpop.permute.xlu0 %190
  %vm192 = vcmask 1022976
  %v193 = vsel %vm192, %v185, %v187
  %v194 = vsel %vm192, %v187, %v189
  %v195 = vsel %vm192, %v189, %v191
  %200 = vrot.lane.b32.xlu0 %v135, 124
  %v201 = vpop.permute.xlu0 %200
  %202 = vrot.lane.b32.xlu0 %v139, 124
  %v203 = vpop.permute.xlu0 %202
  %204 = vrot.lane.b32.xlu0 %v143, 124
  %v205 = vpop.permute.xlu0 %204
  %206 = vrot.lane.b32.xlu0 %v147, 124
  %v207 = vpop.permute.xlu0 %206
  %vm208 = vcmask 1014784
  %v209 = vsel %vm208, %v201, %v203
  %v210 = vsel %vm208, %v203, %v205
  %v211 = vsel %vm208, %v205, %v207
  %216 = vrot.lane.b32.xlu0 %v135, 123
  %v217 = vpop.permute.xlu0 %216
  %218 = vrot.lane.b32.xlu0 %v139, 123
  %v219 = vpop.permute.xlu0 %218
  %220 = vrot.lane.b32.xlu0 %v143, 123
  %v221 = vpop.permute.xlu0 %220
  %222 = vrot.lane.b32.xlu0 %v147, 123
  %v223 = vpop.permute.xlu0 %222
  %vm224 = vcmask 1006592
  %v225 = vsel %vm224, %v217, %v219
  %v226 = vsel %vm224, %v219, %v221
  %v227 = vsel %vm224, %v221, %v223
  %232 = vrot.lane.b32.xlu0 %v135, 122
  %v233 = vpop.permute.xlu0 %232
  %234 = vrot.lane.b32.xlu0 %v139, 122
  %v235 = vpop.permute.xlu0 %234
  %236 = vrot.lane.b32.xlu0 %v143, 122
  %v237 = vpop.permute.xlu0 %236
  %238 = vrot.lane.b32.xlu0 %v147, 122
  %v239 = vpop.permute.xlu0 %238
  %vm240 = vcmask 998400
  %v241 = vsel %vm240, %v233, %v235
  %v242 = vsel %vm240, %v235, %v237
  %v243 = vsel %vm240, %v237, %v239
  %248 = vrot.lane.b32.xlu0 %v135, 121
  %v249 = vpop.permute.xlu0 %248
  %250 = vrot.lane.b32.xlu0 %v139, 121
  %v251 = vpop.permute.xlu0 %250
  %252 = vrot.lane.b32.xlu0 %v143, 121
  %v253 = vpop.permute.xlu0 %252
  %254 = vrot.lane.b32.xlu0 %v147, 121
  %v255 = vpop.permute.xlu0 %254
  %vm256 = vcmask 990208
  %v257 = vsel %vm256, %v249, %v251
  %v258 = vsel %vm256, %v251, %v253
  %v259 = vsel %vm256, %v253, %v255
  %264 = vrot.lane.b32.xlu0 %v135, 120
  %v265 = vpop.permute.xlu0 %264
  %266 = vrot.lane.b32.xlu0 %v139, 120
  %v267 = vpop.permute.xlu0 %266
  %268 = vrot.lane.b32.xlu0 %v143, 120
  %v269 = vpop.permute.xlu0 %268
  %270 = vrot.lane.b32.xlu0 %v147, 120
  %v271 = vpop.permute.xlu0 %270
  %vm272 = vcmask 982016
  %v273 = vsel %vm272, %v265, %v267
  %v274 = vsel %vm272, %v267, %v269
  %v275 = vsel %vm272, %v269, %v271
  %280 = vrot.lane.b32.xlu0 %v135, 119
  %v281 = vpop.permute.xlu0 %280
  %282 = vrot.lane.b32.xlu0 %v139, 119
  %v283 = vpop.permute.xlu0 %282
  %284 = vrot.lane.b32.xlu0 %v143, 119
  %v285 = vpop.permute.xlu0 %284
  %286 = vrot.lane.b32.xlu0 %v147, 119
  %v287 = vpop.permute.xlu0 %286
  %vm288 = vcmask 973824
  %v289 = vsel %vm288, %v281, %v283
  %v290 = vsel %vm288, %v283, %v285
  %v291 = vsel %vm288, %v285, %v287
  %296 = vrot.lane.b32.xlu0 %v135, 118
  %v297 = vpop.permute.xlu0 %296
  %298 = vrot.lane.b32.xlu0 %v139, 118
  %v299 = vpop.permute.xlu0 %298
  %300 = vrot.lane.b32.xlu0 %v143, 118
  %v301 = vpop.permute.xlu0 %300
  %302 = vrot.lane.b32.xlu0 %v147, 118
  %v303 = vpop.permute.xlu0 %302
  %vm304 = vcmask 965632
  %v305 = vsel %vm304, %v297, %v299
  %v306 = vsel %vm304, %v299, %v301
  %v307 = vsel %vm304, %v301, %v303
  %312 = vrot.lane.b32.xlu0 %v135, 117
  %v313 = vpop.permute.xlu0 %312
  %314 = vrot.lane.b32.xlu0 %v139, 117
  %v315 = vpop.permute.xlu0 %314
  %316 = vrot.lane.b32.xlu0 %v143, 117
  %v317 = vpop.permute.xlu0 %316
  %318 = vrot.lane.b32.xlu0 %v147, 117
  %v319 = vpop.permute.xlu0 %318
  %vm320 = vcmask 957440
  %v321 = vsel %vm320, %v313, %v315
  %v322 = vsel %vm320, %v315, %v317
  %v323 = vsel %vm320, %v317, %v319
  %328 = vrot.lane.b32.xlu0 %v135, 116
  %v329 = vpop.permute.xlu0 %328
  %330 = vrot.lane.b32.xlu0 %v139, 116
  %v331 = vpop.permute.xlu0 %330
  %332 = vrot.lane.b32.xlu0 %v143, 116
  %v333 = vpop.permute.xlu0 %332
  %334 = vrot.lane.b32.xlu0 %v147, 116
  %v335 = vpop.permute.xlu0 %334
  %vm336 = vcmask 949248
  %v337 = vsel %vm336, %v329, %v331
  %v338 = vsel %vm336, %v331, %v333
  %v339 = vsel %vm336, %v333, %v335
  %344 = vrot.lane.b32.xlu0 %v135, 115
  %v345 = vpop.permute.xlu0 %344
  %346 = vrot.lane.b32.xlu0 %v139, 115
  %v347 = vpop.permute.xlu0 %346
  %348 = vrot.lane.b32.xlu0 %v143, 115
  %v349 = vpop.permute.xlu0 %348
  %350 = vrot.lane.b32.xlu0 %v147, 115
  %v351 = vpop.permute.xlu0 %350
  %vm352 = vcmask 941056
  %v353 = vsel %vm352, %v345, %v347
  %v354 = vsel %vm352, %v347, %v349
  %v355 = vsel %vm352, %v349, %v351
  %360 = vrot.lane.b32.xlu0 %v135, 114
  %v361 = vpop.permute.xlu0 %360
  %362 = vrot.lane.b32.xlu0 %v139, 114
  %v363 = vpop.permute.xlu0 %362
  %364 = vrot.lane.b32.xlu0 %v143, 114
  %v365 = vpop.permute.xlu0 %364
  %366 = vrot.lane.b32.xlu0 %v147, 114
  %v367 = vpop.permute.xlu0 %366
  %vm368 = vcmask 932864
  %v369 = vsel %vm368, %v361, %v363
  %v370 = vsel %vm368, %v363, %v365
  %v371 = vsel %vm368, %v365, %v367
  %vm376 = vcmask 1040384
  %v377 = vsel %vm376, %v135, %v161
  %v378 = vsel %vm376, %v139, %v162
  %v379 = vsel %vm376, %v143, %v163
  %v380 = vsel %vm376, %v147, %v159
  %vm381 = vcmask 1041408
  %v382 = vsel %vm381, %v377, %v177
  %v383 = vsel %vm381, %v378, %v178
  %v384 = vsel %vm381, %v379, %v179
  %v385 = vsel %vm381, %v380, %v175
  %vm386 = vcmask 1042432
  %v387 = vsel %vm386, %v382, %v193
  %v388 = vsel %vm386, %v383, %v194
  %v389 = vsel %vm386, %v384, %v195
  %v390 = vsel %vm386, %v385, %v191
  %vm391 = vcmask 1043456
  %v392 = vsel %vm391, %v387, %v209
  %v393 = vsel %vm391, %v388, %v210
  %v394 = vsel %vm391, %v389, %v211
  %v395 = vsel %vm391, %v390, %v207
  %vm396 = vcmask 1044480
  %v397 = vsel %vm396, %v392, %v225
  %v398 = vsel %vm396, %v393, %v226
  %v399 = vsel %vm396, %v394, %v227
  %v400 = vsel %vm396, %v395, %v223
  %vm401 = vcmask 1045504
  %v402 = vsel %vm401, %v397, %v241
  %v403 = vsel %vm401, %v398, %v242
  %v404 = vsel %vm401, %v399, %v243
  %v405 = vsel %vm401, %v400, %v239
  %vm406 = vcmask 1046528
  %v407 = vsel %vm406, %v402, %v257
  %v408 = vsel %vm406, %v403, %v258
  %v409 = vsel %vm406, %v404, %v259
  %v410 = vsel %vm406, %v405, %v255
  %v411 = vsel %vm376, %v273, %v289
  %v412 = vsel %vm376, %v274, %v290
  %v413 = vsel %vm376, %v275, %v291
  %v414 = vsel %vm376, %v271, %v287
  %v415 = vsel %vm381, %v411, %v305
  %v416 = vsel %vm381, %v412, %v306
  %v417 = vsel %vm381, %v413, %v307
  %v418 = vsel %vm381, %v414, %v303
  %v419 = vsel %vm386, %v415, %v321
  %v420 = vsel %vm386, %v416, %v322
  %v421 = vsel %vm386, %v417, %v323
  %v422 = vsel %vm386, %v418, %v319
  %v423 = vsel %vm391, %v419, %v337
  %v424 = vsel %vm391, %v420, %v338
  %v425 = vsel %vm391, %v421, %v339
  %v426 = vsel %vm391, %v422, %v335
  %v427 = vsel %vm396, %v423, %v353
  %v428 = vsel %vm396, %v424, %v354
  %v429 = vsel %vm396, %v425, %v355
  %v430 = vsel %vm396, %v426, %v351
  %v431 = vsel %vm401, %v427, %v369
  %v432 = vsel %vm401, %v428, %v370
  %v433 = vsel %vm401, %v429, %v371
  %v434 = vsel %vm401, %v430, %v367
  %v435 = vlaneseq
  %v436 = vshrl.u32 %v435, 7
  %v437 = vsub.s32 4, %v436
  %v438 = vrot.slane %v130, %v437
  %v439 = vlaneseq
  %v440 = vshrl.u32 %v439, 7
  %v441 = vsub.s32 5, %v440
  %v442 = vrot.slane %v130, %v441
  %v443 = vlaneseq
  %v444 = vshrl.u32 %v443, 7
  %v445 = vsub.s32 6, %v444
  %v446 = vrot.slane %v130, %v445
  %v447 = vlaneseq
  %v448 = vshrl.u32 %v447, 7
  %v449 = vsub.s32 7, %v448
  %v450 = vrot.slane %v130, %v449
  %455 = vrot.lane.b32.xlu0 %v438, 127
  %v456 = vpop.permute.xlu0 %455
  %457 = vrot.lane.b32.xlu0 %v442, 127
  %v458 = vpop.permute.xlu0 %457
  %459 = vrot.lane.b32.xlu0 %v446, 127
  %v460 = vpop.permute.xlu0 %459
  %461 = vrot.lane.b32.xlu0 %v450, 127
  %v462 = vpop.permute.xlu0 %461
  %v463 = vsel %vm160, %v456, %v458
  %v464 = vsel %vm160, %v458, %v460
  %v465 = vsel %vm160, %v460, %v462
  %470 = vrot.lane.b32.xlu0 %v438, 126
  %v471 = vpop.permute.xlu0 %470
  %472 = vrot.lane.b32.xlu0 %v442, 126
  %v473 = vpop.permute.xlu0 %472
  %474 = vrot.lane.b32.xlu0 %v446, 126
  %v475 = vpop.permute.xlu0 %474
  %476 = vrot.lane.b32.xlu0 %v450, 126
  %v477 = vpop.permute.xlu0 %476
  %v478 = vsel %vm176, %v471, %v473
  %v479 = vsel %vm176, %v473, %v475
  %v480 = vsel %vm176, %v475, %v477
  %485 = vrot.lane.b32.xlu0 %v438, 125
  %v486 = vpop.permute.xlu0 %485
  %487 = vrot.lane.b32.xlu0 %v442, 125
  %v488 = vpop.permute.xlu0 %487
  %489 = vrot.lane.b32.xlu0 %v446, 125
  %v490 = vpop.permute.xlu0 %489
  %491 = vrot.lane.b32.xlu0 %v450, 125
  %v492 = vpop.permute.xlu0 %491
  %v493 = vsel %vm192, %v486, %v488
  %v494 = vsel %vm192, %v488, %v490
  %v495 = vsel %vm192, %v490, %v492
  %500 = vrot.lane.b32.xlu0 %v438, 124
  %v501 = vpop.permute.xlu0 %500
  %502 = vrot.lane.b32.xlu0 %v442, 124
  %v503 = vpop.permute.xlu0 %502
  %504 = vrot.lane.b32.xlu0 %v446, 124
  %v505 = vpop.permute.xlu0 %504
  %506 = vrot.lane.b32.xlu0 %v450, 124
  %v507 = vpop.permute.xlu0 %506
  %v508 = vsel %vm208, %v501, %v503
  %v509 = vsel %vm208, %v503, %v505
  %v510 = vsel %vm208, %v505, %v507
  %515 = vrot.lane.b32.xlu0 %v438, 123
  %v516 = vpop.permute.xlu0 %515
  %517 = vrot.lane.b32.xlu0 %v442, 123
  %v518 = vpop.permute.xlu0 %517
  %519 = vrot.lane.b32.xlu0 %v446, 123
  %v520 = vpop.permute.xlu0 %519
  %521 = vrot.lane.b32.xlu0 %v450, 123
  %v522 = vpop.permute.xlu0 %521
  %v523 = vsel %vm224, %v516, %v518
  %v524 = vsel %vm224, %v518, %v520
  %v525 = vsel %vm224, %v520, %v522
  %530 = vrot.lane.b32.xlu0 %v438, 122
  %v531 = vpop.permute.xlu0 %530
  %532 = vrot.lane.b32.xlu0 %v442, 122
  %v533 = vpop.permute.xlu0 %532
  %534 = vrot.lane.b32.xlu0 %v446, 122
  %v535 = vpop.permute.xlu0 %534
  %536 = vrot.lane.b32.xlu0 %v450, 122
  %v537 = vpop.permute.xlu0 %536
  %v538 = vsel %vm240, %v531, %v533
  %v539 = vsel %vm240, %v533, %v535
  %v540 = vsel %vm240, %v535, %v537
  %545 = vrot.lane.b32.xlu0 %v438, 121
  %v546 = vpop.permute.xlu0 %545
  %547 = vrot.lane.b32.xlu0 %v442, 121
  %v548 = vpop.permute.xlu0 %547
  %549 = vrot.lane.b32.xlu0 %v446, 121
  %v550 = vpop.permute.xlu0 %549
  %551 = vrot.lane.b32.xlu0 %v450, 121
  %v552 = vpop.permute.xlu0 %551
  %v553 = vsel %vm256, %v546, %v548
  %v554 = vsel %vm256, %v548, %v550
  %v555 = vsel %vm256, %v550, %v552
  %560 = vrot.lane.b32.xlu0 %v438, 120
  %v561 = vpop.permute.xlu0 %560
  %562 = vrot.lane.b32.xlu0 %v442, 120
  %v563 = vpop.permute.xlu0 %562
  %564 = vrot.lane.b32.xlu0 %v446, 120
  %v565 = vpop.permute.xlu0 %564
  %566 = vrot.lane.b32.xlu0 %v450, 120
  %v567 = vpop.permute.xlu0 %566
  %v568 = vsel %vm272, %v561, %v563
  %v569 = vsel %vm272, %v563, %v565
  %v570 = vsel %vm272, %v565, %v567
  %575 = vrot.lane.b32.xlu0 %v438, 119
  %v576 = vpop.permute.xlu0 %575
  %577 = vrot.lane.b32.xlu0 %v442, 119
  %v578 = vpop.permute.xlu0 %577
  %579 = vrot.lane.b32.xlu0 %v446, 119
  %v580 = vpop.permute.xlu0 %579
  %581 = vrot.lane.b32.xlu0 %v450, 119
  %v582 = vpop.permute.xlu0 %581
  %v583 = vsel %vm288, %v576, %v578
  %v584 = vsel %vm288, %v578, %v580
  %v585 = vsel %vm288, %v580, %v582
  %590 = vrot.lane.b32.xlu0 %v438, 118
  %v591 = vpop.permute.xlu0 %590
  %592 = vrot.lane.b32.xlu0 %v442, 118
  %v593 = vpop.permute.xlu0 %592
  %594 = vrot.lane.b32.xlu0 %v446, 118
  %v595 = vpop.permute.xlu0 %594
  %596 = vrot.lane.b32.xlu0 %v450, 118
  %v597 = vpop.permute.xlu0 %596
  %v598 = vsel %vm304, %v591, %v593
  %v599 = vsel %vm304, %v593, %v595
  %v600 = vsel %vm304, %v595, %v597
  %605 = vrot.lane.b32.xlu0 %v438, 117
  %v606 = vpop.permute.xlu0 %605
  %607 = vrot.lane.b32.xlu0 %v442, 117
  %v608 = vpop.permute.xlu0 %607
  %609 = vrot.lane.b32.xlu0 %v446, 117
  %v610 = vpop.permute.xlu0 %609
  %611 = vrot.lane.b32.xlu0 %v450, 117
  %v612 = vpop.permute.xlu0 %611
  %v613 = vsel %vm320, %v606, %v608
  %v614 = vsel %vm320, %v608, %v610
  %v615 = vsel %vm320, %v610, %v612
  %620 = vrot.lane.b32.xlu0 %v438, 116
  %v621 = vpop.permute.xlu0 %620
  %622 = vrot.lane.b32.xlu0 %v442, 116
  %v623 = vpop.permute.xlu0 %622
  %624 = vrot.lane.b32.xlu0 %v446, 116
  %v625 = vpop.permute.xlu0 %624
  %626 = vrot.lane.b32.xlu0 %v450, 116
  %v627 = vpop.permute.xlu0 %626
  %v628 = vsel %vm336, %v621, %v623
  %v629 = vsel %vm336, %v623, %v625
  %v630 = vsel %vm336, %v625, %v627
  %635 = vrot.lane.b32.xlu0 %v438, 115
  %v636 = vpop.permute.xlu0 %635
  %637 = vrot.lane.b32.xlu0 %v442, 115
  %v638 = vpop.permute.xlu0 %637
  %639 = vrot.lane.b32.xlu0 %v446, 115
  %v640 = vpop.permute.xlu0 %639
  %641 = vrot.lane.b32.xlu0 %v450, 115
  %v642 = vpop.permute.xlu0 %641
  %v643 = vsel %vm352, %v636, %v638
  %v644 = vsel %vm352, %v638, %v640
  %v645 = vsel %vm352, %v640, %v642
  %650 = vrot.lane.b32.xlu0 %v438, 114
  %v651 = vpop.permute.xlu0 %650
  %652 = vrot.lane.b32.xlu0 %v442, 114
  %v653 = vpop.permute.xlu0 %652
  %654 = vrot.lane.b32.xlu0 %v446, 114
  %v655 = vpop.permute.xlu0 %654
  %656 = vrot.lane.b32.xlu0 %v450, 114
  %v657 = vpop.permute.xlu0 %656
  %v658 = vsel %vm368, %v651, %v653
  %v659 = vsel %vm368, %v653, %v655
  %v660 = vsel %vm368, %v655, %v657
  %v665 = vsel %vm376, %v438, %v463
  %v666 = vsel %vm376, %v442, %v464
  %v667 = vsel %vm376, %v446, %v465
  %v668 = vsel %vm376, %v450, %v462
  %v669 = vsel %vm381, %v665, %v478
  %v670 = vsel %vm381, %v666, %v479
  %v671 = vsel %vm381, %v667, %v480
  %v672 = vsel %vm381, %v668, %v477
  %v673 = vsel %vm386, %v669, %v493
  %v674 = vsel %vm386, %v670, %v494
  %v675 = vsel %vm386, %v671, %v495
  %v676 = vsel %vm386, %v672, %v492
  %v677 = vsel %vm391, %v673, %v508
  %v678 = vsel %vm391, %v674, %v509
  %v679 = vsel %vm391, %v675, %v510
  %v680 = vsel %vm391, %v676, %v507
  %v681 = vsel %vm396, %v677, %v523
  %v682 = vsel %vm396, %v678, %v524
  %v683 = vsel %vm396, %v679, %v525
  %v684 = vsel %vm396, %v680, %v522
  %v685 = vsel %vm401, %v681, %v538
  %v686 = vsel %vm401, %v682, %v539
  %v687 = vsel %vm401, %v683, %v540
  %v688 = vsel %vm401, %v684, %v537
  %v689 = vsel %vm406, %v685, %v553
  %v690 = vsel %vm406, %v686, %v554
  %v691 = vsel %vm406, %v687, %v555
  %v692 = vsel %vm406, %v688, %v552
  %v693 = vsel %vm376, %v568, %v583
  %v694 = vsel %vm376, %v569, %v584
  %v695 = vsel %vm376, %v570, %v585
  %v696 = vsel %vm376, %v567, %v582
  %v697 = vsel %vm381, %v693, %v598
  %v698 = vsel %vm381, %v694, %v599
  %v699 = vsel %vm381, %v695, %v600
  %v700 = vsel %vm381, %v696, %v597
  %v701 = vsel %vm386, %v697, %v613
  %v702 = vsel %vm386, %v698, %v614
  %v703 = vsel %vm386, %v699, %v615
  %v704 = vsel %vm386, %v700, %v612
  %v705 = vsel %vm391, %v701, %v628
  %v706 = vsel %vm391, %v702, %v629
  %v707 = vsel %vm391, %v703, %v630
  %v708 = vsel %vm391, %v704, %v627
  %v709 = vsel %vm396, %v705, %v643
  %v710 = vsel %vm396, %v706, %v644
  %v711 = vsel %vm396, %v707, %v645
  %v712 = vsel %vm396, %v708, %v642
  %v713 = vsel %vm401, %v709, %v658
  %v714 = vsel %vm401, %v710, %v659
  %v715 = vsel %vm401, %v711, %v660
  %v716 = vsel %vm401, %v712, %v657
  %725 = vrot.lane.b32.xlu0 %v689, 114
  %v726 = vpop.permute.xlu0 %725
  %727 = vrot.lane.b32.xlu0 %v690, 114
  %v728 = vpop.permute.xlu0 %727
  %729 = vrot.lane.b32.xlu0 %v691, 114
  %v730 = vpop.permute.xlu0 %729
  %731 = vrot.lane.b32.xlu0 %v692, 114
  %v732 = vpop.permute.xlu0 %731
  %733 = vrot.lane.b32.xlu0 %v713, 114
  %v734 = vpop.permute.xlu0 %733
  %735 = vrot.lane.b32.xlu0 %v714, 114
  %v736 = vpop.permute.xlu0 %735
  %737 = vrot.lane.b32.xlu0 %v715, 114
  %v738 = vpop.permute.xlu0 %737
  %739 = vrot.lane.b32.xlu0 %v716, 114
  %v740 = vpop.permute.xlu0 %739
  %v741 = vsel %vm368, %v726, %v728
  %v742 = vsel %vm368, %v728, %v730
  %v743 = vsel %vm368, %v730, %v732
  %v744 = vsel %vm368, %v734, %v736
  %v745 = vsel %vm368, %v736, %v738
  %v746 = vsel %vm368, %v738, %v740
  %v753 = vsel %vm368, %v410, %v726
  %v754 = vsel %vm368, %v434, %v734
  %v755 = vld [vmem:[%s3] sm:$0xff]
  %v756 = vld [vmem:[%s5] sm:$0xff]
  %758 = vset.pattern.permute.xlu0 0
  %759 = vperm.xlu0 %758, %v756
  %v760 = vpop.permute.xlu0 %759
  %vm762 = vcmask 121856
  %v764 = vsel %vm762, %v755, 0
  %v767 = vsel %vm406, %v431, 0
  %v770 = vsel %vm406, %v432, 0
  %v773 = vsel %vm406, %v433, 0
  %v776 = vsel %vm406, %v754, 0
  %v778 = vsel %vm406, %v744, 0
  %v780 = vsel %vm406, %v745, 0
  %v782 = vsel %vm406, %v746, 0
  %v784 = vsel %vm406, %v740, 0
  %786 = vmatprep.subr.mxu0 %v408
  %787 = vmatpush1.msra.mxu0 %v407
  %788 = vmatprep.subr.mxu0 %v770
  %789 = vmatpush1.msra.mxu0 %v767
  %790 = vmatprep.subr.mxu0 0.0
  %791 = vmatpush1.msra.mxu0 0.0
  %792 = vmatprep.subr.mxu0 0.0
  %793 = vmatpush1.msra.mxu0 0.0
  %794 = vmatprep.subr.mxu0 0.0
  %795 = vmatpush1.msra.mxu0 0.0
  %796 = vmatprep.subr.mxu0 0.0
  %797 = vmatpush1.msra.mxu0 0.0
  %798 = vmatprep.subr.mxu0 0.0
  %799 = vmatpush1.msra.mxu0 0.0
  %800 = vmatprep.subr.mxu0 0.0
  %801 = vmatpush1.msra.mxu0 0.0
  %802 = vmatprep.subr.mxu0 0.0
  %803 = vmatpush1.msra.mxu0 0.0
  %804 = vmatprep.subr.mxu0 0.0
  %805 = vmatpush1.msra.mxu0 0.0
  %806 = vmatprep.subr.mxu0 0.0
  %807 = vmatpush1.msra.mxu0 0.0
  %808 = vmatprep.subr.mxu0 0.0
  %809 = vmatpush1.msra.mxu0 0.0
  %810 = vmatprep.subr.mxu0 0.0
  %811 = vmatpush1.msra.mxu0 0.0
  %812 = vmatprep.subr.mxu0 0.0
  %813 = vmatpush1.msra.mxu0 0.0
  %814 = vmatprep.subr.mxu0 0.0
  %815 = vmatpush1.msra.mxu0 0.0
  %816 = vmatprep.subr.mxu0 0.0
  %817 = vmatpush1.msra.mxu0 0.0
  %818 = vmatprep.subr.mxu0 0.0
  %819 = vmatpush1.msra.mxu0 0.0
  %820 = vmatprep.subr.mxu0 0.0
  %821 = vmatpush1.msra.mxu0 0.0
  %822 = vmatprep.subr.mxu0 0.0
  %823 = vmatpush1.msra.mxu0 0.0
  %824 = vmatprep.subr.mxu0 0.0
  %825 = vmatpush1.msra.mxu0 0.0
  %826 = vmatprep.subr.mxu0 0.0
  %827 = vmatpush1.msra.mxu0 0.0
  %828 = vmatprep.subr.mxu0 0.0
  %829 = vmatpush1.msra.mxu0 0.0
  %830 = vmatprep.subr.mxu0 0.0
  %831 = vmatpush1.msra.mxu0 0.0
  %832 = vmatprep.subr.mxu0 0.0
  %833 = vmatpush1.msra.mxu0 0.0
  %834 = vmatprep.subr.mxu0 0.0
  %835 = vmatpush1.msra.mxu0 0.0
  %836 = vmatprep.subr.mxu0 0.0
  %837 = vmatpush1.msra.mxu0 0.0
  %838 = vmatprep.subr.mxu0 0.0
  %839 = vmatpush1.msra.mxu0 0.0
  %840 = vmatprep.subr.mxu0 0.0
  %841 = vmatpush1.msra.mxu0 0.0
  %842 = vmatprep.subr.mxu0 0.0
  %843 = vmatpush1.msra.mxu0 0.0
  %844 = vmatprep.subr.mxu0 0.0
  %845 = vmatpush1.msra.mxu0 0.0
  %846 = vmatprep.subr.mxu0 0.0
  %847 = vmatpush1.msra.mxu0 0.0
  %848 = vmatprep.subr.mxu0 0.0
  %849 = vmatpush1.msra.mxu0 0.0
  %850 = vmatprep.mubr.f32.mxu0 0.0
  %851 = vmatmul.mubr.f32.gmra.mrb[0].mxu0 %v764
  %v852 = vpop.f32.mrb[0].mxu0
  %v853 = vadd.f32 %v760, %v852
  %v854 = vpop.f32.mrb[0].mxu0
  %v855 = vadd.f32 %v760, %v854
  %856 = vdwg.mxu0
  %857 = vmatprep.subr.mxu0 %v753
  %858 = vmatpush1.msra.mxu0 %v409
  %859 = vmatprep.subr.mxu0 %v776
  %860 = vmatpush1.msra.mxu0 %v773
  %861 = vmatprep.subr.mxu0 0.0
  %862 = vmatpush1.msra.mxu0 0.0
  %863 = vmatprep.subr.mxu0 0.0
  %864 = vmatpush1.msra.mxu0 0.0
  %865 = vmatprep.subr.mxu0 0.0
  %866 = vmatpush1.msra.mxu0 0.0
  %867 = vmatprep.subr.mxu0 0.0
  %868 = vmatpush1.msra.mxu0 0.0
  %869 = vmatprep.subr.mxu0 0.0
  %870 = vmatpush1.msra.mxu0 0.0
  %871 = vmatprep.subr.mxu0 0.0
  %872 = vmatpush1.msra.mxu0 0.0
  %873 = vmatprep.subr.mxu0 0.0
  %874 = vmatpush1.msra.mxu0 0.0
  %875 = vmatprep.subr.mxu0 0.0
  %876 = vmatpush1.msra.mxu0 0.0
  %877 = vmatprep.subr.mxu0 0.0
  %878 = vmatpush1.msra.mxu0 0.0
  %879 = vmatprep.subr.mxu0 0.0
  %880 = vmatpush1.msra.mxu0 0.0
  %881 = vmatprep.subr.mxu0 0.0
  %882 = vmatpush1.msra.mxu0 0.0
  %883 = vmatprep.subr.mxu0 0.0
  %884 = vmatpush1.msra.mxu0 0.0
  %885 = vmatprep.subr.mxu0 0.0
  %886 = vmatpush1.msra.mxu0 0.0
  %887 = vmatprep.subr.mxu0 0.0
  %888 = vmatpush1.msra.mxu0 0.0
  %889 = vmatprep.subr.mxu0 0.0
  %890 = vmatpush1.msra.mxu0 0.0
  %891 = vmatprep.subr.mxu0 0.0
  %892 = vmatpush1.msra.mxu0 0.0
  %893 = vmatprep.subr.mxu0 0.0
  %894 = vmatpush1.msra.mxu0 0.0
  %895 = vmatprep.subr.mxu0 0.0
  %896 = vmatpush1.msra.mxu0 0.0
  %897 = vmatprep.subr.mxu0 0.0
  %898 = vmatpush1.msra.mxu0 0.0
  %899 = vmatprep.subr.mxu0 0.0
  %900 = vmatpush1.msra.mxu0 0.0
  %901 = vmatprep.subr.mxu0 0.0
  %902 = vmatpush1.msra.mxu0 0.0
  %903 = vmatprep.subr.mxu0 0.0
  %904 = vmatpush1.msra.mxu0 0.0
  %905 = vmatprep.subr.mxu0 0.0
  %906 = vmatpush1.msra.mxu0 0.0
  %907 = vmatprep.subr.mxu0 0.0
  %908 = vmatpush1.msra.mxu0 0.0
  %909 = vmatprep.subr.mxu0 0.0
  %910 = vmatpush1.msra.mxu0 0.0
  %911 = vmatprep.subr.mxu0 0.0
  %912 = vmatpush1.msra.mxu0 0.0
  %913 = vmatprep.subr.mxu0 0.0
  %914 = vmatpush1.msra.mxu0 0.0
  %915 = vmatprep.subr.mxu0 0.0
  %916 = vmatpush1.msra.mxu0 0.0
  %917 = vmatprep.subr.mxu0 0.0
  %918 = vmatpush1.msra.mxu0 0.0
  %919 = vmatprep.subr.mxu0 0.0
  %920 = vmatpush1.msra.mxu0 0.0
  %921 = vmatprep.mubr.f32.mxu0 0.0
  %922 = vmatmul.mubr.f32.gmra.mrb[0].mxu0 %v764
  %v923 = vpop.f32.mrb[0].mxu0
  %v924 = vadd.f32 %v760, %v923
  %v925 = vpop.f32.mrb[0].mxu0
  %v926 = vadd.f32 %v760, %v925
  %927 = vdwg.mxu0
  %928 = vmatprep.subr.mxu0 %v742
  %929 = vmatpush1.msra.mxu0 %v741
  %930 = vmatprep.subr.mxu0 %v780
  %931 = vmatpush1.msra.mxu0 %v778
  %932 = vmatprep.subr.mxu0 0.0
  %933 = vmatpush1.msra.mxu0 0.0
  %934 = vmatprep.subr.mxu0 0.0
  %935 = vmatpush1.msra.mxu0 0.0
  %936 = vmatprep.subr.mxu0 0.0
  %937 = vmatpush1.msra.mxu0 0.0
  %938 = vmatprep.subr.mxu0 0.0
  %939 = vmatpush1.msra.mxu0 0.0
  %940 = vmatprep.subr.mxu0 0.0
  %941 = vmatpush1.msra.mxu0 0.0
  %942 = vmatprep.subr.mxu0 0.0
  %943 = vmatpush1.msra.mxu0 0.0
  %944 = vmatprep.subr.mxu0 0.0
  %945 = vmatpush1.msra.mxu0 0.0
  %946 = vmatprep.subr.mxu0 0.0
  %947 = vmatpush1.msra.mxu0 0.0
  %948 = vmatprep.subr.mxu0 0.0
  %949 = vmatpush1.msra.mxu0 0.0
  %950 = vmatprep.subr.mxu0 0.0
  %951 = vmatpush1.msra.mxu0 0.0
  %952 = vmatprep.subr.mxu0 0.0
  %953 = vmatpush1.msra.mxu0 0.0
  %954 = vmatprep.subr.mxu0 0.0
  %955 = vmatpush1.msra.mxu0 0.0
  %956 = vmatprep.subr.mxu0 0.0
  %957 = vmatpush1.msra.mxu0 0.0
  %958 = vmatprep.subr.mxu0 0.0
  %959 = vmatpush1.msra.mxu0 0.0
  %960 = vmatprep.subr.mxu0 0.0
  %961 = vmatpush1.msra.mxu0 0.0
  %962 = vmatprep.subr.mxu0 0.0
  %963 = vmatpush1.msra.mxu0 0.0
  %964 = vmatprep.subr.mxu0 0.0
  %965 = vmatpush1.msra.mxu0 0.0
  %966 = vmatprep.subr.mxu0 0.0
  %967 = vmatpush1.msra.mxu0 0.0
  %968 = vmatprep.subr.mxu0 0.0
  %969 = vmatpush1.msra.mxu0 0.0
  %970 = vmatprep.subr.mxu0 0.0
  %971 = vmatpush1.msra.mxu0 0.0
  %972 = vmatprep.subr.mxu0 0.0
  %973 = vmatpush1.msra.mxu0 0.0
  %974 = vmatprep.subr.mxu0 0.0
  %975 = vmatpush1.msra.mxu0 0.0
  %976 = vmatprep.subr.mxu0 0.0
  %977 = vmatpush1.msra.mxu0 0.0
  %978 = vmatprep.subr.mxu0 0.0
  %979 = vmatpush1.msra.mxu0 0.0
  %980 = vmatprep.subr.mxu0 0.0
  %981 = vmatpush1.msra.mxu0 0.0
  %982 = vmatprep.subr.mxu0 0.0
  %983 = vmatpush1.msra.mxu0 0.0
  %984 = vmatprep.subr.mxu0 0.0
  %985 = vmatpush1.msra.mxu0 0.0
  %986 = vmatprep.subr.mxu0 0.0
  %987 = vmatpush1.msra.mxu0 0.0
  %988 = vmatprep.subr.mxu0 0.0
  %989 = vmatpush1.msra.mxu0 0.0
  %990 = vmatprep.subr.mxu0 0.0
  %991 = vmatpush1.msra.mxu0 0.0
  %992 = vmatprep.mubr.f32.mxu0 0.0
  %993 = vmatmul.mubr.f32.gmra.mrb[0].mxu0 %v764
  %v994 = vpop.f32.mrb[0].mxu0
  %v995 = vadd.f32 %v760, %v994
  %v996 = vpop.f32.mrb[0].mxu0
  %v997 = vadd.f32 %v760, %v996
  %998 = vdwg.mxu0
  %999 = vmatprep.subr.mxu0 %v732
  %1000 = vmatpush1.msra.mxu0 %v743
  %1001 = vmatprep.subr.mxu0 %v784
  %1002 = vmatpush1.msra.mxu0 %v782
  %1003 = vmatprep.subr.mxu0 0.0
  %1004 = vmatpush1.msra.mxu0 0.0
  %1005 = vmatprep.subr.mxu0 0.0
  %1006 = vmatpush1.msra.mxu0 0.0
  %1007 = vmatprep.subr.mxu0 0.0
  %1008 = vmatpush1.msra.mxu0 0.0
  %1009 = vmatprep.subr.mxu0 0.0
  %1010 = vmatpush1.msra.mxu0 0.0
  %1011 = vmatprep.subr.mxu0 0.0
  %1012 = vmatpush1.msra.mxu0 0.0
  %1013 = vmatprep.subr.mxu0 0.0
  %1014 = vmatpush1.msra.mxu0 0.0
  %1015 = vmatprep.subr.mxu0 0.0
  %1016 = vmatpush1.msra.mxu0 0.0
  %1017 = vmatprep.subr.mxu0 0.0
  %1018 = vmatpush1.msra.mxu0 0.0
  %1019 = vmatprep.subr.mxu0 0.0
  %1020 = vmatpush1.msra.mxu0 0.0
  %1021 = vmatprep.subr.mxu0 0.0
  %1022 = vmatpush1.msra.mxu0 0.0
  %1023 = vmatprep.subr.mxu0 0.0
  %1024 = vmatpush1.msra.mxu0 0.0
  %1025 = vmatprep.subr.mxu0 0.0
  %1026 = vmatpush1.msra.mxu0 0.0
  %1027 = vmatprep.subr.mxu0 0.0
  %1028 = vmatpush1.msra.mxu0 0.0
  %1029 = vmatprep.subr.mxu0 0.0
  %1030 = vmatpush1.msra.mxu0 0.0
  %1031 = vmatprep.subr.mxu0 0.0
  %1032 = vmatpush1.msra.mxu0 0.0
  %1033 = vmatprep.subr.mxu0 0.0
  %1034 = vmatpush1.msra.mxu0 0.0
  %1035 = vmatprep.subr.mxu0 0.0
  %1036 = vmatpush1.msra.mxu0 0.0
  %1037 = vmatprep.subr.mxu0 0.0
  %1038 = vmatpush1.msra.mxu0 0.0
  %1039 = vmatprep.subr.mxu0 0.0
  %1040 = vmatpush1.msra.mxu0 0.0
  %1041 = vmatprep.subr.mxu0 0.0
  %1042 = vmatpush1.msra.mxu0 0.0
  %1043 = vmatprep.subr.mxu0 0.0
  %1044 = vmatpush1.msra.mxu0 0.0
  %1045 = vmatprep.subr.mxu0 0.0
  %1046 = vmatpush1.msra.mxu0 0.0
  %1047 = vmatprep.subr.mxu0 0.0
  %1048 = vmatpush1.msra.mxu0 0.0
  %1049 = vmatprep.subr.mxu0 0.0
  %1050 = vmatpush1.msra.mxu0 0.0
  %1051 = vmatprep.subr.mxu0 0.0
  %1052 = vmatpush1.msra.mxu0 0.0
  %1053 = vmatprep.subr.mxu0 0.0
  %1054 = vmatpush1.msra.mxu0 0.0
  %1055 = vmatprep.subr.mxu0 0.0
  %1056 = vmatpush1.msra.mxu0 0.0
  %1057 = vmatprep.subr.mxu0 0.0
  %1058 = vmatpush1.msra.mxu0 0.0
  %1059 = vmatprep.subr.mxu0 0.0
  %1060 = vmatpush1.msra.mxu0 0.0
  %1061 = vmatprep.subr.mxu0 0.0
  %1062 = vmatpush1.msra.mxu0 0.0
  %1063 = vmatprep.mubr.f32.mxu0 0.0
  %1064 = vmatmul.mubr.f32.gmra.mrb[0].mxu0 %v764
  %v1065 = vpop.f32.mrb[0].mxu0
  %v1066 = vadd.f32 %v760, %v1065
  %v1067 = vpop.f32.mrb[0].mxu0
  %v1068 = vadd.f32 %v760, %v1067
  %1069 = vdwg.mxu0
  %v1070 = vmax.f32 %v853, 0.0
  %v1071 = vmax.f32 %v855, 0.0
  %v1072 = vmax.f32 %v924, 0.0
  %v1073 = vmax.f32 %v926, 0.0
  %v1074 = vmax.f32 %v995, 0.0
  %v1075 = vmax.f32 %v997, 0.0
  %v1076 = vmax.f32 %v1066, 0.0
  %v1077 = vmax.f32 %v1068, 0.0
  %v1078 = vlaneseq
  %v1079 = vshrl.u32 %v1078, 7
  %v1080 = vadd.s32 %v1079, 8
  %v1081 = vadd.s32 %v1079, 16
  %v1082 = vadd.s32 %v1079, 24
  %v1083 = vadd.s32 %v1079, 32
  %v1084 = vadd.s32 %v1079, 40
  %v1085 = vadd.s32 %v1079, 48
  %v1086 = vadd.s32 %v1079, 56
  %v1087 = vadd.s32 %v1079, 64
  %v1088 = vadd.s32 %v1079, 72
  %v1089 = vadd.s32 %v1079, 80
  %v1090 = vadd.s32 %v1079, 88
  %v1091 = vadd.s32 %v1079, 96
  %v1092 = vadd.s32 %v1079, 104
  %v1093 = vadd.s32 %v1079, 112
  %v1094 = vadd.s32 %v1079, 120
  %v1095 = vadd.s32 %v1079, 128
  %v1096 = vadd.s32 %v1079, 136
  %v1097 = vadd.s32 %v1079, 144
  %v1098 = vadd.s32 %v1079, 152
  %v1099 = vadd.s32 %v1079, 160
  %v1100 = vadd.s32 %v1079, 168
  %v1101 = vadd.s32 %v1079, 176
  %v1102 = vadd.s32 %v1079, 184
  %v1103 = vadd.s32 %v1079, 192
  %v1104 = vadd.s32 %v1079, 200
  %v1105 = vadd.s32 %v1079, 208
  %v1106 = vadd.s32 %v1079, 216
  %v1107 = vadd.s32 %v1079, 224
  %v1108 = vadd.s32 %v1079, 232
  %v1109 = vadd.s32 %v1079, 240
  %v1110 = vadd.s32 %v1079, 248
  %v1111 = vadd.s32 %v1079, 256
  %v1112 = vadd.s32 %v1079, 264
  %v1113 = vadd.s32 %v1079, 272
  %v1114 = vadd.s32 %v1079, 280
  %v1115 = vadd.s32 %v1079, 288
  %v1116 = vadd.s32 %v1079, 296
  %v1117 = vadd.s32 %v1079, 304
  %v1118 = vadd.s32 %v1079, 312
  %v1119 = vadd.s32 %v1079, 320
  %v1120 = vadd.s32 %v1079, 328
  %v1121 = vadd.s32 %v1079, 336
  %v1122 = vadd.s32 %v1079, 344
  %v1123 = vadd.s32 %v1079, 352
  %v1124 = vadd.s32 %v1079, 360
  %v1125 = vadd.s32 %v1079, 368
  %v1126 = vadd.s32 %v1079, 376
  %v1127 = vadd.s32 %v1079, 384
  %v1128 = vadd.s32 %v1079, 392
  %v1129 = vadd.s32 %v1079, 400
  %v1130 = vadd.s32 %v1079, 408
  %v1131 = vadd.s32 %v1079, 416
  %v1132 = vadd.s32 %v1079, 424
  %v1133 = vadd.s32 %v1079, 432
  %v1134 = vadd.s32 %v1079, 440
  %v1135 = vadd.s32 %v1079, 448
  %v1136 = vadd.s32 %v1079, 456
  %v1137 = vadd.s32 %v1079, 464
  %v1138 = vadd.s32 %v1079, 472
  %v1139 = vadd.s32 %v1079, 480
  %v1140 = vadd.s32 %v1079, 488
  %v1141 = vadd.s32 %v1079, 496
  %v1142 = vlaneseq
  %v1143 = vand.u32 %v1142, 127
  %v1144 = vmul.u32 %v1143, 6
  %vm1145 = vcmp.ge.s32.totalorder %v1079, %v1144
  %vm1146 = vcmp.ge.s32.totalorder %v1080, %v1144
  %vm1147 = vcmp.ge.s32.totalorder %v1081, %v1144
  %vm1148 = vcmp.ge.s32.totalorder %v1082, %v1144
  %vm1149 = vcmp.ge.s32.totalorder %v1083, %v1144
  %vm1150 = vcmp.ge.s32.totalorder %v1084, %v1144
  %vm1151 = vcmp.ge.s32.totalorder %v1085, %v1144
  %vm1152 = vcmp.ge.s32.totalorder %v1086, %v1144
  %vm1153 = vcmp.ge.s32.totalorder %v1087, %v1144
  %vm1154 = vcmp.ge.s32.totalorder %v1088, %v1144
  %vm1155 = vcmp.ge.s32.totalorder %v1089, %v1144
  %vm1156 = vcmp.ge.s32.totalorder %v1090, %v1144
  %vm1157 = vcmp.ge.s32.totalorder %v1091, %v1144
  %vm1158 = vcmp.ge.s32.totalorder %v1092, %v1144
  %vm1159 = vcmp.ge.s32.totalorder %v1093, %v1144
  %vm1160 = vcmp.ge.s32.totalorder %v1094, %v1144
  %vm1161 = vcmp.ge.s32.totalorder %v1095, %v1144
  %vm1162 = vcmp.ge.s32.totalorder %v1096, %v1144
  %vm1163 = vcmp.ge.s32.totalorder %v1097, %v1144
  %vm1164 = vcmp.ge.s32.totalorder %v1098, %v1144
  %vm1165 = vcmp.ge.s32.totalorder %v1099, %v1144
  %vm1166 = vcmp.ge.s32.totalorder %v1100, %v1144
  %vm1167 = vcmp.ge.s32.totalorder %v1101, %v1144
  %vm1168 = vcmp.ge.s32.totalorder %v1102, %v1144
  %vm1169 = vcmp.ge.s32.totalorder %v1103, %v1144
  %vm1170 = vcmp.ge.s32.totalorder %v1104, %v1144
  %vm1171 = vcmp.ge.s32.totalorder %v1105, %v1144
  %vm1172 = vcmp.ge.s32.totalorder %v1106, %v1144
  %vm1173 = vcmp.ge.s32.totalorder %v1107, %v1144
  %vm1174 = vcmp.ge.s32.totalorder %v1108, %v1144
  %vm1175 = vcmp.ge.s32.totalorder %v1109, %v1144
  %vm1176 = vcmp.ge.s32.totalorder %v1110, %v1144
  %vm1177 = vcmp.ge.s32.totalorder %v1111, %v1144
  %vm1178 = vcmp.ge.s32.totalorder %v1112, %v1144
  %vm1179 = vcmp.ge.s32.totalorder %v1113, %v1144
  %vm1180 = vcmp.ge.s32.totalorder %v1114, %v1144
  %vm1181 = vcmp.ge.s32.totalorder %v1115, %v1144
  %vm1182 = vcmp.ge.s32.totalorder %v1116, %v1144
  %vm1183 = vcmp.ge.s32.totalorder %v1117, %v1144
  %vm1184 = vcmp.ge.s32.totalorder %v1118, %v1144
  %vm1185 = vcmp.ge.s32.totalorder %v1119, %v1144
  %vm1186 = vcmp.ge.s32.totalorder %v1120, %v1144
  %vm1187 = vcmp.ge.s32.totalorder %v1121, %v1144
  %vm1188 = vcmp.ge.s32.totalorder %v1122, %v1144
  %vm1189 = vcmp.ge.s32.totalorder %v1123, %v1144
  %vm1190 = vcmp.ge.s32.totalorder %v1124, %v1144
  %vm1191 = vcmp.ge.s32.totalorder %v1125, %v1144
  %vm1192 = vcmp.ge.s32.totalorder %v1126, %v1144
  %vm1193 = vcmp.ge.s32.totalorder %v1127, %v1144
  %vm1194 = vcmp.ge.s32.totalorder %v1128, %v1144
  %vm1195 = vcmp.ge.s32.totalorder %v1129, %v1144
  %vm1196 = vcmp.ge.s32.totalorder %v1130, %v1144
  %vm1197 = vcmp.ge.s32.totalorder %v1131, %v1144
  %vm1198 = vcmp.ge.s32.totalorder %v1132, %v1144
  %vm1199 = vcmp.ge.s32.totalorder %v1133, %v1144
  %vm1200 = vcmp.ge.s32.totalorder %v1134, %v1144
  %vm1201 = vcmp.ge.s32.totalorder %v1135, %v1144
  %vm1202 = vcmp.ge.s32.totalorder %v1136, %v1144
  %vm1203 = vcmp.ge.s32.totalorder %v1137, %v1144
  %vm1204 = vcmp.ge.s32.totalorder %v1138, %v1144
  %vm1205 = vcmp.ge.s32.totalorder %v1139, %v1144
  %vm1206 = vcmp.ge.s32.totalorder %v1140, %v1144
  %vm1207 = vcmp.ge.s32.totalorder %v1141, %v1144
  %v1208 = vadd.s32 %v1143, 1
  %v1209 = vmul.u32 %v1208, 6
  %vm1210 = vcmp.lt.s32.totalorder %v1079, %v1209
  %vm1211 = vcmp.lt.s32.totalorder %v1080, %v1209
  %vm1212 = vcmp.lt.s32.totalorder %v1081, %v1209
  %vm1213 = vcmp.lt.s32.totalorder %v1082, %v1209
  %vm1214 = vcmp.lt.s32.totalorder %v1083, %v1209
  %vm1215 = vcmp.lt.s32.totalorder %v1084, %v1209
  %vm1216 = vcmp.lt.s32.totalorder %v1085, %v1209
  %vm1217 = vcmp.lt.s32.totalorder %v1086, %v1209
  %vm1218 = vcmp.lt.s32.totalorder %v1087, %v1209
  %vm1219 = vcmp.lt.s32.totalorder %v1088, %v1209
  %vm1220 = vcmp.lt.s32.totalorder %v1089, %v1209
  %vm1221 = vcmp.lt.s32.totalorder %v1090, %v1209
  %vm1222 = vcmp.lt.s32.totalorder %v1091, %v1209
  %vm1223 = vcmp.lt.s32.totalorder %v1092, %v1209
  %vm1224 = vcmp.lt.s32.totalorder %v1093, %v1209
  %vm1225 = vcmp.lt.s32.totalorder %v1094, %v1209
  %vm1226 = vcmp.lt.s32.totalorder %v1095, %v1209
  %vm1227 = vcmp.lt.s32.totalorder %v1096, %v1209
  %vm1228 = vcmp.lt.s32.totalorder %v1097, %v1209
  %vm1229 = vcmp.lt.s32.totalorder %v1098, %v1209
  %vm1230 = vcmp.lt.s32.totalorder %v1099, %v1209
  %vm1231 = vcmp.lt.s32.totalorder %v1100, %v1209
  %vm1232 = vcmp.lt.s32.totalorder %v1101, %v1209
  %vm1233 = vcmp.lt.s32.totalorder %v1102, %v1209
  %vm1234 = vcmp.lt.s32.totalorder %v1103, %v1209
  %vm1235 = vcmp.lt.s32.totalorder %v1104, %v1209
  %vm1236 = vcmp.lt.s32.totalorder %v1105, %v1209
  %vm1237 = vcmp.lt.s32.totalorder %v1106, %v1209
  %vm1238 = vcmp.lt.s32.totalorder %v1107, %v1209
  %vm1239 = vcmp.lt.s32.totalorder %v1108, %v1209
  %vm1240 = vcmp.lt.s32.totalorder %v1109, %v1209
  %vm1241 = vcmp.lt.s32.totalorder %v1110, %v1209
  %vm1242 = vcmp.lt.s32.totalorder %v1111, %v1209
  %vm1243 = vcmp.lt.s32.totalorder %v1112, %v1209
  %vm1244 = vcmp.lt.s32.totalorder %v1113, %v1209
  %vm1245 = vcmp.lt.s32.totalorder %v1114, %v1209
  %vm1246 = vcmp.lt.s32.totalorder %v1115, %v1209
  %vm1247 = vcmp.lt.s32.totalorder %v1116, %v1209
  %vm1248 = vcmp.lt.s32.totalorder %v1117, %v1209
  %vm1249 = vcmp.lt.s32.totalorder %v1118, %v1209
  %vm1250 = vcmp.lt.s32.totalorder %v1119, %v1209
  %vm1251 = vcmp.lt.s32.totalorder %v1120, %v1209
  %vm1252 = vcmp.lt.s32.totalorder %v1121, %v1209
  %vm1253 = vcmp.lt.s32.totalorder %v1122, %v1209
  %vm1254 = vcmp.lt.s32.totalorder %v1123, %v1209
  %vm1255 = vcmp.lt.s32.totalorder %v1124, %v1209
  %vm1256 = vcmp.lt.s32.totalorder %v1125, %v1209
  %vm1257 = vcmp.lt.s32.totalorder %v1126, %v1209
  %vm1258 = vcmp.lt.s32.totalorder %v1127, %v1209
  %vm1259 = vcmp.lt.s32.totalorder %v1128, %v1209
  %vm1260 = vcmp.lt.s32.totalorder %v1129, %v1209
  %vm1261 = vcmp.lt.s32.totalorder %v1130, %v1209
  %vm1262 = vcmp.lt.s32.totalorder %v1131, %v1209
  %vm1263 = vcmp.lt.s32.totalorder %v1132, %v1209
  %vm1264 = vcmp.lt.s32.totalorder %v1133, %v1209
  %vm1265 = vcmp.lt.s32.totalorder %v1134, %v1209
  %vm1266 = vcmp.lt.s32.totalorder %v1135, %v1209
  %vm1267 = vcmp.lt.s32.totalorder %v1136, %v1209
  %vm1268 = vcmp.lt.s32.totalorder %v1137, %v1209
  %vm1269 = vcmp.lt.s32.totalorder %v1138, %v1209
  %vm1270 = vcmp.lt.s32.totalorder %v1139, %v1209
  %vm1271 = vcmp.lt.s32.totalorder %v1140, %v1209
  %vm1272 = vcmp.lt.s32.totalorder %v1141, %v1209
  %vm1273 = vmand %vm1145, %vm1210
  %vm1274 = vmand %vm1146, %vm1211
  %vm1275 = vmand %vm1147, %vm1212
  %vm1276 = vmand %vm1148, %vm1213
  %vm1277 = vmand %vm1149, %vm1214
  %vm1278 = vmand %vm1150, %vm1215
  %vm1279 = vmand %vm1151, %vm1216
  %vm1280 = vmand %vm1152, %vm1217
  %vm1281 = vmand %vm1153, %vm1218
  %vm1282 = vmand %vm1154, %vm1219
  %vm1283 = vmand %vm1155, %vm1220
  %vm1284 = vmand %vm1156, %vm1221
  %vm1285 = vmand %vm1157, %vm1222
  %vm1286 = vmand %vm1158, %vm1223
  %vm1287 = vmand %vm1159, %vm1224
  %vm1288 = vmand %vm1160, %vm1225
  %vm1289 = vmand %vm1161, %vm1226
  %vm1290 = vmand %vm1162, %vm1227
  %vm1291 = vmand %vm1163, %vm1228
  %vm1292 = vmand %vm1164, %vm1229
  %vm1293 = vmand %vm1165, %vm1230
  %vm1294 = vmand %vm1166, %vm1231
  %vm1295 = vmand %vm1167, %vm1232
  %vm1296 = vmand %vm1168, %vm1233
  %vm1297 = vmand %vm1169, %vm1234
  %vm1298 = vmand %vm1170, %vm1235
  %vm1299 = vmand %vm1171, %vm1236
  %vm1300 = vmand %vm1172, %vm1237
  %vm1301 = vmand %vm1173, %vm1238
  %vm1302 = vmand %vm1174, %vm1239
  %vm1303 = vmand %vm1175, %vm1240
  %vm1304 = vmand %vm1176, %vm1241
  %vm1305 = vmand %vm1177, %vm1242
  %vm1306 = vmand %vm1178, %vm1243
  %vm1307 = vmand %vm1179, %vm1244
  %vm1308 = vmand %vm1180, %vm1245
  %vm1309 = vmand %vm1181, %vm1246
  %vm1310 = vmand %vm1182, %vm1247
  %vm1311 = vmand %vm1183, %vm1248
  %vm1312 = vmand %vm1184, %vm1249
  %vm1313 = vmand %vm1185, %vm1250
  %vm1314 = vmand %vm1186, %vm1251
  %vm1315 = vmand %vm1187, %vm1252
  %vm1316 = vmand %vm1188, %vm1253
  %vm1317 = vmand %vm1189, %vm1254
  %vm1318 = vmand %vm1190, %vm1255
  %vm1319 = vmand %vm1191, %vm1256
  %vm1320 = vmand %vm1192, %vm1257
  %vm1321 = vmand %vm1193, %vm1258
  %vm1322 = vmand %vm1194, %vm1259
  %vm1323 = vmand %vm1195, %vm1260
  %vm1324 = vmand %vm1196, %vm1261
  %vm1325 = vmand %vm1197, %vm1262
  %vm1326 = vmand %vm1198, %vm1263
  %vm1327 = vmand %vm1199, %vm1264
  %vm1328 = vmand %vm1200, %vm1265
  %vm1329 = vmand %vm1201, %vm1266
  %vm1330 = vmand %vm1202, %vm1267
  %vm1331 = vmand %vm1203, %vm1268
  %vm1332 = vmand %vm1204, %vm1269
  %vm1333 = vmand %vm1205, %vm1270
  %vm1334 = vmand %vm1206, %vm1271
  %vm1335 = vmand %vm1207, %vm1272
  %v1336 = vsel %vm1273, 0.16666667, 0.0
  %v1337 = vsel %vm1274, 0.16666667, 0.0
  %v1338 = vsel %vm1275, 0.16666667, 0.0
  %v1339 = vsel %vm1276, 0.16666667, 0.0
  %v1340 = vsel %vm1277, 0.16666667, 0.0
  %v1341 = vsel %vm1278, 0.16666667, 0.0
  %v1342 = vsel %vm1279, 0.16666667, 0.0
  %v1343 = vsel %vm1280, 0.16666667, 0.0
  %v1344 = vsel %vm1281, 0.16666667, 0.0
  %v1345 = vsel %vm1282, 0.16666667, 0.0
  %v1346 = vsel %vm1283, 0.16666667, 0.0
  %v1347 = vsel %vm1284, 0.16666667, 0.0
  %v1348 = vsel %vm1285, 0.16666667, 0.0
  %v1349 = vsel %vm1286, 0.16666667, 0.0
  %v1350 = vsel %vm1287, 0.16666667, 0.0
  %v1351 = vsel %vm1288, 0.16666667, 0.0
  %v1352 = vsel %vm1289, 0.16666667, 0.0
  %v1353 = vsel %vm1290, 0.16666667, 0.0
  %v1354 = vsel %vm1291, 0.16666667, 0.0
  %v1355 = vsel %vm1292, 0.16666667, 0.0
  %v1356 = vsel %vm1293, 0.16666667, 0.0
  %v1357 = vsel %vm1294, 0.16666667, 0.0
  %v1358 = vsel %vm1295, 0.16666667, 0.0
  %v1359 = vsel %vm1296, 0.16666667, 0.0
  %v1360 = vsel %vm1297, 0.16666667, 0.0
  %v1361 = vsel %vm1298, 0.16666667, 0.0
  %v1362 = vsel %vm1299, 0.16666667, 0.0
  %v1363 = vsel %vm1300, 0.16666667, 0.0
  %v1364 = vsel %vm1301, 0.16666667, 0.0
  %v1365 = vsel %vm1302, 0.16666667, 0.0
  %v1366 = vsel %vm1303, 0.16666667, 0.0
  %v1367 = vsel %vm1304, 0.16666667, 0.0
  %v1368 = vsel %vm1305, 0.16666667, 0.0
  %v1369 = vsel %vm1306, 0.16666667, 0.0
  %v1370 = vsel %vm1307, 0.16666667, 0.0
  %v1371 = vsel %vm1308, 0.16666667, 0.0
  %v1372 = vsel %vm1309, 0.16666667, 0.0
  %v1373 = vsel %vm1310, 0.16666667, 0.0
  %v1374 = vsel %vm1311, 0.16666667, 0.0
  %v1375 = vsel %vm1312, 0.16666667, 0.0
  %v1376 = vsel %vm1313, 0.16666667, 0.0
  %v1377 = vsel %vm1314, 0.16666667, 0.0
  %v1378 = vsel %vm1315, 0.16666667, 0.0
  %v1379 = vsel %vm1316, 0.16666667, 0.0
  %v1380 = vsel %vm1317, 0.16666667, 0.0
  %v1381 = vsel %vm1318, 0.16666667, 0.0
  %v1382 = vsel %vm1319, 0.16666667, 0.0
  %v1383 = vsel %vm1320, 0.16666667, 0.0
  %v1384 = vsel %vm1321, 0.16666667, 0.0
  %v1385 = vsel %vm1322, 0.16666667, 0.0
  %v1386 = vsel %vm1323, 0.16666667, 0.0
  %v1387 = vsel %vm1324, 0.16666667, 0.0
  %v1388 = vsel %vm1325, 0.16666667, 0.0
  %v1389 = vsel %vm1326, 0.16666667, 0.0
  %v1390 = vsel %vm1327, 0.16666667, 0.0
  %v1391 = vsel %vm1328, 0.16666667, 0.0
  %v1392 = vsel %vm1329, 0.16666667, 0.0
  %v1393 = vsel %vm1330, 0.16666667, 0.0
  %v1394 = vsel %vm1331, 0.16666667, 0.0
  %v1395 = vsel %vm1332, 0.16666667, 0.0
  %v1396 = vsel %vm1333, 0.16666667, 0.0
  %v1397 = vsel %vm1334, 0.16666667, 0.0
  %v1398 = vsel %vm1335, 0.16666667, 0.0
  %v1400 = vsel %vm368, %v1073, 0
  %v1403 = vsel %vm381, %v1398, 0
  %1405 = vmatprep.subr.mxu0 0.0
  %1406 = vmatpush1.msra.mxu0 %v1336
  %1407 = vmatprep.subr.mxu0 0.0
  %1408 = vmatpush1.msra.mxu0 %v1337
  %1409 = vmatprep.subr.mxu0 0.0
  %1410 = vmatpush1.msra.mxu0 %v1338
  %1411 = vmatprep.subr.mxu0 0.0
  %1412 = vmatpush1.msra.mxu0 %v1339
  %1413 = vmatprep.subr.mxu0 0.0
  %1414 = vmatpush1.msra.mxu0 %v1340
  %1415 = vmatprep.subr.mxu0 0.0
  %1416 = vmatpush1.msra.mxu0 %v1341
  %1417 = vmatprep.subr.mxu0 0.0
  %1418 = vmatpush1.msra.mxu0 %v1342
  %1419 = vmatprep.subr.mxu0 0.0
  %1420 = vmatpush1.msra.mxu0 %v1343
  %1421 = vmatprep.subr.mxu0 0.0
  %1422 = vmatpush1.msra.mxu0 %v1344
  %1423 = vmatprep.subr.mxu0 0.0
  %1424 = vmatpush1.msra.mxu0 %v1345
  %1425 = vmatprep.subr.mxu0 0.0
  %1426 = vmatpush1.msra.mxu0 %v1346
  %1427 = vmatprep.subr.mxu0 0.0
  %1428 = vmatpush1.msra.mxu0 %v1347
  %1429 = vmatprep.subr.mxu0 0.0
  %1430 = vmatpush1.msra.mxu0 %v1348
  %1431 = vmatprep.subr.mxu0 0.0
  %1432 = vmatpush1.msra.mxu0 %v1349
  %1433 = vmatprep.subr.mxu0 0.0
  %1434 = vmatpush1.msra.mxu0 %v1350
  %1435 = vmatprep.subr.mxu0 0.0
  %1436 = vmatpush1.msra.mxu0 %v1351
  %1437 = vmatprep.subr.mxu0 0.0
  %1438 = vmatpush1.msra.mxu0 %v1352
  %1439 = vmatprep.subr.mxu0 0.0
  %1440 = vmatpush1.msra.mxu0 %v1353
  %1441 = vmatprep.subr.mxu0 0.0
  %1442 = vmatpush1.msra.mxu0 %v1354
  %1443 = vmatprep.subr.mxu0 0.0
  %1444 = vmatpush1.msra.mxu0 %v1355
  %1445 = vmatprep.subr.mxu0 0.0
  %1446 = vmatpush1.msra.mxu0 %v1356
  %1447 = vmatprep.subr.mxu0 0.0
  %1448 = vmatpush1.msra.mxu0 %v1357
  %1449 = vmatprep.subr.mxu0 0.0
  %1450 = vmatpush1.msra.mxu0 %v1358
  %1451 = vmatprep.subr.mxu0 0.0
  %1452 = vmatpush1.msra.mxu0 %v1359
  %1453 = vmatprep.subr.mxu0 0.0
  %1454 = vmatpush1.msra.mxu0 %v1360
  %1455 = vmatprep.subr.mxu0 0.0
  %1456 = vmatpush1.msra.mxu0 %v1361
  %1457 = vmatprep.subr.mxu0 0.0
  %1458 = vmatpush1.msra.mxu0 %v1362
  %1459 = vmatprep.subr.mxu0 0.0
  %1460 = vmatpush1.msra.mxu0 %v1363
  %1461 = vmatprep.subr.mxu0 0.0
  %1462 = vmatpush1.msra.mxu0 %v1364
  %1463 = vmatprep.subr.mxu0 0.0
  %1464 = vmatpush1.msra.mxu0 %v1365
  %1465 = vmatprep.subr.mxu0 0.0
  %1466 = vmatpush1.msra.mxu0 %v1366
  %1467 = vmatprep.subr.mxu0 0.0
  %1468 = vmatpush1.msra.mxu0 %v1367
  %1469 = vmatprep.mubr.f32.mxu0 %v1071
  %1470 = vmatmul.mubr.f32.gmra.mrb[0].mxu0 %v1070
  %v1471 = vpop.f32.mrb[0].mxu0
  %v1472 = vadd.f32 0.0, %v1471
  %v1473 = vpop.f32.mrb[0].mxu0
  %1474 = vdwg.mxu0
  %1475 = vmatprep.subr.mxu0 0.0
  %1476 = vmatpush1.msra.mxu0 %v1368
  %1477 = vmatprep.subr.mxu0 0.0
  %1478 = vmatpush1.msra.mxu0 %v1369
  %1479 = vmatprep.subr.mxu0 0.0
  %1480 = vmatpush1.msra.mxu0 %v1370
  %1481 = vmatprep.subr.mxu0 0.0
  %1482 = vmatpush1.msra.mxu0 %v1371
  %1483 = vmatprep.subr.mxu0 0.0
  %1484 = vmatpush1.msra.mxu0 %v1372
  %1485 = vmatprep.subr.mxu0 0.0
  %1486 = vmatpush1.msra.mxu0 %v1373
  %1487 = vmatprep.subr.mxu0 0.0
  %1488 = vmatpush1.msra.mxu0 %v1374
  %1489 = vmatprep.subr.mxu0 0.0
  %1490 = vmatpush1.msra.mxu0 %v1375
  %1491 = vmatprep.subr.mxu0 0.0
  %1492 = vmatpush1.msra.mxu0 %v1376
  %1493 = vmatprep.subr.mxu0 0.0
  %1494 = vmatpush1.msra.mxu0 %v1377
  %1495 = vmatprep.subr.mxu0 0.0
  %1496 = vmatpush1.msra.mxu0 %v1378
  %1497 = vmatprep.subr.mxu0 0.0
  %1498 = vmatpush1.msra.mxu0 %v1379
  %1499 = vmatprep.subr.mxu0 0.0
  %1500 = vmatpush1.msra.mxu0 %v1380
  %1501 = vmatprep.subr.mxu0 0.0
  %1502 = vmatpush1.msra.mxu0 %v1381
  %1503 = vmatprep.subr.mxu0 0.0
  %1504 = vmatpush1.msra.mxu0 %v1382
  %1505 = vmatprep.subr.mxu0 0.0
  %1506 = vmatpush1.msra.mxu0 %v1383
  %1507 = vmatprep.subr.mxu0 0.0
  %1508 = vmatpush1.msra.mxu0 %v1384
  %1509 = vmatprep.subr.mxu0 0.0
  %1510 = vmatpush1.msra.mxu0 %v1385
  %1511 = vmatprep.subr.mxu0 0.0
  %1512 = vmatpush1.msra.mxu0 %v1386
  %1513 = vmatprep.subr.mxu0 0.0
  %1514 = vmatpush1.msra.mxu0 %v1387
  %1515 = vmatprep.subr.mxu0 0.0
  %1516 = vmatpush1.msra.mxu0 %v1388
  %1517 = vmatprep.subr.mxu0 0.0
  %1518 = vmatpush1.msra.mxu0 %v1389
  %1519 = vmatprep.subr.mxu0 0.0
  %1520 = vmatpush1.msra.mxu0 %v1390
  %1521 = vmatprep.subr.mxu0 0.0
  %1522 = vmatpush1.msra.mxu0 %v1391
  %1523 = vmatprep.subr.mxu0 0.0
  %1524 = vmatpush1.msra.mxu0 %v1392
  %1525 = vmatprep.subr.mxu0 0.0
  %1526 = vmatpush1.msra.mxu0 %v1393
  %1527 = vmatprep.subr.mxu0 0.0
  %1528 = vmatpush1.msra.mxu0 %v1394
  %1529 = vmatprep.subr.mxu0 0.0
  %1530 = vmatpush1.msra.mxu0 %v1395
  %1531 = vmatprep.subr.mxu0 0.0
  %1532 = vmatpush1.msra.mxu0 %v1396
  %1533 = vmatprep.subr.mxu0 0.0
  %1534 = vmatpush1.msra.mxu0 %v1397
  %1535 = vmatprep.subr.mxu0 0.0
  %1536 = vmatpush1.msra.mxu0 %v1403
  %1537 = vmatprep.subr.mxu0 0.0
  %1538 = vmatpush1.msra.mxu0 0.0
  %1539 = vmatprep.mubr.f32.mxu0 %v1400
  %1540 = vmatmul.mubr.f32.gmra.mrb[0].mxu0 %v1072
  %v1541 = vpop.f32.mrb[0].mxu0
  %v1542 = vadd.f32 %v1472, %v1541
  %v1543 = vpop.f32.mrb[0].mxu0
  %1544 = vdwg.mxu0
  %1549 = vrot.lane.b32.xlu0 %v1073, 14
  %v1550 = vpop.permute.xlu0 %1549
  %1551 = vrot.lane.b32.xlu0 %v1074, 14
  %v1552 = vpop.permute.xlu0 %1551
  %1553 = vrot.lane.b32.xlu0 %v1075, 14
  %v1554 = vpop.permute.xlu0 %1553
  %1555 = vrot.lane.b32.xlu0 %v1076, 14
  %v1556 = vpop.permute.xlu0 %1555
  %1557 = vrot.lane.b32.xlu0 %v1077, 14
  %v1558 = vpop.permute.xlu0 %1557
  %vm1559 = vcmask 113664
  %v1560 = vsel %vm1559, %v1550, %v1552
  %v1561 = vsel %vm1559, %v1552, %v1554
  %v1562 = vsel %vm1559, %v1554, %v1556
  %v1563 = vsel %vm1559, %v1556, %v1558
  %v1567 = vsel %vm368, %v1563, 0
  %1569 = vmatprep.subr.mxu0 0.0
  %1570 = vmatpush1.msra.mxu0 %v1336
  %1571 = vmatprep.subr.mxu0 0.0
  %1572 = vmatpush1.msra.mxu0 %v1337
  %1573 = vmatprep.subr.mxu0 0.0
  %1574 = vmatpush1.msra.mxu0 %v1338
  %1575 = vmatprep.subr.mxu0 0.0
  %1576 = vmatpush1.msra.mxu0 %v1339
  %1577 = vmatprep.subr.mxu0 0.0
  %1578 = vmatpush1.msra.mxu0 %v1340
  %1579 = vmatprep.subr.mxu0 0.0
  %1580 = vmatpush1.msra.mxu0 %v1341
  %1581 = vmatprep.subr.mxu0 0.0
  %1582 = vmatpush1.msra.mxu0 %v1342
  %1583 = vmatprep.subr.mxu0 0.0
  %1584 = vmatpush1.msra.mxu0 %v1343
  %1585 = vmatprep.subr.mxu0 0.0
  %1586 = vmatpush1.msra.mxu0 %v1344
  %1587 = vmatprep.subr.mxu0 0.0
  %1588 = vmatpush1.msra.mxu0 %v1345
  %1589 = vmatprep.subr.mxu0 0.0
  %1590 = vmatpush1.msra.mxu0 %v1346
  %1591 = vmatprep.subr.mxu0 0.0
  %1592 = vmatpush1.msra.mxu0 %v1347
  %1593 = vmatprep.subr.mxu0 0.0
  %1594 = vmatpush1.msra.mxu0 %v1348
  %1595 = vmatprep.subr.mxu0 0.0
  %1596 = vmatpush1.msra.mxu0 %v1349
  %1597 = vmatprep.subr.mxu0 0.0
  %1598 = vmatpush1.msra.mxu0 %v1350
  %1599 = vmatprep.subr.mxu0 0.0
  %1600 = vmatpush1.msra.mxu0 %v1351
  %1601 = vmatprep.subr.mxu0 0.0
  %1602 = vmatpush1.msra.mxu0 %v1352
  %1603 = vmatprep.subr.mxu0 0.0
  %1604 = vmatpush1.msra.mxu0 %v1353
  %1605 = vmatprep.subr.mxu0 0.0
  %1606 = vmatpush1.msra.mxu0 %v1354
  %1607 = vmatprep.subr.mxu0 0.0
  %1608 = vmatpush1.msra.mxu0 %v1355
  %1609 = vmatprep.subr.mxu0 0.0
  %1610 = vmatpush1.msra.mxu0 %v1356
  %1611 = vmatprep.subr.mxu0 0.0
  %1612 = vmatpush1.msra.mxu0 %v1357
  %1613 = vmatprep.subr.mxu0 0.0
  %1614 = vmatpush1.msra.mxu0 %v1358
  %1615 = vmatprep.subr.mxu0 0.0
  %1616 = vmatpush1.msra.mxu0 %v1359
  %1617 = vmatprep.subr.mxu0 0.0
  %1618 = vmatpush1.msra.mxu0 %v1360
  %1619 = vmatprep.subr.mxu0 0.0
  %1620 = vmatpush1.msra.mxu0 %v1361
  %1621 = vmatprep.subr.mxu0 0.0
  %1622 = vmatpush1.msra.mxu0 %v1362
  %1623 = vmatprep.subr.mxu0 0.0
  %1624 = vmatpush1.msra.mxu0 %v1363
  %1625 = vmatprep.subr.mxu0 0.0
  %1626 = vmatpush1.msra.mxu0 %v1364
  %1627 = vmatprep.subr.mxu0 0.0
  %1628 = vmatpush1.msra.mxu0 %v1365
  %1629 = vmatprep.subr.mxu0 0.0
  %1630 = vmatpush1.msra.mxu0 %v1366
  %1631 = vmatprep.subr.mxu0 0.0
  %1632 = vmatpush1.msra.mxu0 %v1367
  %1633 = vmatprep.mubr.f32.mxu0 %v1561
  %1634 = vmatmul.mubr.f32.gmra.mrb[0].mxu0 %v1560
  %v1635 = vpop.f32.mrb[0].mxu0
  %v1636 = vadd.f32 0.0, %v1635
  %v1637 = vpop.f32.mrb[0].mxu0
  %1638 = vdwg.mxu0
  %1639 = vmatprep.subr.mxu0 0.0
  %1640 = vmatpush1.msra.mxu0 %v1368
  %1641 = vmatprep.subr.mxu0 0.0
  %1642 = vmatpush1.msra.mxu0 %v1369
  %1643 = vmatprep.subr.mxu0 0.0
  %1644 = vmatpush1.msra.mxu0 %v1370
  %1645 = vmatprep.subr.mxu0 0.0
  %1646 = vmatpush1.msra.mxu0 %v1371
  %1647 = vmatprep.subr.mxu0 0.0
  %1648 = vmatpush1.msra.mxu0 %v1372
  %1649 = vmatprep.subr.mxu0 0.0
  %1650 = vmatpush1.msra.mxu0 %v1373
  %1651 = vmatprep.subr.mxu0 0.0
  %1652 = vmatpush1.msra.mxu0 %v1374
  %1653 = vmatprep.subr.mxu0 0.0
  %1654 = vmatpush1.msra.mxu0 %v1375
  %1655 = vmatprep.subr.mxu0 0.0
  %1656 = vmatpush1.msra.mxu0 %v1376
  %1657 = vmatprep.subr.mxu0 0.0
  %1658 = vmatpush1.msra.mxu0 %v1377
  %1659 = vmatprep.subr.mxu0 0.0
  %1660 = vmatpush1.msra.mxu0 %v1378
  %1661 = vmatprep.subr.mxu0 0.0
  %1662 = vmatpush1.msra.mxu0 %v1379
  %1663 = vmatprep.subr.mxu0 0.0
  %1664 = vmatpush1.msra.mxu0 %v1380
  %1665 = vmatprep.subr.mxu0 0.0
  %1666 = vmatpush1.msra.mxu0 %v1381
  %1667 = vmatprep.subr.mxu0 0.0
  %1668 = vmatpush1.msra.mxu0 %v1382
  %1669 = vmatprep.subr.mxu0 0.0
  %1670 = vmatpush1.msra.mxu0 %v1383
  %1671 = vmatprep.subr.mxu0 0.0
  %1672 = vmatpush1.msra.mxu0 %v1384
  %1673 = vmatprep.subr.mxu0 0.0
  %1674 = vmatpush1.msra.mxu0 %v1385
  %1675 = vmatprep.subr.mxu0 0.0
  %1676 = vmatpush1.msra.mxu0 %v1386
  %1677 = vmatprep.subr.mxu0 0.0
  %1678 = vmatpush1.msra.mxu0 %v1387
  %1679 = vmatprep.subr.mxu0 0.0
  %1680 = vmatpush1.msra.mxu0 %v1388
  %1681 = vmatprep.subr.mxu0 0.0
  %1682 = vmatpush1.msra.mxu0 %v1389
  %1683 = vmatprep.subr.mxu0 0.0
  %1684 = vmatpush1.msra.mxu0 %v1390
  %1685 = vmatprep.subr.mxu0 0.0
  %1686 = vmatpush1.msra.mxu0 %v1391
  %1687 = vmatprep.subr.mxu0 0.0
  %1688 = vmatpush1.msra.mxu0 %v1392
  %1689 = vmatprep.subr.mxu0 0.0
  %1690 = vmatpush1.msra.mxu0 %v1393
  %1691 = vmatprep.subr.mxu0 0.0
  %1692 = vmatpush1.msra.mxu0 %v1394
  %1693 = vmatprep.subr.mxu0 0.0
  %1694 = vmatpush1.msra.mxu0 %v1395
  %1695 = vmatprep.subr.mxu0 0.0
  %1696 = vmatpush1.msra.mxu0 %v1396
  %1697 = vmatprep.subr.mxu0 0.0
  %1698 = vmatpush1.msra.mxu0 %v1397
  %1699 = vmatprep.subr.mxu0 0.0
  %1700 = vmatpush1.msra.mxu0 %v1403
  %1701 = vmatprep.subr.mxu0 0.0
  %1702 = vmatpush1.msra.mxu0 0.0
  %1703 = vmatprep.mubr.f32.mxu0 %v1567
  %1704 = vmatmul.mubr.f32.gmra.mrb[0].mxu0 %v1562
  %v1705 = vpop.f32.mrb[0].mxu0
  %v1706 = vadd.f32 %v1636, %v1705
  %v1707 = vpop.f32.mrb[0].mxu0
  %1708 = vdwg.mxu0
  %1710 = vrot.lane.b32.xlu0 %v1706, 83
  %v1711 = vpop.permute.xlu0 %1710
  %vm1713 = vcmask 678912
  %v1714 = vsel %vm1713, %v1542, %v1711
  %v1715 = vmax.f32 %v1714, 0.0
  %v1716 = vmax.f32 %v1711, 0.0
  %vm1717 = vcmask 310272
  %v1718 = vsel %vm1717, %v1716, 0.0
  %v1719 = vadd.f32 %v1715, %v1718
  %1720 = vadd.xlane.f32.xlu0 %v1719
  %v1721 = vpop.xlane.xlu0 %1720
  %v1722 = vrcp.pop 166.0
  %v1723 = vmul.f32 %v1721, %v1722
  %v1724 = vsub.f32 %v1715, %v1723
  %v1725 = vsub.f32 %v1716, %v1723
  %v1726 = vmul.f32 %v1724, %v1724
  %v1727 = vmul.f32 %v1725, %v1725
  %v1728 = vsel %vm1717, %v1727, 0.0
  %v1729 = vadd.f32 %v1726, %v1728
  %1730 = vadd.xlane.f32.xlu0 %v1729
  %v1731 = vpop.xlane.xlu0 %1730
  %v1732 = vmul.f32 %v1731, %v1722
  %v1733 = vadd.f32 %v1732, 1e-05
  %v1734 = vrsqrt.pop %v1733
  %v1735 = vmul.f32 %v1724, %v1734
  %v1736 = vmul.f32 %v1725, %v1734
  %v1737 = vld [vmem:[%s7] sm:$0xff]
  %1739 = vset.pattern.permute.xlu0 0
  %1740 = vperm.xlu0 %1739, %v1737
  %v1741 = vpop.permute.xlu0 %1740
  %v1743 = vmul.f32 %v1735, %v1741
  %v1744 = vmul.f32 %v1736, %v1741
  %v1745 = vld [vmem:[%s9] sm:$0xff]
  %1747 = vset.pattern.permute.xlu0 0
  %1748 = vperm.xlu0 %1747, %v1745
  %v1749 = vpop.permute.xlu0 %1748
  %v1751 = vadd.f32 %v1743, %v1749
  %v1752 = vadd.f32 %v1744, %v1749
  %v1753 = vmax.f32 %v1751, 0.0
  %v1754 = vmax.f32 %v1752, 0.0
  %1756 = vrot.lane.b32.xlu0 %v1753, 127
  %v1757 = vpop.permute.xlu0 %1756
  %1759 = vrot.lane.b32.xlu0 %v1753, 126
  %v1760 = vpop.permute.xlu0 %1759
  %1762 = vrot.lane.b32.xlu0 %v1753, 125
  %v1763 = vpop.permute.xlu0 %1762
  %1765 = vrot.lane.b32.xlu0 %v1753, 124
  %v1766 = vpop.permute.xlu0 %1765
  %1768 = vrot.lane.b32.xlu0 %v1753, 123
  %v1769 = vpop.permute.xlu0 %1768
  %1771 = vrot.lane.b32.xlu0 %v1753, 122
  %v1772 = vpop.permute.xlu0 %1771
  %1774 = vrot.lane.b32.xlu0 %v1753, 121
  %v1775 = vpop.permute.xlu0 %1774
  %1778 = vrot.lane.b32.xlu0 %v1754, 127
  %v1779 = vpop.permute.xlu0 %1778
  %v1780 = vsel %vm160, %v1757, %v1779
  %1781 = vrot.lane.b32.xlu0 %v1754, 126
  %v1782 = vpop.permute.xlu0 %1781
  %v1783 = vsel %vm176, %v1760, %v1782
  %1784 = vrot.lane.b32.xlu0 %v1754, 125
  %v1785 = vpop.permute.xlu0 %1784
  %v1786 = vsel %vm192, %v1763, %v1785
  %1787 = vrot.lane.b32.xlu0 %v1754, 124
  %v1788 = vpop.permute.xlu0 %1787
  %v1789 = vsel %vm208, %v1766, %v1788
  %1790 = vrot.lane.b32.xlu0 %v1754, 123
  %v1791 = vpop.permute.xlu0 %1790
  %v1792 = vsel %vm224, %v1769, %v1791
  %1793 = vrot.lane.b32.xlu0 %v1754, 122
  %v1794 = vpop.permute.xlu0 %1793
  %v1795 = vsel %vm240, %v1772, %v1794
  %1796 = vrot.lane.b32.xlu0 %v1754, 121
  %v1797 = vpop.permute.xlu0 %1796
  %v1798 = vsel %vm256, %v1775, %v1797
  %1799 = vrot.lane.b32.xlu0 %v1780, 121
  %v1800 = vpop.permute.xlu0 %1799
  %1801 = vrot.lane.b32.xlu0 %v1779, 121
  %v1802 = vpop.permute.xlu0 %1801
  %1803 = vrot.lane.b32.xlu0 %v1783, 121
  %v1804 = vpop.permute.xlu0 %1803
  %1805 = vrot.lane.b32.xlu0 %v1782, 121
  %v1806 = vpop.permute.xlu0 %1805
  %1807 = vrot.lane.b32.xlu0 %v1786, 121
  %v1808 = vpop.permute.xlu0 %1807
  %1809 = vrot.lane.b32.xlu0 %v1785, 121
  %v1810 = vpop.permute.xlu0 %1809
  %1811 = vrot.lane.b32.xlu0 %v1789, 121
  %v1812 = vpop.permute.xlu0 %1811
  %1813 = vrot.lane.b32.xlu0 %v1788, 121
  %v1814 = vpop.permute.xlu0 %1813
  %1815 = vrot.lane.b32.xlu0 %v1792, 121
  %v1816 = vpop.permute.xlu0 %1815
  %1817 = vrot.lane.b32.xlu0 %v1791, 121
  %v1818 = vpop.permute.xlu0 %1817
  %1819 = vrot.lane.b32.xlu0 %v1795, 121
  %v1820 = vpop.permute.xlu0 %1819
  %1821 = vrot.lane.b32.xlu0 %v1794, 121
  %v1822 = vpop.permute.xlu0 %1821
  %1823 = vrot.lane.b32.xlu0 %v1798, 121
  %v1824 = vpop.permute.xlu0 %1823
  %1825 = vrot.lane.b32.xlu0 %v1797, 121
  %v1826 = vpop.permute.xlu0 %1825
  %v1827 = vsel %vm256, %v1800, %v1802
  %v1828 = vsel %vm256, %v1804, %v1806
  %v1829 = vsel %vm256, %v1808, %v1810
  %v1830 = vsel %vm256, %v1812, %v1814
  %v1831 = vsel %vm256, %v1816, %v1818
  %v1832 = vsel %vm256, %v1820, %v1822
  %v1833 = vsel %vm256, %v1824, %v1826
  %vm1850 = vcmask 621568
  %v1851 = vsel %vm1850, %v1753, %v1798
  %v1852 = vsel %vm1850, %v1757, %v1827
  %v1853 = vsel %vm1850, %v1760, %v1828
  %v1854 = vsel %vm1850, %v1763, %v1829
  %v1855 = vsel %vm1850, %v1766, %v1830
  %v1856 = vsel %vm1850, %v1769, %v1831
  %v1857 = vsel %vm1850, %v1772, %v1832
  %v1858 = vsel %vm1850, %v1775, %v1833
  %v1859 = vld [vmem:[%s11] sm:$0xff]
  %v1860 = vld [vmem:[%s11 + $0x8] sm:$0xff]
  %v1861 = vld [vmem:[%s13] sm:$0xff]
  %v1862 = vld [vmem:[%s13 + $0x8] sm:$0xff]
  %1864 = vset.pattern.permute.xlu0 0
  %1865 = vperm.xlu0 %1864, %v1861
  %v1866 = vpop.permute.xlu0 %1865
  %1869 = vset.pattern.permute.xlu0 0
  %1870 = vperm.xlu0 %1869, %v1862
  %v1871 = vpop.permute.xlu0 %1870
  %vm1873 = vcmask 523264
  %v1875 = vsel %vm1873, %v1859, 0
  %v1878 = vsel %vm1873, %v1860, 0
  %1880 = vmatprep.subr.mxu0 %v1797
  %1881 = vmatpush1.msra.mxu0 %v1851
  %1882 = vmatprep.subr.mxu0 %v1802
  %1883 = vmatpush1.msra.mxu0 %v1852
  %1884 = vmatprep.subr.mxu0 %v1806
  %1885 = vmatpush1.msra.mxu0 %v1853
  %1886 = vmatprep.subr.mxu0 %v1810
  %1887 = vmatpush1.msra.mxu0 %v1854
  %1888 = vmatprep.subr.mxu0 %v1814
  %1889 = vmatpush1.msra.mxu0 %v1855
  %1890 = vmatprep.subr.mxu0 %v1818
  %1891 = vmatpush1.msra.mxu0 %v1856
  %1892 = vmatprep.subr.mxu0 %v1822
  %1893 = vmatpush1.msra.mxu0 %v1857
  %1894 = vmatprep.subr.mxu0 %v1826
  %1895 = vmatpush1.msra.mxu0 %v1858
  %1896 = vmatprep.subr.mxu0 0.0
  %1897 = vmatpush1.msra.mxu0 0.0
  %1898 = vmatprep.subr.mxu0 0.0
  %1899 = vmatpush1.msra.mxu0 0.0
  %1900 = vmatprep.subr.mxu0 0.0
  %1901 = vmatpush1.msra.mxu0 0.0
  %1902 = vmatprep.subr.mxu0 0.0
  %1903 = vmatpush1.msra.mxu0 0.0
  %1904 = vmatprep.subr.mxu0 0.0
  %1905 = vmatpush1.msra.mxu0 0.0
  %1906 = vmatprep.subr.mxu0 0.0
  %1907 = vmatpush1.msra.mxu0 0.0
  %1908 = vmatprep.subr.mxu0 0.0
  %1909 = vmatpush1.msra.mxu0 0.0
  %1910 = vmatprep.subr.mxu0 0.0
  %1911 = vmatpush1.msra.mxu0 0.0
  %1912 = vmatprep.subr.mxu0 0.0
  %1913 = vmatpush1.msra.mxu0 0.0
  %1914 = vmatprep.subr.mxu0 0.0
  %1915 = vmatpush1.msra.mxu0 0.0
  %1916 = vmatprep.subr.mxu0 0.0
  %1917 = vmatpush1.msra.mxu0 0.0
  %1918 = vmatprep.subr.mxu0 0.0
  %1919 = vmatpush1.msra.mxu0 0.0
  %1920 = vmatprep.subr.mxu0 0.0
  %1921 = vmatpush1.msra.mxu0 0.0
  %1922 = vmatprep.subr.mxu0 0.0
  %1923 = vmatpush1.msra.mxu0 0.0
  %1924 = vmatprep.subr.mxu0 0.0
  %1925 = vmatpush1.msra.mxu0 0.0
  %1926 = vmatprep.subr.mxu0 0.0
  %1927 = vmatpush1.msra.mxu0 0.0
  %1928 = vmatprep.subr.mxu0 0.0
  %1929 = vmatpush1.msra.mxu0 0.0
  %1930 = vmatprep.subr.mxu0 0.0
  %1931 = vmatpush1.msra.mxu0 0.0
  %1932 = vmatprep.subr.mxu0 0.0
  %1933 = vmatpush1.msra.mxu0 0.0
  %1934 = vmatprep.subr.mxu0 0.0
  %1935 = vmatpush1.msra.mxu0 0.0
  %1936 = vmatprep.subr.mxu0 0.0
  %1937 = vmatpush1.msra.mxu0 0.0
  %1938 = vmatprep.subr.mxu0 0.0
  %1939 = vmatpush1.msra.mxu0 0.0
  %1940 = vmatprep.subr.mxu0 0.0
  %1941 = vmatpush1.msra.mxu0 0.0
  %1942 = vmatprep.subr.mxu0 0.0
  %1943 = vmatpush1.msra.mxu0 0.0
  %1944 = vmatprep.mubr.f32.mxu0 0.0
  %1945 = vmatmul.mubr.f32.gmra.mrb[0].mxu0 %v1875
  %v1946 = vpop.f32.mrb[0].mxu0
  %v1947 = vadd.f32 %v1866, %v1946
  %v1948 = vpop.f32.mrb[0].mxu0
  %v1949 = vadd.f32 %v1866, %v1948
  %1950 = vmatprep.mubr.f32.mxu0 0.0
  %1951 = vmatmul.mubr.f32.gmra.mrb[0].mxu0 %v1878
  %v1952 = vpop.f32.mrb[0].mxu0
  %v1953 = vadd.f32 %v1871, %v1952
  %v1954 = vpop.f32.mrb[0].mxu0
  %v1955 = vadd.f32 %v1871, %v1954
  %1956 = vdwg.mxu0
  %v1957 = vmax.f32 %v1947, 0.0
  %v1958 = vmax.f32 %v1949, 0.0
  %v1959 = vmax.f32 %v1953, 0.0
  %v1960 = vmax.f32 %v1955, 0.0
  %v1961 = vmul.u32 %v1143, 3
  %vm1962 = vcmp.ge.s32.totalorder %v1079, %v1961
  %vm1963 = vcmp.ge.s32.totalorder %v1080, %v1961
  %vm1964 = vcmp.ge.s32.totalorder %v1081, %v1961
  %vm1965 = vcmp.ge.s32.totalorder %v1082, %v1961
  %vm1966 = vcmp.ge.s32.totalorder %v1083, %v1961
  %vm1967 = vcmp.ge.s32.totalorder %v1084, %v1961
  %vm1968 = vcmp.ge.s32.totalorder %v1085, %v1961
  %vm1969 = vcmp.ge.s32.totalorder %v1086, %v1961
  %vm1970 = vcmp.ge.s32.totalorder %v1087, %v1961
  %vm1971 = vcmp.ge.s32.totalorder %v1088, %v1961
  %v1972 = vmul.u32 %v1208, 3
  %vm1973 = vcmp.lt.s32.totalorder %v1079, %v1972
  %vm1974 = vcmp.lt.s32.totalorder %v1080, %v1972
  %vm1975 = vcmp.lt.s32.totalorder %v1081, %v1972
  %vm1976 = vcmp.lt.s32.totalorder %v1082, %v1972
  %vm1977 = vcmp.lt.s32.totalorder %v1083, %v1972
  %vm1978 = vcmp.lt.s32.totalorder %v1084, %v1972
  %vm1979 = vcmp.lt.s32.totalorder %v1085, %v1972
  %vm1980 = vcmp.lt.s32.totalorder %v1086, %v1972
  %vm1981 = vcmp.lt.s32.totalorder %v1087, %v1972
  %vm1982 = vcmp.lt.s32.totalorder %v1088, %v1972
  %vm1983 = vmand %vm1962, %vm1973
  %vm1984 = vmand %vm1963, %vm1974
  %vm1985 = vmand %vm1964, %vm1975
  %vm1986 = vmand %vm1965, %vm1976
  %vm1987 = vmand %vm1966, %vm1977
  %vm1988 = vmand %vm1967, %vm1978
  %vm1989 = vmand %vm1968, %vm1979
  %vm1990 = vmand %vm1969, %vm1980
  %vm1991 = vmand %vm1970, %vm1981
  %vm1992 = vmand %vm1971, %vm1982
  %v1993 = vsel %vm1983, 0.33333334, 0.0
  %v1994 = vsel %vm1984, 0.33333334, 0.0
  %v1995 = vsel %vm1985, 0.33333334, 0.0
  %v1996 = vsel %vm1986, 0.33333334, 0.0
  %v1997 = vsel %vm1987, 0.33333334, 0.0
  %v1998 = vsel %vm1988, 0.33333334, 0.0
  %v1999 = vsel %vm1989, 0.33333334, 0.0
  %v2000 = vsel %vm1990, 0.33333334, 0.0
  %v2001 = vsel %vm1991, 0.33333334, 0.0
  %v2002 = vsel %vm1992, 0.33333334, 0.0
  %v2004 = vsel %vm1850, %v1957, 0
  %v2007 = vsel %vm1850, %v1959, 0
  %v2010 = vsel %vm391, %v2002, 0
  %2012 = vmatprep.subr.mxu0 0.0
  %2013 = vmatpush1.msra.mxu0 %v1993
  %2014 = vmatprep.subr.mxu0 0.0
  %2015 = vmatpush1.msra.mxu0 %v1994
  %2016 = vmatprep.subr.mxu0 0.0
  %2017 = vmatpush1.msra.mxu0 %v1995
  %2018 = vmatprep.subr.mxu0 0.0
  %2019 = vmatpush1.msra.mxu0 %v1996
  %2020 = vmatprep.subr.mxu0 0.0
  %2021 = vmatpush1.msra.mxu0 %v1997
  %2022 = vmatprep.subr.mxu0 0.0
  %2023 = vmatpush1.msra.mxu0 %v1998
  %2024 = vmatprep.subr.mxu0 0.0
  %2025 = vmatpush1.msra.mxu0 %v1999
  %2026 = vmatprep.subr.mxu0 0.0
  %2027 = vmatpush1.msra.mxu0 %v2000
  %2028 = vmatprep.subr.mxu0 0.0
  %2029 = vmatpush1.msra.mxu0 %v2001
  %2030 = vmatprep.subr.mxu0 0.0
  %2031 = vmatpush1.msra.mxu0 %v2010
  %2032 = vmatprep.subr.mxu0 0.0
  %2033 = vmatpush1.msra.mxu0 0.0
  %2034 = vmatprep.subr.mxu0 0.0
  %2035 = vmatpush1.msra.mxu0 0.0
  %2036 = vmatprep.subr.mxu0 0.0
  %2037 = vmatpush1.msra.mxu0 0.0
  %2038 = vmatprep.subr.mxu0 0.0
  %2039 = vmatpush1.msra.mxu0 0.0
  %2040 = vmatprep.subr.mxu0 0.0
  %2041 = vmatpush1.msra.mxu0 0.0
  %2042 = vmatprep.subr.mxu0 0.0
  %2043 = vmatpush1.msra.mxu0 0.0
  %2044 = vmatprep.subr.mxu0 0.0
  %2045 = vmatpush1.msra.mxu0 0.0
  %2046 = vmatprep.subr.mxu0 0.0
  %2047 = vmatpush1.msra.mxu0 0.0
  %2048 = vmatprep.subr.mxu0 0.0
  %2049 = vmatpush1.msra.mxu0 0.0
  %2050 = vmatprep.subr.mxu0 0.0
  %2051 = vmatpush1.msra.mxu0 0.0
  %2052 = vmatprep.subr.mxu0 0.0
  %2053 = vmatpush1.msra.mxu0 0.0
  %2054 = vmatprep.subr.mxu0 0.0
  %2055 = vmatpush1.msra.mxu0 0.0
  %2056 = vmatprep.subr.mxu0 0.0
  %2057 = vmatpush1.msra.mxu0 0.0
  %2058 = vmatprep.subr.mxu0 0.0
  %2059 = vmatpush1.msra.mxu0 0.0
  %2060 = vmatprep.subr.mxu0 0.0
  %2061 = vmatpush1.msra.mxu0 0.0
  %2062 = vmatprep.subr.mxu0 0.0
  %2063 = vmatpush1.msra.mxu0 0.0
  %2064 = vmatprep.subr.mxu0 0.0
  %2065 = vmatpush1.msra.mxu0 0.0
  %2066 = vmatprep.subr.mxu0 0.0
  %2067 = vmatpush1.msra.mxu0 0.0
  %2068 = vmatprep.subr.mxu0 0.0
  %2069 = vmatpush1.msra.mxu0 0.0
  %2070 = vmatprep.subr.mxu0 0.0
  %2071 = vmatpush1.msra.mxu0 0.0
  %2072 = vmatprep.subr.mxu0 0.0
  %2073 = vmatpush1.msra.mxu0 0.0
  %2074 = vmatprep.subr.mxu0 0.0
  %2075 = vmatpush1.msra.mxu0 0.0
  %2076 = vmatprep.mubr.f32.mxu0 0.0
  %2077 = vmatmul.mubr.f32.gmra.mrb[0].mxu0 %v2004
  %v2078 = vpop.f32.mrb[0].mxu0
  %v2079 = vadd.f32 0.0, %v2078
  %v2080 = vpop.f32.mrb[0].mxu0
  %2081 = vmatprep.mubr.f32.mxu0 0.0
  %2082 = vmatmul.mubr.f32.gmra.mrb[0].mxu0 %v2007
  %v2083 = vpop.f32.mrb[0].mxu0
  %v2084 = vadd.f32 0.0, %v2083
  %v2085 = vpop.f32.mrb[0].mxu0
  %2086 = vdwg.mxu0
  %2089 = vrot.lane.b32.xlu0 %v1957, 52
  %v2090 = vpop.permute.xlu0 %2089
  %2091 = vrot.lane.b32.xlu0 %v1958, 52
  %v2092 = vpop.permute.xlu0 %2091
  %2093 = vrot.lane.b32.xlu0 %v1959, 52
  %v2094 = vpop.permute.xlu0 %2093
  %2095 = vrot.lane.b32.xlu0 %v1960, 52
  %v2096 = vpop.permute.xlu0 %2095
  %vm2097 = vcmask 424960
  %v2098 = vsel %vm2097, %v2090, %v2092
  %v2099 = vsel %vm2097, %v2094, %v2096
  %v2100 = vsel %vm1850, %v2098, 0
  %v2102 = vsel %vm1850, %v2099, 0
  %2104 = vmatprep.subr.mxu0 0.0
  %2105 = vmatpush1.msra.mxu0 %v1993
  %2106 = vmatprep.subr.mxu0 0.0
  %2107 = vmatpush1.msra.mxu0 %v1994
  %2108 = vmatprep.subr.mxu0 0.0
  %2109 = vmatpush1.msra.mxu0 %v1995
  %2110 = vmatprep.subr.mxu0 0.0
  %2111 = vmatpush1.msra.mxu0 %v1996
  %2112 = vmatprep.subr.mxu0 0.0
  %2113 = vmatpush1.msra.mxu0 %v1997
  %2114 = vmatprep.subr.mxu0 0.0
  %2115 = vmatpush1.msra.mxu0 %v1998
  %2116 = vmatprep.subr.mxu0 0.0
  %2117 = vmatpush1.msra.mxu0 %v1999
  %2118 = vmatprep.subr.mxu0 0.0
  %2119 = vmatpush1.msra.mxu0 %v2000
  %2120 = vmatprep.subr.mxu0 0.0
  %2121 = vmatpush1.msra.mxu0 %v2001
  %2122 = vmatprep.subr.mxu0 0.0
  %2123 = vmatpush1.msra.mxu0 %v2010
  %2124 = vmatprep.subr.mxu0 0.0
  %2125 = vmatpush1.msra.mxu0 0.0
  %2126 = vmatprep.subr.mxu0 0.0
  %2127 = vmatpush1.msra.mxu0 0.0
  %2128 = vmatprep.subr.mxu0 0.0
  %2129 = vmatpush1.msra.mxu0 0.0
  %2130 = vmatprep.subr.mxu0 0.0
  %2131 = vmatpush1.msra.mxu0 0.0
  %2132 = vmatprep.subr.mxu0 0.0
  %2133 = vmatpush1.msra.mxu0 0.0
  %2134 = vmatprep.subr.mxu0 0.0
  %2135 = vmatpush1.msra.mxu0 0.0
  %2136 = vmatprep.subr.mxu0 0.0
  %2137 = vmatpush1.msra.mxu0 0.0
  %2138 = vmatprep.subr.mxu0 0.0
  %2139 = vmatpush1.msra.mxu0 0.0
  %2140 = vmatprep.subr.mxu0 0.0
  %2141 = vmatpush1.msra.mxu0 0.0
  %2142 = vmatprep.subr.mxu0 0.0
  %2143 = vmatpush1.msra.mxu0 0.0
  %2144 = vmatprep.subr.mxu0 0.0
  %2145 = vmatpush1.msra.mxu0 0.0
  %2146 = vmatprep.subr.mxu0 0.0
  %2147 = vmatpush1.msra.mxu0 0.0
  %2148 = vmatprep.subr.mxu0 0.0
  %2149 = vmatpush1.msra.mxu0 0.0
  %2150 = vmatprep.subr.mxu0 0.0
  %2151 = vmatpush1.msra.mxu0 0.0
  %2152 = vmatprep.subr.mxu0 0.0
  %2153 = vmatpush1.msra.mxu0 0.0
  %2154 = vmatprep.subr.mxu0 0.0
  %2155 = vmatpush1.msra.mxu0 0.0
  %2156 = vmatprep.subr.mxu0 0.0
  %2157 = vmatpush1.msra.mxu0 0.0
  %2158 = vmatprep.subr.mxu0 0.0
  %2159 = vmatpush1.msra.mxu0 0.0
  %2160 = vmatprep.subr.mxu0 0.0
  %2161 = vmatpush1.msra.mxu0 0.0
  %2162 = vmatprep.subr.mxu0 0.0
  %2163 = vmatpush1.msra.mxu0 0.0
  %2164 = vmatprep.subr.mxu0 0.0
  %2165 = vmatpush1.msra.mxu0 0.0
  %2166 = vmatprep.subr.mxu0 0.0
  %2167 = vmatpush1.msra.mxu0 0.0
  %2168 = vmatprep.mubr.f32.mxu0 0.0
  %2169 = vmatmul.mubr.f32.gmra.mrb[0].mxu0 %v2100
  %v2170 = vpop.f32.mrb[0].mxu0
  %v2171 = vadd.f32 0.0, %v2170
  %v2172 = vpop.f32.mrb[0].mxu0
  %2173 = vmatprep.mubr.f32.mxu0 0.0
  %2174 = vmatmul.mubr.f32.gmra.mrb[0].mxu0 %v2102
  %v2175 = vpop.f32.mrb[0].mxu0
  %v2176 = vadd.f32 0.0, %v2175
  %v2177 = vpop.f32.mrb[0].mxu0
  %2178 = vdwg.mxu0
  %2181 = vrot.lane.b32.xlu0 %v2171, 25
  %v2182 = vpop.permute.xlu0 %2181
  %2183 = vrot.lane.b32.xlu0 %v2176, 25
  %v2184 = vpop.permute.xlu0 %2183
  %vm2187 = vcmask 203776
  %v2188 = vsel %vm2187, %v2079, %v2182
  %v2189 = vsel %vm2187, %v2084, %v2184
  %v2190 = vmax.f32 %v2188, 0.0
  %v2191 = vmax.f32 %v2189, 0.0
  %vm2192 = vcmask 408576
  %v2193 = vsel %vm2192, %v2190, 0.0
  %2194 = vadd.xlane.f32.xlu0 %v2193
  %v2195 = vpop.xlane.xlu0 %2194
  %v2196 = vsel %vm2192, %v2191, 0.0
  %2197 = vadd.xlane.f32.xlu0 %v2196
  %v2198 = vpop.xlane.xlu0 %2197
  %v2199 = vrcp.pop 50.0
  %v2200 = vmul.f32 %v2195, %v2199
  %v2201 = vmul.f32 %v2198, %v2199
  %v2202 = vsub.f32 %v2190, %v2200
  %v2203 = vsub.f32 %v2191, %v2201
  %v2204 = vmul.f32 %v2202, %v2202
  %v2205 = vmul.f32 %v2203, %v2203
  %v2206 = vsel %vm2192, %v2204, 0.0
  %2207 = vadd.xlane.f32.xlu0 %v2206
  %v2208 = vpop.xlane.xlu0 %2207
  %v2209 = vsel %vm2192, %v2205, 0.0
  %2210 = vadd.xlane.f32.xlu0 %v2209
  %v2211 = vpop.xlane.xlu0 %2210
  %v2212 = vmul.f32 %v2208, %v2199
  %v2213 = vmul.f32 %v2211, %v2199
  %v2214 = vadd.f32 %v2212, 1e-05
  %v2215 = vadd.f32 %v2213, 1e-05
  %v2216 = vrsqrt.pop %v2214
  %v2217 = vrsqrt.pop %v2215
  %v2218 = vmul.f32 %v2202, %v2216
  %v2219 = vmul.f32 %v2203, %v2217
  %v2220 = vld [vmem:[%s15] sm:$0xff]
  %v2221 = vld [vmem:[%s15 + $0x8] sm:$0xff]
  %2223 = vset.pattern.permute.xlu0 0
  %2224 = vperm.xlu0 %2223, %v2220
  %v2225 = vpop.permute.xlu0 %2224
  %2228 = vset.pattern.permute.xlu0 0
  %2229 = vperm.xlu0 %2228, %v2221
  %v2230 = vpop.permute.xlu0 %2229
  %v2232 = vmul.f32 %v2218, %v2225
  %v2233 = vmul.f32 %v2219, %v2230
  %v2234 = vld [vmem:[%s17] sm:$0xff]
  %v2235 = vld [vmem:[%s17 + $0x8] sm:$0xff]
  %2237 = vset.pattern.permute.xlu0 0
  %2238 = vperm.xlu0 %2237, %v2234
  %v2239 = vpop.permute.xlu0 %2238
  %2242 = vset.pattern.permute.xlu0 0
  %2243 = vperm.xlu0 %2242, %v2235
  %v2244 = vpop.permute.xlu0 %2243
  %v2246 = vadd.f32 %v2232, %v2239
  %v2247 = vadd.f32 %v2233, %v2244
  %v2248 = vmax.f32 %v2246, 0.0
  %v2249 = vmax.f32 %v2247, 0.0
  %2252 = vrot.lane.b32.xlu0 %v2248, 127
  %v2253 = vpop.permute.xlu0 %2252
  %2254 = vrot.lane.b32.xlu0 %v2249, 127
  %v2255 = vpop.permute.xlu0 %2254
  %2258 = vrot.lane.b32.xlu0 %v2248, 126
  %v2259 = vpop.permute.xlu0 %2258
  %2260 = vrot.lane.b32.xlu0 %v2249, 126
  %v2261 = vpop.permute.xlu0 %2260
  %2264 = vrot.lane.b32.xlu0 %v2248, 125
  %v2265 = vpop.permute.xlu0 %2264
  %2266 = vrot.lane.b32.xlu0 %v2249, 125
  %v2267 = vpop.permute.xlu0 %2266
  %2270 = vrot.lane.b32.xlu0 %v2248, 124
  %v2271 = vpop.permute.xlu0 %2270
  %2272 = vrot.lane.b32.xlu0 %v2249, 124
  %v2273 = vpop.permute.xlu0 %2272
  %2276 = vrot.lane.b32.xlu0 %v2248, 123
  %v2277 = vpop.permute.xlu0 %2276
  %2278 = vrot.lane.b32.xlu0 %v2249, 123
  %v2279 = vpop.permute.xlu0 %2278
  %2282 = vrot.lane.b32.xlu0 %v2253, 123
  %v2283 = vpop.permute.xlu0 %2282
  %2284 = vrot.lane.b32.xlu0 %v2255, 123
  %v2285 = vpop.permute.xlu0 %2284
  %2286 = vrot.lane.b32.xlu0 %v2259, 123
  %v2287 = vpop.permute.xlu0 %2286
  %2288 = vrot.lane.b32.xlu0 %v2261, 123
  %v2289 = vpop.permute.xlu0 %2288
  %2290 = vrot.lane.b32.xlu0 %v2265, 123
  %v2291 = vpop.permute.xlu0 %2290
  %2292 = vrot.lane.b32.xlu0 %v2267, 123
  %v2293 = vpop.permute.xlu0 %2292
  %2294 = vrot.lane.b32.xlu0 %v2271, 123
  %v2295 = vpop.permute.xlu0 %2294
  %2296 = vrot.lane.b32.xlu0 %v2273, 123
  %v2297 = vpop.permute.xlu0 %2296
  %2298 = vrot.lane.b32.xlu0 %v2277, 123
  %v2299 = vpop.permute.xlu0 %2298
  %2300 = vrot.lane.b32.xlu0 %v2279, 123
  %v2301 = vpop.permute.xlu0 %2300
  %vm2312 = vcmask 162816
  %v2313 = vsel %vm2312, %v2248, %v2277
  %v2314 = vsel %vm2312, %v2249, %v2279
  %v2315 = vsel %vm2312, %v2253, %v2283
  %v2316 = vsel %vm2312, %v2255, %v2285
  %v2317 = vsel %vm2312, %v2259, %v2287
  %v2318 = vsel %vm2312, %v2261, %v2289
  %v2319 = vsel %vm2312, %v2265, %v2291
  %v2320 = vsel %vm2312, %v2267, %v2293
  %v2321 = vsel %vm2312, %v2271, %v2295
  %v2322 = vsel %vm2312, %v2273, %v2297
  %v2323 = vsel %vm2312, %v2277, %v2299
  %v2324 = vsel %vm2312, %v2279, %v2301
  %v2325 = vld [vmem:[%s19] sm:$0xff]
  %v2326 = vld [vmem:[%s19 + $0x8] sm:$0xff]
  %v2327 = vld [vmem:[%s19 + $0x10] sm:$0xff]
  %v2328 = vld [vmem:[%s19 + $0x18] sm:$0xff]
  %v2329 = vld [vmem:[%s21] sm:$0xff]
  %v2330 = vld [vmem:[%s21 + $0x8] sm:$0xff]
  %v2331 = vld [vmem:[%s21 + $0x10] sm:$0xff]
  %v2332 = vld [vmem:[%s21 + $0x18] sm:$0xff]
  %2334 = vset.pattern.permute.xlu0 0
  %2335 = vperm.xlu0 %2334, %v2329
  %v2336 = vpop.permute.xlu0 %2335
  %2339 = vset.pattern.permute.xlu0 0
  %2340 = vperm.xlu0 %2339, %v2330
  %v2341 = vpop.permute.xlu0 %2340
  %2344 = vset.pattern.permute.xlu0 0
  %2345 = vperm.xlu0 %2344, %v2331
  %v2346 = vpop.permute.xlu0 %2345
  %2349 = vset.pattern.permute.xlu0 0
  %2350 = vperm.xlu0 %2349, %v2332
  %v2351 = vpop.permute.xlu0 %2350
  %vm2353 = vcmask 785408
  %v2355 = vsel %vm2353, %v2325, 0
  %v2358 = vsel %vm2353, %v2326, 0
  %v2361 = vsel %vm2353, %v2327, 0
  %v2364 = vsel %vm2353, %v2328, 0
  %2366 = vmatprep.subr.mxu0 0.0
  %2367 = vmatpush1.msra.mxu0 %v2313
  %2368 = vmatprep.subr.mxu0 0.0
  %2369 = vmatpush1.msra.mxu0 %v2314
  %2370 = vmatprep.subr.mxu0 0.0
  %2371 = vmatpush1.msra.mxu0 %v2315
  %2372 = vmatprep.subr.mxu0 0.0
  %2373 = vmatpush1.msra.mxu0 %v2316
  %2374 = vmatprep.subr.mxu0 0.0
  %2375 = vmatpush1.msra.mxu0 %v2317
  %2376 = vmatprep.subr.mxu0 0.0
  %2377 = vmatpush1.msra.mxu0 %v2318
  %2378 = vmatprep.subr.mxu0 0.0
  %2379 = vmatpush1.msra.mxu0 %v2319
  %2380 = vmatprep.subr.mxu0 0.0
  %2381 = vmatpush1.msra.mxu0 %v2320
  %2382 = vmatprep.subr.mxu0 0.0
  %2383 = vmatpush1.msra.mxu0 %v2321
  %2384 = vmatprep.subr.mxu0 0.0
  %2385 = vmatpush1.msra.mxu0 %v2322
  %2386 = vmatprep.subr.mxu0 0.0
  %2387 = vmatpush1.msra.mxu0 %v2323
  %2388 = vmatprep.subr.mxu0 0.0
  %2389 = vmatpush1.msra.mxu0 %v2324
  %2390 = vmatprep.subr.mxu0 0.0
  %2391 = vmatpush1.msra.mxu0 0.0
  %2392 = vmatprep.subr.mxu0 0.0
  %2393 = vmatpush1.msra.mxu0 0.0
  %2394 = vmatprep.subr.mxu0 0.0
  %2395 = vmatpush1.msra.mxu0 0.0
  %2396 = vmatprep.subr.mxu0 0.0
  %2397 = vmatpush1.msra.mxu0 0.0
  %2398 = vmatprep.subr.mxu0 0.0
  %2399 = vmatpush1.msra.mxu0 0.0
  %2400 = vmatprep.subr.mxu0 0.0
  %2401 = vmatpush1.msra.mxu0 0.0
  %2402 = vmatprep.subr.mxu0 0.0
  %2403 = vmatpush1.msra.mxu0 0.0
  %2404 = vmatprep.subr.mxu0 0.0
  %2405 = vmatpush1.msra.mxu0 0.0
  %2406 = vmatprep.subr.mxu0 0.0
  %2407 = vmatpush1.msra.mxu0 0.0
  %2408 = vmatprep.subr.mxu0 0.0
  %2409 = vmatpush1.msra.mxu0 0.0
  %2410 = vmatprep.subr.mxu0 0.0
  %2411 = vmatpush1.msra.mxu0 0.0
  %2412 = vmatprep.subr.mxu0 0.0
  %2413 = vmatpush1.msra.mxu0 0.0
  %2414 = vmatprep.subr.mxu0 0.0
  %2415 = vmatpush1.msra.mxu0 0.0
  %2416 = vmatprep.subr.mxu0 0.0
  %2417 = vmatpush1.msra.mxu0 0.0
  %2418 = vmatprep.subr.mxu0 0.0
  %2419 = vmatpush1.msra.mxu0 0.0
  %2420 = vmatprep.subr.mxu0 0.0
  %2421 = vmatpush1.msra.mxu0 0.0
  %2422 = vmatprep.subr.mxu0 0.0
  %2423 = vmatpush1.msra.mxu0 0.0
  %2424 = vmatprep.subr.mxu0 0.0
  %2425 = vmatpush1.msra.mxu0 0.0
  %2426 = vmatprep.subr.mxu0 0.0
  %2427 = vmatpush1.msra.mxu0 0.0
  %2428 = vmatprep.subr.mxu0 0.0
  %2429 = vmatpush1.msra.mxu0 0.0
  %2430 = vmatprep.mubr.f32.mxu0 0.0
  %2431 = vmatmul.mubr.f32.gmra.mrb[0].mxu0 %v2355
  %v2432 = vpop.f32.mrb[0].mxu0
  %v2433 = vadd.f32 %v2336, %v2432
  %v2434 = vpop.f32.mrb[0].mxu0
  %2435 = vmatprep.mubr.f32.mxu0 0.0
  %2436 = vmatmul.mubr.f32.gmra.mrb[0].mxu0 %v2358
  %v2437 = vpop.f32.mrb[0].mxu0
  %v2438 = vadd.f32 %v2341, %v2437
  %v2439 = vpop.f32.mrb[0].mxu0
  %2440 = vmatprep.mubr.f32.mxu0 0.0
  %2441 = vmatmul.mubr.f32.gmra.mrb[0].mxu0 %v2361
  %v2442 = vpop.f32.mrb[0].mxu0
  %v2443 = vadd.f32 %v2346, %v2442
  %v2444 = vpop.f32.mrb[0].mxu0
  %2445 = vmatprep.mubr.f32.mxu0 0.0
  %2446 = vmatmul.mubr.f32.gmra.mrb[0].mxu0 %v2364
  %v2447 = vpop.f32.mrb[0].mxu0
  %v2448 = vadd.f32 %v2351, %v2447
  %v2449 = vpop.f32.mrb[0].mxu0
  %2450 = vdwg.mxu0
  %v2451 = vmax.f32 %v2433, 0.0
  %v2452 = vmax.f32 %v2438, 0.0
  %v2453 = vmax.f32 %v2443, 0.0
  %v2454 = vmax.f32 %v2448, 0.0
  %v2455 = vmul.u32 %v1143, 2
  %vm2456 = vcmp.ge.s32.totalorder %v1079, %v2455
  %vm2457 = vcmp.ge.s32.totalorder %v1080, %v2455
  %vm2458 = vcmp.ge.s32.totalorder %v1081, %v2455
  %v2459 = vmul.u32 %v1208, 2
  %vm2460 = vcmp.lt.s32.totalorder %v1079, %v2459
  %vm2461 = vcmp.lt.s32.totalorder %v1080, %v2459
  %vm2462 = vcmp.lt.s32.totalorder %v1081, %v2459
  %vm2463 = vmand %vm2456, %vm2460
  %vm2464 = vmand %vm2457, %vm2461
  %vm2465 = vmand %vm2458, %vm2462
  %v2466 = vsel %vm2463, 0.5, 0.0
  %v2467 = vsel %vm2464, 0.5, 0.0
  %v2468 = vsel %vm2465, 0.5, 0.0
  %v2470 = vsel %vm2312, %v2451, 0
  %v2473 = vsel %vm2312, %v2452, 0
  %v2476 = vsel %vm2312, %v2453, 0
  %v2479 = vsel %vm2312, %v2454, 0
  %v2482 = vsel %vm391, %v2468, 0
  %2484 = vmatprep.subr.mxu0 0.0
  %2485 = vmatpush1.msra.mxu0 %v2466
  %2486 = vmatprep.subr.mxu0 0.0
  %2487 = vmatpush1.msra.mxu0 %v2467
  %2488 = vmatprep.subr.mxu0 0.0
  %2489 = vmatpush1.msra.mxu0 %v2482
  %2490 = vmatprep.subr.mxu0 0.0
  %2491 = vmatpush1.msra.mxu0 0.0
  %2492 = vmatprep.subr.mxu0 0.0
  %2493 = vmatpush1.msra.mxu0 0.0
  %2494 = vmatprep.subr.mxu0 0.0
  %2495 = vmatpush1.msra.mxu0 0.0
  %2496 = vmatprep.subr.mxu0 0.0
  %2497 = vmatpush1.msra.mxu0 0.0
  %2498 = vmatprep.subr.mxu0 0.0
  %2499 = vmatpush1.msra.mxu0 0.0
  %2500 = vmatprep.subr.mxu0 0.0
  %2501 = vmatpush1.msra.mxu0 0.0
  %2502 = vmatprep.subr.mxu0 0.0
  %2503 = vmatpush1.msra.mxu0 0.0
  %2504 = vmatprep.subr.mxu0 0.0
  %2505 = vmatpush1.msra.mxu0 0.0
  %2506 = vmatprep.subr.mxu0 0.0
  %2507 = vmatpush1.msra.mxu0 0.0
  %2508 = vmatprep.subr.mxu0 0.0
  %2509 = vmatpush1.msra.mxu0 0.0
  %2510 = vmatprep.subr.mxu0 0.0
  %2511 = vmatpush1.msra.mxu0 0.0
  %2512 = vmatprep.subr.mxu0 0.0
  %2513 = vmatpush1.msra.mxu0 0.0
  %2514 = vmatprep.subr.mxu0 0.0
  %2515 = vmatpush1.msra.mxu0 0.0
  %2516 = vmatprep.subr.mxu0 0.0
  %2517 = vmatpush1.msra.mxu0 0.0
  %2518 = vmatprep.subr.mxu0 0.0
  %2519 = vmatpush1.msra.mxu0 0.0
  %2520 = vmatprep.subr.mxu0 0.0
  %2521 = vmatpush1.msra.mxu0 0.0
  %2522 = vmatprep.subr.mxu0 0.0
  %2523 = vmatpush1.msra.mxu0 0.0
  %2524 = vmatprep.subr.mxu0 0.0
  %2525 = vmatpush1.msra.mxu0 0.0
  %2526 = vmatprep.subr.mxu0 0.0
  %2527 = vmatpush1.msra.mxu0 0.0
  %2528 = vmatprep.subr.mxu0 0.0
  %2529 = vmatpush1.msra.mxu0 0.0
  %2530 = vmatprep.subr.mxu0 0.0
  %2531 = vmatpush1.msra.mxu0 0.0
  %2532 = vmatprep.subr.mxu0 0.0
  %2533 = vmatpush1.msra.mxu0 0.0
  %2534 = vmatprep.subr.mxu0 0.0
  %2535 = vmatpush1.msra.mxu0 0.0
  %2536 = vmatprep.subr.mxu0 0.0
  %2537 = vmatpush1.msra.mxu0 0.0
  %2538 = vmatprep.subr.mxu0 0.0
  %2539 = vmatpush1.msra.mxu0 0.0
  %2540 = vmatprep.subr.mxu0 0.0
  %2541 = vmatpush1.msra.mxu0 0.0
  %2542 = vmatprep.subr.mxu0 0.0
  %2543 = vmatpush1.msra.mxu0 0.0
  %2544 = vmatprep.subr.mxu0 0.0
  %2545 = vmatpush1.msra.mxu0 0.0
  %2546 = vmatprep.subr.mxu0 0.0
  %2547 = vmatpush1.msra.mxu0 0.0
  %2548 = vmatprep.mubr.f32.mxu0 0.0
  %2549 = vmatmul.mubr.f32.gmra.mrb[0].mxu0 %v2470
  %v2550 = vpop.f32.mrb[0].mxu0
  %v2551 = vadd.f32 0.0, %v2550
  %v2552 = vpop.f32.mrb[0].mxu0
  %2553 = vmatprep.mubr.f32.mxu0 0.0
  %2554 = vmatmul.mubr.f32.gmra.mrb[0].mxu0 %v2473
  %v2555 = vpop.f32.mrb[0].mxu0
  %v2556 = vadd.f32 0.0, %v2555
  %v2557 = vpop.f32.mrb[0].mxu0
  %2558 = vmatprep.mubr.f32.mxu0 0.0
  %2559 = vmatmul.mubr.f32.gmra.mrb[0].mxu0 %v2476
  %v2560 = vpop.f32.mrb[0].mxu0
  %v2561 = vadd.f32 0.0, %v2560
  %v2562 = vpop.f32.mrb[0].mxu0
  %2563 = vmatprep.mubr.f32.mxu0 0.0
  %2564 = vmatmul.mubr.f32.gmra.mrb[0].mxu0 %v2479
  %v2565 = vpop.f32.mrb[0].mxu0
  %v2566 = vadd.f32 0.0, %v2565
  %v2567 = vpop.f32.mrb[0].mxu0
  %2568 = vdwg.mxu0
  %2569 = vrot.lane.b32.xlu0 %v2451, 108
  %v2570 = vpop.permute.xlu0 %2569
  %2571 = vrot.lane.b32.xlu0 %v2452, 108
  %v2572 = vpop.permute.xlu0 %2571
  %2573 = vrot.lane.b32.xlu0 %v2453, 108
  %v2574 = vpop.permute.xlu0 %2573
  %2575 = vrot.lane.b32.xlu0 %v2454, 108
  %v2576 = vpop.permute.xlu0 %2575
  %v2577 = vsel %vm2312, %v2570, 0
  %v2579 = vsel %vm2312, %v2572, 0
  %v2581 = vsel %vm2312, %v2574, 0
  %v2583 = vsel %vm2312, %v2576, 0
  %2585 = vmatprep.subr.mxu0 0.0
  %2586 = vmatpush1.msra.mxu0 %v2466
  %2587 = vmatprep.subr.mxu0 0.0
  %2588 = vmatpush1.msra.mxu0 %v2467
  %2589 = vmatprep.subr.mxu0 0.0
  %2590 = vmatpush1.msra.mxu0 %v2482
  %2591 = vmatprep.subr.mxu0 0.0
  %2592 = vmatpush1.msra.mxu0 0.0
  %2593 = vmatprep.subr.mxu0 0.0
  %2594 = vmatpush1.msra.mxu0 0.0
  %2595 = vmatprep.subr.mxu0 0.0
  %2596 = vmatpush1.msra.mxu0 0.0
  %2597 = vmatprep.subr.mxu0 0.0
  %2598 = vmatpush1.msra.mxu0 0.0
  %2599 = vmatprep.subr.mxu0 0.0
  %2600 = vmatpush1.msra.mxu0 0.0
  %2601 = vmatprep.subr.mxu0 0.0
  %2602 = vmatpush1.msra.mxu0 0.0
  %2603 = vmatprep.subr.mxu0 0.0
  %2604 = vmatpush1.msra.mxu0 0.0
  %2605 = vmatprep.subr.mxu0 0.0
  %2606 = vmatpush1.msra.mxu0 0.0
  %2607 = vmatprep.subr.mxu0 0.0
  %2608 = vmatpush1.msra.mxu0 0.0
  %2609 = vmatprep.subr.mxu0 0.0
  %2610 = vmatpush1.msra.mxu0 0.0
  %2611 = vmatprep.subr.mxu0 0.0
  %2612 = vmatpush1.msra.mxu0 0.0
  %2613 = vmatprep.subr.mxu0 0.0
  %2614 = vmatpush1.msra.mxu0 0.0
  %2615 = vmatprep.subr.mxu0 0.0
  %2616 = vmatpush1.msra.mxu0 0.0
  %2617 = vmatprep.subr.mxu0 0.0
  %2618 = vmatpush1.msra.mxu0 0.0
  %2619 = vmatprep.subr.mxu0 0.0
  %2620 = vmatpush1.msra.mxu0 0.0
  %2621 = vmatprep.subr.mxu0 0.0
  %2622 = vmatpush1.msra.mxu0 0.0
  %2623 = vmatprep.subr.mxu0 0.0
  %2624 = vmatpush1.msra.mxu0 0.0
  %2625 = vmatprep.subr.mxu0 0.0
  %2626 = vmatpush1.msra.mxu0 0.0
  %2627 = vmatprep.subr.mxu0 0.0
  %2628 = vmatpush1.msra.mxu0 0.0
  %2629 = vmatprep.subr.mxu0 0.0
  %2630 = vmatpush1.msra.mxu0 0.0
  %2631 = vmatprep.subr.mxu0 0.0
  %2632 = vmatpush1.msra.mxu0 0.0
  %2633 = vmatprep.subr.mxu0 0.0
  %2634 = vmatpush1.msra.mxu0 0.0
  %2635 = vmatprep.subr.mxu0 0.0
  %2636 = vmatpush1.msra.mxu0 0.0
  %2637 = vmatprep.subr.mxu0 0.0
  %2638 = vmatpush1.msra.mxu0 0.0
  %2639 = vmatprep.subr.mxu0 0.0
  %2640 = vmatpush1.msra.mxu0 0.0
  %2641 = vmatprep.subr.mxu0 0.0
  %2642 = vmatpush1.msra.mxu0 0.0
  %2643 = vmatprep.subr.mxu0 0.0
  %2644 = vmatpush1.msra.mxu0 0.0
  %2645 = vmatprep.subr.mxu0 0.0
  %2646 = vmatpush1.msra.mxu0 0.0
  %2647 = vmatprep.subr.mxu0 0.0
  %2648 = vmatpush1.msra.mxu0 0.0
  %2649 = vmatprep.mubr.f32.mxu0 0.0
  %2650 = vmatmul.mubr.f32.gmra.mrb[0].mxu0 %v2577
  %v2651 = vpop.f32.mrb[0].mxu0
  %v2652 = vadd.f32 0.0, %v2651
  %v2653 = vpop.f32.mrb[0].mxu0
  %2654 = vmatprep.mubr.f32.mxu0 0.0
  %2655 = vmatmul.mubr.f32.gmra.mrb[0].mxu0 %v2579
  %v2656 = vpop.f32.mrb[0].mxu0
  %v2657 = vadd.f32 0.0, %v2656
  %v2658 = vpop.f32.mrb[0].mxu0
  %2659 = vmatprep.mubr.f32.mxu0 0.0
  %2660 = vmatmul.mubr.f32.gmra.mrb[0].mxu0 %v2581
  %v2661 = vpop.f32.mrb[0].mxu0
  %v2662 = vadd.f32 0.0, %v2661
  %v2663 = vpop.f32.mrb[0].mxu0
  %2664 = vmatprep.mubr.f32.mxu0 0.0
  %2665 = vmatmul.mubr.f32.gmra.mrb[0].mxu0 %v2583
  %v2666 = vpop.f32.mrb[0].mxu0
  %v2667 = vadd.f32 0.0, %v2666
  %v2668 = vpop.f32.mrb[0].mxu0
  %2669 = vdwg.mxu0
  %2674 = vrot.lane.b32.xlu0 %v2652, 10
  %v2675 = vpop.permute.xlu0 %2674
  %2676 = vrot.lane.b32.xlu0 %v2657, 10
  %v2677 = vpop.permute.xlu0 %2676
  %2678 = vrot.lane.b32.xlu0 %v2662, 10
  %v2679 = vpop.permute.xlu0 %2678
  %2680 = vrot.lane.b32.xlu0 %v2667, 10
  %v2681 = vpop.permute.xlu0 %2680
  %vm2686 = vcmask 80896
  %v2687 = vsel %vm2686, %v2551, %v2675
  %v2688 = vsel %vm2686, %v2556, %v2677
  %v2689 = vsel %vm2686, %v2561, %v2679
  %v2690 = vsel %vm2686, %v2566, %v2681
  %v2691 = vmax.f32 %v2687, 0.0
  %v2692 = vmax.f32 %v2688, 0.0
  %v2693 = vmax.f32 %v2689, 0.0
  %v2694 = vmax.f32 %v2690, 0.0
  %v2695 = vsel %vm2312, %v2691, 0.0
  %2696 = vadd.xlane.f32.xlu0 %v2695
  %v2697 = vpop.xlane.xlu0 %2696
  %v2698 = vsel %vm2312, %v2692, 0.0
  %2699 = vadd.xlane.f32.xlu0 %v2698
  %v2700 = vpop.xlane.xlu0 %2699
  %v2701 = vsel %vm2312, %v2693, 0.0
  %2702 = vadd.xlane.f32.xlu0 %v2701
  %v2703 = vpop.xlane.xlu0 %2702
  %v2704 = vsel %vm2312, %v2694, 0.0
  %2705 = vadd.xlane.f32.xlu0 %v2704
  %v2706 = vpop.xlane.xlu0 %2705
  %v2707 = vrcp.pop 20.0
  %v2708 = vmul.f32 %v2697, %v2707
  %v2709 = vmul.f32 %v2700, %v2707
  %v2710 = vmul.f32 %v2703, %v2707
  %v2711 = vmul.f32 %v2706, %v2707
  %v2712 = vsub.f32 %v2691, %v2708
  %v2713 = vsub.f32 %v2692, %v2709
  %v2714 = vsub.f32 %v2693, %v2710
  %v2715 = vsub.f32 %v2694, %v2711
  %v2716 = vmul.f32 %v2712, %v2712
  %v2717 = vmul.f32 %v2713, %v2713
  %v2718 = vmul.f32 %v2714, %v2714
  %v2719 = vmul.f32 %v2715, %v2715
  %v2720 = vsel %vm2312, %v2716, 0.0
  %2721 = vadd.xlane.f32.xlu0 %v2720
  %v2722 = vpop.xlane.xlu0 %2721
  %v2723 = vsel %vm2312, %v2717, 0.0
  %2724 = vadd.xlane.f32.xlu0 %v2723
  %v2725 = vpop.xlane.xlu0 %2724
  %v2726 = vsel %vm2312, %v2718, 0.0
  %2727 = vadd.xlane.f32.xlu0 %v2726
  %v2728 = vpop.xlane.xlu0 %2727
  %v2729 = vsel %vm2312, %v2719, 0.0
  %2730 = vadd.xlane.f32.xlu0 %v2729
  %v2731 = vpop.xlane.xlu0 %2730
  %v2732 = vmul.f32 %v2722, %v2707
  %v2733 = vmul.f32 %v2725, %v2707
  %v2734 = vmul.f32 %v2728, %v2707
  %v2735 = vmul.f32 %v2731, %v2707
  %v2736 = vadd.f32 %v2732, 1e-05
  %v2737 = vadd.f32 %v2733, 1e-05
  %v2738 = vadd.f32 %v2734, 1e-05
  %v2739 = vadd.f32 %v2735, 1e-05
  %v2740 = vrsqrt.pop %v2736
  %v2741 = vrsqrt.pop %v2737
  %v2742 = vrsqrt.pop %v2738
  %v2743 = vrsqrt.pop %v2739
  %v2744 = vmul.f32 %v2712, %v2740
  %v2745 = vmul.f32 %v2713, %v2741
  %v2746 = vmul.f32 %v2714, %v2742
  %v2747 = vmul.f32 %v2715, %v2743
  %v2748 = vld [vmem:[%s23] sm:$0xff]
  %v2749 = vld [vmem:[%s23 + $0x8] sm:$0xff]
  %v2750 = vld [vmem:[%s23 + $0x10] sm:$0xff]
  %v2751 = vld [vmem:[%s23 + $0x18] sm:$0xff]
  %2753 = vset.pattern.permute.xlu0 0
  %2754 = vperm.xlu0 %2753, %v2748
  %v2755 = vpop.permute.xlu0 %2754
  %2758 = vset.pattern.permute.xlu0 0
  %2759 = vperm.xlu0 %2758, %v2749
  %v2760 = vpop.permute.xlu0 %2759
  %2763 = vset.pattern.permute.xlu0 0
  %2764 = vperm.xlu0 %2763, %v2750
  %v2765 = vpop.permute.xlu0 %2764
  %2768 = vset.pattern.permute.xlu0 0
  %2769 = vperm.xlu0 %2768, %v2751
  %v2770 = vpop.permute.xlu0 %2769
  %v2772 = vmul.f32 %v2744, %v2755
  %v2773 = vmul.f32 %v2745, %v2760
  %v2774 = vmul.f32 %v2746, %v2765
  %v2775 = vmul.f32 %v2747, %v2770
  %v2776 = vld [vmem:[%s25] sm:$0xff]
  %v2777 = vld [vmem:[%s25 + $0x8] sm:$0xff]
  %v2778 = vld [vmem:[%s25 + $0x10] sm:$0xff]
  %v2779 = vld [vmem:[%s25 + $0x18] sm:$0xff]
  %2781 = vset.pattern.permute.xlu0 0
  %2782 = vperm.xlu0 %2781, %v2776
  %v2783 = vpop.permute.xlu0 %2782
  %2786 = vset.pattern.permute.xlu0 0
  %2787 = vperm.xlu0 %2786, %v2777
  %v2788 = vpop.permute.xlu0 %2787
  %2791 = vset.pattern.permute.xlu0 0
  %2792 = vperm.xlu0 %2791, %v2778
  %v2793 = vpop.permute.xlu0 %2792
  %2796 = vset.pattern.permute.xlu0 0
  %2797 = vperm.xlu0 %2796, %v2779
  %v2798 = vpop.permute.xlu0 %2797
  %v2800 = vadd.f32 %v2772, %v2783
  %v2801 = vadd.f32 %v2773, %v2788
  %v2802 = vadd.f32 %v2774, %v2793
  %v2803 = vadd.f32 %v2775, %v2798
  %v2804 = vmax.f32 %v2800, 0.0
  %v2805 = vmax.f32 %v2801, 0.0
  %v2806 = vmax.f32 %v2802, 0.0
  %v2807 = vmax.f32 %v2803, 0.0
  %2812 = vrot.lane.b32.xlu0 %v2804, 127
  %v2813 = vpop.permute.xlu0 %2812
  %2814 = vrot.lane.b32.xlu0 %v2805, 127
  %v2815 = vpop.permute.xlu0 %2814
  %2816 = vrot.lane.b32.xlu0 %v2806, 127
  %v2817 = vpop.permute.xlu0 %2816
  %2818 = vrot.lane.b32.xlu0 %v2807, 127
  %v2819 = vpop.permute.xlu0 %2818
  %2824 = vrot.lane.b32.xlu0 %v2804, 126
  %v2825 = vpop.permute.xlu0 %2824
  %2826 = vrot.lane.b32.xlu0 %v2805, 126
  %v2827 = vpop.permute.xlu0 %2826
  %2828 = vrot.lane.b32.xlu0 %v2806, 126
  %v2829 = vpop.permute.xlu0 %2828
  %2830 = vrot.lane.b32.xlu0 %v2807, 126
  %v2831 = vpop.permute.xlu0 %2830
  %2836 = vrot.lane.b32.xlu0 %v2804, 125
  %v2837 = vpop.permute.xlu0 %2836
  %2838 = vrot.lane.b32.xlu0 %v2805, 125
  %v2839 = vpop.permute.xlu0 %2838
  %2840 = vrot.lane.b32.xlu0 %v2806, 125
  %v2841 = vpop.permute.xlu0 %2840
  %2842 = vrot.lane.b32.xlu0 %v2807, 125
  %v2843 = vpop.permute.xlu0 %2842
  %2848 = vrot.lane.b32.xlu0 %v2813, 125
  %v2849 = vpop.permute.xlu0 %2848
  %2850 = vrot.lane.b32.xlu0 %v2815, 125
  %v2851 = vpop.permute.xlu0 %2850
  %2852 = vrot.lane.b32.xlu0 %v2817, 125
  %v2853 = vpop.permute.xlu0 %2852
  %2854 = vrot.lane.b32.xlu0 %v2819, 125
  %v2855 = vpop.permute.xlu0 %2854
  %2856 = vrot.lane.b32.xlu0 %v2825, 125
  %v2857 = vpop.permute.xlu0 %2856
  %2858 = vrot.lane.b32.xlu0 %v2827, 125
  %v2859 = vpop.permute.xlu0 %2858
  %2860 = vrot.lane.b32.xlu0 %v2829, 125
  %v2861 = vpop.permute.xlu0 %2860
  %2862 = vrot.lane.b32.xlu0 %v2831, 125
  %v2863 = vpop.permute.xlu0 %2862
  %2864 = vrot.lane.b32.xlu0 %v2837, 125
  %v2865 = vpop.permute.xlu0 %2864
  %2866 = vrot.lane.b32.xlu0 %v2839, 125
  %v2867 = vpop.permute.xlu0 %2866
  %2868 = vrot.lane.b32.xlu0 %v2841, 125
  %v2869 = vpop.permute.xlu0 %2868
  %2870 = vrot.lane.b32.xlu0 %v2843, 125
  %v2871 = vpop.permute.xlu0 %2870
  %vm2884 = vcmask 56320
  %v2885 = vsel %vm2884, %v2804, %v2837
  %v2886 = vsel %vm2884, %v2805, %v2839
  %v2887 = vsel %vm2884, %v2806, %v2841
  %v2888 = vsel %vm2884, %v2807, %v2843
  %v2889 = vsel %vm2884, %v2813, %v2849
  %v2890 = vsel %vm2884, %v2815, %v2851
  %v2891 = vsel %vm2884, %v2817, %v2853
  %v2892 = vsel %vm2884, %v2819, %v2855
  %v2893 = vsel %vm2884, %v2825, %v2857
  %v2894 = vsel %vm2884, %v2827, %v2859
  %v2895 = vsel %vm2884, %v2829, %v2861
  %v2896 = vsel %vm2884, %v2831, %v2863
  %v2897 = vsel %vm2884, %v2837, %v2865
  %v2898 = vsel %vm2884, %v2839, %v2867
  %v2899 = vsel %vm2884, %v2841, %v2869
  %v2900 = vsel %vm2884, %v2843, %v2871
  %v2901 = vld [vmem:[%s27] sm:$0xff]
  %v2902 = vld [vmem:[%s27 + $0x8] sm:$0xff]
  %v2903 = vld [vmem:[%s27 + $0x10] sm:$0xff]
  %v2904 = vld [vmem:[%s27 + $0x18] sm:$0xff]
  %v2905 = vld [vmem:[%s27 + $0x20] sm:$0xff]
  %v2906 = vld [vmem:[%s27 + $0x28] sm:$0xff]
  %v2907 = vld [vmem:[%s27 + $0x30] sm:$0xff]
  %v2908 = vld [vmem:[%s27 + $0x38] sm:$0xff]
  %v2909 = vld [vmem:[%s29] sm:$0xff]
  %v2910 = vld [vmem:[%s29 + $0x8] sm:$0xff]
  %v2911 = vld [vmem:[%s29 + $0x10] sm:$0xff]
  %v2912 = vld [vmem:[%s29 + $0x18] sm:$0xff]
  %v2913 = vld [vmem:[%s29 + $0x20] sm:$0xff]
  %v2914 = vld [vmem:[%s29 + $0x28] sm:$0xff]
  %v2915 = vld [vmem:[%s29 + $0x30] sm:$0xff]
  %v2916 = vld [vmem:[%s29 + $0x38] sm:$0xff]
  %2918 = vset.pattern.permute.xlu0 0
  %2919 = vperm.xlu0 %2918, %v2909
  %v2920 = vpop.permute.xlu0 %2919
  %2923 = vset.pattern.permute.xlu0 0
  %2924 = vperm.xlu0 %2923, %v2910
  %v2925 = vpop.permute.xlu0 %2924
  %2928 = vset.pattern.permute.xlu0 0
  %2929 = vperm.xlu0 %2928, %v2911
  %v2930 = vpop.permute.xlu0 %2929
  %2933 = vset.pattern.permute.xlu0 0
  %2934 = vperm.xlu0 %2933, %v2912
  %v2935 = vpop.permute.xlu0 %2934
  %2938 = vset.pattern.permute.xlu0 0
  %2939 = vperm.xlu0 %2938, %v2913
  %v2940 = vpop.permute.xlu0 %2939
  %2943 = vset.pattern.permute.xlu0 0
  %2944 = vperm.xlu0 %2943, %v2914
  %v2945 = vpop.permute.xlu0 %2944
  %2948 = vset.pattern.permute.xlu0 0
  %2949 = vperm.xlu0 %2948, %v2915
  %v2950 = vpop.permute.xlu0 %2949
  %2953 = vset.pattern.permute.xlu0 0
  %2954 = vperm.xlu0 %2953, %v2916
  %v2955 = vpop.permute.xlu0 %2954
  %2957 = vmatprep.subr.mxu0 0.0
  %2958 = vmatpush1.msra.mxu0 %v2885
  %2959 = vmatprep.subr.mxu0 0.0
  %2960 = vmatpush1.msra.mxu0 %v2886
  %2961 = vmatprep.subr.mxu0 0.0
  %2962 = vmatpush1.msra.mxu0 %v2887
  %2963 = vmatprep.subr.mxu0 0.0
  %2964 = vmatpush1.msra.mxu0 %v2888
  %2965 = vmatprep.subr.mxu0 0.0
  %2966 = vmatpush1.msra.mxu0 %v2889
  %2967 = vmatprep.subr.mxu0 0.0
  %2968 = vmatpush1.msra.mxu0 %v2890
  %2969 = vmatprep.subr.mxu0 0.0
  %2970 = vmatpush1.msra.mxu0 %v2891
  %2971 = vmatprep.subr.mxu0 0.0
  %2972 = vmatpush1.msra.mxu0 %v2892
  %2973 = vmatprep.subr.mxu0 0.0
  %2974 = vmatpush1.msra.mxu0 %v2893
  %2975 = vmatprep.subr.mxu0 0.0
  %2976 = vmatpush1.msra.mxu0 %v2894
  %2977 = vmatprep.subr.mxu0 0.0
  %2978 = vmatpush1.msra.mxu0 %v2895
  %2979 = vmatprep.subr.mxu0 0.0
  %2980 = vmatpush1.msra.mxu0 %v2896
  %2981 = vmatprep.subr.mxu0 0.0
  %2982 = vmatpush1.msra.mxu0 %v2897
  %2983 = vmatprep.subr.mxu0 0.0
  %2984 = vmatpush1.msra.mxu0 %v2898
  %2985 = vmatprep.subr.mxu0 0.0
  %2986 = vmatpush1.msra.mxu0 %v2899
  %2987 = vmatprep.subr.mxu0 0.0
  %2988 = vmatpush1.msra.mxu0 %v2900
  %2989 = vmatprep.subr.mxu0 0.0
  %2990 = vmatpush1.msra.mxu0 0.0
  %2991 = vmatprep.subr.mxu0 0.0
  %2992 = vmatpush1.msra.mxu0 0.0
  %2993 = vmatprep.subr.mxu0 0.0
  %2994 = vmatpush1.msra.mxu0 0.0
  %2995 = vmatprep.subr.mxu0 0.0
  %2996 = vmatpush1.msra.mxu0 0.0
  %2997 = vmatprep.subr.mxu0 0.0
  %2998 = vmatpush1.msra.mxu0 0.0
  %2999 = vmatprep.subr.mxu0 0.0
  %3000 = vmatpush1.msra.mxu0 0.0
  %3001 = vmatprep.subr.mxu0 0.0
  %3002 = vmatpush1.msra.mxu0 0.0
  %3003 = vmatprep.subr.mxu0 0.0
  %3004 = vmatpush1.msra.mxu0 0.0
  %3005 = vmatprep.subr.mxu0 0.0
  %3006 = vmatpush1.msra.mxu0 0.0
  %3007 = vmatprep.subr.mxu0 0.0
  %3008 = vmatpush1.msra.mxu0 0.0
  %3009 = vmatprep.subr.mxu0 0.0
  %3010 = vmatpush1.msra.mxu0 0.0
  %3011 = vmatprep.subr.mxu0 0.0
  %3012 = vmatpush1.msra.mxu0 0.0
  %3013 = vmatprep.subr.mxu0 0.0
  %3014 = vmatpush1.msra.mxu0 0.0
  %3015 = vmatprep.subr.mxu0 0.0
  %3016 = vmatpush1.msra.mxu0 0.0
  %3017 = vmatprep.subr.mxu0 0.0
  %3018 = vmatpush1.msra.mxu0 0.0
  %3019 = vmatprep.subr.mxu0 0.0
  %3020 = vmatpush1.msra.mxu0 0.0
  %3021 = vmatprep.mubr.f32.mxu0 0.0
  %3022 = vmatmul.mubr.f32.gmra.mrb[0].mxu0 %v2901
  %v3023 = vpop.f32.mrb[0].mxu0
  %v3024 = vadd.f32 %v2920, %v3023
  %v3025 = vpop.f32.mrb[0].mxu0
  %3026 = vmatprep.mubr.f32.mxu0 0.0
  %3027 = vmatmul.mubr.f32.gmra.mrb[0].mxu0 %v2902
  %v3028 = vpop.f32.mrb[0].mxu0
  %v3029 = vadd.f32 %v2925, %v3028
  %v3030 = vpop.f32.mrb[0].mxu0
  %3031 = vmatprep.mubr.f32.mxu0 0.0
  %3032 = vmatmul.mubr.f32.gmra.mrb[0].mxu0 %v2903
  %v3033 = vpop.f32.mrb[0].mxu0
  %v3034 = vadd.f32 %v2930, %v3033
  %v3035 = vpop.f32.mrb[0].mxu0
  %3036 = vmatprep.mubr.f32.mxu0 0.0
  %3037 = vmatmul.mubr.f32.gmra.mrb[0].mxu0 %v2904
  %v3038 = vpop.f32.mrb[0].mxu0
  %v3039 = vadd.f32 %v2935, %v3038
  %v3040 = vpop.f32.mrb[0].mxu0
  %3041 = vmatprep.mubr.f32.mxu0 0.0
  %3042 = vmatmul.mubr.f32.gmra.mrb[0].mxu0 %v2905
  %v3043 = vpop.f32.mrb[0].mxu0
  %v3044 = vadd.f32 %v2940, %v3043
  %v3045 = vpop.f32.mrb[0].mxu0
  %3046 = vmatprep.mubr.f32.mxu0 0.0
  %3047 = vmatmul.mubr.f32.gmra.mrb[0].mxu0 %v2906
  %v3048 = vpop.f32.mrb[0].mxu0
  %v3049 = vadd.f32 %v2945, %v3048
  %v3050 = vpop.f32.mrb[0].mxu0
  %3051 = vmatprep.mubr.f32.mxu0 0.0
  %3052 = vmatmul.mubr.f32.gmra.mrb[0].mxu0 %v2907
  %v3053 = vpop.f32.mrb[0].mxu0
  %v3054 = vadd.f32 %v2950, %v3053
  %v3055 = vpop.f32.mrb[0].mxu0
  %3056 = vmatprep.mubr.f32.mxu0 0.0
  %3057 = vmatmul.mubr.f32.gmra.mrb[0].mxu0 %v2908
  %v3058 = vpop.f32.mrb[0].mxu0
  %v3059 = vadd.f32 %v2955, %v3058
  %v3060 = vpop.f32.mrb[0].mxu0
  %3061 = vdwg.mxu0
  %v3062 = vmax.f32 %v3024, 0.0
  %v3063 = vmax.f32 %v3029, 0.0
  %v3064 = vmax.f32 %v3034, 0.0
  %v3065 = vmax.f32 %v3039, 0.0
  %v3066 = vmax.f32 %v3044, 0.0
  %v3067 = vmax.f32 %v3049, 0.0
  %v3068 = vmax.f32 %v3054, 0.0
  %v3069 = vmax.f32 %v3059, 0.0
  %v3071 = vsel %vm2884, %v3062, 0
  %v3074 = vsel %vm2884, %v3063, 0
  %v3077 = vsel %vm2884, %v3064, 0
  %v3080 = vsel %vm2884, %v3065, 0
  %v3083 = vsel %vm2884, %v3066, 0
  %v3086 = vsel %vm2884, %v3067, 0
  %v3089 = vsel %vm2884, %v3068, 0
  %v3092 = vsel %vm2884, %v3069, 0
  %v3095 = vsel %vm406, %v2466, 0
  %3097 = vmatprep.subr.mxu0 0.0
  %3098 = vmatpush1.msra.mxu0 %v3095
  %3099 = vmatprep.subr.mxu0 0.0
  %3100 = vmatpush1.msra.mxu0 0.0
  %3101 = vmatprep.subr.mxu0 0.0
  %3102 = vmatpush1.msra.mxu0 0.0
  %3103 = vmatprep.subr.mxu0 0.0
  %3104 = vmatpush1.msra.mxu0 0.0
  %3105 = vmatprep.subr.mxu0 0.0
  %3106 = vmatpush1.msra.mxu0 0.0
  %3107 = vmatprep.subr.mxu0 0.0
  %3108 = vmatpush1.msra.mxu0 0.0
  %3109 = vmatprep.subr.mxu0 0.0
  %3110 = vmatpush1.msra.mxu0 0.0
  %3111 = vmatprep.subr.mxu0 0.0
  %3112 = vmatpush1.msra.mxu0 0.0
  %3113 = vmatprep.subr.mxu0 0.0
  %3114 = vmatpush1.msra.mxu0 0.0
  %3115 = vmatprep.subr.mxu0 0.0
  %3116 = vmatpush1.msra.mxu0 0.0
  %3117 = vmatprep.subr.mxu0 0.0
  %3118 = vmatpush1.msra.mxu0 0.0
  %3119 = vmatprep.subr.mxu0 0.0
  %3120 = vmatpush1.msra.mxu0 0.0
  %3121 = vmatprep.subr.mxu0 0.0
  %3122 = vmatpush1.msra.mxu0 0.0
  %3123 = vmatprep.subr.mxu0 0.0
  %3124 = vmatpush1.msra.mxu0 0.0
  %3125 = vmatprep.subr.mxu0 0.0
  %3126 = vmatpush1.msra.mxu0 0.0
  %3127 = vmatprep.subr.mxu0 0.0
  %3128 = vmatpush1.msra.mxu0 0.0
  %3129 = vmatprep.subr.mxu0 0.0
  %3130 = vmatpush1.msra.mxu0 0.0
  %3131 = vmatprep.subr.mxu0 0.0
  %3132 = vmatpush1.msra.mxu0 0.0
  %3133 = vmatprep.subr.mxu0 0.0
  %3134 = vmatpush1.msra.mxu0 0.0
  %3135 = vmatprep.subr.mxu0 0.0
  %3136 = vmatpush1.msra.mxu0 0.0
  %3137 = vmatprep.subr.mxu0 0.0
  %3138 = vmatpush1.msra.mxu0 0.0
  %3139 = vmatprep.subr.mxu0 0.0
  %3140 = vmatpush1.msra.mxu0 0.0
  %3141 = vmatprep.subr.mxu0 0.0
  %3142 = vmatpush1.msra.mxu0 0.0
  %3143 = vmatprep.subr.mxu0 0.0
  %3144 = vmatpush1.msra.mxu0 0.0
  %3145 = vmatprep.subr.mxu0 0.0
  %3146 = vmatpush1.msra.mxu0 0.0
  %3147 = vmatprep.subr.mxu0 0.0
  %3148 = vmatpush1.msra.mxu0 0.0
  %3149 = vmatprep.subr.mxu0 0.0
  %3150 = vmatpush1.msra.mxu0 0.0
  %3151 = vmatprep.subr.mxu0 0.0
  %3152 = vmatpush1.msra.mxu0 0.0
  %3153 = vmatprep.subr.mxu0 0.0
  %3154 = vmatpush1.msra.mxu0 0.0
  %3155 = vmatprep.subr.mxu0 0.0
  %3156 = vmatpush1.msra.mxu0 0.0
  %3157 = vmatprep.subr.mxu0 0.0
  %3158 = vmatpush1.msra.mxu0 0.0
  %3159 = vmatprep.subr.mxu0 0.0
  %3160 = vmatpush1.msra.mxu0 0.0
  %3161 = vmatprep.mubr.f32.mxu0 0.0
  %3162 = vmatmul.mubr.f32.gmra.mrb[0].mxu0 %v3071
  %v3163 = vpop.f32.mrb[0].mxu0
  %v3164 = vadd.f32 0.0, %v3163
  %v3165 = vpop.f32.mrb[0].mxu0
  %3166 = vmatprep.mubr.f32.mxu0 0.0
  %3167 = vmatmul.mubr.f32.gmra.mrb[0].mxu0 %v3074
  %v3168 = vpop.f32.mrb[0].mxu0
  %v3169 = vadd.f32 0.0, %v3168
  %v3170 = vpop.f32.mrb[0].mxu0
  %3171 = vmatprep.mubr.f32.mxu0 0.0
  %3172 = vmatmul.mubr.f32.gmra.mrb[0].mxu0 %v3077
  %v3173 = vpop.f32.mrb[0].mxu0
  %v3174 = vadd.f32 0.0, %v3173
  %v3175 = vpop.f32.mrb[0].mxu0
  %3176 = vmatprep.mubr.f32.mxu0 0.0
  %3177 = vmatmul.mubr.f32.gmra.mrb[0].mxu0 %v3080
  %v3178 = vpop.f32.mrb[0].mxu0
  %v3179 = vadd.f32 0.0, %v3178
  %v3180 = vpop.f32.mrb[0].mxu0
  %3181 = vmatprep.mubr.f32.mxu0 0.0
  %3182 = vmatmul.mubr.f32.gmra.mrb[0].mxu0 %v3083
  %v3183 = vpop.f32.mrb[0].mxu0
  %v3184 = vadd.f32 0.0, %v3183
  %v3185 = vpop.f32.mrb[0].mxu0
  %3186 = vmatprep.mubr.f32.mxu0 0.0
  %3187 = vmatmul.mubr.f32.gmra.mrb[0].mxu0 %v3086
  %v3188 = vpop.f32.mrb[0].mxu0
  %v3189 = vadd.f32 0.0, %v3188
  %v3190 = vpop.f32.mrb[0].mxu0
  %3191 = vmatprep.mubr.f32.mxu0 0.0
  %3192 = vmatmul.mubr.f32.gmra.mrb[0].mxu0 %v3089
  %v3193 = vpop.f32.mrb[0].mxu0
  %v3194 = vadd.f32 0.0, %v3193
  %v3195 = vpop.f32.mrb[0].mxu0
  %3196 = vmatprep.mubr.f32.mxu0 0.0
  %3197 = vmatmul.mubr.f32.gmra.mrb[0].mxu0 %v3092
  %v3198 = vpop.f32.mrb[0].mxu0
  %v3199 = vadd.f32 0.0, %v3198
  %v3200 = vpop.f32.mrb[0].mxu0
  %3201 = vdwg.mxu0
  %3202 = vrot.lane.b32.xlu0 %v3062, 121
  %v3203 = vpop.permute.xlu0 %3202
  %3204 = vrot.lane.b32.xlu0 %v3063, 121
  %v3205 = vpop.permute.xlu0 %3204
  %3206 = vrot.lane.b32.xlu0 %v3064, 121
  %v3207 = vpop.permute.xlu0 %3206
  %3208 = vrot.lane.b32.xlu0 %v3065, 121
  %v3209 = vpop.permute.xlu0 %3208
  %3210 = vrot.lane.b32.xlu0 %v3066, 121
  %v3211 = vpop.permute.xlu0 %3210
  %3212 = vrot.lane.b32.xlu0 %v3067, 121
  %v3213 = vpop.permute.xlu0 %3212
  %3214 = vrot.lane.b32.xlu0 %v3068, 121
  %v3215 = vpop.permute.xlu0 %3214
  %3216 = vrot.lane.b32.xlu0 %v3069, 121
  %v3217 = vpop.permute.xlu0 %3216
  %v3218 = vsel %vm2884, %v3203, 0
  %v3220 = vsel %vm2884, %v3205, 0
  %v3222 = vsel %vm2884, %v3207, 0
  %v3224 = vsel %vm2884, %v3209, 0
  %v3226 = vsel %vm2884, %v3211, 0
  %v3228 = vsel %vm2884, %v3213, 0
  %v3230 = vsel %vm2884, %v3215, 0
  %v3232 = vsel %vm2884, %v3217, 0
  %3234 = vmatprep.subr.mxu0 0.0
  %3235 = vmatpush1.msra.mxu0 %v3095
  %3236 = vmatprep.subr.mxu0 0.0
  %3237 = vmatpush1.msra.mxu0 0.0
  %3238 = vmatprep.subr.mxu0 0.0
  %3239 = vmatpush1.msra.mxu0 0.0
  %3240 = vmatprep.subr.mxu0 0.0
  %3241 = vmatpush1.msra.mxu0 0.0
  %3242 = vmatprep.subr.mxu0 0.0
  %3243 = vmatpush1.msra.mxu0 0.0
  %3244 = vmatprep.subr.mxu0 0.0
  %3245 = vmatpush1.msra.mxu0 0.0
  %3246 = vmatprep.subr.mxu0 0.0
  %3247 = vmatpush1.msra.mxu0 0.0
  %3248 = vmatprep.subr.mxu0 0.0
  %3249 = vmatpush1.msra.mxu0 0.0
  %3250 = vmatprep.subr.mxu0 0.0
  %3251 = vmatpush1.msra.mxu0 0.0
  %3252 = vmatprep.subr.mxu0 0.0
  %3253 = vmatpush1.msra.mxu0 0.0
  %3254 = vmatprep.subr.mxu0 0.0
  %3255 = vmatpush1.msra.mxu0 0.0
  %3256 = vmatprep.subr.mxu0 0.0
  %3257 = vmatpush1.msra.mxu0 0.0
  %3258 = vmatprep.subr.mxu0 0.0
  %3259 = vmatpush1.msra.mxu0 0.0
  %3260 = vmatprep.subr.mxu0 0.0
  %3261 = vmatpush1.msra.mxu0 0.0
  %3262 = vmatprep.subr.mxu0 0.0
  %3263 = vmatpush1.msra.mxu0 0.0
  %3264 = vmatprep.subr.mxu0 0.0
  %3265 = vmatpush1.msra.mxu0 0.0
  %3266 = vmatprep.subr.mxu0 0.0
  %3267 = vmatpush1.msra.mxu0 0.0
  %3268 = vmatprep.subr.mxu0 0.0
  %3269 = vmatpush1.msra.mxu0 0.0
  %3270 = vmatprep.subr.mxu0 0.0
  %3271 = vmatpush1.msra.mxu0 0.0
  %3272 = vmatprep.subr.mxu0 0.0
  %3273 = vmatpush1.msra.mxu0 0.0
  %3274 = vmatprep.subr.mxu0 0.0
  %3275 = vmatpush1.msra.mxu0 0.0
  %3276 = vmatprep.subr.mxu0 0.0
  %3277 = vmatpush1.msra.mxu0 0.0
  %3278 = vmatprep.subr.mxu0 0.0
  %3279 = vmatpush1.msra.mxu0 0.0
  %3280 = vmatprep.subr.mxu0 0.0
  %3281 = vmatpush1.msra.mxu0 0.0
  %3282 = vmatprep.subr.mxu0 0.0
  %3283 = vmatpush1.msra.mxu0 0.0
  %3284 = vmatprep.subr.mxu0 0.0
  %3285 = vmatpush1.msra.mxu0 0.0
  %3286 = vmatprep.subr.mxu0 0.0
  %3287 = vmatpush1.msra.mxu0 0.0
  %3288 = vmatprep.subr.mxu0 0.0
  %3289 = vmatpush1.msra.mxu0 0.0
  %3290 = vmatprep.subr.mxu0 0.0
  %3291 = vmatpush1.msra.mxu0 0.0
  %3292 = vmatprep.subr.mxu0 0.0
  %3293 = vmatpush1.msra.mxu0 0.0
  %3294 = vmatprep.subr.mxu0 0.0
  %3295 = vmatpush1.msra.mxu0 0.0
  %3296 = vmatprep.subr.mxu0 0.0
  %3297 = vmatpush1.msra.mxu0 0.0
  %3298 = vmatprep.mubr.f32.mxu0 0.0
  %3299 = vmatmul.mubr.f32.gmra.mrb[0].mxu0 %v3218
  %v3300 = vpop.f32.mrb[0].mxu0
  %v3301 = vadd.f32 0.0, %v3300
  %v3302 = vpop.f32.mrb[0].mxu0
  %3303 = vmatprep.mubr.f32.mxu0 0.0
  %3304 = vmatmul.mubr.f32.gmra.mrb[0].mxu0 %v3220
  %v3305 = vpop.f32.mrb[0].mxu0
  %v3306 = vadd.f32 0.0, %v3305
  %v3307 = vpop.f32.mrb[0].mxu0
  %3308 = vmatprep.mubr.f32.mxu0 0.0
  %3309 = vmatmul.mubr.f32.gmra.mrb[0].mxu0 %v3222
  %v3310 = vpop.f32.mrb[0].mxu0
  %v3311 = vadd.f32 0.0, %v3310
  %v3312 = vpop.f32.mrb[0].mxu0
  %3313 = vmatprep.mubr.f32.mxu0 0.0
  %3314 = vmatmul.mubr.f32.gmra.mrb[0].mxu0 %v3224
  %v3315 = vpop.f32.mrb[0].mxu0
  %v3316 = vadd.f32 0.0, %v3315
  %v3317 = vpop.f32.mrb[0].mxu0
  %3318 = vmatprep.mubr.f32.mxu0 0.0
  %3319 = vmatmul.mubr.f32.gmra.mrb[0].mxu0 %v3226
  %v3320 = vpop.f32.mrb[0].mxu0
  %v3321 = vadd.f32 0.0, %v3320
  %v3322 = vpop.f32.mrb[0].mxu0
  %3323 = vmatprep.mubr.f32.mxu0 0.0
  %3324 = vmatmul.mubr.f32.gmra.mrb[0].mxu0 %v3228
  %v3325 = vpop.f32.mrb[0].mxu0
  %v3326 = vadd.f32 0.0, %v3325
  %v3327 = vpop.f32.mrb[0].mxu0
  %3328 = vmatprep.mubr.f32.mxu0 0.0
  %3329 = vmatmul.mubr.f32.gmra.mrb[0].mxu0 %v3230
  %v3330 = vpop.f32.mrb[0].mxu0
  %v3331 = vadd.f32 0.0, %v3330
  %v3332 = vpop.f32.mrb[0].mxu0
  %3333 = vmatprep.mubr.f32.mxu0 0.0
  %3334 = vmatmul.mubr.f32.gmra.mrb[0].mxu0 %v3232
  %v3335 = vpop.f32.mrb[0].mxu0
  %v3336 = vadd.f32 0.0, %v3335
  %v3337 = vpop.f32.mrb[0].mxu0
  %3338 = vdwg.mxu0
  %3347 = vrot.lane.b32.xlu0 %v3301, 3
  %v3348 = vpop.permute.xlu0 %3347
  %3349 = vrot.lane.b32.xlu0 %v3306, 3
  %v3350 = vpop.permute.xlu0 %3349
  %3351 = vrot.lane.b32.xlu0 %v3311, 3
  %v3352 = vpop.permute.xlu0 %3351
  %3353 = vrot.lane.b32.xlu0 %v3316, 3
  %v3354 = vpop.permute.xlu0 %3353
  %3355 = vrot.lane.b32.xlu0 %v3321, 3
  %v3356 = vpop.permute.xlu0 %3355
  %3357 = vrot.lane.b32.xlu0 %v3326, 3
  %v3358 = vpop.permute.xlu0 %3357
  %3359 = vrot.lane.b32.xlu0 %v3331, 3
  %v3360 = vpop.permute.xlu0 %3359
  %3361 = vrot.lane.b32.xlu0 %v3336, 3
  %v3362 = vpop.permute.xlu0 %3361
  %vm3371 = vcmask 23552
  %v3372 = vsel %vm3371, %v3164, %v3348
  %v3373 = vsel %vm3371, %v3169, %v3350
  %v3374 = vsel %vm3371, %v3174, %v3352
  %v3375 = vsel %vm3371, %v3179, %v3354
  %v3376 = vsel %vm3371, %v3184, %v3356
  %v3377 = vsel %vm3371, %v3189, %v3358
  %v3378 = vsel %vm3371, %v3194, %v3360
  %v3379 = vsel %vm3371, %v3199, %v3362
  %vm3380 = vcmp.gt.f32.partialorder %v3372, 0.0
  %vm3381 = vcmp.gt.f32.partialorder %v3373, 0.0
  %vm3382 = vcmp.gt.f32.partialorder %v3374, 0.0
  %vm3383 = vcmp.gt.f32.partialorder %v3375, 0.0
  %vm3384 = vcmp.gt.f32.partialorder %v3376, 0.0
  %vm3385 = vcmp.gt.f32.partialorder %v3377, 0.0
  %vm3386 = vcmp.gt.f32.partialorder %v3378, 0.0
  %vm3387 = vcmp.gt.f32.partialorder %v3379, 0.0
  %v3388 = vmul.f32 %v3372, 0.01
  %v3389 = vmul.f32 %v3373, 0.01
  %v3390 = vmul.f32 %v3374, 0.01
  %v3391 = vmul.f32 %v3375, 0.01
  %v3392 = vmul.f32 %v3376, 0.01
  %v3393 = vmul.f32 %v3377, 0.01
  %v3394 = vmul.f32 %v3378, 0.01
  %v3395 = vmul.f32 %v3379, 0.01
  %v3396 = vsel %vm3380, %v3372, %v3388
  %v3397 = vsel %vm3381, %v3373, %v3389
  %v3398 = vsel %vm3382, %v3374, %v3390
  %v3399 = vsel %vm3383, %v3375, %v3391
  %v3400 = vsel %vm3384, %v3376, %v3392
  %v3401 = vsel %vm3385, %v3377, %v3393
  %v3402 = vsel %vm3386, %v3378, %v3394
  %v3403 = vsel %vm3387, %v3379, %v3395
  %vm3404 = vcmask 48128
  %v3405 = vsel %vm3404, %v3396, 0.0
  %3406 = vadd.xlane.f32.xlu0 %v3405
  %v3407 = vpop.xlane.xlu0 %3406
  %v3408 = vsel %vm3404, %v3397, 0.0
  %3409 = vadd.xlane.f32.xlu0 %v3408
  %v3410 = vpop.xlane.xlu0 %3409
  %v3411 = vsel %vm3404, %v3398, 0.0
  %3412 = vadd.xlane.f32.xlu0 %v3411
  %v3413 = vpop.xlane.xlu0 %3412
  %v3414 = vsel %vm3404, %v3399, 0.0
  %3415 = vadd.xlane.f32.xlu0 %v3414
  %v3416 = vpop.xlane.xlu0 %3415
  %v3417 = vsel %vm3404, %v3400, 0.0
  %3418 = vadd.xlane.f32.xlu0 %v3417
  %v3419 = vpop.xlane.xlu0 %3418
  %v3420 = vsel %vm3404, %v3401, 0.0
  %3421 = vadd.xlane.f32.xlu0 %v3420
  %v3422 = vpop.xlane.xlu0 %3421
  %v3423 = vsel %vm3404, %v3402, 0.0
  %3424 = vadd.xlane.f32.xlu0 %v3423
  %v3425 = vpop.xlane.xlu0 %3424
  %v3426 = vsel %vm3404, %v3403, 0.0
  %3427 = vadd.xlane.f32.xlu0 %v3426
  %v3428 = vpop.xlane.xlu0 %3427
  %v3429 = vrcp.pop 6.0
  %v3430 = vmul.f32 %v3407, %v3429
  %v3431 = vmul.f32 %v3410, %v3429
  %v3432 = vmul.f32 %v3413, %v3429
  %v3433 = vmul.f32 %v3416, %v3429
  %v3434 = vmul.f32 %v3419, %v3429
  %v3435 = vmul.f32 %v3422, %v3429
  %v3436 = vmul.f32 %v3425, %v3429
  %v3437 = vmul.f32 %v3428, %v3429
  %v3438 = vsub.f32 %v3396, %v3430
  %v3439 = vsub.f32 %v3397, %v3431
  %v3440 = vsub.f32 %v3398, %v3432
  %v3441 = vsub.f32 %v3399, %v3433
  %v3442 = vsub.f32 %v3400, %v3434
  %v3443 = vsub.f32 %v3401, %v3435
  %v3444 = vsub.f32 %v3402, %v3436
  %v3445 = vsub.f32 %v3403, %v3437
  %v3446 = vmul.f32 %v3438, %v3438
  %v3447 = vmul.f32 %v3439, %v3439
  %v3448 = vmul.f32 %v3440, %v3440
  %v3449 = vmul.f32 %v3441, %v3441
  %v3450 = vmul.f32 %v3442, %v3442
  %v3451 = vmul.f32 %v3443, %v3443
  %v3452 = vmul.f32 %v3444, %v3444
  %v3453 = vmul.f32 %v3445, %v3445
  %v3454 = vsel %vm3404, %v3446, 0.0
  %3455 = vadd.xlane.f32.xlu0 %v3454
  %v3456 = vpop.xlane.xlu0 %3455
  %v3457 = vsel %vm3404, %v3447, 0.0
  %3458 = vadd.xlane.f32.xlu0 %v3457
  %v3459 = vpop.xlane.xlu0 %3458
  %v3460 = vsel %vm3404, %v3448, 0.0
  %3461 = vadd.xlane.f32.xlu0 %v3460
  %v3462 = vpop.xlane.xlu0 %3461
  %v3463 = vsel %vm3404, %v3449, 0.0
  %3464 = vadd.xlane.f32.xlu0 %v3463
  %v3465 = vpop.xlane.xlu0 %3464
  %v3466 = vsel %vm3404, %v3450, 0.0
  %3467 = vadd.xlane.f32.xlu0 %v3466
  %v3468 = vpop.xlane.xlu0 %3467
  %v3469 = vsel %vm3404, %v3451, 0.0
  %3470 = vadd.xlane.f32.xlu0 %v3469
  %v3471 = vpop.xlane.xlu0 %3470
  %v3472 = vsel %vm3404, %v3452, 0.0
  %3473 = vadd.xlane.f32.xlu0 %v3472
  %v3474 = vpop.xlane.xlu0 %3473
  %v3475 = vsel %vm3404, %v3453, 0.0
  %3476 = vadd.xlane.f32.xlu0 %v3475
  %v3477 = vpop.xlane.xlu0 %3476
  %v3478 = vmul.f32 %v3456, %v3429
  %v3479 = vmul.f32 %v3459, %v3429
  %v3480 = vmul.f32 %v3462, %v3429
  %v3481 = vmul.f32 %v3465, %v3429
  %v3482 = vmul.f32 %v3468, %v3429
  %v3483 = vmul.f32 %v3471, %v3429
  %v3484 = vmul.f32 %v3474, %v3429
  %v3485 = vmul.f32 %v3477, %v3429
  %v3486 = vadd.f32 %v3478, 1e-05
  %v3487 = vadd.f32 %v3479, 1e-05
  %v3488 = vadd.f32 %v3480, 1e-05
  %v3489 = vadd.f32 %v3481, 1e-05
  %v3490 = vadd.f32 %v3482, 1e-05
  %v3491 = vadd.f32 %v3483, 1e-05
  %v3492 = vadd.f32 %v3484, 1e-05
  %v3493 = vadd.f32 %v3485, 1e-05
  %v3494 = vrsqrt.pop %v3486
  %v3495 = vrsqrt.pop %v3487
  %v3496 = vrsqrt.pop %v3488
  %v3497 = vrsqrt.pop %v3489
  %v3498 = vrsqrt.pop %v3490
  %v3499 = vrsqrt.pop %v3491
  %v3500 = vrsqrt.pop %v3492
  %v3501 = vrsqrt.pop %v3493
  %v3502 = vmul.f32 %v3438, %v3494
  %v3503 = vmul.f32 %v3439, %v3495
  %v3504 = vmul.f32 %v3440, %v3496
  %v3505 = vmul.f32 %v3441, %v3497
  %v3506 = vmul.f32 %v3442, %v3498
  %v3507 = vmul.f32 %v3443, %v3499
  %v3508 = vmul.f32 %v3444, %v3500
  %v3509 = vmul.f32 %v3445, %v3501
  %v3510 = vld [vmem:[%s31] sm:$0xff]
  %v3511 = vld [vmem:[%s31 + $0x8] sm:$0xff]
  %v3512 = vld [vmem:[%s31 + $0x10] sm:$0xff]
  %v3513 = vld [vmem:[%s31 + $0x18] sm:$0xff]
  %v3514 = vld [vmem:[%s31 + $0x20] sm:$0xff]
  %v3515 = vld [vmem:[%s31 + $0x28] sm:$0xff]
  %v3516 = vld [vmem:[%s31 + $0x30] sm:$0xff]
  %v3517 = vld [vmem:[%s31 + $0x38] sm:$0xff]
  %3519 = vset.pattern.permute.xlu0 0
  %3520 = vperm.xlu0 %3519, %v3510
  %v3521 = vpop.permute.xlu0 %3520
  %3524 = vset.pattern.permute.xlu0 0
  %3525 = vperm.xlu0 %3524, %v3511
  %v3526 = vpop.permute.xlu0 %3525
  %3529 = vset.pattern.permute.xlu0 0
  %3530 = vperm.xlu0 %3529, %v3512
  %v3531 = vpop.permute.xlu0 %3530
  %3534 = vset.pattern.permute.xlu0 0
  %3535 = vperm.xlu0 %3534, %v3513
  %v3536 = vpop.permute.xlu0 %3535
  %3539 = vset.pattern.permute.xlu0 0
  %3540 = vperm.xlu0 %3539, %v3514
  %v3541 = vpop.permute.xlu0 %3540
  %3544 = vset.pattern.permute.xlu0 0
  %3545 = vperm.xlu0 %3544, %v3515
  %v3546 = vpop.permute.xlu0 %3545
  %3549 = vset.pattern.permute.xlu0 0
  %3550 = vperm.xlu0 %3549, %v3516
  %v3551 = vpop.permute.xlu0 %3550
  %3554 = vset.pattern.permute.xlu0 0
  %3555 = vperm.xlu0 %3554, %v3517
  %v3556 = vpop.permute.xlu0 %3555
  %v3558 = vmul.f32 %v3502, %v3521
  %v3559 = vmul.f32 %v3503, %v3526
  %v3560 = vmul.f32 %v3504, %v3531
  %v3561 = vmul.f32 %v3505, %v3536
  %v3562 = vmul.f32 %v3506, %v3541
  %v3563 = vmul.f32 %v3507, %v3546
  %v3564 = vmul.f32 %v3508, %v3551
  %v3565 = vmul.f32 %v3509, %v3556
  %v3566 = vld [vmem:[%s33] sm:$0xff]
  %v3567 = vld [vmem:[%s33 + $0x8] sm:$0xff]
  %v3568 = vld [vmem:[%s33 + $0x10] sm:$0xff]
  %v3569 = vld [vmem:[%s33 + $0x18] sm:$0xff]
  %v3570 = vld [vmem:[%s33 + $0x20] sm:$0xff]
  %v3571 = vld [vmem:[%s33 + $0x28] sm:$0xff]
  %v3572 = vld [vmem:[%s33 + $0x30] sm:$0xff]
  %v3573 = vld [vmem:[%s33 + $0x38] sm:$0xff]
  %3575 = vset.pattern.permute.xlu0 0
  %3576 = vperm.xlu0 %3575, %v3566
  %v3577 = vpop.permute.xlu0 %3576
  %3580 = vset.pattern.permute.xlu0 0
  %3581 = vperm.xlu0 %3580, %v3567
  %v3582 = vpop.permute.xlu0 %3581
  %3585 = vset.pattern.permute.xlu0 0
  %3586 = vperm.xlu0 %3585, %v3568
  %v3587 = vpop.permute.xlu0 %3586
  %3590 = vset.pattern.permute.xlu0 0
  %3591 = vperm.xlu0 %3590, %v3569
  %v3592 = vpop.permute.xlu0 %3591
  %3595 = vset.pattern.permute.xlu0 0
  %3596 = vperm.xlu0 %3595, %v3570
  %v3597 = vpop.permute.xlu0 %3596
  %3600 = vset.pattern.permute.xlu0 0
  %3601 = vperm.xlu0 %3600, %v3571
  %v3602 = vpop.permute.xlu0 %3601
  %3605 = vset.pattern.permute.xlu0 0
  %3606 = vperm.xlu0 %3605, %v3572
  %v3607 = vpop.permute.xlu0 %3606
  %3610 = vset.pattern.permute.xlu0 0
  %3611 = vperm.xlu0 %3610, %v3573
  %v3612 = vpop.permute.xlu0 %3611
  %v3614 = vadd.f32 %v3558, %v3577
  %v3615 = vadd.f32 %v3559, %v3582
  %v3616 = vadd.f32 %v3560, %v3587
  %v3617 = vadd.f32 %v3561, %v3592
  %v3618 = vadd.f32 %v3562, %v3597
  %v3619 = vadd.f32 %v3563, %v3602
  %v3620 = vadd.f32 %v3564, %v3607
  %v3621 = vadd.f32 %v3565, %v3612
  %v3622 = vmax.f32 %v3614, 0.0
  %v3623 = vmax.f32 %v3615, 0.0
  %v3624 = vmax.f32 %v3616, 0.0
  %v3625 = vmax.f32 %v3617, 0.0
  %v3626 = vmax.f32 %v3618, 0.0
  %v3627 = vmax.f32 %v3619, 0.0
  %v3628 = vmax.f32 %v3620, 0.0
  %v3629 = vmax.f32 %v3621, 0.0
  %3638 = vrot.lane.b32.xlu0 %v3622, 127
  %v3639 = vpop.permute.xlu0 %3638
  %3640 = vrot.lane.b32.xlu0 %v3623, 127
  %v3641 = vpop.permute.xlu0 %3640
  %3642 = vrot.lane.b32.xlu0 %v3624, 127
  %v3643 = vpop.permute.xlu0 %3642
  %3644 = vrot.lane.b32.xlu0 %v3625, 127
  %v3645 = vpop.permute.xlu0 %3644
  %3646 = vrot.lane.b32.xlu0 %v3626, 127
  %v3647 = vpop.permute.xlu0 %3646
  %3648 = vrot.lane.b32.xlu0 %v3627, 127
  %v3649 = vpop.permute.xlu0 %3648
  %3650 = vrot.lane.b32.xlu0 %v3628, 127
  %v3651 = vpop.permute.xlu0 %3650
  %3652 = vrot.lane.b32.xlu0 %v3629, 127
  %v3653 = vpop.permute.xlu0 %3652
  %3662 = vrot.lane.b32.xlu0 %v3639, 127
  %v3663 = vpop.permute.xlu0 %3662
  %3664 = vrot.lane.b32.xlu0 %v3641, 127
  %v3665 = vpop.permute.xlu0 %3664
  %3666 = vrot.lane.b32.xlu0 %v3643, 127
  %v3667 = vpop.permute.xlu0 %3666
  %3668 = vrot.lane.b32.xlu0 %v3645, 127
  %v3669 = vpop.permute.xlu0 %3668
  %3670 = vrot.lane.b32.xlu0 %v3647, 127
  %v3671 = vpop.permute.xlu0 %3670
  %3672 = vrot.lane.b32.xlu0 %v3649, 127
  %v3673 = vpop.permute.xlu0 %3672
  %3674 = vrot.lane.b32.xlu0 %v3651, 127
  %v3675 = vpop.permute.xlu0 %3674
  %3676 = vrot.lane.b32.xlu0 %v3653, 127
  %v3677 = vpop.permute.xlu0 %3676
  %vm3686 = vcmask 15360
  %v3687 = vsel %vm3686, %v3622, %v3639
  %v3688 = vsel %vm3686, %v3623, %v3641
  %v3689 = vsel %vm3686, %v3624, %v3643
  %v3690 = vsel %vm3686, %v3625, %v3645
  %v3691 = vsel %vm3686, %v3626, %v3647
  %v3692 = vsel %vm3686, %v3627, %v3649
  %v3693 = vsel %vm3686, %v3628, %v3651
  %v3694 = vsel %vm3686, %v3629, %v3653
  %v3695 = vsel %vm3686, %v3639, %v3663
  %v3696 = vsel %vm3686, %v3641, %v3665
  %v3697 = vsel %vm3686, %v3643, %v3667
  %v3698 = vsel %vm3686, %v3645, %v3669
  %v3699 = vsel %vm3686, %v3647, %v3671
  %v3700 = vsel %vm3686, %v3649, %v3673
  %v3701 = vsel %vm3686, %v3651, %v3675
  %v3702 = vsel %vm3686, %v3653, %v3677
  %v3703 = vld [vmem:[%s35] sm:$0xff]
  %v3704 = vld [vmem:[%s35 + $0x8] sm:$0xff]
  %v3705 = vld [vmem:[%s35 + $0x10] sm:$0xff]
  %v3706 = vld [vmem:[%s35 + $0x18] sm:$0xff]
  %v3707 = vld [vmem:[%s35 + $0x20] sm:$0xff]
  %v3708 = vld [vmem:[%s35 + $0x28] sm:$0xff]
  %v3709 = vld [vmem:[%s35 + $0x30] sm:$0xff]
  %v3710 = vld [vmem:[%s35 + $0x38] sm:$0xff]
  %v3711 = vld [vmem:[%s35 + $0x40] sm:$0xff]
  %v3712 = vld [vmem:[%s35 + $0x48] sm:$0xff]
  %v3713 = vld [vmem:[%s35 + $0x50] sm:$0xff]
  %v3714 = vld [vmem:[%s35 + $0x58] sm:$0xff]
  %v3715 = vld [vmem:[%s35 + $0x60] sm:$0xff]
  %v3716 = vld [vmem:[%s35 + $0x68] sm:$0xff]
  %v3717 = vld [vmem:[%s35 + $0x70] sm:$0xff]
  %v3718 = vld [vmem:[%s35 + $0x78] sm:$0xff]
  %v3719 = vld [vmem:[%s37] sm:$0xff]
  %v3720 = vld [vmem:[%s37 + $0x8] sm:$0xff]
  %v3721 = vld [vmem:[%s37 + $0x10] sm:$0xff]
  %v3722 = vld [vmem:[%s37 + $0x18] sm:$0xff]
  %v3723 = vld [vmem:[%s37 + $0x20] sm:$0xff]
  %v3724 = vld [vmem:[%s37 + $0x28] sm:$0xff]
  %v3725 = vld [vmem:[%s37 + $0x30] sm:$0xff]
  %v3726 = vld [vmem:[%s37 + $0x38] sm:$0xff]
  %v3727 = vld [vmem:[%s37 + $0x40] sm:$0xff]
  %v3728 = vld [vmem:[%s37 + $0x48] sm:$0xff]
  %v3729 = vld [vmem:[%s37 + $0x50] sm:$0xff]
  %v3730 = vld [vmem:[%s37 + $0x58] sm:$0xff]
  %v3731 = vld [vmem:[%s37 + $0x60] sm:$0xff]
  %v3732 = vld [vmem:[%s37 + $0x68] sm:$0xff]
  %v3733 = vld [vmem:[%s37 + $0x70] sm:$0xff]
  %v3734 = vld [vmem:[%s37 + $0x78] sm:$0xff]
  %3736 = vset.pattern.permute.xlu0 0
  %3737 = vperm.xlu0 %3736, %v3719
  %v3738 = vpop.permute.xlu0 %3737
  %3741 = vset.pattern.permute.xlu0 0
  %3742 = vperm.xlu0 %3741, %v3720
  %v3743 = vpop.permute.xlu0 %3742
  %3746 = vset.pattern.permute.xlu0 0
  %3747 = vperm.xlu0 %3746, %v3721
  %v3748 = vpop.permute.xlu0 %3747
  %3751 = vset.pattern.permute.xlu0 0
  %3752 = vperm.xlu0 %3751, %v3722
  %v3753 = vpop.permute.xlu0 %3752
  %3756 = vset.pattern.permute.xlu0 0
  %3757 = vperm.xlu0 %3756, %v3723
  %v3758 = vpop.permute.xlu0 %3757
  %3761 = vset.pattern.permute.xlu0 0
  %3762 = vperm.xlu0 %3761, %v3724
  %v3763 = vpop.permute.xlu0 %3762
  %3766 = vset.pattern.permute.xlu0 0
  %3767 = vperm.xlu0 %3766, %v3725
  %v3768 = vpop.permute.xlu0 %3767
  %3771 = vset.pattern.permute.xlu0 0
  %3772 = vperm.xlu0 %3771, %v3726
  %v3773 = vpop.permute.xlu0 %3772
  %3776 = vset.pattern.permute.xlu0 0
  %3777 = vperm.xlu0 %3776, %v3727
  %v3778 = vpop.permute.xlu0 %3777
  %3781 = vset.pattern.permute.xlu0 0
  %3782 = vperm.xlu0 %3781, %v3728
  %v3783 = vpop.permute.xlu0 %3782
  %3786 = vset.pattern.permute.xlu0 0
  %3787 = vperm.xlu0 %3786, %v3729
  %v3788 = vpop.permute.xlu0 %3787
  %3791 = vset.pattern.permute.xlu0 0
  %3792 = vperm.xlu0 %3791, %v3730
  %v3793 = vpop.permute.xlu0 %3792
  %3796 = vset.pattern.permute.xlu0 0
  %3797 = vperm.xlu0 %3796, %v3731
  %v3798 = vpop.permute.xlu0 %3797
  %3801 = vset.pattern.permute.xlu0 0
  %3802 = vperm.xlu0 %3801, %v3732
  %v3803 = vpop.permute.xlu0 %3802
  %3806 = vset.pattern.permute.xlu0 0
  %3807 = vperm.xlu0 %3806, %v3733
  %v3808 = vpop.permute.xlu0 %3807
  %3811 = vset.pattern.permute.xlu0 0
  %3812 = vperm.xlu0 %3811, %v3734
  %v3813 = vpop.permute.xlu0 %3812
  %3815 = vmatprep.subr.mxu0 0.0
  %3816 = vmatpush1.msra.mxu0 %v3687
  %3817 = vmatprep.subr.mxu0 0.0
  %3818 = vmatpush1.msra.mxu0 %v3688
  %3819 = vmatprep.subr.mxu0 0.0
  %3820 = vmatpush1.msra.mxu0 %v3689
  %3821 = vmatprep.subr.mxu0 0.0
  %3822 = vmatpush1.msra.mxu0 %v3690
  %3823 = vmatprep.subr.mxu0 0.0
  %3824 = vmatpush1.msra.mxu0 %v3691
  %3825 = vmatprep.subr.mxu0 0.0
  %3826 = vmatpush1.msra.mxu0 %v3692
  %3827 = vmatprep.subr.mxu0 0.0
  %3828 = vmatpush1.msra.mxu0 %v3693
  %3829 = vmatprep.subr.mxu0 0.0
  %3830 = vmatpush1.msra.mxu0 %v3694
  %3831 = vmatprep.subr.mxu0 0.0
  %3832 = vmatpush1.msra.mxu0 %v3695
  %3833 = vmatprep.subr.mxu0 0.0
  %3834 = vmatpush1.msra.mxu0 %v3696
  %3835 = vmatprep.subr.mxu0 0.0
  %3836 = vmatpush1.msra.mxu0 %v3697
  %3837 = vmatprep.subr.mxu0 0.0
  %3838 = vmatpush1.msra.mxu0 %v3698
  %3839 = vmatprep.subr.mxu0 0.0
  %3840 = vmatpush1.msra.mxu0 %v3699
  %3841 = vmatprep.subr.mxu0 0.0
  %3842 = vmatpush1.msra.mxu0 %v3700
  %3843 = vmatprep.subr.mxu0 0.0
  %3844 = vmatpush1.msra.mxu0 %v3701
  %3845 = vmatprep.subr.mxu0 0.0
  %3846 = vmatpush1.msra.mxu0 %v3702
  %3847 = vmatprep.subr.mxu0 0.0
  %3848 = vmatpush1.msra.mxu0 0.0
  %3849 = vmatprep.subr.mxu0 0.0
  %3850 = vmatpush1.msra.mxu0 0.0
  %3851 = vmatprep.subr.mxu0 0.0
  %3852 = vmatpush1.msra.mxu0 0.0
  %3853 = vmatprep.subr.mxu0 0.0
  %3854 = vmatpush1.msra.mxu0 0.0
  %3855 = vmatprep.subr.mxu0 0.0
  %3856 = vmatpush1.msra.mxu0 0.0
  %3857 = vmatprep.subr.mxu0 0.0
  %3858 = vmatpush1.msra.mxu0 0.0
  %3859 = vmatprep.subr.mxu0 0.0
  %3860 = vmatpush1.msra.mxu0 0.0
  %3861 = vmatprep.subr.mxu0 0.0
  %3862 = vmatpush1.msra.mxu0 0.0
  %3863 = vmatprep.subr.mxu0 0.0
  %3864 = vmatpush1.msra.mxu0 0.0
  %3865 = vmatprep.subr.mxu0 0.0
  %3866 = vmatpush1.msra.mxu0 0.0
  %3867 = vmatprep.subr.mxu0 0.0
  %3868 = vmatpush1.msra.mxu0 0.0
  %3869 = vmatprep.subr.mxu0 0.0
  %3870 = vmatpush1.msra.mxu0 0.0
  %3871 = vmatprep.subr.mxu0 0.0
  %3872 = vmatpush1.msra.mxu0 0.0
  %3873 = vmatprep.subr.mxu0 0.0
  %3874 = vmatpush1.msra.mxu0 0.0
  %3875 = vmatprep.subr.mxu0 0.0
  %3876 = vmatpush1.msra.mxu0 0.0
  %3877 = vmatprep.subr.mxu0 0.0
  %3878 = vmatpush1.msra.mxu0 0.0
  %3879 = vmatprep.mubr.f32.mxu0 0.0
  %3880 = vmatmul.mubr.f32.gmra.mrb[0].mxu0 %v3703
  %v3881 = vpop.f32.mrb[0].mxu0
  %v3882 = vadd.f32 %v3738, %v3881
  %v3883 = vpop.f32.mrb[0].mxu0
  %3884 = vmatprep.mubr.f32.mxu0 0.0
  %3885 = vmatmul.mubr.f32.gmra.mrb[0].mxu0 %v3704
  %v3886 = vpop.f32.mrb[0].mxu0
  %v3887 = vadd.f32 %v3743, %v3886
  %v3888 = vpop.f32.mrb[0].mxu0
  %3889 = vmatprep.mubr.f32.mxu0 0.0
  %3890 = vmatmul.mubr.f32.gmra.mrb[0].mxu0 %v3705
  %v3891 = vpop.f32.mrb[0].mxu0
  %v3892 = vadd.f32 %v3748, %v3891
  %v3893 = vpop.f32.mrb[0].mxu0
  %3894 = vmatprep.mubr.f32.mxu0 0.0
  %3895 = vmatmul.mubr.f32.gmra.mrb[0].mxu0 %v3706
  %v3896 = vpop.f32.mrb[0].mxu0
  %v3897 = vadd.f32 %v3753, %v3896
  %v3898 = vpop.f32.mrb[0].mxu0
  %3899 = vmatprep.mubr.f32.mxu0 0.0
  %3900 = vmatmul.mubr.f32.gmra.mrb[0].mxu0 %v3707
  %v3901 = vpop.f32.mrb[0].mxu0
  %v3902 = vadd.f32 %v3758, %v3901
  %v3903 = vpop.f32.mrb[0].mxu0
  %3904 = vmatprep.mubr.f32.mxu0 0.0
  %3905 = vmatmul.mubr.f32.gmra.mrb[0].mxu0 %v3708
  %v3906 = vpop.f32.mrb[0].mxu0
  %v3907 = vadd.f32 %v3763, %v3906
  %v3908 = vpop.f32.mrb[0].mxu0
  %3909 = vmatprep.mubr.f32.mxu0 0.0
  %3910 = vmatmul.mubr.f32.gmra.mrb[0].mxu0 %v3709
  %v3911 = vpop.f32.mrb[0].mxu0
  %v3912 = vadd.f32 %v3768, %v3911
  %v3913 = vpop.f32.mrb[0].mxu0
  %3914 = vmatprep.mubr.f32.mxu0 0.0
  %3915 = vmatmul.mubr.f32.gmra.mrb[0].mxu0 %v3710
  %v3916 = vpop.f32.mrb[0].mxu0
  %v3917 = vadd.f32 %v3773, %v3916
  %v3918 = vpop.f32.mrb[0].mxu0
  %3919 = vmatprep.mubr.f32.mxu0 0.0
  %3920 = vmatmul.mubr.f32.gmra.mrb[0].mxu0 %v3711
  %v3921 = vpop.f32.mrb[0].mxu0
  %v3922 = vadd.f32 %v3778, %v3921
  %v3923 = vpop.f32.mrb[0].mxu0
  %3924 = vmatprep.mubr.f32.mxu0 0.0
  %3925 = vmatmul.mubr.f32.gmra.mrb[0].mxu0 %v3712
  %v3926 = vpop.f32.mrb[0].mxu0
  %v3927 = vadd.f32 %v3783, %v3926
  %v3928 = vpop.f32.mrb[0].mxu0
  %3929 = vmatprep.mubr.f32.mxu0 0.0
  %3930 = vmatmul.mubr.f32.gmra.mrb[0].mxu0 %v3713
  %v3931 = vpop.f32.mrb[0].mxu0
  %v3932 = vadd.f32 %v3788, %v3931
  %v3933 = vpop.f32.mrb[0].mxu0
  %3934 = vmatprep.mubr.f32.mxu0 0.0
  %3935 = vmatmul.mubr.f32.gmra.mrb[0].mxu0 %v3714
  %v3936 = vpop.f32.mrb[0].mxu0
  %v3937 = vadd.f32 %v3793, %v3936
  %v3938 = vpop.f32.mrb[0].mxu0
  %3939 = vmatprep.mubr.f32.mxu0 0.0
  %3940 = vmatmul.mubr.f32.gmra.mrb[0].mxu0 %v3715
  %v3941 = vpop.f32.mrb[0].mxu0
  %v3942 = vadd.f32 %v3798, %v3941
  %v3943 = vpop.f32.mrb[0].mxu0
  %3944 = vmatprep.mubr.f32.mxu0 0.0
  %3945 = vmatmul.mubr.f32.gmra.mrb[0].mxu0 %v3716
  %v3946 = vpop.f32.mrb[0].mxu0
  %v3947 = vadd.f32 %v3803, %v3946
  %v3948 = vpop.f32.mrb[0].mxu0
  %3949 = vmatprep.mubr.f32.mxu0 0.0
  %3950 = vmatmul.mubr.f32.gmra.mrb[0].mxu0 %v3717
  %v3951 = vpop.f32.mrb[0].mxu0
  %v3952 = vadd.f32 %v3808, %v3951
  %v3953 = vpop.f32.mrb[0].mxu0
  %3954 = vmatprep.mubr.f32.mxu0 0.0
  %3955 = vmatmul.mubr.f32.gmra.mrb[0].mxu0 %v3718
  %v3956 = vpop.f32.mrb[0].mxu0
  %v3957 = vadd.f32 %v3813, %v3956
  %v3958 = vpop.f32.mrb[0].mxu0
  %3959 = vdwg.mxu0
  %v3960 = vmax.f32 %v3882, 0.0
  %v3961 = vmax.f32 %v3887, 0.0
  %v3962 = vmax.f32 %v3892, 0.0
  %v3963 = vmax.f32 %v3897, 0.0
  %v3964 = vmax.f32 %v3902, 0.0
  %v3965 = vmax.f32 %v3907, 0.0
  %v3966 = vmax.f32 %v3912, 0.0
  %v3967 = vmax.f32 %v3917, 0.0
  %v3968 = vmax.f32 %v3922, 0.0
  %v3969 = vmax.f32 %v3927, 0.0
  %v3970 = vmax.f32 %v3932, 0.0
  %v3971 = vmax.f32 %v3937, 0.0
  %v3972 = vmax.f32 %v3942, 0.0
  %v3973 = vmax.f32 %v3947, 0.0
  %v3974 = vmax.f32 %v3952, 0.0
  %v3975 = vmax.f32 %v3957, 0.0
  %vm3976 = vcmp.gt.f32.partialorder %v3960, 0.0
  %vm3977 = vcmp.gt.f32.partialorder %v3961, 0.0
  %vm3978 = vcmp.gt.f32.partialorder %v3962, 0.0
  %vm3979 = vcmp.gt.f32.partialorder %v3963, 0.0
  %vm3980 = vcmp.gt.f32.partialorder %v3964, 0.0
  %vm3981 = vcmp.gt.f32.partialorder %v3965, 0.0
  %vm3982 = vcmp.gt.f32.partialorder %v3966, 0.0
  %vm3983 = vcmp.gt.f32.partialorder %v3967, 0.0
  %vm3984 = vcmp.gt.f32.partialorder %v3968, 0.0
  %vm3985 = vcmp.gt.f32.partialorder %v3969, 0.0
  %vm3986 = vcmp.gt.f32.partialorder %v3970, 0.0
  %vm3987 = vcmp.gt.f32.partialorder %v3971, 0.0
  %vm3988 = vcmp.gt.f32.partialorder %v3972, 0.0
  %vm3989 = vcmp.gt.f32.partialorder %v3973, 0.0
  %vm3990 = vcmp.gt.f32.partialorder %v3974, 0.0
  %vm3991 = vcmp.gt.f32.partialorder %v3975, 0.0
  %v3992 = vmul.f32 %v3960, 0.01
  %v3993 = vmul.f32 %v3961, 0.01
  %v3994 = vmul.f32 %v3962, 0.01
  %v3995 = vmul.f32 %v3963, 0.01
  %v3996 = vmul.f32 %v3964, 0.01
  %v3997 = vmul.f32 %v3965, 0.01
  %v3998 = vmul.f32 %v3966, 0.01
  %v3999 = vmul.f32 %v3967, 0.01
  %v4000 = vmul.f32 %v3968, 0.01
  %v4001 = vmul.f32 %v3969, 0.01
  %v4002 = vmul.f32 %v3970, 0.01
  %v4003 = vmul.f32 %v3971, 0.01
  %v4004 = vmul.f32 %v3972, 0.01
  %v4005 = vmul.f32 %v3973, 0.01
  %v4006 = vmul.f32 %v3974, 0.01
  %v4007 = vmul.f32 %v3975, 0.01
  %v4008 = vsel %vm3976, %v3960, %v3992
  %v4009 = vsel %vm3977, %v3961, %v3993
  %v4010 = vsel %vm3978, %v3962, %v3994
  %v4011 = vsel %vm3979, %v3963, %v3995
  %v4012 = vsel %vm3980, %v3964, %v3996
  %v4013 = vsel %vm3981, %v3965, %v3997
  %v4014 = vsel %vm3982, %v3966, %v3998
  %v4015 = vsel %vm3983, %v3967, %v3999
  %v4016 = vsel %vm3984, %v3968, %v4000
  %v4017 = vsel %vm3985, %v3969, %v4001
  %v4018 = vsel %vm3986, %v3970, %v4002
  %v4019 = vsel %vm3987, %v3971, %v4003
  %v4020 = vsel %vm3988, %v3972, %v4004
  %v4021 = vsel %vm3989, %v3973, %v4005
  %v4022 = vsel %vm3990, %v3974, %v4006
  %v4023 = vsel %vm3991, %v3975, %v4007
  %vm4024 = vcmask 31744
  %v4025 = vsel %vm4024, %v4008, 0.0
  %4026 = vadd.xlane.f32.xlu0 %v4025
  %v4027 = vpop.xlane.xlu0 %4026
  %v4028 = vsel %vm4024, %v4009, 0.0
  %4029 = vadd.xlane.f32.xlu0 %v4028
  %v4030 = vpop.xlane.xlu0 %4029
  %v4031 = vsel %vm4024, %v4010, 0.0
  %4032 = vadd.xlane.f32.xlu0 %v4031
  %v4033 = vpop.xlane.xlu0 %4032
  %v4034 = vsel %vm4024, %v4011, 0.0
  %4035 = vadd.xlane.f32.xlu0 %v4034
  %v4036 = vpop.xlane.xlu0 %4035
  %v4037 = vsel %vm4024, %v4012, 0.0
  %4038 = vadd.xlane.f32.xlu0 %v4037
  %v4039 = vpop.xlane.xlu0 %4038
  %v4040 = vsel %vm4024, %v4013, 0.0
  %4041 = vadd.xlane.f32.xlu0 %v4040
  %v4042 = vpop.xlane.xlu0 %4041
  %v4043 = vsel %vm4024, %v4014, 0.0
  %4044 = vadd.xlane.f32.xlu0 %v4043
  %v4045 = vpop.xlane.xlu0 %4044
  %v4046 = vsel %vm4024, %v4015, 0.0
  %4047 = vadd.xlane.f32.xlu0 %v4046
  %v4048 = vpop.xlane.xlu0 %4047
  %v4049 = vsel %vm4024, %v4016, 0.0
  %4050 = vadd.xlane.f32.xlu0 %v4049
  %v4051 = vpop.xlane.xlu0 %4050
  %v4052 = vsel %vm4024, %v4017, 0.0
  %4053 = vadd.xlane.f32.xlu0 %v4052
  %v4054 = vpop.xlane.xlu0 %4053
  %v4055 = vsel %vm4024, %v4018, 0.0
  %4056 = vadd.xlane.f32.xlu0 %v4055
  %v4057 = vpop.xlane.xlu0 %4056
  %v4058 = vsel %vm4024, %v4019, 0.0
  %4059 = vadd.xlane.f32.xlu0 %v4058
  %v4060 = vpop.xlane.xlu0 %4059
  %v4061 = vsel %vm4024, %v4020, 0.0
  %4062 = vadd.xlane.f32.xlu0 %v4061
  %v4063 = vpop.xlane.xlu0 %4062
  %v4064 = vsel %vm4024, %v4021, 0.0
  %4065 = vadd.xlane.f32.xlu0 %v4064
  %v4066 = vpop.xlane.xlu0 %4065
  %v4067 = vsel %vm4024, %v4022, 0.0
  %4068 = vadd.xlane.f32.xlu0 %v4067
  %v4069 = vpop.xlane.xlu0 %4068
  %v4070 = vsel %vm4024, %v4023, 0.0
  %4071 = vadd.xlane.f32.xlu0 %v4070
  %v4072 = vpop.xlane.xlu0 %4071
  %v4073 = vrcp.pop 4.0
  %v4074 = vmul.f32 %v4027, %v4073
  %v4075 = vmul.f32 %v4030, %v4073
  %v4076 = vmul.f32 %v4033, %v4073
  %v4077 = vmul.f32 %v4036, %v4073
  %v4078 = vmul.f32 %v4039, %v4073
  %v4079 = vmul.f32 %v4042, %v4073
  %v4080 = vmul.f32 %v4045, %v4073
  %v4081 = vmul.f32 %v4048, %v4073
  %v4082 = vmul.f32 %v4051, %v4073
  %v4083 = vmul.f32 %v4054, %v4073
  %v4084 = vmul.f32 %v4057, %v4073
  %v4085 = vmul.f32 %v4060, %v4073
  %v4086 = vmul.f32 %v4063, %v4073
  %v4087 = vmul.f32 %v4066, %v4073
  %v4088 = vmul.f32 %v4069, %v4073
  %v4089 = vmul.f32 %v4072, %v4073
  %v4090 = vsub.f32 %v4008, %v4074
  %v4091 = vsub.f32 %v4009, %v4075
  %v4092 = vsub.f32 %v4010, %v4076
  %v4093 = vsub.f32 %v4011, %v4077
  %v4094 = vsub.f32 %v4012, %v4078
  %v4095 = vsub.f32 %v4013, %v4079
  %v4096 = vsub.f32 %v4014, %v4080
  %v4097 = vsub.f32 %v4015, %v4081
  %v4098 = vsub.f32 %v4016, %v4082
  %v4099 = vsub.f32 %v4017, %v4083
  %v4100 = vsub.f32 %v4018, %v4084
  %v4101 = vsub.f32 %v4019, %v4085
  %v4102 = vsub.f32 %v4020, %v4086
  %v4103 = vsub.f32 %v4021, %v4087
  %v4104 = vsub.f32 %v4022, %v4088
  %v4105 = vsub.f32 %v4023, %v4089
  %v4106 = vmul.f32 %v4090, %v4090
  %v4107 = vmul.f32 %v4091, %v4091
  %v4108 = vmul.f32 %v4092, %v4092
  %v4109 = vmul.f32 %v4093, %v4093
  %v4110 = vmul.f32 %v4094, %v4094
  %v4111 = vmul.f32 %v4095, %v4095
  %v4112 = vmul.f32 %v4096, %v4096
  %v4113 = vmul.f32 %v4097, %v4097
  %v4114 = vmul.f32 %v4098, %v4098
  %v4115 = vmul.f32 %v4099, %v4099
  %v4116 = vmul.f32 %v4100, %v4100
  %v4117 = vmul.f32 %v4101, %v4101
  %v4118 = vmul.f32 %v4102, %v4102
  %v4119 = vmul.f32 %v4103, %v4103
  %v4120 = vmul.f32 %v4104, %v4104
  %v4121 = vmul.f32 %v4105, %v4105
  %v4122 = vsel %vm4024, %v4106, 0.0
  %4123 = vadd.xlane.f32.xlu0 %v4122
  %v4124 = vpop.xlane.xlu0 %4123
  %v4125 = vsel %vm4024, %v4107, 0.0
  %4126 = vadd.xlane.f32.xlu0 %v4125
  %v4127 = vpop.xlane.xlu0 %4126
  %v4128 = vsel %vm4024, %v4108, 0.0
  %4129 = vadd.xlane.f32.xlu0 %v4128
  %v4130 = vpop.xlane.xlu0 %4129
  %v4131 = vsel %vm4024, %v4109, 0.0
  %4132 = vadd.xlane.f32.xlu0 %v4131
  %v4133 = vpop.xlane.xlu0 %4132
  %v4134 = vsel %vm4024, %v4110, 0.0
  %4135 = vadd.xlane.f32.xlu0 %v4134
  %v4136 = vpop.xlane.xlu0 %4135
  %v4137 = vsel %vm4024, %v4111, 0.0
  %4138 = vadd.xlane.f32.xlu0 %v4137
  %v4139 = vpop.xlane.xlu0 %4138
  %v4140 = vsel %vm4024, %v4112, 0.0
  %4141 = vadd.xlane.f32.xlu0 %v4140
  %v4142 = vpop.xlane.xlu0 %4141
  %v4143 = vsel %vm4024, %v4113, 0.0
  %4144 = vadd.xlane.f32.xlu0 %v4143
  %v4145 = vpop.xlane.xlu0 %4144
  %v4146 = vsel %vm4024, %v4114, 0.0
  %4147 = vadd.xlane.f32.xlu0 %v4146
  %v4148 = vpop.xlane.xlu0 %4147
  %v4149 = vsel %vm4024, %v4115, 0.0
  %4150 = vadd.xlane.f32.xlu0 %v4149
  %v4151 = vpop.xlane.xlu0 %4150
  %v4152 = vsel %vm4024, %v4116, 0.0
  %4153 = vadd.xlane.f32.xlu0 %v4152
  %v4154 = vpop.xlane.xlu0 %4153
  %v4155 = vsel %vm4024, %v4117, 0.0
  %4156 = vadd.xlane.f32.xlu0 %v4155
  %v4157 = vpop.xlane.xlu0 %4156
  %v4158 = vsel %vm4024, %v4118, 0.0
  %4159 = vadd.xlane.f32.xlu0 %v4158
  %v4160 = vpop.xlane.xlu0 %4159
  %v4161 = vsel %vm4024, %v4119, 0.0
  %4162 = vadd.xlane.f32.xlu0 %v4161
  %v4163 = vpop.xlane.xlu0 %4162
  %v4164 = vsel %vm4024, %v4120, 0.0
  %4165 = vadd.xlane.f32.xlu0 %v4164
  %v4166 = vpop.xlane.xlu0 %4165
  %v4167 = vsel %vm4024, %v4121, 0.0
  %4168 = vadd.xlane.f32.xlu0 %v4167
  %v4169 = vpop.xlane.xlu0 %4168
  %v4170 = vmul.f32 %v4124, %v4073
  %v4171 = vmul.f32 %v4127, %v4073
  %v4172 = vmul.f32 %v4130, %v4073
  %v4173 = vmul.f32 %v4133, %v4073
  %v4174 = vmul.f32 %v4136, %v4073
  %v4175 = vmul.f32 %v4139, %v4073
  %v4176 = vmul.f32 %v4142, %v4073
  %v4177 = vmul.f32 %v4145, %v4073
  %v4178 = vmul.f32 %v4148, %v4073
  %v4179 = vmul.f32 %v4151, %v4073
  %v4180 = vmul.f32 %v4154, %v4073
  %v4181 = vmul.f32 %v4157, %v4073
  %v4182 = vmul.f32 %v4160, %v4073
  %v4183 = vmul.f32 %v4163, %v4073
  %v4184 = vmul.f32 %v4166, %v4073
  %v4185 = vmul.f32 %v4169, %v4073
  %v4186 = vadd.f32 %v4170, 1e-05
  %v4187 = vadd.f32 %v4171, 1e-05
  %v4188 = vadd.f32 %v4172, 1e-05
  %v4189 = vadd.f32 %v4173, 1e-05
  %v4190 = vadd.f32 %v4174, 1e-05
  %v4191 = vadd.f32 %v4175, 1e-05
  %v4192 = vadd.f32 %v4176, 1e-05
  %v4193 = vadd.f32 %v4177, 1e-05
  %v4194 = vadd.f32 %v4178, 1e-05
  %v4195 = vadd.f32 %v4179, 1e-05
  %v4196 = vadd.f32 %v4180, 1e-05
  %v4197 = vadd.f32 %v4181, 1e-05
  %v4198 = vadd.f32 %v4182, 1e-05
  %v4199 = vadd.f32 %v4183, 1e-05
  %v4200 = vadd.f32 %v4184, 1e-05
  %v4201 = vadd.f32 %v4185, 1e-05
  %v4202 = vrsqrt.pop %v4186
  %v4203 = vrsqrt.pop %v4187
  %v4204 = vrsqrt.pop %v4188
  %v4205 = vrsqrt.pop %v4189
  %v4206 = vrsqrt.pop %v4190
  %v4207 = vrsqrt.pop %v4191
  %v4208 = vrsqrt.pop %v4192
  %v4209 = vrsqrt.pop %v4193
  %v4210 = vrsqrt.pop %v4194
  %v4211 = vrsqrt.pop %v4195
  %v4212 = vrsqrt.pop %v4196
  %v4213 = vrsqrt.pop %v4197
  %v4214 = vrsqrt.pop %v4198
  %v4215 = vrsqrt.pop %v4199
  %v4216 = vrsqrt.pop %v4200
  %v4217 = vrsqrt.pop %v4201
  %v4218 = vmul.f32 %v4090, %v4202
  %v4219 = vmul.f32 %v4091, %v4203
  %v4220 = vmul.f32 %v4092, %v4204
  %v4221 = vmul.f32 %v4093, %v4205
  %v4222 = vmul.f32 %v4094, %v4206
  %v4223 = vmul.f32 %v4095, %v4207
  %v4224 = vmul.f32 %v4096, %v4208
  %v4225 = vmul.f32 %v4097, %v4209
  %v4226 = vmul.f32 %v4098, %v4210
  %v4227 = vmul.f32 %v4099, %v4211
  %v4228 = vmul.f32 %v4100, %v4212
  %v4229 = vmul.f32 %v4101, %v4213
  %v4230 = vmul.f32 %v4102, %v4214
  %v4231 = vmul.f32 %v4103, %v4215
  %v4232 = vmul.f32 %v4104, %v4216
  %v4233 = vmul.f32 %v4105, %v4217
  %v4234 = vld [vmem:[%s39] sm:$0xff]
  %v4235 = vld [vmem:[%s39 + $0x8] sm:$0xff]
  %v4236 = vld [vmem:[%s39 + $0x10] sm:$0xff]
  %v4237 = vld [vmem:[%s39 + $0x18] sm:$0xff]
  %v4238 = vld [vmem:[%s39 + $0x20] sm:$0xff]
  %v4239 = vld [vmem:[%s39 + $0x28] sm:$0xff]
  %v4240 = vld [vmem:[%s39 + $0x30] sm:$0xff]
  %v4241 = vld [vmem:[%s39 + $0x38] sm:$0xff]
  %v4242 = vld [vmem:[%s39 + $0x40] sm:$0xff]
  %v4243 = vld [vmem:[%s39 + $0x48] sm:$0xff]
  %v4244 = vld [vmem:[%s39 + $0x50] sm:$0xff]
  %v4245 = vld [vmem:[%s39 + $0x58] sm:$0xff]
  %v4246 = vld [vmem:[%s39 + $0x60] sm:$0xff]
  %v4247 = vld [vmem:[%s39 + $0x68] sm:$0xff]
  %v4248 = vld [vmem:[%s39 + $0x70] sm:$0xff]
  %v4249 = vld [vmem:[%s39 + $0x78] sm:$0xff]
  %4251 = vset.pattern.permute.xlu0 0
  %4252 = vperm.xlu0 %4251, %v4234
  %v4253 = vpop.permute.xlu0 %4252
  %4256 = vset.pattern.permute.xlu0 0
  %4257 = vperm.xlu0 %4256, %v4235
  %v4258 = vpop.permute.xlu0 %4257
  %4261 = vset.pattern.permute.xlu0 0
  %4262 = vperm.xlu0 %4261, %v4236
  %v4263 = vpop.permute.xlu0 %4262
  %4266 = vset.pattern.permute.xlu0 0
  %4267 = vperm.xlu0 %4266, %v4237
  %v4268 = vpop.permute.xlu0 %4267
  %4271 = vset.pattern.permute.xlu0 0
  %4272 = vperm.xlu0 %4271, %v4238
  %v4273 = vpop.permute.xlu0 %4272
  %4276 = vset.pattern.permute.xlu0 0
  %4277 = vperm.xlu0 %4276, %v4239
  %v4278 = vpop.permute.xlu0 %4277
  %4281 = vset.pattern.permute.xlu0 0
  %4282 = vperm.xlu0 %4281, %v4240
  %v4283 = vpop.permute.xlu0 %4282
  %4286 = vset.pattern.permute.xlu0 0
  %4287 = vperm.xlu0 %4286, %v4241
  %v4288 = vpop.permute.xlu0 %4287
  %4291 = vset.pattern.permute.xlu0 0
  %4292 = vperm.xlu0 %4291, %v4242
  %v4293 = vpop.permute.xlu0 %4292
  %4296 = vset.pattern.permute.xlu0 0
  %4297 = vperm.xlu0 %4296, %v4243
  %v4298 = vpop.permute.xlu0 %4297
  %4301 = vset.pattern.permute.xlu0 0
  %4302 = vperm.xlu0 %4301, %v4244
  %v4303 = vpop.permute.xlu0 %4302
  %4306 = vset.pattern.permute.xlu0 0
  %4307 = vperm.xlu0 %4306, %v4245
  %v4308 = vpop.permute.xlu0 %4307
  %4311 = vset.pattern.permute.xlu0 0
  %4312 = vperm.xlu0 %4311, %v4246
  %v4313 = vpop.permute.xlu0 %4312
  %4316 = vset.pattern.permute.xlu0 0
  %4317 = vperm.xlu0 %4316, %v4247
  %v4318 = vpop.permute.xlu0 %4317
  %4321 = vset.pattern.permute.xlu0 0
  %4322 = vperm.xlu0 %4321, %v4248
  %v4323 = vpop.permute.xlu0 %4322
  %4326 = vset.pattern.permute.xlu0 0
  %4327 = vperm.xlu0 %4326, %v4249
  %v4328 = vpop.permute.xlu0 %4327
  %v4330 = vmul.f32 %v4218, %v4253
  %v4331 = vmul.f32 %v4219, %v4258
  %v4332 = vmul.f32 %v4220, %v4263
  %v4333 = vmul.f32 %v4221, %v4268
  %v4334 = vmul.f32 %v4222, %v4273
  %v4335 = vmul.f32 %v4223, %v4278
  %v4336 = vmul.f32 %v4224, %v4283
  %v4337 = vmul.f32 %v4225, %v4288
  %v4338 = vmul.f32 %v4226, %v4293
  %v4339 = vmul.f32 %v4227, %v4298
  %v4340 = vmul.f32 %v4228, %v4303
  %v4341 = vmul.f32 %v4229, %v4308
  %v4342 = vmul.f32 %v4230, %v4313
  %v4343 = vmul.f32 %v4231, %v4318
  %v4344 = vmul.f32 %v4232, %v4323
  %v4345 = vmul.f32 %v4233, %v4328
  %v4346 = vld [vmem:[%s41] sm:$0xff]
  %v4347 = vld [vmem:[%s41 + $0x8] sm:$0xff]
  %v4348 = vld [vmem:[%s41 + $0x10] sm:$0xff]
  %v4349 = vld [vmem:[%s41 + $0x18] sm:$0xff]
  %v4350 = vld [vmem:[%s41 + $0x20] sm:$0xff]
  %v4351 = vld [vmem:[%s41 + $0x28] sm:$0xff]
  %v4352 = vld [vmem:[%s41 + $0x30] sm:$0xff]
  %v4353 = vld [vmem:[%s41 + $0x38] sm:$0xff]
  %v4354 = vld [vmem:[%s41 + $0x40] sm:$0xff]
  %v4355 = vld [vmem:[%s41 + $0x48] sm:$0xff]
  %v4356 = vld [vmem:[%s41 + $0x50] sm:$0xff]
  %v4357 = vld [vmem:[%s41 + $0x58] sm:$0xff]
  %v4358 = vld [vmem:[%s41 + $0x60] sm:$0xff]
  %v4359 = vld [vmem:[%s41 + $0x68] sm:$0xff]
  %v4360 = vld [vmem:[%s41 + $0x70] sm:$0xff]
  %v4361 = vld [vmem:[%s41 + $0x78] sm:$0xff]
  %4363 = vset.pattern.permute.xlu0 0
  %4364 = vperm.xlu0 %4363, %v4346
  %v4365 = vpop.permute.xlu0 %4364
  %4368 = vset.pattern.permute.xlu0 0
  %4369 = vperm.xlu0 %4368, %v4347
  %v4370 = vpop.permute.xlu0 %4369
  %4373 = vset.pattern.permute.xlu0 0
  %4374 = vperm.xlu0 %4373, %v4348
  %v4375 = vpop.permute.xlu0 %4374
  %4378 = vset.pattern.permute.xlu0 0
  %4379 = vperm.xlu0 %4378, %v4349
  %v4380 = vpop.permute.xlu0 %4379
  %4383 = vset.pattern.permute.xlu0 0
  %4384 = vperm.xlu0 %4383, %v4350
  %v4385 = vpop.permute.xlu0 %4384
  %4388 = vset.pattern.permute.xlu0 0
  %4389 = vperm.xlu0 %4388, %v4351
  %v4390 = vpop.permute.xlu0 %4389
  %4393 = vset.pattern.permute.xlu0 0
  %4394 = vperm.xlu0 %4393, %v4352
  %v4395 = vpop.permute.xlu0 %4394
  %4398 = vset.pattern.permute.xlu0 0
  %4399 = vperm.xlu0 %4398, %v4353
  %v4400 = vpop.permute.xlu0 %4399
  %4403 = vset.pattern.permute.xlu0 0
  %4404 = vperm.xlu0 %4403, %v4354
  %v4405 = vpop.permute.xlu0 %4404
  %4408 = vset.pattern.permute.xlu0 0
  %4409 = vperm.xlu0 %4408, %v4355
  %v4410 = vpop.permute.xlu0 %4409
  %4413 = vset.pattern.permute.xlu0 0
  %4414 = vperm.xlu0 %4413, %v4356
  %v4415 = vpop.permute.xlu0 %4414
  %4418 = vset.pattern.permute.xlu0 0
  %4419 = vperm.xlu0 %4418, %v4357
  %v4420 = vpop.permute.xlu0 %4419
  %4423 = vset.pattern.permute.xlu0 0
  %4424 = vperm.xlu0 %4423, %v4358
  %v4425 = vpop.permute.xlu0 %4424
  %4428 = vset.pattern.permute.xlu0 0
  %4429 = vperm.xlu0 %4428, %v4359
  %v4430 = vpop.permute.xlu0 %4429
  %4433 = vset.pattern.permute.xlu0 0
  %4434 = vperm.xlu0 %4433, %v4360
  %v4435 = vpop.permute.xlu0 %4434
  %4438 = vset.pattern.permute.xlu0 0
  %4439 = vperm.xlu0 %4438, %v4361
  %v4440 = vpop.permute.xlu0 %4439
  %v4442 = vadd.f32 %v4330, %v4365
  %v4443 = vadd.f32 %v4331, %v4370
  %v4444 = vadd.f32 %v4332, %v4375
  %v4445 = vadd.f32 %v4333, %v4380
  %v4446 = vadd.f32 %v4334, %v4385
  %v4447 = vadd.f32 %v4335, %v4390
  %v4448 = vadd.f32 %v4336, %v4395
  %v4449 = vadd.f32 %v4337, %v4400
  %v4450 = vadd.f32 %v4338, %v4405
  %v4451 = vadd.f32 %v4339, %v4410
  %v4452 = vadd.f32 %v4340, %v4415
  %v4453 = vadd.f32 %v4341, %v4420
  %v4454 = vadd.f32 %v4342, %v4425
  %v4455 = vadd.f32 %v4343, %v4430
  %v4456 = vadd.f32 %v4344, %v4435
  %v4457 = vadd.f32 %v4345, %v4440
  %v4458 = vmax.f32 %v4442, 0.0
  %v4459 = vmax.f32 %v4443, 0.0
  %v4460 = vmax.f32 %v4444, 0.0
  %v4461 = vmax.f32 %v4445, 0.0
  %v4462 = vmax.f32 %v4446, 0.0
  %v4463 = vmax.f32 %v4447, 0.0
  %v4464 = vmax.f32 %v4448, 0.0
  %v4465 = vmax.f32 %v4449, 0.0
  %v4466 = vmax.f32 %v4450, 0.0
  %v4467 = vmax.f32 %v4451, 0.0
  %v4468 = vmax.f32 %v4452, 0.0
  %v4469 = vmax.f32 %v4453, 0.0
  %v4470 = vmax.f32 %v4454, 0.0
  %v4471 = vmax.f32 %v4455, 0.0
  %v4472 = vmax.f32 %v4456, 0.0
  %v4473 = vmax.f32 %v4457, 0.0
  %4490 = vrot.lane.b32.xlu0 %v4458, 127
  %v4491 = vpop.permute.xlu0 %4490
  %4492 = vrot.lane.b32.xlu0 %v4459, 127
  %v4493 = vpop.permute.xlu0 %4492
  %4494 = vrot.lane.b32.xlu0 %v4460, 127
  %v4495 = vpop.permute.xlu0 %4494
  %4496 = vrot.lane.b32.xlu0 %v4461, 127
  %v4497 = vpop.permute.xlu0 %4496
  %4498 = vrot.lane.b32.xlu0 %v4462, 127
  %v4499 = vpop.permute.xlu0 %4498
  %4500 = vrot.lane.b32.xlu0 %v4463, 127
  %v4501 = vpop.permute.xlu0 %4500
  %4502 = vrot.lane.b32.xlu0 %v4464, 127
  %v4503 = vpop.permute.xlu0 %4502
  %4504 = vrot.lane.b32.xlu0 %v4465, 127
  %v4505 = vpop.permute.xlu0 %4504
  %4506 = vrot.lane.b32.xlu0 %v4466, 127
  %v4507 = vpop.permute.xlu0 %4506
  %4508 = vrot.lane.b32.xlu0 %v4467, 127
  %v4509 = vpop.permute.xlu0 %4508
  %4510 = vrot.lane.b32.xlu0 %v4468, 127
  %v4511 = vpop.permute.xlu0 %4510
  %4512 = vrot.lane.b32.xlu0 %v4469, 127
  %v4513 = vpop.permute.xlu0 %4512
  %4514 = vrot.lane.b32.xlu0 %v4470, 127
  %v4515 = vpop.permute.xlu0 %4514
  %4516 = vrot.lane.b32.xlu0 %v4471, 127
  %v4517 = vpop.permute.xlu0 %4516
  %4518 = vrot.lane.b32.xlu0 %v4472, 127
  %v4519 = vpop.permute.xlu0 %4518
  %4520 = vrot.lane.b32.xlu0 %v4473, 127
  %v4521 = vpop.permute.xlu0 %4520
  %vm4538 = vcmask 7168
  %v4539 = vsel %vm4538, %v4458, %v4491
  %v4540 = vsel %vm4538, %v4459, %v4493
  %v4541 = vsel %vm4538, %v4460, %v4495
  %v4542 = vsel %vm4538, %v4461, %v4497
  %v4543 = vsel %vm4538, %v4462, %v4499
  %v4544 = vsel %vm4538, %v4463, %v4501
  %v4545 = vsel %vm4538, %v4464, %v4503
  %v4546 = vsel %vm4538, %v4465, %v4505
  %v4547 = vsel %vm4538, %v4466, %v4507
  %v4548 = vsel %vm4538, %v4467, %v4509
  %v4549 = vsel %vm4538, %v4468, %v4511
  %v4550 = vsel %vm4538, %v4469, %v4513
  %v4551 = vsel %vm4538, %v4470, %v4515
  %v4552 = vsel %vm4538, %v4471, %v4517
  %v4553 = vsel %vm4538, %v4472, %v4519
  %v4554 = vsel %vm4538, %v4473, %v4521
  %v4555 = vld [vmem:[%s43] sm:$0xff]
  %v4556 = vld [vmem:[%s43 + $0x8] sm:$0xff]
  %v4557 = vld [vmem:[%s43 + $0x10] sm:$0xff]
  %v4558 = vld [vmem:[%s43 + $0x18] sm:$0xff]
  %v4559 = vld [vmem:[%s43 + $0x20] sm:$0xff]
  %v4560 = vld [vmem:[%s43 + $0x28] sm:$0xff]
  %v4561 = vld [vmem:[%s43 + $0x30] sm:$0xff]
  %v4562 = vld [vmem:[%s43 + $0x38] sm:$0xff]
  %v4563 = vld [vmem:[%s43 + $0x40] sm:$0xff]
  %v4564 = vld [vmem:[%s43 + $0x48] sm:$0xff]
  %v4565 = vld [vmem:[%s43 + $0x50] sm:$0xff]
  %v4566 = vld [vmem:[%s43 + $0x58] sm:$0xff]
  %v4567 = vld [vmem:[%s43 + $0x60] sm:$0xff]
  %v4568 = vld [vmem:[%s43 + $0x68] sm:$0xff]
  %v4569 = vld [vmem:[%s43 + $0x70] sm:$0xff]
  %v4570 = vld [vmem:[%s43 + $0x78] sm:$0xff]
  %4571 = vrot.lane.b32.xlu0 %v4458, 126
  %v4572 = vpop.permute.xlu0 %4571
  %4573 = vrot.lane.b32.xlu0 %v4459, 126
  %v4574 = vpop.permute.xlu0 %4573
  %4575 = vrot.lane.b32.xlu0 %v4460, 126
  %v4576 = vpop.permute.xlu0 %4575
  %4577 = vrot.lane.b32.xlu0 %v4461, 126
  %v4578 = vpop.permute.xlu0 %4577
  %4579 = vrot.lane.b32.xlu0 %v4462, 126
  %v4580 = vpop.permute.xlu0 %4579
  %4581 = vrot.lane.b32.xlu0 %v4463, 126
  %v4582 = vpop.permute.xlu0 %4581
  %4583 = vrot.lane.b32.xlu0 %v4464, 126
  %v4584 = vpop.permute.xlu0 %4583
  %4585 = vrot.lane.b32.xlu0 %v4465, 126
  %v4586 = vpop.permute.xlu0 %4585
  %4587 = vrot.lane.b32.xlu0 %v4466, 126
  %v4588 = vpop.permute.xlu0 %4587
  %4589 = vrot.lane.b32.xlu0 %v4467, 126
  %v4590 = vpop.permute.xlu0 %4589
  %4591 = vrot.lane.b32.xlu0 %v4468, 126
  %v4592 = vpop.permute.xlu0 %4591
  %4593 = vrot.lane.b32.xlu0 %v4469, 126
  %v4594 = vpop.permute.xlu0 %4593
  %4595 = vrot.lane.b32.xlu0 %v4470, 126
  %v4596 = vpop.permute.xlu0 %4595
  %4597 = vrot.lane.b32.xlu0 %v4471, 126
  %v4598 = vpop.permute.xlu0 %4597
  %4599 = vrot.lane.b32.xlu0 %v4472, 126
  %v4600 = vpop.permute.xlu0 %4599
  %4601 = vrot.lane.b32.xlu0 %v4473, 126
  %v4602 = vpop.permute.xlu0 %4601
  %v4619 = vsel %vm4538, %v4491, %v4572
  %v4620 = vsel %vm4538, %v4493, %v4574
  %v4621 = vsel %vm4538, %v4495, %v4576
  %v4622 = vsel %vm4538, %v4497, %v4578
  %v4623 = vsel %vm4538, %v4499, %v4580
  %v4624 = vsel %vm4538, %v4501, %v4582
  %v4625 = vsel %vm4538, %v4503, %v4584
  %v4626 = vsel %vm4538, %v4505, %v4586
  %v4627 = vsel %vm4538, %v4507, %v4588
  %v4628 = vsel %vm4538, %v4509, %v4590
  %v4629 = vsel %vm4538, %v4511, %v4592
  %v4630 = vsel %vm4538, %v4513, %v4594
  %v4631 = vsel %vm4538, %v4515, %v4596
  %v4632 = vsel %vm4538, %v4517, %v4598
  %v4633 = vsel %vm4538, %v4519, %v4600
  %v4634 = vsel %vm4538, %v4521, %v4602
  %s4635 = scalar_lea.vmem %s43, 128
  %v4636 = vld [vmem:[%s4635] sm:$0xff]
  %v4637 = vld [vmem:[%s4635 + $0x8] sm:$0xff]
  %v4638 = vld [vmem:[%s4635 + $0x10] sm:$0xff]
  %v4639 = vld [vmem:[%s4635 + $0x18] sm:$0xff]
  %v4640 = vld [vmem:[%s4635 + $0x20] sm:$0xff]
  %v4641 = vld [vmem:[%s4635 + $0x28] sm:$0xff]
  %v4642 = vld [vmem:[%s4635 + $0x30] sm:$0xff]
  %v4643 = vld [vmem:[%s4635 + $0x38] sm:$0xff]
  %v4644 = vld [vmem:[%s4635 + $0x40] sm:$0xff]
  %v4645 = vld [vmem:[%s4635 + $0x48] sm:$0xff]
  %v4646 = vld [vmem:[%s4635 + $0x50] sm:$0xff]
  %v4647 = vld [vmem:[%s4635 + $0x58] sm:$0xff]
  %v4648 = vld [vmem:[%s4635 + $0x60] sm:$0xff]
  %v4649 = vld [vmem:[%s4635 + $0x68] sm:$0xff]
  %v4650 = vld [vmem:[%s4635 + $0x70] sm:$0xff]
  %v4651 = vld [vmem:[%s4635 + $0x78] sm:$0xff]
  %4652 = vmatprep.subr.mxu0 0.0
  %4653 = vmatpush1.msra.mxu0 %v4619
  %4654 = vmatprep.subr.mxu0 0.0
  %4655 = vmatpush1.msra.mxu0 %v4620
  %4656 = vmatprep.subr.mxu0 0.0
  %4657 = vmatpush1.msra.mxu0 %v4621
  %4658 = vmatprep.subr.mxu0 0.0
  %4659 = vmatpush1.msra.mxu0 %v4622
  %4660 = vmatprep.subr.mxu0 0.0
  %4661 = vmatpush1.msra.mxu0 %v4623
  %4662 = vmatprep.subr.mxu0 0.0
  %4663 = vmatpush1.msra.mxu0 %v4624
  %4664 = vmatprep.subr.mxu0 0.0
  %4665 = vmatpush1.msra.mxu0 %v4625
  %4666 = vmatprep.subr.mxu0 0.0
  %4667 = vmatpush1.msra.mxu0 %v4626
  %4668 = vmatprep.subr.mxu0 0.0
  %4669 = vmatpush1.msra.mxu0 %v4627
  %4670 = vmatprep.subr.mxu0 0.0
  %4671 = vmatpush1.msra.mxu0 %v4628
  %4672 = vmatprep.subr.mxu0 0.0
  %4673 = vmatpush1.msra.mxu0 %v4629
  %4674 = vmatprep.subr.mxu0 0.0
  %4675 = vmatpush1.msra.mxu0 %v4630
  %4676 = vmatprep.subr.mxu0 0.0
  %4677 = vmatpush1.msra.mxu0 %v4631
  %4678 = vmatprep.subr.mxu0 0.0
  %4679 = vmatpush1.msra.mxu0 %v4632
  %4680 = vmatprep.subr.mxu0 0.0
  %4681 = vmatpush1.msra.mxu0 %v4633
  %4682 = vmatprep.subr.mxu0 0.0
  %4683 = vmatpush1.msra.mxu0 %v4634
  %4684 = vmatprep.subr.mxu0 0.0
  %4685 = vmatpush1.msra.mxu0 0.0
  %4686 = vmatprep.subr.mxu0 0.0
  %4687 = vmatpush1.msra.mxu0 0.0
  %4688 = vmatprep.subr.mxu0 0.0
  %4689 = vmatpush1.msra.mxu0 0.0
  %4690 = vmatprep.subr.mxu0 0.0
  %4691 = vmatpush1.msra.mxu0 0.0
  %4692 = vmatprep.subr.mxu0 0.0
  %4693 = vmatpush1.msra.mxu0 0.0
  %4694 = vmatprep.subr.mxu0 0.0
  %4695 = vmatpush1.msra.mxu0 0.0
  %4696 = vmatprep.subr.mxu0 0.0
  %4697 = vmatpush1.msra.mxu0 0.0
  %4698 = vmatprep.subr.mxu0 0.0
  %4699 = vmatpush1.msra.mxu0 0.0
  %4700 = vmatprep.subr.mxu0 0.0
  %4701 = vmatpush1.msra.mxu0 0.0
  %4702 = vmatprep.subr.mxu0 0.0
  %4703 = vmatpush1.msra.mxu0 0.0
  %4704 = vmatprep.subr.mxu0 0.0
  %4705 = vmatpush1.msra.mxu0 0.0
  %4706 = vmatprep.subr.mxu0 0.0
  %4707 = vmatpush1.msra.mxu0 0.0
  %4708 = vmatprep.subr.mxu0 0.0
  %4709 = vmatpush1.msra.mxu0 0.0
  %4710 = vmatprep.subr.mxu0 0.0
  %4711 = vmatpush1.msra.mxu0 0.0
  %4712 = vmatprep.subr.mxu0 0.0
  %4713 = vmatpush1.msra.mxu0 0.0
  %4714 = vmatprep.subr.mxu0 0.0
  %4715 = vmatpush1.msra.mxu0 0.0
  %4716 = vmatprep.mubr.f32.mxu0 0.0
  %4717 = vmatmul.mubr.f32.gmra.mrb[0].mxu0 %v4636
  %v4718 = vpop.f32.mrb[0].mxu0
  %v4719 = vadd.f32 0.0, %v4718
  %v4720 = vpop.f32.mrb[0].mxu0
  %4721 = vmatprep.mubr.f32.mxu0 0.0
  %4722 = vmatmul.mubr.f32.gmra.mrb[0].mxu0 %v4637
  %v4723 = vpop.f32.mrb[0].mxu0
  %v4724 = vadd.f32 0.0, %v4723
  %v4725 = vpop.f32.mrb[0].mxu0
  %4726 = vmatprep.mubr.f32.mxu0 0.0
  %4727 = vmatmul.mubr.f32.gmra.mrb[0].mxu0 %v4638
  %v4728 = vpop.f32.mrb[0].mxu0
  %v4729 = vadd.f32 0.0, %v4728
  %v4730 = vpop.f32.mrb[0].mxu0
  %4731 = vmatprep.mubr.f32.mxu0 0.0
  %4732 = vmatmul.mubr.f32.gmra.mrb[0].mxu0 %v4639
  %v4733 = vpop.f32.mrb[0].mxu0
  %v4734 = vadd.f32 0.0, %v4733
  %v4735 = vpop.f32.mrb[0].mxu0
  %4736 = vmatprep.mubr.f32.mxu0 0.0
  %4737 = vmatmul.mubr.f32.gmra.mrb[0].mxu0 %v4640
  %v4738 = vpop.f32.mrb[0].mxu0
  %v4739 = vadd.f32 0.0, %v4738
  %v4740 = vpop.f32.mrb[0].mxu0
  %4741 = vmatprep.mubr.f32.mxu0 0.0
  %4742 = vmatmul.mubr.f32.gmra.mrb[0].mxu0 %v4641
  %v4743 = vpop.f32.mrb[0].mxu0
  %v4744 = vadd.f32 0.0, %v4743
  %v4745 = vpop.f32.mrb[0].mxu0
  %4746 = vmatprep.mubr.f32.mxu0 0.0
  %4747 = vmatmul.mubr.f32.gmra.mrb[0].mxu0 %v4642
  %v4748 = vpop.f32.mrb[0].mxu0
  %v4749 = vadd.f32 0.0, %v4748
  %v4750 = vpop.f32.mrb[0].mxu0
  %4751 = vmatprep.mubr.f32.mxu0 0.0
  %4752 = vmatmul.mubr.f32.gmra.mrb[0].mxu0 %v4643
  %v4753 = vpop.f32.mrb[0].mxu0
  %v4754 = vadd.f32 0.0, %v4753
  %v4755 = vpop.f32.mrb[0].mxu0
  %4756 = vmatprep.mubr.f32.mxu0 0.0
  %4757 = vmatmul.mubr.f32.gmra.mrb[0].mxu0 %v4644
  %v4758 = vpop.f32.mrb[0].mxu0
  %v4759 = vadd.f32 0.0, %v4758
  %v4760 = vpop.f32.mrb[0].mxu0
  %4761 = vmatprep.mubr.f32.mxu0 0.0
  %4762 = vmatmul.mubr.f32.gmra.mrb[0].mxu0 %v4645
  %v4763 = vpop.f32.mrb[0].mxu0
  %v4764 = vadd.f32 0.0, %v4763
  %v4765 = vpop.f32.mrb[0].mxu0
  %4766 = vmatprep.mubr.f32.mxu0 0.0
  %4767 = vmatmul.mubr.f32.gmra.mrb[0].mxu0 %v4646
  %v4768 = vpop.f32.mrb[0].mxu0
  %v4769 = vadd.f32 0.0, %v4768
  %v4770 = vpop.f32.mrb[0].mxu0
  %4771 = vmatprep.mubr.f32.mxu0 0.0
  %4772 = vmatmul.mubr.f32.gmra.mrb[0].mxu0 %v4647
  %v4773 = vpop.f32.mrb[0].mxu0
  %v4774 = vadd.f32 0.0, %v4773
  %v4775 = vpop.f32.mrb[0].mxu0
  %4776 = vmatprep.mubr.f32.mxu0 0.0
  %4777 = vmatmul.mubr.f32.gmra.mrb[0].mxu0 %v4648
  %v4778 = vpop.f32.mrb[0].mxu0
  %v4779 = vadd.f32 0.0, %v4778
  %v4780 = vpop.f32.mrb[0].mxu0
  %4781 = vmatprep.mubr.f32.mxu0 0.0
  %4782 = vmatmul.mubr.f32.gmra.mrb[0].mxu0 %v4649
  %v4783 = vpop.f32.mrb[0].mxu0
  %v4784 = vadd.f32 0.0, %v4783
  %v4785 = vpop.f32.mrb[0].mxu0
  %4786 = vmatprep.mubr.f32.mxu0 0.0
  %4787 = vmatmul.mubr.f32.gmra.mrb[0].mxu0 %v4650
  %v4788 = vpop.f32.mrb[0].mxu0
  %v4789 = vadd.f32 0.0, %v4788
  %v4790 = vpop.f32.mrb[0].mxu0
  %4791 = vmatprep.mubr.f32.mxu0 0.0
  %4792 = vmatmul.mubr.f32.gmra.mrb[0].mxu0 %v4651
  %v4793 = vpop.f32.mrb[0].mxu0
  %v4794 = vadd.f32 0.0, %v4793
  %v4795 = vpop.f32.mrb[0].mxu0
  %4796 = vdwg.mxu0
  %4797 = vmatprep.subr.mxu0 0.0
  %4798 = vmatpush1.msra.mxu0 %v4539
  %4799 = vmatprep.subr.mxu0 0.0
  %4800 = vmatpush1.msra.mxu0 %v4540
  %4801 = vmatprep.subr.mxu0 0.0
  %4802 = vmatpush1.msra.mxu0 %v4541
  %4803 = vmatprep.subr.mxu0 0.0
  %4804 = vmatpush1.msra.mxu0 %v4542
  %4805 = vmatprep.subr.mxu0 0.0
  %4806 = vmatpush1.msra.mxu0 %v4543
  %4807 = vmatprep.subr.mxu0 0.0
  %4808 = vmatpush1.msra.mxu0 %v4544
  %4809 = vmatprep.subr.mxu0 0.0
  %4810 = vmatpush1.msra.mxu0 %v4545
  %4811 = vmatprep.subr.mxu0 0.0
  %4812 = vmatpush1.msra.mxu0 %v4546
  %4813 = vmatprep.subr.mxu0 0.0
  %4814 = vmatpush1.msra.mxu0 %v4547
  %4815 = vmatprep.subr.mxu0 0.0
  %4816 = vmatpush1.msra.mxu0 %v4548
  %4817 = vmatprep.subr.mxu0 0.0
  %4818 = vmatpush1.msra.mxu0 %v4549
  %4819 = vmatprep.subr.mxu0 0.0
  %4820 = vmatpush1.msra.mxu0 %v4550
  %4821 = vmatprep.subr.mxu0 0.0
  %4822 = vmatpush1.msra.mxu0 %v4551
  %4823 = vmatprep.subr.mxu0 0.0
  %4824 = vmatpush1.msra.mxu0 %v4552
  %4825 = vmatprep.subr.mxu0 0.0
  %4826 = vmatpush1.msra.mxu0 %v4553
  %4827 = vmatprep.subr.mxu0 0.0
  %4828 = vmatpush1.msra.mxu0 %v4554
  %4829 = vmatprep.subr.mxu0 0.0
  %4830 = vmatpush1.msra.mxu0 0.0
  %4831 = vmatprep.subr.mxu0 0.0
  %4832 = vmatpush1.msra.mxu0 0.0
  %4833 = vmatprep.subr.mxu0 0.0
  %4834 = vmatpush1.msra.mxu0 0.0
  %4835 = vmatprep.subr.mxu0 0.0
  %4836 = vmatpush1.msra.mxu0 0.0
  %4837 = vmatprep.subr.mxu0 0.0
  %4838 = vmatpush1.msra.mxu0 0.0
  %4839 = vmatprep.subr.mxu0 0.0
  %4840 = vmatpush1.msra.mxu0 0.0
  %4841 = vmatprep.subr.mxu0 0.0
  %4842 = vmatpush1.msra.mxu0 0.0
  %4843 = vmatprep.subr.mxu0 0.0
  %4844 = vmatpush1.msra.mxu0 0.0
  %4845 = vmatprep.subr.mxu0 0.0
  %4846 = vmatpush1.msra.mxu0 0.0
  %4847 = vmatprep.subr.mxu0 0.0
  %4848 = vmatpush1.msra.mxu0 0.0
  %4849 = vmatprep.subr.mxu0 0.0
  %4850 = vmatpush1.msra.mxu0 0.0
  %4851 = vmatprep.subr.mxu0 0.0
  %4852 = vmatpush1.msra.mxu0 0.0
  %4853 = vmatprep.subr.mxu0 0.0
  %4854 = vmatpush1.msra.mxu0 0.0
  %4855 = vmatprep.subr.mxu0 0.0
  %4856 = vmatpush1.msra.mxu0 0.0
  %4857 = vmatprep.subr.mxu0 0.0
  %4858 = vmatpush1.msra.mxu0 0.0
  %4859 = vmatprep.subr.mxu0 0.0
  %4860 = vmatpush1.msra.mxu0 0.0
  %4861 = vmatprep.mubr.f32.mxu0 0.0
  %4862 = vmatmul.mubr.f32.gmra.mrb[0].mxu0 %v4555
  %v4863 = vpop.f32.mrb[0].mxu0
  %v4864 = vadd.f32 %v4719, %v4863
  %v4865 = vpop.f32.mrb[0].mxu0
  %4866 = vmatprep.mubr.f32.mxu0 0.0
  %4867 = vmatmul.mubr.f32.gmra.mrb[0].mxu0 %v4556
  %v4868 = vpop.f32.mrb[0].mxu0
  %v4869 = vadd.f32 %v4724, %v4868
  %v4870 = vpop.f32.mrb[0].mxu0
  %4871 = vmatprep.mubr.f32.mxu0 0.0
  %4872 = vmatmul.mubr.f32.gmra.mrb[0].mxu0 %v4557
  %v4873 = vpop.f32.mrb[0].mxu0
  %v4874 = vadd.f32 %v4729, %v4873
  %v4875 = vpop.f32.mrb[0].mxu0
  %4876 = vmatprep.mubr.f32.mxu0 0.0
  %4877 = vmatmul.mubr.f32.gmra.mrb[0].mxu0 %v4558
  %v4878 = vpop.f32.mrb[0].mxu0
  %v4879 = vadd.f32 %v4734, %v4878
  %v4880 = vpop.f32.mrb[0].mxu0
  %4881 = vmatprep.mubr.f32.mxu0 0.0
  %4882 = vmatmul.mubr.f32.gmra.mrb[0].mxu0 %v4559
  %v4883 = vpop.f32.mrb[0].mxu0
  %v4884 = vadd.f32 %v4739, %v4883
  %v4885 = vpop.f32.mrb[0].mxu0
  %4886 = vmatprep.mubr.f32.mxu0 0.0
  %4887 = vmatmul.mubr.f32.gmra.mrb[0].mxu0 %v4560
  %v4888 = vpop.f32.mrb[0].mxu0
  %v4889 = vadd.f32 %v4744, %v4888
  %v4890 = vpop.f32.mrb[0].mxu0
  %4891 = vmatprep.mubr.f32.mxu0 0.0
  %4892 = vmatmul.mubr.f32.gmra.mrb[0].mxu0 %v4561
  %v4893 = vpop.f32.mrb[0].mxu0
  %v4894 = vadd.f32 %v4749, %v4893
  %v4895 = vpop.f32.mrb[0].mxu0
  %4896 = vmatprep.mubr.f32.mxu0 0.0
  %4897 = vmatmul.mubr.f32.gmra.mrb[0].mxu0 %v4562
  %v4898 = vpop.f32.mrb[0].mxu0
  %v4899 = vadd.f32 %v4754, %v4898
  %v4900 = vpop.f32.mrb[0].mxu0
  %4901 = vmatprep.mubr.f32.mxu0 0.0
  %4902 = vmatmul.mubr.f32.gmra.mrb[0].mxu0 %v4563
  %v4903 = vpop.f32.mrb[0].mxu0
  %v4904 = vadd.f32 %v4759, %v4903
  %v4905 = vpop.f32.mrb[0].mxu0
  %4906 = vmatprep.mubr.f32.mxu0 0.0
  %4907 = vmatmul.mubr.f32.gmra.mrb[0].mxu0 %v4564
  %v4908 = vpop.f32.mrb[0].mxu0
  %v4909 = vadd.f32 %v4764, %v4908
  %v4910 = vpop.f32.mrb[0].mxu0
  %4911 = vmatprep.mubr.f32.mxu0 0.0
  %4912 = vmatmul.mubr.f32.gmra.mrb[0].mxu0 %v4565
  %v4913 = vpop.f32.mrb[0].mxu0
  %v4914 = vadd.f32 %v4769, %v4913
  %v4915 = vpop.f32.mrb[0].mxu0
  %4916 = vmatprep.mubr.f32.mxu0 0.0
  %4917 = vmatmul.mubr.f32.gmra.mrb[0].mxu0 %v4566
  %v4918 = vpop.f32.mrb[0].mxu0
  %v4919 = vadd.f32 %v4774, %v4918
  %v4920 = vpop.f32.mrb[0].mxu0
  %4921 = vmatprep.mubr.f32.mxu0 0.0
  %4922 = vmatmul.mubr.f32.gmra.mrb[0].mxu0 %v4567
  %v4923 = vpop.f32.mrb[0].mxu0
  %v4924 = vadd.f32 %v4779, %v4923
  %v4925 = vpop.f32.mrb[0].mxu0
  %4926 = vmatprep.mubr.f32.mxu0 0.0
  %4927 = vmatmul.mubr.f32.gmra.mrb[0].mxu0 %v4568
  %v4928 = vpop.f32.mrb[0].mxu0
  %v4929 = vadd.f32 %v4784, %v4928
  %v4930 = vpop.f32.mrb[0].mxu0
  %4931 = vmatprep.mubr.f32.mxu0 0.0
  %4932 = vmatmul.mubr.f32.gmra.mrb[0].mxu0 %v4569
  %v4933 = vpop.f32.mrb[0].mxu0
  %v4934 = vadd.f32 %v4789, %v4933
  %v4935 = vpop.f32.mrb[0].mxu0
  %4936 = vmatprep.mubr.f32.mxu0 0.0
  %4937 = vmatmul.mubr.f32.gmra.mrb[0].mxu0 %v4570
  %v4938 = vpop.f32.mrb[0].mxu0
  %v4939 = vadd.f32 %v4794, %v4938
  %v4940 = vpop.f32.mrb[0].mxu0
  %4941 = vdwg.mxu0
  %v4942 = vld [vmem:[%s45] sm:$0xff]
  %v4943 = vld [vmem:[%s45 + $0x8] sm:$0xff]
  %v4944 = vld [vmem:[%s45 + $0x10] sm:$0xff]
  %v4945 = vld [vmem:[%s45 + $0x18] sm:$0xff]
  %v4946 = vld [vmem:[%s45 + $0x20] sm:$0xff]
  %v4947 = vld [vmem:[%s45 + $0x28] sm:$0xff]
  %v4948 = vld [vmem:[%s45 + $0x30] sm:$0xff]
  %v4949 = vld [vmem:[%s45 + $0x38] sm:$0xff]
  %v4950 = vld [vmem:[%s45 + $0x40] sm:$0xff]
  %v4951 = vld [vmem:[%s45 + $0x48] sm:$0xff]
  %v4952 = vld [vmem:[%s45 + $0x50] sm:$0xff]
  %v4953 = vld [vmem:[%s45 + $0x58] sm:$0xff]
  %v4954 = vld [vmem:[%s45 + $0x60] sm:$0xff]
  %v4955 = vld [vmem:[%s45 + $0x68] sm:$0xff]
  %v4956 = vld [vmem:[%s45 + $0x70] sm:$0xff]
  %v4957 = vld [vmem:[%s45 + $0x78] sm:$0xff]
  %4959 = vset.pattern.permute.xlu0 0
  %4960 = vperm.xlu0 %4959, %v4942
  %v4961 = vpop.permute.xlu0 %4960
  %4964 = vset.pattern.permute.xlu0 0
  %4965 = vperm.xlu0 %4964, %v4943
  %v4966 = vpop.permute.xlu0 %4965
  %4969 = vset.pattern.permute.xlu0 0
  %4970 = vperm.xlu0 %4969, %v4944
  %v4971 = vpop.permute.xlu0 %4970
  %4974 = vset.pattern.permute.xlu0 0
  %4975 = vperm.xlu0 %4974, %v4945
  %v4976 = vpop.permute.xlu0 %4975
  %4979 = vset.pattern.permute.xlu0 0
  %4980 = vperm.xlu0 %4979, %v4946
  %v4981 = vpop.permute.xlu0 %4980
  %4984 = vset.pattern.permute.xlu0 0
  %4985 = vperm.xlu0 %4984, %v4947
  %v4986 = vpop.permute.xlu0 %4985
  %4989 = vset.pattern.permute.xlu0 0
  %4990 = vperm.xlu0 %4989, %v4948
  %v4991 = vpop.permute.xlu0 %4990
  %4994 = vset.pattern.permute.xlu0 0
  %4995 = vperm.xlu0 %4994, %v4949
  %v4996 = vpop.permute.xlu0 %4995
  %4999 = vset.pattern.permute.xlu0 0
  %5000 = vperm.xlu0 %4999, %v4950
  %v5001 = vpop.permute.xlu0 %5000
  %5004 = vset.pattern.permute.xlu0 0
  %5005 = vperm.xlu0 %5004, %v4951
  %v5006 = vpop.permute.xlu0 %5005
  %5009 = vset.pattern.permute.xlu0 0
  %5010 = vperm.xlu0 %5009, %v4952
  %v5011 = vpop.permute.xlu0 %5010
  %5014 = vset.pattern.permute.xlu0 0
  %5015 = vperm.xlu0 %5014, %v4953
  %v5016 = vpop.permute.xlu0 %5015
  %5019 = vset.pattern.permute.xlu0 0
  %5020 = vperm.xlu0 %5019, %v4954
  %v5021 = vpop.permute.xlu0 %5020
  %5024 = vset.pattern.permute.xlu0 0
  %5025 = vperm.xlu0 %5024, %v4955
  %v5026 = vpop.permute.xlu0 %5025
  %5029 = vset.pattern.permute.xlu0 0
  %5030 = vperm.xlu0 %5029, %v4956
  %v5031 = vpop.permute.xlu0 %5030
  %5034 = vset.pattern.permute.xlu0 0
  %5035 = vperm.xlu0 %5034, %v4957
  %v5036 = vpop.permute.xlu0 %5035
  %v5038 = vadd.f32 %v4864, %v4961
  %v5039 = vadd.f32 %v4869, %v4966
  %v5040 = vadd.f32 %v4874, %v4971
  %v5041 = vadd.f32 %v4879, %v4976
  %v5042 = vadd.f32 %v4884, %v4981
  %v5043 = vadd.f32 %v4889, %v4986
  %v5044 = vadd.f32 %v4894, %v4991
  %v5045 = vadd.f32 %v4899, %v4996
  %v5046 = vadd.f32 %v4904, %v5001
  %v5047 = vadd.f32 %v4909, %v5006
  %v5048 = vadd.f32 %v4914, %v5011
  %v5049 = vadd.f32 %v4919, %v5016
  %v5050 = vadd.f32 %v4924, %v5021
  %v5051 = vadd.f32 %v4929, %v5026
  %v5052 = vadd.f32 %v4934, %v5031
  %v5053 = vadd.f32 %v4939, %v5036
  %v5054 = vmax.f32 %v5038, 0.0
  %v5055 = vmax.f32 %v5039, 0.0
  %v5056 = vmax.f32 %v5040, 0.0
  %v5057 = vmax.f32 %v5041, 0.0
  %v5058 = vmax.f32 %v5042, 0.0
  %v5059 = vmax.f32 %v5043, 0.0
  %v5060 = vmax.f32 %v5044, 0.0
  %v5061 = vmax.f32 %v5045, 0.0
  %v5062 = vmax.f32 %v5046, 0.0
  %v5063 = vmax.f32 %v5047, 0.0
  %v5064 = vmax.f32 %v5048, 0.0
  %v5065 = vmax.f32 %v5049, 0.0
  %v5066 = vmax.f32 %v5050, 0.0
  %v5067 = vmax.f32 %v5051, 0.0
  %v5068 = vmax.f32 %v5052, 0.0
  %v5069 = vmax.f32 %v5053, 0.0
  %v5070 = vld [vmem:[%s47] sm:$0xff]
  %v5071 = vld [vmem:[%s47 + $0x8] sm:$0xff]
  %v5072 = vld [vmem:[%s47 + $0x10] sm:$0xff]
  %v5073 = vld [vmem:[%s47 + $0x18] sm:$0xff]
  %v5074 = vld [vmem:[%s47 + $0x20] sm:$0xff]
  %v5075 = vld [vmem:[%s47 + $0x28] sm:$0xff]
  %v5076 = vld [vmem:[%s47 + $0x30] sm:$0xff]
  %v5077 = vld [vmem:[%s47 + $0x38] sm:$0xff]
  %v5078 = vld [vmem:[%s47 + $0x40] sm:$0xff]
  %v5079 = vld [vmem:[%s47 + $0x48] sm:$0xff]
  %v5080 = vld [vmem:[%s47 + $0x50] sm:$0xff]
  %v5081 = vld [vmem:[%s47 + $0x58] sm:$0xff]
  %v5082 = vld [vmem:[%s47 + $0x60] sm:$0xff]
  %v5083 = vld [vmem:[%s47 + $0x68] sm:$0xff]
  %v5084 = vld [vmem:[%s47 + $0x70] sm:$0xff]
  %v5085 = vld [vmem:[%s47 + $0x78] sm:$0xff]
  %v5086 = vld [vmem:[%s49] sm:$0xff]
  %v5087 = vld [vmem:[%s49 + $0x8] sm:$0xff]
  %v5088 = vld [vmem:[%s49 + $0x10] sm:$0xff]
  %v5089 = vld [vmem:[%s49 + $0x18] sm:$0xff]
  %v5090 = vld [vmem:[%s49 + $0x20] sm:$0xff]
  %v5091 = vld [vmem:[%s49 + $0x28] sm:$0xff]
  %v5092 = vld [vmem:[%s49 + $0x30] sm:$0xff]
  %v5093 = vld [vmem:[%s49 + $0x38] sm:$0xff]
  %v5094 = vld [vmem:[%s49 + $0x40] sm:$0xff]
  %v5095 = vld [vmem:[%s49 + $0x48] sm:$0xff]
  %v5096 = vld [vmem:[%s49 + $0x50] sm:$0xff]
  %v5097 = vld [vmem:[%s49 + $0x58] sm:$0xff]
  %v5098 = vld [vmem:[%s49 + $0x60] sm:$0xff]
  %v5099 = vld [vmem:[%s49 + $0x68] sm:$0xff]
  %v5100 = vld [vmem:[%s49 + $0x70] sm:$0xff]
  %v5101 = vld [vmem:[%s49 + $0x78] sm:$0xff]
  %v5102 = vsel %vm3686, %v5054, 0.0
  %5103 = vadd.xlane.f32.xlu0 %v5102
  %v5104 = vpop.xlane.xlu0 %5103
  %v5105 = vsel %vm3686, %v5055, 0.0
  %5106 = vadd.xlane.f32.xlu0 %v5105
  %v5107 = vpop.xlane.xlu0 %5106
  %v5108 = vsel %vm3686, %v5056, 0.0
  %5109 = vadd.xlane.f32.xlu0 %v5108
  %v5110 = vpop.xlane.xlu0 %5109
  %v5111 = vsel %vm3686, %v5057, 0.0
  %5112 = vadd.xlane.f32.xlu0 %v5111
  %v5113 = vpop.xlane.xlu0 %5112
  %v5114 = vsel %vm3686, %v5058, 0.0
  %5115 = vadd.xlane.f32.xlu0 %v5114
  %v5116 = vpop.xlane.xlu0 %5115
  %v5117 = vsel %vm3686, %v5059, 0.0
  %5118 = vadd.xlane.f32.xlu0 %v5117
  %v5119 = vpop.xlane.xlu0 %5118
  %v5120 = vsel %vm3686, %v5060, 0.0
  %5121 = vadd.xlane.f32.xlu0 %v5120
  %v5122 = vpop.xlane.xlu0 %5121
  %v5123 = vsel %vm3686, %v5061, 0.0
  %5124 = vadd.xlane.f32.xlu0 %v5123
  %v5125 = vpop.xlane.xlu0 %5124
  %v5126 = vsel %vm3686, %v5062, 0.0
  %5127 = vadd.xlane.f32.xlu0 %v5126
  %v5128 = vpop.xlane.xlu0 %5127
  %v5129 = vsel %vm3686, %v5063, 0.0
  %5130 = vadd.xlane.f32.xlu0 %v5129
  %v5131 = vpop.xlane.xlu0 %5130
  %v5132 = vsel %vm3686, %v5064, 0.0
  %5133 = vadd.xlane.f32.xlu0 %v5132
  %v5134 = vpop.xlane.xlu0 %5133
  %v5135 = vsel %vm3686, %v5065, 0.0
  %5136 = vadd.xlane.f32.xlu0 %v5135
  %v5137 = vpop.xlane.xlu0 %5136
  %v5138 = vsel %vm3686, %v5066, 0.0
  %5139 = vadd.xlane.f32.xlu0 %v5138
  %v5140 = vpop.xlane.xlu0 %5139
  %v5141 = vsel %vm3686, %v5067, 0.0
  %5142 = vadd.xlane.f32.xlu0 %v5141
  %v5143 = vpop.xlane.xlu0 %5142
  %v5144 = vsel %vm3686, %v5068, 0.0
  %5145 = vadd.xlane.f32.xlu0 %v5144
  %v5146 = vpop.xlane.xlu0 %5145
  %v5147 = vsel %vm3686, %v5069, 0.0
  %5148 = vadd.xlane.f32.xlu0 %v5147
  %v5149 = vpop.xlane.xlu0 %5148
  %v5150 = vrcp.pop 2.0
  %v5151 = vmul.f32 %v5104, %v5150
  %v5152 = vmul.f32 %v5107, %v5150
  %v5153 = vmul.f32 %v5110, %v5150
  %v5154 = vmul.f32 %v5113, %v5150
  %v5155 = vmul.f32 %v5116, %v5150
  %v5156 = vmul.f32 %v5119, %v5150
  %v5157 = vmul.f32 %v5122, %v5150
  %v5158 = vmul.f32 %v5125, %v5150
  %v5159 = vmul.f32 %v5128, %v5150
  %v5160 = vmul.f32 %v5131, %v5150
  %v5161 = vmul.f32 %v5134, %v5150
  %v5162 = vmul.f32 %v5137, %v5150
  %v5163 = vmul.f32 %v5140, %v5150
  %v5164 = vmul.f32 %v5143, %v5150
  %v5165 = vmul.f32 %v5146, %v5150
  %v5166 = vmul.f32 %v5149, %v5150
  %v5167 = vsub.f32 %v5054, %v5151
  %v5168 = vsub.f32 %v5055, %v5152
  %v5169 = vsub.f32 %v5056, %v5153
  %v5170 = vsub.f32 %v5057, %v5154
  %v5171 = vsub.f32 %v5058, %v5155
  %v5172 = vsub.f32 %v5059, %v5156
  %v5173 = vsub.f32 %v5060, %v5157
  %v5174 = vsub.f32 %v5061, %v5158
  %v5175 = vsub.f32 %v5062, %v5159
  %v5176 = vsub.f32 %v5063, %v5160
  %v5177 = vsub.f32 %v5064, %v5161
  %v5178 = vsub.f32 %v5065, %v5162
  %v5179 = vsub.f32 %v5066, %v5163
  %v5180 = vsub.f32 %v5067, %v5164
  %v5181 = vsub.f32 %v5068, %v5165
  %v5182 = vsub.f32 %v5069, %v5166
  %v5183 = vmul.f32 %v5167, %v5167
  %v5184 = vmul.f32 %v5168, %v5168
  %v5185 = vmul.f32 %v5169, %v5169
  %v5186 = vmul.f32 %v5170, %v5170
  %v5187 = vmul.f32 %v5171, %v5171
  %v5188 = vmul.f32 %v5172, %v5172
  %v5189 = vmul.f32 %v5173, %v5173
  %v5190 = vmul.f32 %v5174, %v5174
  %v5191 = vmul.f32 %v5175, %v5175
  %v5192 = vmul.f32 %v5176, %v5176
  %v5193 = vmul.f32 %v5177, %v5177
  %v5194 = vmul.f32 %v5178, %v5178
  %v5195 = vmul.f32 %v5179, %v5179
  %v5196 = vmul.f32 %v5180, %v5180
  %v5197 = vmul.f32 %v5181, %v5181
  %v5198 = vmul.f32 %v5182, %v5182
  %v5199 = vsel %vm3686, %v5183, 0.0
  %5200 = vadd.xlane.f32.xlu0 %v5199
  %v5201 = vpop.xlane.xlu0 %5200
  %v5202 = vsel %vm3686, %v5184, 0.0
  %5203 = vadd.xlane.f32.xlu0 %v5202
  %v5204 = vpop.xlane.xlu0 %5203
  %v5205 = vsel %vm3686, %v5185, 0.0
  %5206 = vadd.xlane.f32.xlu0 %v5205
  %v5207 = vpop.xlane.xlu0 %5206
  %v5208 = vsel %vm3686, %v5186, 0.0
  %5209 = vadd.xlane.f32.xlu0 %v5208
  %v5210 = vpop.xlane.xlu0 %5209
  %v5211 = vsel %vm3686, %v5187, 0.0
  %5212 = vadd.xlane.f32.xlu0 %v5211
  %v5213 = vpop.xlane.xlu0 %5212
  %v5214 = vsel %vm3686, %v5188, 0.0
  %5215 = vadd.xlane.f32.xlu0 %v5214
  %v5216 = vpop.xlane.xlu0 %5215
  %v5217 = vsel %vm3686, %v5189, 0.0
  %5218 = vadd.xlane.f32.xlu0 %v5217
  %v5219 = vpop.xlane.xlu0 %5218
  %v5220 = vsel %vm3686, %v5190, 0.0
  %5221 = vadd.xlane.f32.xlu0 %v5220
  %v5222 = vpop.xlane.xlu0 %5221
  %v5223 = vsel %vm3686, %v5191, 0.0
  %5224 = vadd.xlane.f32.xlu0 %v5223
  %v5225 = vpop.xlane.xlu0 %5224
  %v5226 = vsel %vm3686, %v5192, 0.0
  %5227 = vadd.xlane.f32.xlu0 %v5226
  %v5228 = vpop.xlane.xlu0 %5227
  %v5229 = vsel %vm3686, %v5193, 0.0
  %5230 = vadd.xlane.f32.xlu0 %v5229
  %v5231 = vpop.xlane.xlu0 %5230
  %v5232 = vsel %vm3686, %v5194, 0.0
  %5233 = vadd.xlane.f32.xlu0 %v5232
  %v5234 = vpop.xlane.xlu0 %5233
  %v5235 = vsel %vm3686, %v5195, 0.0
  %5236 = vadd.xlane.f32.xlu0 %v5235
  %v5237 = vpop.xlane.xlu0 %5236
  %v5238 = vsel %vm3686, %v5196, 0.0
  %5239 = vadd.xlane.f32.xlu0 %v5238
  %v5240 = vpop.xlane.xlu0 %5239
  %v5241 = vsel %vm3686, %v5197, 0.0
  %5242 = vadd.xlane.f32.xlu0 %v5241
  %v5243 = vpop.xlane.xlu0 %5242
  %v5244 = vsel %vm3686, %v5198, 0.0
  %5245 = vadd.xlane.f32.xlu0 %v5244
  %v5246 = vpop.xlane.xlu0 %5245
  %v5247 = vmul.f32 %v5201, %v5150
  %v5248 = vmul.f32 %v5204, %v5150
  %v5249 = vmul.f32 %v5207, %v5150
  %v5250 = vmul.f32 %v5210, %v5150
  %v5251 = vmul.f32 %v5213, %v5150
  %v5252 = vmul.f32 %v5216, %v5150
  %v5253 = vmul.f32 %v5219, %v5150
  %v5254 = vmul.f32 %v5222, %v5150
  %v5255 = vmul.f32 %v5225, %v5150
  %v5256 = vmul.f32 %v5228, %v5150
  %v5257 = vmul.f32 %v5231, %v5150
  %v5258 = vmul.f32 %v5234, %v5150
  %v5259 = vmul.f32 %v5237, %v5150
  %v5260 = vmul.f32 %v5240, %v5150
  %v5261 = vmul.f32 %v5243, %v5150
  %v5262 = vmul.f32 %v5246, %v5150
  %v5263 = vadd.f32 %v5247, 1e-05
  %v5264 = vadd.f32 %v5248, 1e-05
  %v5265 = vadd.f32 %v5249, 1e-05
  %v5266 = vadd.f32 %v5250, 1e-05
  %v5267 = vadd.f32 %v5251, 1e-05
  %v5268 = vadd.f32 %v5252, 1e-05
  %v5269 = vadd.f32 %v5253, 1e-05
  %v5270 = vadd.f32 %v5254, 1e-05
  %v5271 = vadd.f32 %v5255, 1e-05
  %v5272 = vadd.f32 %v5256, 1e-05
  %v5273 = vadd.f32 %v5257, 1e-05
  %v5274 = vadd.f32 %v5258, 1e-05
  %v5275 = vadd.f32 %v5259, 1e-05
  %v5276 = vadd.f32 %v5260, 1e-05
  %v5277 = vadd.f32 %v5261, 1e-05
  %v5278 = vadd.f32 %v5262, 1e-05
  %v5279 = vrsqrt.pop %v5263
  %v5280 = vrsqrt.pop %v5264
  %v5281 = vrsqrt.pop %v5265
  %v5282 = vrsqrt.pop %v5266
  %v5283 = vrsqrt.pop %v5267
  %v5284 = vrsqrt.pop %v5268
  %v5285 = vrsqrt.pop %v5269
  %v5286 = vrsqrt.pop %v5270
  %v5287 = vrsqrt.pop %v5271
  %v5288 = vrsqrt.pop %v5272
  %v5289 = vrsqrt.pop %v5273
  %v5290 = vrsqrt.pop %v5274
  %v5291 = vrsqrt.pop %v5275
  %v5292 = vrsqrt.pop %v5276
  %v5293 = vrsqrt.pop %v5277
  %v5294 = vrsqrt.pop %v5278
  %v5295 = vmul.f32 %v5167, %v5279
  %v5296 = vmul.f32 %v5168, %v5280
  %v5297 = vmul.f32 %v5169, %v5281
  %v5298 = vmul.f32 %v5170, %v5282
  %v5299 = vmul.f32 %v5171, %v5283
  %v5300 = vmul.f32 %v5172, %v5284
  %v5301 = vmul.f32 %v5173, %v5285
  %v5302 = vmul.f32 %v5174, %v5286
  %v5303 = vmul.f32 %v5175, %v5287
  %v5304 = vmul.f32 %v5176, %v5288
  %v5305 = vmul.f32 %v5177, %v5289
  %v5306 = vmul.f32 %v5178, %v5290
  %v5307 = vmul.f32 %v5179, %v5291
  %v5308 = vmul.f32 %v5180, %v5292
  %v5309 = vmul.f32 %v5181, %v5293
  %v5310 = vmul.f32 %v5182, %v5294
  %5312 = vset.pattern.permute.xlu0 0
  %5313 = vperm.xlu0 %5312, %v5070
  %v5314 = vpop.permute.xlu0 %5313
  %5317 = vset.pattern.permute.xlu0 0
  %5318 = vperm.xlu0 %5317, %v5071
  %v5319 = vpop.permute.xlu0 %5318
  %5322 = vset.pattern.permute.xlu0 0
  %5323 = vperm.xlu0 %5322, %v5072
  %v5324 = vpop.permute.xlu0 %5323
  %5327 = vset.pattern.permute.xlu0 0
  %5328 = vperm.xlu0 %5327, %v5073
  %v5329 = vpop.permute.xlu0 %5328
  %5332 = vset.pattern.permute.xlu0 0
  %5333 = vperm.xlu0 %5332, %v5074
  %v5334 = vpop.permute.xlu0 %5333
  %5337 = vset.pattern.permute.xlu0 0
  %5338 = vperm.xlu0 %5337, %v5075
  %v5339 = vpop.permute.xlu0 %5338
  %5342 = vset.pattern.permute.xlu0 0
  %5343 = vperm.xlu0 %5342, %v5076
  %v5344 = vpop.permute.xlu0 %5343
  %5347 = vset.pattern.permute.xlu0 0
  %5348 = vperm.xlu0 %5347, %v5077
  %v5349 = vpop.permute.xlu0 %5348
  %5352 = vset.pattern.permute.xlu0 0
  %5353 = vperm.xlu0 %5352, %v5078
  %v5354 = vpop.permute.xlu0 %5353
  %5357 = vset.pattern.permute.xlu0 0
  %5358 = vperm.xlu0 %5357, %v5079
  %v5359 = vpop.permute.xlu0 %5358
  %5362 = vset.pattern.permute.xlu0 0
  %5363 = vperm.xlu0 %5362, %v5080
  %v5364 = vpop.permute.xlu0 %5363
  %5367 = vset.pattern.permute.xlu0 0
  %5368 = vperm.xlu0 %5367, %v5081
  %v5369 = vpop.permute.xlu0 %5368
  %5372 = vset.pattern.permute.xlu0 0
  %5373 = vperm.xlu0 %5372, %v5082
  %v5374 = vpop.permute.xlu0 %5373
  %5377 = vset.pattern.permute.xlu0 0
  %5378 = vperm.xlu0 %5377, %v5083
  %v5379 = vpop.permute.xlu0 %5378
  %5382 = vset.pattern.permute.xlu0 0
  %5383 = vperm.xlu0 %5382, %v5084
  %v5384 = vpop.permute.xlu0 %5383
  %5387 = vset.pattern.permute.xlu0 0
  %5388 = vperm.xlu0 %5387, %v5085
  %v5389 = vpop.permute.xlu0 %5388
  %v5391 = vmul.f32 %v5295, %v5314
  %v5392 = vmul.f32 %v5296, %v5319
  %v5393 = vmul.f32 %v5297, %v5324
  %v5394 = vmul.f32 %v5298, %v5329
  %v5395 = vmul.f32 %v5299, %v5334
  %v5396 = vmul.f32 %v5300, %v5339
  %v5397 = vmul.f32 %v5301, %v5344
  %v5398 = vmul.f32 %v5302, %v5349
  %v5399 = vmul.f32 %v5303, %v5354
  %v5400 = vmul.f32 %v5304, %v5359
  %v5401 = vmul.f32 %v5305, %v5364
  %v5402 = vmul.f32 %v5306, %v5369
  %v5403 = vmul.f32 %v5307, %v5374
  %v5404 = vmul.f32 %v5308, %v5379
  %v5405 = vmul.f32 %v5309, %v5384
  %v5406 = vmul.f32 %v5310, %v5389
  %5408 = vset.pattern.permute.xlu0 0
  %5409 = vperm.xlu0 %5408, %v5086
  %v5410 = vpop.permute.xlu0 %5409
  %5413 = vset.pattern.permute.xlu0 0
  %5414 = vperm.xlu0 %5413, %v5087
  %v5415 = vpop.permute.xlu0 %5414
  %5418 = vset.pattern.permute.xlu0 0
  %5419 = vperm.xlu0 %5418, %v5088
  %v5420 = vpop.permute.xlu0 %5419
  %5423 = vset.pattern.permute.xlu0 0
  %5424 = vperm.xlu0 %5423, %v5089
  %v5425 = vpop.permute.xlu0 %5424
  %5428 = vset.pattern.permute.xlu0 0
  %5429 = vperm.xlu0 %5428, %v5090
  %v5430 = vpop.permute.xlu0 %5429
  %5433 = vset.pattern.permute.xlu0 0
  %5434 = vperm.xlu0 %5433, %v5091
  %v5435 = vpop.permute.xlu0 %5434
  %5438 = vset.pattern.permute.xlu0 0
  %5439 = vperm.xlu0 %5438, %v5092
  %v5440 = vpop.permute.xlu0 %5439
  %5443 = vset.pattern.permute.xlu0 0
  %5444 = vperm.xlu0 %5443, %v5093
  %v5445 = vpop.permute.xlu0 %5444
  %5448 = vset.pattern.permute.xlu0 0
  %5449 = vperm.xlu0 %5448, %v5094
  %v5450 = vpop.permute.xlu0 %5449
  %5453 = vset.pattern.permute.xlu0 0
  %5454 = vperm.xlu0 %5453, %v5095
  %v5455 = vpop.permute.xlu0 %5454
  %5458 = vset.pattern.permute.xlu0 0
  %5459 = vperm.xlu0 %5458, %v5096
  %v5460 = vpop.permute.xlu0 %5459
  %5463 = vset.pattern.permute.xlu0 0
  %5464 = vperm.xlu0 %5463, %v5097
  %v5465 = vpop.permute.xlu0 %5464
  %5468 = vset.pattern.permute.xlu0 0
  %5469 = vperm.xlu0 %5468, %v5098
  %v5470 = vpop.permute.xlu0 %5469
  %5473 = vset.pattern.permute.xlu0 0
  %5474 = vperm.xlu0 %5473, %v5099
  %v5475 = vpop.permute.xlu0 %5474
  %5478 = vset.pattern.permute.xlu0 0
  %5479 = vperm.xlu0 %5478, %v5100
  %v5480 = vpop.permute.xlu0 %5479
  %5483 = vset.pattern.permute.xlu0 0
  %5484 = vperm.xlu0 %5483, %v5101
  %v5485 = vpop.permute.xlu0 %5484
  %v5487 = vadd.f32 %v5391, %v5410
  %v5488 = vadd.f32 %v5392, %v5415
  %v5489 = vadd.f32 %v5393, %v5420
  %v5490 = vadd.f32 %v5394, %v5425
  %v5491 = vadd.f32 %v5395, %v5430
  %v5492 = vadd.f32 %v5396, %v5435
  %v5493 = vadd.f32 %v5397, %v5440
  %v5494 = vadd.f32 %v5398, %v5445
  %v5495 = vadd.f32 %v5399, %v5450
  %v5496 = vadd.f32 %v5400, %v5455
  %v5497 = vadd.f32 %v5401, %v5460
  %v5498 = vadd.f32 %v5402, %v5465
  %v5499 = vadd.f32 %v5403, %v5470
  %v5500 = vadd.f32 %v5404, %v5475
  %v5501 = vadd.f32 %v5405, %v5480
  %v5502 = vadd.f32 %v5406, %v5485
  %v5503 = vmax.f32 %v5487, 0.0
  %v5504 = vmax.f32 %v5488, 0.0
  %v5505 = vmax.f32 %v5489, 0.0
  %v5506 = vmax.f32 %v5490, 0.0
  %v5507 = vmax.f32 %v5491, 0.0
  %v5508 = vmax.f32 %v5492, 0.0
  %v5509 = vmax.f32 %v5493, 0.0
  %v5510 = vmax.f32 %v5494, 0.0
  %v5511 = vmax.f32 %v5495, 0.0
  %v5512 = vmax.f32 %v5496, 0.0
  %v5513 = vmax.f32 %v5497, 0.0
  %v5514 = vmax.f32 %v5498, 0.0
  %v5515 = vmax.f32 %v5499, 0.0
  %v5516 = vmax.f32 %v5500, 0.0
  %v5517 = vmax.f32 %v5501, 0.0
  %v5518 = vmax.f32 %v5502, 0.0
  %v5519 = vld [vmem:[%s51] sm:$0xff]
  %v5520 = vld [vmem:[%s51 + $0x8] sm:$0xff]
  %v5521 = vld [vmem:[%s51 + $0x10] sm:$0xff]
  %v5522 = vld [vmem:[%s51 + $0x18] sm:$0xff]
  %v5523 = vld [vmem:[%s51 + $0x20] sm:$0xff]
  %v5524 = vld [vmem:[%s51 + $0x28] sm:$0xff]
  %v5525 = vld [vmem:[%s51 + $0x30] sm:$0xff]
  %v5526 = vld [vmem:[%s51 + $0x38] sm:$0xff]
  %v5527 = vld [vmem:[%s53] sm:$0xff]
  %v5528 = vld [vmem:[%s53 + $0x8] sm:$0xff]
  %v5529 = vld [vmem:[%s53 + $0x10] sm:$0xff]
  %v5530 = vld [vmem:[%s53 + $0x18] sm:$0xff]
  %v5531 = vld [vmem:[%s53 + $0x20] sm:$0xff]
  %v5532 = vld [vmem:[%s53 + $0x28] sm:$0xff]
  %v5533 = vld [vmem:[%s53 + $0x30] sm:$0xff]
  %v5534 = vld [vmem:[%s53 + $0x38] sm:$0xff]
  %5536 = vset.pattern.permute.xlu0 0
  %5537 = vperm.xlu0 %5536, %v5527
  %v5538 = vpop.permute.xlu0 %5537
  %5541 = vset.pattern.permute.xlu0 0
  %5542 = vperm.xlu0 %5541, %v5528
  %v5543 = vpop.permute.xlu0 %5542
  %5546 = vset.pattern.permute.xlu0 0
  %5547 = vperm.xlu0 %5546, %v5529
  %v5548 = vpop.permute.xlu0 %5547
  %5551 = vset.pattern.permute.xlu0 0
  %5552 = vperm.xlu0 %5551, %v5530
  %v5553 = vpop.permute.xlu0 %5552
  %5556 = vset.pattern.permute.xlu0 0
  %5557 = vperm.xlu0 %5556, %v5531
  %v5558 = vpop.permute.xlu0 %5557
  %5561 = vset.pattern.permute.xlu0 0
  %5562 = vperm.xlu0 %5561, %v5532
  %v5563 = vpop.permute.xlu0 %5562
  %5566 = vset.pattern.permute.xlu0 0
  %5567 = vperm.xlu0 %5566, %v5533
  %v5568 = vpop.permute.xlu0 %5567
  %5571 = vset.pattern.permute.xlu0 0
  %5572 = vperm.xlu0 %5571, %v5534
  %v5573 = vpop.permute.xlu0 %5572
  %5575 = vmatprep.subr.mxu0 0.0
  %5576 = vmatpush1.msra.mxu0 %v5503
  %5577 = vmatprep.subr.mxu0 0.0
  %5578 = vmatpush1.msra.mxu0 %v5504
  %5579 = vmatprep.subr.mxu0 0.0
  %5580 = vmatpush1.msra.mxu0 %v5505
  %5581 = vmatprep.subr.mxu0 0.0
  %5582 = vmatpush1.msra.mxu0 %v5506
  %5583 = vmatprep.subr.mxu0 0.0
  %5584 = vmatpush1.msra.mxu0 %v5507
  %5585 = vmatprep.subr.mxu0 0.0
  %5586 = vmatpush1.msra.mxu0 %v5508
  %5587 = vmatprep.subr.mxu0 0.0
  %5588 = vmatpush1.msra.mxu0 %v5509
  %5589 = vmatprep.subr.mxu0 0.0
  %5590 = vmatpush1.msra.mxu0 %v5510
  %5591 = vmatprep.subr.mxu0 0.0
  %5592 = vmatpush1.msra.mxu0 %v5511
  %5593 = vmatprep.subr.mxu0 0.0
  %5594 = vmatpush1.msra.mxu0 %v5512
  %5595 = vmatprep.subr.mxu0 0.0
  %5596 = vmatpush1.msra.mxu0 %v5513
  %5597 = vmatprep.subr.mxu0 0.0
  %5598 = vmatpush1.msra.mxu0 %v5514
  %5599 = vmatprep.subr.mxu0 0.0
  %5600 = vmatpush1.msra.mxu0 %v5515
  %5601 = vmatprep.subr.mxu0 0.0
  %5602 = vmatpush1.msra.mxu0 %v5516
  %5603 = vmatprep.subr.mxu0 0.0
  %5604 = vmatpush1.msra.mxu0 %v5517
  %5605 = vmatprep.subr.mxu0 0.0
  %5606 = vmatpush1.msra.mxu0 %v5518
  %5607 = vmatprep.subr.mxu0 0.0
  %5608 = vmatpush1.msra.mxu0 0.0
  %5609 = vmatprep.subr.mxu0 0.0
  %5610 = vmatpush1.msra.mxu0 0.0
  %5611 = vmatprep.subr.mxu0 0.0
  %5612 = vmatpush1.msra.mxu0 0.0
  %5613 = vmatprep.subr.mxu0 0.0
  %5614 = vmatpush1.msra.mxu0 0.0
  %5615 = vmatprep.subr.mxu0 0.0
  %5616 = vmatpush1.msra.mxu0 0.0
  %5617 = vmatprep.subr.mxu0 0.0
  %5618 = vmatpush1.msra.mxu0 0.0
  %5619 = vmatprep.subr.mxu0 0.0
  %5620 = vmatpush1.msra.mxu0 0.0
  %5621 = vmatprep.subr.mxu0 0.0
  %5622 = vmatpush1.msra.mxu0 0.0
  %5623 = vmatprep.subr.mxu0 0.0
  %5624 = vmatpush1.msra.mxu0 0.0
  %5625 = vmatprep.subr.mxu0 0.0
  %5626 = vmatpush1.msra.mxu0 0.0
  %5627 = vmatprep.subr.mxu0 0.0
  %5628 = vmatpush1.msra.mxu0 0.0
  %5629 = vmatprep.subr.mxu0 0.0
  %5630 = vmatpush1.msra.mxu0 0.0
  %5631 = vmatprep.subr.mxu0 0.0
  %5632 = vmatpush1.msra.mxu0 0.0
  %5633 = vmatprep.subr.mxu0 0.0
  %5634 = vmatpush1.msra.mxu0 0.0
  %5635 = vmatprep.subr.mxu0 0.0
  %5636 = vmatpush1.msra.mxu0 0.0
  %5637 = vmatprep.subr.mxu0 0.0
  %5638 = vmatpush1.msra.mxu0 0.0
  %5639 = vmatprep.mubr.f32.mxu0 0.0
  %5640 = vmatmul.mubr.f32.gmra.mrb[0].mxu0 %v5519
  %v5641 = vpop.f32.mrb[0].mxu0
  %v5642 = vadd.f32 %v5538, %v5641
  %v5643 = vpop.f32.mrb[0].mxu0
  %5644 = vmatprep.mubr.f32.mxu0 0.0
  %5645 = vmatmul.mubr.f32.gmra.mrb[0].mxu0 %v5520
  %v5646 = vpop.f32.mrb[0].mxu0
  %v5647 = vadd.f32 %v5543, %v5646
  %v5648 = vpop.f32.mrb[0].mxu0
  %5649 = vmatprep.mubr.f32.mxu0 0.0
  %5650 = vmatmul.mubr.f32.gmra.mrb[0].mxu0 %v5521
  %v5651 = vpop.f32.mrb[0].mxu0
  %v5652 = vadd.f32 %v5548, %v5651
  %v5653 = vpop.f32.mrb[0].mxu0
  %5654 = vmatprep.mubr.f32.mxu0 0.0
  %5655 = vmatmul.mubr.f32.gmra.mrb[0].mxu0 %v5522
  %v5656 = vpop.f32.mrb[0].mxu0
  %v5657 = vadd.f32 %v5553, %v5656
  %v5658 = vpop.f32.mrb[0].mxu0
  %5659 = vmatprep.mubr.f32.mxu0 0.0
  %5660 = vmatmul.mubr.f32.gmra.mrb[0].mxu0 %v5523
  %v5661 = vpop.f32.mrb[0].mxu0
  %v5662 = vadd.f32 %v5558, %v5661
  %v5663 = vpop.f32.mrb[0].mxu0
  %5664 = vmatprep.mubr.f32.mxu0 0.0
  %5665 = vmatmul.mubr.f32.gmra.mrb[0].mxu0 %v5524
  %v5666 = vpop.f32.mrb[0].mxu0
  %v5667 = vadd.f32 %v5563, %v5666
  %v5668 = vpop.f32.mrb[0].mxu0
  %5669 = vmatprep.mubr.f32.mxu0 0.0
  %5670 = vmatmul.mubr.f32.gmra.mrb[0].mxu0 %v5525
  %v5671 = vpop.f32.mrb[0].mxu0
  %v5672 = vadd.f32 %v5568, %v5671
  %v5673 = vpop.f32.mrb[0].mxu0
  %5674 = vmatprep.mubr.f32.mxu0 0.0
  %5675 = vmatmul.mubr.f32.gmra.mrb[0].mxu0 %v5526
  %v5676 = vpop.f32.mrb[0].mxu0
  %v5677 = vadd.f32 %v5573, %v5676
  %v5678 = vpop.f32.mrb[0].mxu0
  %5679 = vdwg.mxu0
  %v5680 = vmax.f32 %v5642, 0.0
  %v5681 = vmax.f32 %v5647, 0.0
  %v5682 = vmax.f32 %v5652, 0.0
  %v5683 = vmax.f32 %v5657, 0.0
  %v5684 = vmax.f32 %v5662, 0.0
  %v5685 = vmax.f32 %v5667, 0.0
  %v5686 = vmax.f32 %v5672, 0.0
  %v5687 = vmax.f32 %v5677, 0.0
  %v5688 = vld [vmem:[%s55] sm:$0xff]
  %v5689 = vld [vmem:[%s55 + $0x8] sm:$0xff]
  %v5690 = vld [vmem:[%s55 + $0x10] sm:$0xff]
  %v5691 = vld [vmem:[%s55 + $0x18] sm:$0xff]
  %v5692 = vld [vmem:[%s55 + $0x20] sm:$0xff]
  %v5693 = vld [vmem:[%s55 + $0x28] sm:$0xff]
  %v5694 = vld [vmem:[%s55 + $0x30] sm:$0xff]
  %v5695 = vld [vmem:[%s55 + $0x38] sm:$0xff]
  %v5696 = vld [vmem:[%s57] sm:$0xff]
  %v5697 = vld [vmem:[%s57 + $0x8] sm:$0xff]
  %v5698 = vld [vmem:[%s57 + $0x10] sm:$0xff]
  %v5699 = vld [vmem:[%s57 + $0x18] sm:$0xff]
  %v5700 = vld [vmem:[%s57 + $0x20] sm:$0xff]
  %v5701 = vld [vmem:[%s57 + $0x28] sm:$0xff]
  %v5702 = vld [vmem:[%s57 + $0x30] sm:$0xff]
  %v5703 = vld [vmem:[%s57 + $0x38] sm:$0xff]
  %v5704 = vsel %vm3686, %v5680, 0.0
  %5705 = vadd.xlane.f32.xlu0 %v5704
  %v5706 = vpop.xlane.xlu0 %5705
  %v5707 = vsel %vm3686, %v5681, 0.0
  %5708 = vadd.xlane.f32.xlu0 %v5707
  %v5709 = vpop.xlane.xlu0 %5708
  %v5710 = vsel %vm3686, %v5682, 0.0
  %5711 = vadd.xlane.f32.xlu0 %v5710
  %v5712 = vpop.xlane.xlu0 %5711
  %v5713 = vsel %vm3686, %v5683, 0.0
  %5714 = vadd.xlane.f32.xlu0 %v5713
  %v5715 = vpop.xlane.xlu0 %5714
  %v5716 = vsel %vm3686, %v5684, 0.0
  %5717 = vadd.xlane.f32.xlu0 %v5716
  %v5718 = vpop.xlane.xlu0 %5717
  %v5719 = vsel %vm3686, %v5685, 0.0
  %5720 = vadd.xlane.f32.xlu0 %v5719
  %v5721 = vpop.xlane.xlu0 %5720
  %v5722 = vsel %vm3686, %v5686, 0.0
  %5723 = vadd.xlane.f32.xlu0 %v5722
  %v5724 = vpop.xlane.xlu0 %5723
  %v5725 = vsel %vm3686, %v5687, 0.0
  %5726 = vadd.xlane.f32.xlu0 %v5725
  %v5727 = vpop.xlane.xlu0 %5726
  %v5728 = vmul.f32 %v5706, %v5150
  %v5729 = vmul.f32 %v5709, %v5150
  %v5730 = vmul.f32 %v5712, %v5150
  %v5731 = vmul.f32 %v5715, %v5150
  %v5732 = vmul.f32 %v5718, %v5150
  %v5733 = vmul.f32 %v5721, %v5150
  %v5734 = vmul.f32 %v5724, %v5150
  %v5735 = vmul.f32 %v5727, %v5150
  %v5736 = vsub.f32 %v5680, %v5728
  %v5737 = vsub.f32 %v5681, %v5729
  %v5738 = vsub.f32 %v5682, %v5730
  %v5739 = vsub.f32 %v5683, %v5731
  %v5740 = vsub.f32 %v5684, %v5732
  %v5741 = vsub.f32 %v5685, %v5733
  %v5742 = vsub.f32 %v5686, %v5734
  %v5743 = vsub.f32 %v5687, %v5735
  %v5744 = vmul.f32 %v5736, %v5736
  %v5745 = vmul.f32 %v5737, %v5737
  %v5746 = vmul.f32 %v5738, %v5738
  %v5747 = vmul.f32 %v5739, %v5739
  %v5748 = vmul.f32 %v5740, %v5740
  %v5749 = vmul.f32 %v5741, %v5741
  %v5750 = vmul.f32 %v5742, %v5742
  %v5751 = vmul.f32 %v5743, %v5743
  %v5752 = vsel %vm3686, %v5744, 0.0
  %5753 = vadd.xlane.f32.xlu0 %v5752
  %v5754 = vpop.xlane.xlu0 %5753
  %v5755 = vsel %vm3686, %v5745, 0.0
  %5756 = vadd.xlane.f32.xlu0 %v5755
  %v5757 = vpop.xlane.xlu0 %5756
  %v5758 = vsel %vm3686, %v5746, 0.0
  %5759 = vadd.xlane.f32.xlu0 %v5758
  %v5760 = vpop.xlane.xlu0 %5759
  %v5761 = vsel %vm3686, %v5747, 0.0
  %5762 = vadd.xlane.f32.xlu0 %v5761
  %v5763 = vpop.xlane.xlu0 %5762
  %v5764 = vsel %vm3686, %v5748, 0.0
  %5765 = vadd.xlane.f32.xlu0 %v5764
  %v5766 = vpop.xlane.xlu0 %5765
  %v5767 = vsel %vm3686, %v5749, 0.0
  %5768 = vadd.xlane.f32.xlu0 %v5767
  %v5769 = vpop.xlane.xlu0 %5768
  %v5770 = vsel %vm3686, %v5750, 0.0
  %5771 = vadd.xlane.f32.xlu0 %v5770
  %v5772 = vpop.xlane.xlu0 %5771
  %v5773 = vsel %vm3686, %v5751, 0.0
  %5774 = vadd.xlane.f32.xlu0 %v5773
  %v5775 = vpop.xlane.xlu0 %5774
  %v5776 = vmul.f32 %v5754, %v5150
  %v5777 = vmul.f32 %v5757, %v5150
  %v5778 = vmul.f32 %v5760, %v5150
  %v5779 = vmul.f32 %v5763, %v5150
  %v5780 = vmul.f32 %v5766, %v5150
  %v5781 = vmul.f32 %v5769, %v5150
  %v5782 = vmul.f32 %v5772, %v5150
  %v5783 = vmul.f32 %v5775, %v5150
  %v5784 = vadd.f32 %v5776, 1e-05
  %v5785 = vadd.f32 %v5777, 1e-05
  %v5786 = vadd.f32 %v5778, 1e-05
  %v5787 = vadd.f32 %v5779, 1e-05
  %v5788 = vadd.f32 %v5780, 1e-05
  %v5789 = vadd.f32 %v5781, 1e-05
  %v5790 = vadd.f32 %v5782, 1e-05
  %v5791 = vadd.f32 %v5783, 1e-05
  %v5792 = vrsqrt.pop %v5784
  %v5793 = vrsqrt.pop %v5785
  %v5794 = vrsqrt.pop %v5786
  %v5795 = vrsqrt.pop %v5787
  %v5796 = vrsqrt.pop %v5788
  %v5797 = vrsqrt.pop %v5789
  %v5798 = vrsqrt.pop %v5790
  %v5799 = vrsqrt.pop %v5791
  %v5800 = vmul.f32 %v5736, %v5792
  %v5801 = vmul.f32 %v5737, %v5793
  %v5802 = vmul.f32 %v5738, %v5794
  %v5803 = vmul.f32 %v5739, %v5795
  %v5804 = vmul.f32 %v5740, %v5796
  %v5805 = vmul.f32 %v5741, %v5797
  %v5806 = vmul.f32 %v5742, %v5798
  %v5807 = vmul.f32 %v5743, %v5799
  %5809 = vset.pattern.permute.xlu0 0
  %5810 = vperm.xlu0 %5809, %v5688
  %v5811 = vpop.permute.xlu0 %5810
  %5814 = vset.pattern.permute.xlu0 0
  %5815 = vperm.xlu0 %5814, %v5689
  %v5816 = vpop.permute.xlu0 %5815
  %5819 = vset.pattern.permute.xlu0 0
  %5820 = vperm.xlu0 %5819, %v5690
  %v5821 = vpop.permute.xlu0 %5820
  %5824 = vset.pattern.permute.xlu0 0
  %5825 = vperm.xlu0 %5824, %v5691
  %v5826 = vpop.permute.xlu0 %5825
  %5829 = vset.pattern.permute.xlu0 0
  %5830 = vperm.xlu0 %5829, %v5692
  %v5831 = vpop.permute.xlu0 %5830
  %5834 = vset.pattern.permute.xlu0 0
  %5835 = vperm.xlu0 %5834, %v5693
  %v5836 = vpop.permute.xlu0 %5835
  %5839 = vset.pattern.permute.xlu0 0
  %5840 = vperm.xlu0 %5839, %v5694
  %v5841 = vpop.permute.xlu0 %5840
  %5844 = vset.pattern.permute.xlu0 0
  %5845 = vperm.xlu0 %5844, %v5695
  %v5846 = vpop.permute.xlu0 %5845
  %v5848 = vmul.f32 %v5800, %v5811
  %v5849 = vmul.f32 %v5801, %v5816
  %v5850 = vmul.f32 %v5802, %v5821
  %v5851 = vmul.f32 %v5803, %v5826
  %v5852 = vmul.f32 %v5804, %v5831
  %v5853 = vmul.f32 %v5805, %v5836
  %v5854 = vmul.f32 %v5806, %v5841
  %v5855 = vmul.f32 %v5807, %v5846
  %5857 = vset.pattern.permute.xlu0 0
  %5858 = vperm.xlu0 %5857, %v5696
  %v5859 = vpop.permute.xlu0 %5858
  %5862 = vset.pattern.permute.xlu0 0
  %5863 = vperm.xlu0 %5862, %v5697
  %v5864 = vpop.permute.xlu0 %5863
  %5867 = vset.pattern.permute.xlu0 0
  %5868 = vperm.xlu0 %5867, %v5698
  %v5869 = vpop.permute.xlu0 %5868
  %5872 = vset.pattern.permute.xlu0 0
  %5873 = vperm.xlu0 %5872, %v5699
  %v5874 = vpop.permute.xlu0 %5873
  %5877 = vset.pattern.permute.xlu0 0
  %5878 = vperm.xlu0 %5877, %v5700
  %v5879 = vpop.permute.xlu0 %5878
  %5882 = vset.pattern.permute.xlu0 0
  %5883 = vperm.xlu0 %5882, %v5701
  %v5884 = vpop.permute.xlu0 %5883
  %5887 = vset.pattern.permute.xlu0 0
  %5888 = vperm.xlu0 %5887, %v5702
  %v5889 = vpop.permute.xlu0 %5888
  %5892 = vset.pattern.permute.xlu0 0
  %5893 = vperm.xlu0 %5892, %v5703
  %v5894 = vpop.permute.xlu0 %5893
  %v5896 = vadd.f32 %v5848, %v5859
  %v5897 = vadd.f32 %v5849, %v5864
  %v5898 = vadd.f32 %v5850, %v5869
  %v5899 = vadd.f32 %v5851, %v5874
  %v5900 = vadd.f32 %v5852, %v5879
  %v5901 = vadd.f32 %v5853, %v5884
  %v5902 = vadd.f32 %v5854, %v5889
  %v5903 = vadd.f32 %v5855, %v5894
  %v5904 = vmax.f32 %v5896, 0.0
  %v5905 = vmax.f32 %v5897, 0.0
  %v5906 = vmax.f32 %v5898, 0.0
  %v5907 = vmax.f32 %v5899, 0.0
  %v5908 = vmax.f32 %v5900, 0.0
  %v5909 = vmax.f32 %v5901, 0.0
  %v5910 = vmax.f32 %v5902, 0.0
  %v5911 = vmax.f32 %v5903, 0.0
  %v5912 = vld [vmem:[%s59] sm:$0x1f]
  %v5913 = vld [vmem:[%s61] sm:$0x1f]
  %5915 = vset.pattern.permute.xlu0 0
  %5916 = vperm.xlu0 %5915, %v5913
  %v5917 = vpop.permute.xlu0 %5916
  %v5920 = vsel %vm1873, %v5912, 0
  %5922 = vmatprep.subr.mxu0 0.0
  %5923 = vmatpush1.msra.mxu0 %v5904
  %5924 = vmatprep.subr.mxu0 0.0
  %5925 = vmatpush1.msra.mxu0 %v5905
  %5926 = vmatprep.subr.mxu0 0.0
  %5927 = vmatpush1.msra.mxu0 %v5906
  %5928 = vmatprep.subr.mxu0 0.0
  %5929 = vmatpush1.msra.mxu0 %v5907
  %5930 = vmatprep.subr.mxu0 0.0
  %5931 = vmatpush1.msra.mxu0 %v5908
  %5932 = vmatprep.subr.mxu0 0.0
  %5933 = vmatpush1.msra.mxu0 %v5909
  %5934 = vmatprep.subr.mxu0 0.0
  %5935 = vmatpush1.msra.mxu0 %v5910
  %5936 = vmatprep.subr.mxu0 0.0
  %5937 = vmatpush1.msra.mxu0 %v5911
  %5938 = vmatprep.subr.mxu0 0.0
  %5939 = vmatpush1.msra.mxu0 0.0
  %5940 = vmatprep.subr.mxu0 0.0
  %5941 = vmatpush1.msra.mxu0 0.0
  %5942 = vmatprep.subr.mxu0 0.0
  %5943 = vmatpush1.msra.mxu0 0.0
  %5944 = vmatprep.subr.mxu0 0.0
  %5945 = vmatpush1.msra.mxu0 0.0
  %5946 = vmatprep.subr.mxu0 0.0
  %5947 = vmatpush1.msra.mxu0 0.0
  %5948 = vmatprep.subr.mxu0 0.0
  %5949 = vmatpush1.msra.mxu0 0.0
  %5950 = vmatprep.subr.mxu0 0.0
  %5951 = vmatpush1.msra.mxu0 0.0
  %5952 = vmatprep.subr.mxu0 0.0
  %5953 = vmatpush1.msra.mxu0 0.0
  %5954 = vmatprep.subr.mxu0 0.0
  %5955 = vmatpush1.msra.mxu0 0.0
  %5956 = vmatprep.subr.mxu0 0.0
  %5957 = vmatpush1.msra.mxu0 0.0
  %5958 = vmatprep.subr.mxu0 0.0
  %5959 = vmatpush1.msra.mxu0 0.0
  %5960 = vmatprep.subr.mxu0 0.0
  %5961 = vmatpush1.msra.mxu0 0.0
  %5962 = vmatprep.subr.mxu0 0.0
  %5963 = vmatpush1.msra.mxu0 0.0
  %5964 = vmatprep.subr.mxu0 0.0
  %5965 = vmatpush1.msra.mxu0 0.0
  %5966 = vmatprep.subr.mxu0 0.0
  %5967 = vmatpush1.msra.mxu0 0.0
  %5968 = vmatprep.subr.mxu0 0.0
  %5969 = vmatpush1.msra.mxu0 0.0
  %5970 = vmatprep.subr.mxu0 0.0
  %5971 = vmatpush1.msra.mxu0 0.0
  %5972 = vmatprep.subr.mxu0 0.0
  %5973 = vmatpush1.msra.mxu0 0.0
  %5974 = vmatprep.subr.mxu0 0.0
  %5975 = vmatpush1.msra.mxu0 0.0
  %5976 = vmatprep.subr.mxu0 0.0
  %5977 = vmatpush1.msra.mxu0 0.0
  %5978 = vmatprep.subr.mxu0 0.0
  %5979 = vmatpush1.msra.mxu0 0.0
  %5980 = vmatprep.subr.mxu0 0.0
  %5981 = vmatpush1.msra.mxu0 0.0
  %5982 = vmatprep.subr.mxu0 0.0
  %5983 = vmatpush1.msra.mxu0 0.0
  %5984 = vmatprep.subr.mxu0 0.0
  %5985 = vmatpush1.msra.mxu0 0.0
  %5986 = vmatprep.mubr.f32.mxu0 0.0
  %5987 = vmatmul.mubr.f32.gmra.mrb[0].mxu0 %v5920
  %v5988 = vpop.f32.mrb[0].mxu0
  %v5989 = vadd.f32 %v5917, %v5988
  %v5990 = vpop.f32.mrb[0].mxu0
  %5991 = vdwg.mxu0
  %vm5992 = vcmask 12288
  %5993 = vst.msk [vmem:[%s63] sm:$0x1f] %vm5992, %v5989
  // Predicated region
  $region126: #{forward.1} parent=0 // pred_check
    _
  $region127: #{forward.1} parent=0 // pred_check_branch
    %5995 = sbr.rel (0) target = $region129
  $region128: #{forward.1} parent=0 // pred_region
    _
  $region129: #{forward.1} parent=0 // pred_fallthru
    _
  // Predicated region
  $region130: #{forward.1} parent=0 // pred_check
    _
  $region131: #{forward.1} parent=0 // pred_check_branch
    %5997 = sbr.rel (0) target = $region133
  $region132: #{forward.1} parent=0 // pred_region
    _
  $region133: #{forward.1} parent=0 // pred_fallthru
    _

</llo_original>
